<compile_context>
chip_gen: v7x
topology: tpu7x:2x2x1
jax: 0.10.0
libtpu: 0.0.40
codegen_flags: <defaults>
</compile_context>

<pallas_src>
import functools

import jax
import jax.numpy as jnp
from jax import lax
from jax.experimental import pallas as pl
from jax.experimental.pallas import tpu as pltpu

LANE = 128          # TPU lane width; every channel dimension is padded to a multiple of this.
BN_EPS = 1e-5       # PyTorch BatchNorm1d default eps.


# ------------------------------ small helpers ------------------------------- #

def _round_up(n, m):
    return (n + m - 1) // m * m


def _pad_axis(a, axis, multiple=LANE):
    """Zero-pad `axis` of `a` up to the next multiple of `multiple`."""
    size = a.shape[axis]
    pad = _round_up(size, multiple) - size
    if pad == 0:
        return a
    cfg = [(0, 0)] * a.ndim
    cfg[axis] = (0, pad)
    return jnp.pad(a, cfg)


# ------------------------------ Pallas kernels ------------------------------ #

def _conv_bn_kernel(*refs, ksize, stride, n_phase, has_residual, relu,
                    n_batch, l_out):
    """Fused Conv1d + BatchNorm1d(batch stats) [+ residual] [+ ReLU].

    refs = (x_phase_0, ..., x_phase_{n_phase-1}, w, b, gamma, beta, [residual], out)
      x_phase_p : (N, L_p, Cin_pad)   phase-p slice of the zero-padded input
      w         : (K, Cin_pad, Cout_tile)
      b / gamma / beta : (1, Cout_tile)
      residual  : (N, L_out, Cout_tile)   (only present when has_residual)
      out       : (N, L_out, Cout_tile)
    """
    i = 0
    x_refs = refs[i:i + n_phase]; i += n_phase
    w_ref = refs[i]; i += 1
    b_ref = refs[i]; i += 1
    g_ref = refs[i]; i += 1
    be_ref = refs[i]; i += 1
    r_ref = refs[i] if has_residual else None
    i += 1 if has_residual else 0
    o_ref = refs[i]

    m = n_batch * l_out
    cout = o_ref.shape[-1]
    x_vals = [r[...] for r in x_refs]

    # Conv1d as K accumulated MXU matmuls over statically shifted input slices
    # (default MXU precision, f32 accumulation).
    acc = jnp.zeros((m, cout), jnp.float32)
    for k in range(ksize):
        ph, off = k % stride, k // stride
        xk = x_vals[ph][:, off:off + l_out, :].reshape(m, -1)
        acc = acc + jnp.dot(xk, w_ref[k], preferred_element_type=jnp.float32)
    y = acc + b_ref[...]

    # Training-mode BatchNorm1d: per-channel batch stats over (N, L) == axis 0 here.
    mean = jnp.mean(y, axis=0, keepdims=True)
    var = jnp.mean((y - mean) ** 2, axis=0, keepdims=True)
    y = (y - mean) * lax.rsqrt(var + BN_EPS) * g_ref[...] + be_ref[...]

    if has_residual:
        y = y + r_ref[...].reshape(m, cout)
    if relu:
        y = jnp.maximum(y, 0.0)
    o_ref[...] = y.reshape(n_batch, l_out, cout)


def _maxpool_kernel(xe_ref, xo_ref, o_ref, *, l_out):
    # kernel=3, stride=2, padding=1 (wrapper pads with -inf and phase-splits):
    # out[l] = max(xp[2l], xp[2l+1], xp[2l+2]) = max(xe[l], xo[l], xe[l+1])
    xe = xe_ref[...]
    xo = xo_ref[...]
    o_ref[...] = jnp.maximum(jnp.maximum(xe[:, 0:l_out, :], xo[:, 0:l_out, :]),
                             xe[:, 1:1 + l_out, :])


def _pool_fc_kernel(x_ref, w_ref, b_ref, o_ref):
    pooled = jnp.mean(x_ref[...], axis=1)                        # (N, C_pad)
    o_ref[...] = (jnp.dot(pooled, w_ref[...],
                          preferred_element_type=jnp.float32)
                  + b_ref[...])


# ------------------------------- op wrappers -------------------------------- #

def conv_bn_act(x, w, b, gamma, beta, *, stride, padding,
                residual=None, relu=True):
    """Fused Conv1d+BN(+res)(+ReLU).  x: (N, L, Cin_pad) channel-last;
    w: (K, Cin_pad, Cout_pad); b/gamma/beta: (1, Cout_pad).  Returns (N, L_out, Cout_pad)."""
    n, l, cin_p = x.shape
    ksize, _, cout_p = w.shape
    l_out = (l + 2 * padding - ksize) // stride + 1

    xp = jnp.pad(x, ((0, 0), (padding, padding), (0, 0))) if padding else x
    # Cheap XLA strided slices (not gathers): split L into `stride` phases so the
    # kernel only needs static contiguous slices per tap.
    n_phase = min(stride, ksize)
    phases = [xp[:, p::stride, :] for p in range(n_phase)]

    has_res = residual is not None
    kernel = functools.partial(
        _conv_bn_kernel, ksize=ksize, stride=stride, n_phase=n_phase,
        has_residual=has_res, relu=relu, n_batch=n, l_out=l_out)

    in_specs = [pl.BlockSpec(p.shape, lambda j: (0, 0, 0)) for p in phases]
    in_specs += [
        pl.BlockSpec((ksize, cin_p, LANE), lambda j: (0, 0, j)),   # weights
        pl.BlockSpec((1, LANE), lambda j: (0, j)),                 # bias
        pl.BlockSpec((1, LANE), lambda j: (0, j)),                 # gamma
        pl.BlockSpec((1, LANE), lambda j: (0, j)),                 # beta
    ]
    args = list(phases) + [w, b, gamma, beta]
    if has_res:
        in_specs.append(pl.BlockSpec((n, l_out, LANE), lambda j: (0, 0, j)))
        args.append(residual)

    return pl.pallas_call(
        kernel,
        out_shape=jax.ShapeDtypeStruct((n, l_out, cout_p), jnp.float32),
        grid=(cout_p // LANE,),
        in_specs=in_specs,
        out_specs=pl.BlockSpec((n, l_out, LANE), lambda j: (0, 0, j)),
        compiler_params=pltpu.CompilerParams(
            dimension_semantics=("parallel",)),
    )(*args)


def maxpool1d(x, ksize=3, stride=2, padding=1):
    """MaxPool1d(kernel=3, stride=2, padding=1) on channel-last (N, L, C_pad)."""
    n, l, c = x.shape
    l_out = (l + 2 * padding - ksize) // stride + 1
    xp = jnp.pad(x, ((0, 0), (padding, padding), (0, 0)),
                 constant_values=-jnp.inf)
    xe, xo = xp[:, 0::2, :], xp[:, 1::2, :]
    kernel = functools.partial(_maxpool_kernel, l_out=l_out)
    return pl.pallas_call(
        kernel,
        out_shape=jax.ShapeDtypeStruct((n, l_out, c), jnp.float32),
        grid=(c // LANE,),
        in_specs=[pl.BlockSpec((n, xe.shape[1], LANE), lambda j: (0, 0, j)),
                  pl.BlockSpec((n, xo.shape[1], LANE), lambda j: (0, 0, j))],
        out_specs=pl.BlockSpec((n, l_out, LANE), lambda j: (0, 0, j)),
        compiler_params=pltpu.CompilerParams(
            dimension_semantics=("parallel",)),
    )(xe, xo)


def pool_fc(x, w, b):
    """AdaptiveAvgPool1d(1) over L then Linear.  x: (N, L, C_pad);
    w: (C_pad, n_class_pad); b: (1, n_class_pad)."""
    n, l, c = x.shape
    ncp = w.shape[1]
    return pl.pallas_call(
        _pool_fc_kernel,
        out_shape=jax.ShapeDtypeStruct((n, ncp), jnp.float32),
        grid=(ncp // LANE,),
        in_specs=[pl.BlockSpec((n, l, c), lambda j: (0, 0, 0)),
                  pl.BlockSpec((c, LANE), lambda j: (0, j)),
                  pl.BlockSpec((1, LANE), lambda j: (0, j))],
        out_specs=pl.BlockSpec((n, LANE), lambda j: (0, j)),
        compiler_params=pltpu.CompilerParams(
            dimension_semantics=("parallel",)),
    )(x, w, b)


# -------------------------- parameters & packing ----------------------------- #

def init_params(key, in_channels, layers, n_class, config):
    """Natural (PyTorch-layout) synthetic parameters."""
    keys = iter(jax.random.split(key, 256))

    def conv_p(cin, cout, k):
        scale = 1.0 / jnp.sqrt(jnp.float32(cin * k))
        w = jax.random.normal(next(keys), (cout, cin, k), jnp.float32) * scale
        b = jax.random.normal(next(keys), (cout,), jnp.float32) * 0.05
        return w, b

    def bn_p(c):
        return jnp.ones((c,), jnp.float32), jnp.zeros((c,), jnp.float32)

    def block_p(cin, cout, down):
        p = {}
        p["w1"], p["b1"] = conv_p(cin, cout, 3)
        p["g1"], p["beta1"] = bn_p(cout)
        p["w2"], p["b2"] = conv_p(cout, cout, 3)
        p["g2"], p["beta2"] = bn_p(cout)
        if down:   # downsample block carries the 1x1 stride-2 residual branch
            p["res_w"], p["res_b"] = conv_p(cin, cout, 1)
            p["res_g"], p["res_beta"] = bn_p(cout)
        return p

    params = {}
    params["conv1_w"], params["conv1_b"] = conv_p(in_channels, layers[0], 7)
    params["bn1_g"], params["bn1_b"] = bn_p(layers[0])

    stage_io = [(layers[0], layers[0], False),
                (layers[0], layers[1], True),
                (layers[1], layers[2], True),
                (layers[2], layers[3], True)]
    stages = []
    for (cin, cout, down), num_l in zip(stage_io, config):
        blocks = [block_p(cin, cout, down)]
        for _ in range(1, num_l):
            blocks.append(block_p(cout, cout, False))
        stages.append({"blocks": blocks})
    params["stages"] = stages

    params["fc_w"] = (jax.random.normal(next(keys), (layers[3], n_class),
                                        jnp.float32)
                      * (1.0 / jnp.sqrt(jnp.float32(layers[3]))))
    params["fc_b"] = jax.random.normal(next(keys), (n_class,),
                                       jnp.float32) * 0.05
    return params


def pack_params(params):
    """Repack natural parameters into lane-padded, kernel-friendly layouts (done once,
    outside the per-call hot path)."""
    def pack_conv(w, b):
        # (Cout, Cin, K) -> (K, Cin_pad, Cout_pad);  bias -> (1, Cout_pad)
        wt = jnp.transpose(w, (2, 1, 0))
        wt = _pad_axis(_pad_axis(wt, 2), 1)
        return wt, _pad_axis(b, 0).reshape(1, -1)

    def pack_vec(v):
        return _pad_axis(v, 0).reshape(1, -1)

    pk = {}
    pk["conv1_w"], pk["conv1_b"] = pack_conv(params["conv1_w"], params["conv1_b"])
    pk["bn1_g"], pk["bn1_b"] = pack_vec(params["bn1_g"]), pack_vec(params["bn1_b"])

    stages = []
    for st in params["stages"]:
        blocks = []
        for blk in st["blocks"]:
            pb = {}
            pb["w1"], pb["b1"] = pack_conv(blk["w1"], blk["b1"])
            pb["g1"], pb["beta1"] = pack_vec(blk["g1"]), pack_vec(blk["beta1"])
            pb["w2"], pb["b2"] = pack_conv(blk["w2"], blk["b2"])
            pb["g2"], pb["beta2"] = pack_vec(blk["g2"]), pack_vec(blk["beta2"])
            if "res_w" in blk:
                pb["res_w"], pb["res_b"] = pack_conv(blk["res_w"], blk["res_b"])
                pb["res_g"] = pack_vec(blk["res_g"])
                pb["res_beta"] = pack_vec(blk["res_beta"])
            blocks.append(pb)
        stages.append({"blocks": blocks})
    pk["stages"] = stages

    pk["fc_w"] = _pad_axis(_pad_axis(params["fc_w"], 1), 0)
    pk["fc_b"] = pack_vec(params["fc_b"])
    return pk


# ------------------------------ Pallas forward ------------------------------- #

def resnet1d_forward_pallas(x, pk, n_class):
    # NCL -> NLC once at the network entry; pad channels to the lane width.
    h = _pad_axis(jnp.transpose(x, (0, 2, 1)), 2)
    h = conv_bn_act(h, pk["conv1_w"], pk["conv1_b"], pk["bn1_g"], pk["bn1_b"],
                    stride=2, padding=3, relu=True)
    h = maxpool1d(h)
    for st in pk["stages"]:
        for blk in st["blocks"]:
            down = "res_w" in blk
            if down:
                identity = conv_bn_act(
                    h, blk["res_w"], blk["res_b"], blk["res_g"],
                    blk["res_beta"], stride=2, padding=0, relu=False)
            else:
                identity = h
            y = conv_bn_act(h, blk["w1"], blk["b1"], blk["g1"], blk["beta1"],
                            stride=2 if down else 1, padding=1, relu=True)
            h = conv_bn_act(y, blk["w2"], blk["b2"], blk["g2"], blk["beta2"],
                            stride=1, padding=1, residual=identity, relu=True)
    logits = pool_fc(h, pk["fc_w"], pk["fc_b"])
    return logits[:, :n_class]


# ----------------------- pure-JAX reference (for checking) ------------------- #

def _conv1d_ref(x, w, b, stride, padding):
    out = lax.conv_general_dilated(
        x, w, (stride,), [(padding, padding)],
        dimension_numbers=("NCH", "OIH", "NCH"),
        precision=lax.Precision.HIGHEST)
    return out + b[None, :, None]


def _bn_ref(x, gamma, beta, residual=None, relu=True):
    mean = jnp.mean(x, axis=(0, 2), keepdims=True)
    var = jnp.mean((x - mean) ** 2, axis=(0, 2), keepdims=True)
    y = ((x - mean) * lax.rsqrt(var + BN_EPS)
         * gamma[None, :, None] + beta[None, :, None])
    if residual is not None:
        y = y + residual
    if relu:
        y = jnp.maximum(y, 0.0)
    return y


def _maxpool_ref(x, ksize=3, stride=2, padding=1):
    n, c, l = x.shape
    l_out = (l + 2 * padding - ksize) // stride + 1
    xp = jnp.pad(x, ((0, 0), (0, 0), (padding, padding)),
                 constant_values=-jnp.inf)
    idx = jnp.arange(l_out)[:, None] * stride + jnp.arange(ksize)[None, :]
    return jnp.max(xp[:, :, idx], axis=-1)


def resnet1d_forward_ref(x, params):
    out = _conv1d_ref(x, params["conv1_w"], params["conv1_b"], 2, 3)
    out = _bn_ref(out, params["bn1_g"], params["bn1_b"], relu=True)
    out = _maxpool_ref(out)
    for st in params["stages"]:
        for blk in st["blocks"]:
            down = "res_w" in blk
            if down:
                r = _conv1d_ref(out, blk["res_w"], blk["res_b"], 2, 0)
                identity = _bn_ref(r, blk["res_g"], blk["res_beta"], relu=False)
            else:
                identity = out
            y = _conv1d_ref(out, blk["w1"], blk["b1"], 2 if down else 1, 1)
            y = _bn_ref(y, blk["g1"], blk["beta1"], relu=True)
            y = _conv1d_ref(y, blk["w2"], blk["b2"], 1, 1)
            out = _bn_ref(y, blk["g2"], blk["beta2"],
                          residual=identity, relu=True)
    pooled = jnp.mean(out, axis=2)
    return pooled @ params["fc_w"] + params["fc_b"][None, :]


# ----------------------------------- main ------------------------------------ #

if __name__ == "__main__":
    # small shapes: batch=2, in_channels=4, length=32, layers=[8,16,32,64]
    in_channels = 4
    layers = [8, 16, 32, 64]
    n_class = 3
    config = [2, 2, 2, 2]   # ResNet-18-style stage configuration

    key = jax.random.PRNGKey(0)
    kx, kp = jax.random.split(key)
    x = jax.random.normal(kx, (2, in_channels, 32), jnp.float32)

    params = init_params(kp, in_channels, layers, n_class, config)
    packed = pack_params(params)

    fwd = jax.jit(lambda xx, pp: resnet1d_forward_pallas(xx, pp, n_class))
    out = jax.block_until_ready(fwd(x, packed))

    ref = jax.block_until_ready(resnet1d_forward_ref(x, params))

    assert out.shape == (2, n_class), out.shape
    # Kernels use default MXU matmul precision (HIGHEST emulation dropped per review),
    # reference uses HIGHEST f32, so allow a slightly looser tolerance.
    if not bool(jnp.allclose(out, ref, rtol=2e-2, atol=2e-2)):
        raise RuntimeError(
            f"mismatch vs reference: max abs diff {jnp.max(jnp.abs(out - ref))}")
    print("KERNEL_OK")
</pallas_src>

<mosaic_0001>
module attributes {stable_mosaic.version = 11 : i64} {
  func.func @_conv_bn_kernel(%arg0: i32, %arg1: memref<2x19x128xf32, #tpu.memory_space<vmem>>, %arg2: memref<2x19x128xf32, #tpu.memory_space<vmem>>, %arg3: memref<7x128x128xf32, #tpu.memory_space<vmem>>, %arg4: memref<1x128xf32, #tpu.memory_space<vmem>>, %arg5: memref<1x128xf32, #tpu.memory_space<vmem>>, %arg6: memref<1x128xf32, #tpu.memory_space<vmem>>, %arg7: memref<2x16x128xf32, #tpu.memory_space<vmem>>) attributes {dimension_semantics = [#tpu.dimension_semantics<parallel>], iteration_bounds = array<i64: 1>, scalar_prefetch = 0 : i64, scratch_operands = 0 : i64, tpu.core_type = #tpu.core_type<tc>, window_params = [{pipeline_mode = #tpu.pipeline_mode<synchronous>, transform_indices = @transform_0, window_bounds = array<i64: 2, 19, 128>}, {pipeline_mode = #tpu.pipeline_mode<synchronous>, transform_indices = @transform_1, window_bounds = array<i64: 2, 19, 128>}, {transform_indices = @transform_2, window_bounds = array<i64: 7, 128, 128>}, {transform_indices = @transform_3, window_bounds = array<i64: 1, 128>}, {transform_indices = @transform_4, window_bounds = array<i64: 1, 128>}, {transform_indices = @transform_5, window_bounds = array<i64: 1, 128>}, {transform_indices = @transform_6, window_bounds = array<i64: 2, 16, 128>}]} {
    %c0 = arith.constant 0 : index
    %c0_0 = arith.constant 0 : index
    %c0_1 = arith.constant 0 : index
    %0 = vector.load %arg1[%c0, %c0_0, %c0_1] : memref<2x19x128xf32, #tpu.memory_space<vmem>>, vector<2x19x128xf32>
    %c0_2 = arith.constant 0 : index
    %c0_3 = arith.constant 0 : index
    %c0_4 = arith.constant 0 : index
    %1 = vector.load %arg2[%c0_2, %c0_3, %c0_4] : memref<2x19x128xf32, #tpu.memory_space<vmem>>, vector<2x19x128xf32>
    %cst = arith.constant 0.000000e+00 : f32
    %2 = vector.broadcast %cst : f32 to vector<32x128xf32>
    %3 = vector.extract_strided_slice %0 {offsets = [0, 0, 0], sizes = [2, 16, 128], strides = [1, 1, 1]} : vector<2x19x128xf32> to vector<2x16x128xf32>
    %4 = vector.shape_cast %3 : vector<2x16x128xf32> to vector<32x128xf32>
    %c0_5 = arith.constant 0 : index
    %c0_6 = arith.constant 0 : index
    %c0_7 = arith.constant 0 : index
    %5 = vector.load %arg3[%c0_5, %c0_6, %c0_7] : memref<7x128x128xf32, #tpu.memory_space<vmem>>, vector<1x128x128xf32>
    %6 = vector.shape_cast %5 : vector<1x128x128xf32> to vector<128x128xf32>
    %cst_8 = arith.constant dense<0.000000e+00> : vector<32x128xf32>
    %7 = tpu.matmul %4, %6, %cst_8 {dimension_numbers = #tpu.dot_dimension_numbers<[1], [0], [0], [1], [0, 0, 1, 1], [], []>} : vector<32x128xf32>, vector<128x128xf32>, vector<32x128xf32> -> vector<32x128xf32>
    %8 = arith.addf %2, %7 : vector<32x128xf32>
    %9 = vector.extract_strided_slice %1 {offsets = [0, 0, 0], sizes = [2, 16, 128], strides = [1, 1, 1]} : vector<2x19x128xf32> to vector<2x16x128xf32>
    %10 = vector.shape_cast %9 : vector<2x16x128xf32> to vector<32x128xf32>
    %c1 = arith.constant 1 : index
    %c0_9 = arith.constant 0 : index
    %c0_10 = arith.constant 0 : index
    %11 = vector.load %arg3[%c1, %c0_9, %c0_10] : memref<7x128x128xf32, #tpu.memory_space<vmem>>, vector<1x128x128xf32>
    %12 = vector.shape_cast %11 : vector<1x128x128xf32> to vector<128x128xf32>
    %cst_11 = arith.constant dense<0.000000e+00> : vector<32x128xf32>
    %13 = tpu.matmul %10, %12, %cst_11 {dimension_numbers = #tpu.dot_dimension_numbers<[1], [0], [0], [1], [0, 0, 1, 1], [], []>} : vector<32x128xf32>, vector<128x128xf32>, vector<32x128xf32> -> vector<32x128xf32>
    %14 = arith.addf %8, %13 : vector<32x128xf32>
    %15 = vector.extract_strided_slice %0 {offsets = [0, 1, 0], sizes = [2, 16, 128], strides = [1, 1, 1]} : vector<2x19x128xf32> to vector<2x16x128xf32>
    %16 = vector.shape_cast %15 : vector<2x16x128xf32> to vector<32x128xf32>
    %c2 = arith.constant 2 : index
    %c0_12 = arith.constant 0 : index
    %c0_13 = arith.constant 0 : index
    %17 = vector.load %arg3[%c2, %c0_12, %c0_13] : memref<7x128x128xf32, #tpu.memory_space<vmem>>, vector<1x128x128xf32>
    %18 = vector.shape_cast %17 : vector<1x128x128xf32> to vector<128x128xf32>
    %cst_14 = arith.constant dense<0.000000e+00> : vector<32x128xf32>
    %19 = tpu.matmul %16, %18, %cst_14 {dimension_numbers = #tpu.dot_dimension_numbers<[1], [0], [0], [1], [0, 0, 1, 1], [], []>} : vector<32x128xf32>, vector<128x128xf32>, vector<32x128xf32> -> vector<32x128xf32>
    %20 = arith.addf %14, %19 : vector<32x128xf32>
    %21 = vector.extract_strided_slice %1 {offsets = [0, 1, 0], sizes = [2, 16, 128], strides = [1, 1, 1]} : vector<2x19x128xf32> to vector<2x16x128xf32>
    %22 = vector.shape_cast %21 : vector<2x16x128xf32> to vector<32x128xf32>
    %c3 = arith.constant 3 : index
    %c0_15 = arith.constant 0 : index
    %c0_16 = arith.constant 0 : index
    %23 = vector.load %arg3[%c3, %c0_15, %c0_16] : memref<7x128x128xf32, #tpu.memory_space<vmem>>, vector<1x128x128xf32>
    %24 = vector.shape_cast %23 : vector<1x128x128xf32> to vector<128x128xf32>
    %cst_17 = arith.constant dense<0.000000e+00> : vector<32x128xf32>
    %25 = tpu.matmul %22, %24, %cst_17 {dimension_numbers = #tpu.dot_dimension_numbers<[1], [0], [0], [1], [0, 0, 1, 1], [], []>} : vector<32x128xf32>, vector<128x128xf32>, vector<32x128xf32> -> vector<32x128xf32>
    %26 = arith.addf %20, %25 : vector<32x128xf32>
    %27 = vector.extract_strided_slice %0 {offsets = [0, 2, 0], sizes = [2, 16, 128], strides = [1, 1, 1]} : vector<2x19x128xf32> to vector<2x16x128xf32>
    %28 = vector.shape_cast %27 : vector<2x16x128xf32> to vector<32x128xf32>
    %c4 = arith.constant 4 : index
    %c0_18 = arith.constant 0 : index
    %c0_19 = arith.constant 0 : index
    %29 = vector.load %arg3[%c4, %c0_18, %c0_19] : memref<7x128x128xf32, #tpu.memory_space<vmem>>, vector<1x128x128xf32>
    %30 = vector.shape_cast %29 : vector<1x128x128xf32> to vector<128x128xf32>
    %cst_20 = arith.constant dense<0.000000e+00> : vector<32x128xf32>
    %31 = tpu.matmul %28, %30, %cst_20 {dimension_numbers = #tpu.dot_dimension_numbers<[1], [0], [0], [1], [0, 0, 1, 1], [], []>} : vector<32x128xf32>, vector<128x128xf32>, vector<32x128xf32> -> vector<32x128xf32>
    %32 = arith.addf %26, %31 : vector<32x128xf32>
    %33 = vector.extract_strided_slice %1 {offsets = [0, 2, 0], sizes = [2, 16, 128], strides = [1, 1, 1]} : vector<2x19x128xf32> to vector<2x16x128xf32>
    %34 = vector.shape_cast %33 : vector<2x16x128xf32> to vector<32x128xf32>
    %c5 = arith.constant 5 : index
    %c0_21 = arith.constant 0 : index
    %c0_22 = arith.constant 0 : index
    %35 = vector.load %arg3[%c5, %c0_21, %c0_22] : memref<7x128x128xf32, #tpu.memory_space<vmem>>, vector<1x128x128xf32>
    %36 = vector.shape_cast %35 : vector<1x128x128xf32> to vector<128x128xf32>
    %cst_23 = arith.constant dense<0.000000e+00> : vector<32x128xf32>
    %37 = tpu.matmul %34, %36, %cst_23 {dimension_numbers = #tpu.dot_dimension_numbers<[1], [0], [0], [1], [0, 0, 1, 1], [], []>} : vector<32x128xf32>, vector<128x128xf32>, vector<32x128xf32> -> vector<32x128xf32>
    %38 = arith.addf %32, %37 : vector<32x128xf32>
    %39 = vector.extract_strided_slice %0 {offsets = [0, 3, 0], sizes = [2, 16, 128], strides = [1, 1, 1]} : vector<2x19x128xf32> to vector<2x16x128xf32>
    %40 = vector.shape_cast %39 : vector<2x16x128xf32> to vector<32x128xf32>
    %c6 = arith.constant 6 : index
    %c0_24 = arith.constant 0 : index
    %c0_25 = arith.constant 0 : index
    %41 = vector.load %arg3[%c6, %c0_24, %c0_25] : memref<7x128x128xf32, #tpu.memory_space<vmem>>, vector<1x128x128xf32>
    %42 = vector.shape_cast %41 : vector<1x128x128xf32> to vector<128x128xf32>
    %cst_26 = arith.constant dense<0.000000e+00> : vector<32x128xf32>
    %43 = tpu.matmul %40, %42, %cst_26 {dimension_numbers = #tpu.dot_dimension_numbers<[1], [0], [0], [1], [0, 0, 1, 1], [], []>} : vector<32x128xf32>, vector<128x128xf32>, vector<32x128xf32> -> vector<32x128xf32>
    %44 = arith.addf %38, %43 : vector<32x128xf32>
    %c0_27 = arith.constant 0 : index
    %c0_28 = arith.constant 0 : index
    %45 = vector.load %arg4[%c0_27, %c0_28] : memref<1x128xf32, #tpu.memory_space<vmem>>, vector<1x128xf32>
    %46 = vector.broadcast %45 : vector<1x128xf32> to vector<32x128xf32>
    %47 = arith.addf %44, %46 : vector<32x128xf32>
    %cst_29 = arith.constant dense<0.000000e+00> : vector<128xf32>
    %48 = vector.multi_reduction <add>, %47, %cst_29 [0] : vector<32x128xf32> to vector<128xf32>
    %49 = vector.shape_cast %48 : vector<128xf32> to vector<1x128xf32>
    %cst_30 = arith.constant 3.200000e+01 : f32
    %50 = vector.broadcast %cst_30 : f32 to vector<1x128xf32>
    %51 = arith.divf %49, %50 : vector<1x128xf32>
    %52 = vector.broadcast %51 : vector<1x128xf32> to vector<32x128xf32>
    %53 = arith.subf %47, %52 : vector<32x128xf32>
    %54 = arith.mulf %53, %53 : vector<32x128xf32>
    %cst_31 = arith.constant dense<0.000000e+00> : vector<128xf32>
    %55 = vector.multi_reduction <add>, %54, %cst_31 [0] : vector<32x128xf32> to vector<128xf32>
    %56 = vector.shape_cast %55 : vector<128xf32> to vector<1x128xf32>
    %cst_32 = arith.constant 3.200000e+01 : f32
    %57 = vector.broadcast %cst_32 : f32 to vector<1x128xf32>
    %58 = arith.divf %56, %57 : vector<1x128xf32>
    %59 = vector.broadcast %51 : vector<1x128xf32> to vector<32x128xf32>
    %60 = arith.subf %47, %59 : vector<32x128xf32>
    %cst_33 = arith.constant 9.99999974E-6 : f32
    %61 = vector.broadcast %cst_33 : f32 to vector<1x128xf32>
    %62 = arith.addf %58, %61 : vector<1x128xf32>
    %63 = math.rsqrt %62 : vector<1x128xf32>
    %64 = vector.broadcast %63 : vector<1x128xf32> to vector<32x128xf32>
    %65 = arith.mulf %60, %64 : vector<32x128xf32>
    %c0_34 = arith.constant 0 : index
    %c0_35 = arith.constant 0 : index
    %66 = vector.load %arg5[%c0_34, %c0_35] : memref<1x128xf32, #tpu.memory_space<vmem>>, vector<1x128xf32>
    %67 = vector.broadcast %66 : vector<1x128xf32> to vector<32x128xf32>
    %68 = arith.mulf %65, %67 : vector<32x128xf32>
    %c0_36 = arith.constant 0 : index
    %c0_37 = arith.constant 0 : index
    %69 = vector.load %arg6[%c0_36, %c0_37] : memref<1x128xf32, #tpu.memory_space<vmem>>, vector<1x128xf32>
    %70 = vector.broadcast %69 : vector<1x128xf32> to vector<32x128xf32>
    %71 = arith.addf %68, %70 : vector<32x128xf32>
    %cst_38 = arith.constant 0.000000e+00 : f32
    %72 = vector.broadcast %cst_38 : f32 to vector<32x128xf32>
    %73 = arith.maximumf %71, %72 : vector<32x128xf32>
    %74 = vector.shape_cast %73 : vector<32x128xf32> to vector<2x16x128xf32>
    %c0_39 = arith.constant 0 : index
    %c0_40 = arith.constant 0 : index
    %c0_41 = arith.constant 0 : index
    %75 = vector.load %arg7[%c0_39, %c0_40, %c0_41] : memref<2x16x128xf32, #tpu.memory_space<vmem>>, vector<2x16x128xf32>
    tpu.vector_store %arg7[%c0_39, %c0_40, %c0_41], %74 {strides = array<i32>} : memref<2x16x128xf32, #tpu.memory_space<vmem>>, vector<2x16x128xf32>,
    return
  }
  func.func @transform_0(%arg0: i32) -> (i32, i32, i32) {
    %c0_i32 = arith.constant 0 : i32
    %c0_i32_0 = arith.constant 0 : i32
    %c0_i32_1 = arith.constant 0 : i32
    %c0_i32_2 = arith.constant 0 : i32
    return %c0_i32, %c0_i32_0, %c0_i32_1 : i32, i32, i32
  }
  func.func @transform_1(%arg0: i32) -> (i32, i32, i32) {
    %c0_i32 = arith.constant 0 : i32
    %c0_i32_0 = arith.constant 0 : i32
    %c0_i32_1 = arith.constant 0 : i32
    %c0_i32_2 = arith.constant 0 : i32
    return %c0_i32, %c0_i32_0, %c0_i32_1 : i32, i32, i32
  }
  func.func @transform_2(%arg0: i32) -> (i32, i32, i32) {
    %c0_i32 = arith.constant 0 : i32
    %c0_i32_0 = arith.constant 0 : i32
    %c0_i32_1 = arith.constant 0 : i32
    return %c0_i32, %c0_i32_0, %arg0 : i32, i32, i32
  }
  func.func @transform_3(%arg0: i32) -> (i32, i32) {
    %c0_i32 = arith.constant 0 : i32
    %c0_i32_0 = arith.constant 0 : i32
    return %c0_i32, %arg0 : i32, i32
  }
  func.func @transform_4(%arg0: i32) -> (i32, i32) {
    %c0_i32 = arith.constant 0 : i32
    %c0_i32_0 = arith.constant 0 : i32
    return %c0_i32, %arg0 : i32, i32
  }
  func.func @transform_5(%arg0: i32) -> (i32, i32) {
    %c0_i32 = arith.constant 0 : i32
    %c0_i32_0 = arith.constant 0 : i32
    return %c0_i32, %arg0 : i32, i32
  }
  func.func @transform_6(%arg0: i32) -> (i32, i32, i32) {
    %c0_i32 = arith.constant 0 : i32
    %c0_i32_0 = arith.constant 0 : i32
    %c0_i32_1 = arith.constant 0 : i32
    return %c0_i32, %c0_i32_0, %arg0 : i32, i32, i32
  }
}

module attributes {stable_mosaic.version = 11 : i64} {
  func.func @_maxpool_kernel(%arg0: i32, %arg1: memref<2x9x128xf32, #tpu.memory_space<vmem>>, %arg2: memref<2x9x128xf32, #tpu.memory_space<vmem>>, %arg3: memref<2x8x128xf32, #tpu.memory_space<vmem>>) attributes {dimension_semantics = [#tpu.dimension_semantics<parallel>], iteration_bounds = array<i64: 1>, scalar_prefetch = 0 : i64, scratch_operands = 0 : i64, tpu.core_type = #tpu.core_type<tc>, window_params = [{transform_indices = @transform_0, window_bounds = array<i64: 2, 9, 128>}, {transform_indices = @transform_1, window_bounds = array<i64: 2, 9, 128>}, {transform_indices = @transform_2, window_bounds = array<i64: 2, 8, 128>}]} {
    %c0 = arith.constant 0 : index
    %c0_0 = arith.constant 0 : index
    %c0_1 = arith.constant 0 : index
    %0 = vector.load %arg1[%c0, %c0_0, %c0_1] : memref<2x9x128xf32, #tpu.memory_space<vmem>>, vector<2x9x128xf32>
    %c0_2 = arith.constant 0 : index
    %c0_3 = arith.constant 0 : index
    %c0_4 = arith.constant 0 : index
    %1 = vector.load %arg2[%c0_2, %c0_3, %c0_4] : memref<2x9x128xf32, #tpu.memory_space<vmem>>, vector<2x9x128xf32>
    %2 = vector.extract_strided_slice %0 {offsets = [0, 0, 0], sizes = [2, 8, 128], strides = [1, 1, 1]} : vector<2x9x128xf32> to vector<2x8x128xf32>
    %3 = vector.extract_strided_slice %1 {offsets = [0, 0, 0], sizes = [2, 8, 128], strides = [1, 1, 1]} : vector<2x9x128xf32> to vector<2x8x128xf32>
    %4 = arith.maximumf %2, %3 : vector<2x8x128xf32>
    %5 = vector.extract_strided_slice %0 {offsets = [0, 1, 0], sizes = [2, 8, 128], strides = [1, 1, 1]} : vector<2x9x128xf32> to vector<2x8x128xf32>
    %6 = arith.maximumf %4, %5 : vector<2x8x128xf32>
    %c0_5 = arith.constant 0 : index
    %c0_6 = arith.constant 0 : index
    %c0_7 = arith.constant 0 : index
    %7 = vector.load %arg3[%c0_5, %c0_6, %c0_7] : memref<2x8x128xf32, #tpu.memory_space<vmem>>, vector<2x8x128xf32>
    tpu.vector_store %arg3[%c0_5, %c0_6, %c0_7], %6 {strides = array<i32>} : memref<2x8x128xf32, #tpu.memory_space<vmem>>, vector<2x8x128xf32>,
    return
  }
  func.func @transform_0(%arg0: i32) -> (i32, i32, i32) {
    %c0_i32 = arith.constant 0 : i32
    %c0_i32_0 = arith.constant 0 : i32
    %c0_i32_1 = arith.constant 0 : i32
    return %c0_i32, %c0_i32_0, %arg0 : i32, i32, i32
  }
  func.func @transform_1(%arg0: i32) -> (i32, i32, i32) {
    %c0_i32 = arith.constant 0 : i32
    %c0_i32_0 = arith.constant 0 : i32
    %c0_i32_1 = arith.constant 0 : i32
    return %c0_i32, %c0_i32_0, %arg0 : i32, i32, i32
  }
  func.func @transform_2(%arg0: i32) -> (i32, i32, i32) {
    %c0_i32 = arith.constant 0 : i32
    %c0_i32_0 = arith.constant 0 : i32
    %c0_i32_1 = arith.constant 0 : i32
    return %c0_i32, %c0_i32_0, %arg0 : i32, i32, i32
  }
}

module attributes {stable_mosaic.version = 11 : i64} {
  func.func @_conv_bn_kernel(%arg0: i32, %arg1: memref<2x10x128xf32, #tpu.memory_space<vmem>>, %arg2: memref<3x128x128xf32, #tpu.memory_space<vmem>>, %arg3: memref<1x128xf32, #tpu.memory_space<vmem>>, %arg4: memref<1x128xf32, #tpu.memory_space<vmem>>, %arg5: memref<1x128xf32, #tpu.memory_space<vmem>>, %arg6: memref<2x8x128xf32, #tpu.memory_space<vmem>>) attributes {dimension_semantics = [#tpu.dimension_semantics<parallel>], iteration_bounds = array<i64: 1>, scalar_prefetch = 0 : i64, scratch_operands = 0 : i64, tpu.core_type = #tpu.core_type<tc>, window_params = [{pipeline_mode = #tpu.pipeline_mode<synchronous>, transform_indices = @transform_0, window_bounds = array<i64: 2, 10, 128>}, {transform_indices = @transform_1, window_bounds = array<i64: 3, 128, 128>}, {transform_indices = @transform_2, window_bounds = array<i64: 1, 128>}, {transform_indices = @transform_3, window_bounds = array<i64: 1, 128>}, {transform_indices = @transform_4, window_bounds = array<i64: 1, 128>}, {transform_indices = @transform_5, window_bounds = array<i64: 2, 8, 128>}]} {
    %c0 = arith.constant 0 : index
    %c0_0 = arith.constant 0 : index
    %c0_1 = arith.constant 0 : index
    %0 = vector.load %arg1[%c0, %c0_0, %c0_1] : memref<2x10x128xf32, #tpu.memory_space<vmem>>, vector<2x10x128xf32>
    %cst = arith.constant 0.000000e+00 : f32
    %1 = vector.broadcast %cst : f32 to vector<16x128xf32>
    %2 = vector.extract_strided_slice %0 {offsets = [0, 0, 0], sizes = [2, 8, 128], strides = [1, 1, 1]} : vector<2x10x128xf32> to vector<2x8x128xf32>
    %3 = vector.shape_cast %2 : vector<2x8x128xf32> to vector<16x128xf32>
    %c0_2 = arith.constant 0 : index
    %c0_3 = arith.constant 0 : index
    %c0_4 = arith.constant 0 : index
    %4 = vector.load %arg2[%c0_2, %c0_3, %c0_4] : memref<3x128x128xf32, #tpu.memory_space<vmem>>, vector<1x128x128xf32>
    %5 = vector.shape_cast %4 : vector<1x128x128xf32> to vector<128x128xf32>
    %cst_5 = arith.constant dense<0.000000e+00> : vector<16x128xf32>
    %6 = tpu.matmul %3, %5, %cst_5 {dimension_numbers = #tpu.dot_dimension_numbers<[1], [0], [0], [1], [0, 0, 1, 1], [], []>} : vector<16x128xf32>, vector<128x128xf32>, vector<16x128xf32> -> vector<16x128xf32>
    %7 = arith.addf %1, %6 : vector<16x128xf32>
    %8 = vector.extract_strided_slice %0 {offsets = [0, 1, 0], sizes = [2, 8, 128], strides = [1, 1, 1]} : vector<2x10x128xf32> to vector<2x8x128xf32>
    %9 = vector.shape_cast %8 : vector<2x8x128xf32> to vector<16x128xf32>
    %c1 = arith.constant 1 : index
    %c0_6 = arith.constant 0 : index
    %c0_7 = arith.constant 0 : index
    %10 = vector.load %arg2[%c1, %c0_6, %c0_7] : memref<3x128x128xf32, #tpu.memory_space<vmem>>, vector<1x128x128xf32>
    %11 = vector.shape_cast %10 : vector<1x128x128xf32> to vector<128x128xf32>
    %cst_8 = arith.constant dense<0.000000e+00> : vector<16x128xf32>
    %12 = tpu.matmul %9, %11, %cst_8 {dimension_numbers = #tpu.dot_dimension_numbers<[1], [0], [0], [1], [0, 0, 1, 1], [], []>} : vector<16x128xf32>, vector<128x128xf32>, vector<16x128xf32> -> vector<16x128xf32>
    %13 = arith.addf %7, %12 : vector<16x128xf32>
    %14 = vector.extract_strided_slice %0 {offsets = [0, 2, 0], sizes = [2, 8, 128], strides = [1, 1, 1]} : vector<2x10x128xf32> to vector<2x8x128xf32>
    %15 = vector.shape_cast %14 : vector<2x8x128xf32> to vector<16x128xf32>
    %c2 = arith.constant 2 : index
    %c0_9 = arith.constant 0 : index
    %c0_10 = arith.constant 0 : index
    %16 = vector.load %arg2[%c2, %c0_9, %c0_10] : memref<3x128x128xf32, #tpu.memory_space<vmem>>, vector<1x128x128xf32>
    %17 = vector.shape_cast %16 : vector<1x128x128xf32> to vector<128x128xf32>
    %cst_11 = arith.constant dense<0.000000e+00> : vector<16x128xf32>
    %18 = tpu.matmul %15, %17, %cst_11 {dimension_numbers = #tpu.dot_dimension_numbers<[1], [0], [0], [1], [0, 0, 1, 1], [], []>} : vector<16x128xf32>, vector<128x128xf32>, vector<16x128xf32> -> vector<16x128xf32>
    %19 = arith.addf %13, %18 : vector<16x128xf32>
    %c0_12 = arith.constant 0 : index
    %c0_13 = arith.constant 0 : index
    %20 = vector.load %arg3[%c0_12, %c0_13] : memref<1x128xf32, #tpu.memory_space<vmem>>, vector<1x128xf32>
    %21 = vector.broadcast %20 : vector<1x128xf32> to vector<16x128xf32>
    %22 = arith.addf %19, %21 : vector<16x128xf32>
    %cst_14 = arith.constant dense<0.000000e+00> : vector<128xf32>
    %23 = vector.multi_reduction <add>, %22, %cst_14 [0] : vector<16x128xf32> to vector<128xf32>
    %24 = vector.shape_cast %23 : vector<128xf32> to vector<1x128xf32>
    %cst_15 = arith.constant 1.600000e+01 : f32
    %25 = vector.broadcast %cst_15 : f32 to vector<1x128xf32>
    %26 = arith.divf %24, %25 : vector<1x128xf32>
    %27 = vector.broadcast %26 : vector<1x128xf32> to vector<16x128xf32>
    %28 = arith.subf %22, %27 : vector<16x128xf32>
    %29 = arith.mulf %28, %28 : vector<16x128xf32>
    %cst_16 = arith.constant dense<0.000000e+00> : vector<128xf32>
    %30 = vector.multi_reduction <add>, %29, %cst_16 [0] : vector<16x128xf32> to vector<128xf32>
    %31 = vector.shape_cast %30 : vector<128xf32> to vector<1x128xf32>
    %cst_17 = arith.constant 1.600000e+01 : f32
    %32 = vector.broadcast %cst_17 : f32 to vector<1x128xf32>
    %33 = arith.divf %31, %32 : vector<1x128xf32>
    %34 = vector.broadcast %26 : vector<1x128xf32> to vector<16x128xf32>
    %35 = arith.subf %22, %34 : vector<16x128xf32>
    %cst_18 = arith.constant 9.99999974E-6 : f32
    %36 = vector.broadcast %cst_18 : f32 to vector<1x128xf32>
    %37 = arith.addf %33, %36 : vector<1x128xf32>
    %38 = math.rsqrt %37 : vector<1x128xf32>
    %39 = vector.broadcast %38 : vector<1x128xf32> to vector<16x128xf32>
    %40 = arith.mulf %35, %39 : vector<16x128xf32>
    %c0_19 = arith.constant 0 : index
    %c0_20 = arith.constant 0 : index
    %41 = vector.load %arg4[%c0_19, %c0_20] : memref<1x128xf32, #tpu.memory_space<vmem>>, vector<1x128xf32>
    %42 = vector.broadcast %41 : vector<1x128xf32> to vector<16x128xf32>
    %43 = arith.mulf %40, %42 : vector<16x128xf32>
    %c0_21 = arith.constant 0 : index
    %c0_22 = arith.constant 0 : index
    %44 = vector.load %arg5[%c0_21, %c0_22] : memref<1x128xf32, #tpu.memory_space<vmem>>, vector<1x128xf32>
    %45 = vector.broadcast %44 : vector<1x128xf32> to vector<16x128xf32>
    %46 = arith.addf %43, %45 : vector<16x128xf32>
    %cst_23 = arith.constant 0.000000e+00 : f32
    %47 = vector.broadcast %cst_23 : f32 to vector<16x128xf32>
    %48 = arith.maximumf %46, %47 : vector<16x128xf32>
    %49 = vector.shape_cast %48 : vector<16x128xf32> to vector<2x8x128xf32>
    %c0_24 = arith.constant 0 : index
    %c0_25 = arith.constant 0 : index
    %c0_26 = arith.constant 0 : index
    %50 = vector.load %arg6[%c0_24, %c0_25, %c0_26] : memref<2x8x128xf32, #tpu.memory_space<vmem>>, vector<2x8x128xf32>
    tpu.vector_store %arg6[%c0_24, %c0_25, %c0_26], %49 {strides = array<i32>} : memref<2x8x128xf32, #tpu.memory_space<vmem>>, vector<2x8x128xf32>,
    return
  }
  func.func @transform_0(%arg0: i32) -> (i32, i32, i32) {
    %c0_i32 = arith.constant 0 : i32
    %c0_i32_0 = arith.constant 0 : i32
    %c0_i32_1 = arith.constant 0 : i32
    %c0_i32_2 = arith.constant 0 : i32
    return %c0_i32, %c0_i32_0, %c0_i32_1 : i32, i32, i32
  }
  func.func @transform_1(%arg0: i32) -> (i32, i32, i32) {
    %c0_i32 = arith.constant 0 : i32
    %c0_i32_0 = arith.constant 0 : i32
    %c0_i32_1 = arith.constant 0 : i32
    return %c0_i32, %c0_i32_0, %arg0 : i32, i32, i32
  }
  func.func @transform_2(%arg0: i32) -> (i32, i32) {
    %c0_i32 = arith.constant 0 : i32
    %c0_i32_0 = arith.constant 0 : i32
    return %c0_i32, %arg0 : i32, i32
  }
  func.func @transform_3(%arg0: i32) -> (i32, i32) {
    %c0_i32 = arith.constant 0 : i32
    %c0_i32_0 = arith.constant 0 : i32
    return %c0_i32, %arg0 : i32, i32
  }
  func.func @transform_4(%arg0: i32) -> (i32, i32) {
    %c0_i32 = arith.constant 0 : i32
    %c0_i32_0 = arith.constant 0 : i32
    return %c0_i32, %arg0 : i32, i32
  }
  func.func @transform_5(%arg0: i32) -> (i32, i32, i32) {
    %c0_i32 = arith.constant 0 : i32
    %c0_i32_0 = arith.constant 0 : i32
    %c0_i32_1 = arith.constant 0 : i32
    return %c0_i32, %c0_i32_0, %arg0 : i32, i32, i32
  }
}

module attributes {stable_mosaic.version = 11 : i64} {
  func.func @_conv_bn_kernel(%arg0: i32, %arg1: memref<2x10x128xf32, #tpu.memory_space<vmem>>, %arg2: memref<3x128x128xf32, #tpu.memory_space<vmem>>, %arg3: memref<1x128xf32, #tpu.memory_space<vmem>>, %arg4: memref<1x128xf32, #tpu.memory_space<vmem>>, %arg5: memref<1x128xf32, #tpu.memory_space<vmem>>, %arg6: memref<2x8x128xf32, #tpu.memory_space<vmem>>, %arg7: memref<2x8x128xf32, #tpu.memory_space<vmem>>) attributes {dimension_semantics = [#tpu.dimension_semantics<parallel>], iteration_bounds = array<i64: 1>, scalar_prefetch = 0 : i64, scratch_operands = 0 : i64, tpu.core_type = #tpu.core_type<tc>, window_params = [{pipeline_mode = #tpu.pipeline_mode<synchronous>, transform_indices = @transform_0, window_bounds = array<i64: 2, 10, 128>}, {transform_indices = @transform_1, window_bounds = array<i64: 3, 128, 128>}, {transform_indices = @transform_2, window_bounds = array<i64: 1, 128>}, {transform_indices = @transform_3, window_bounds = array<i64: 1, 128>}, {transform_indices = @transform_4, window_bounds = array<i64: 1, 128>}, {transform_indices = @transform_5, window_bounds = array<i64: 2, 8, 128>}, {transform_indices = @transform_6, window_bounds = array<i64: 2, 8, 128>}]} {
    %c0 = arith.constant 0 : index
    %c0_0 = arith.constant 0 : index
    %c0_1 = arith.constant 0 : index
    %0 = vector.load %arg1[%c0, %c0_0, %c0_1] : memref<2x10x128xf32, #tpu.memory_space<vmem>>, vector<2x10x128xf32>
    %cst = arith.constant 0.000000e+00 : f32
    %1 = vector.broadcast %cst : f32 to vector<16x128xf32>
    %2 = vector.extract_strided_slice %0 {offsets = [0, 0, 0], sizes = [2, 8, 128], strides = [1, 1, 1]} : vector<2x10x128xf32> to vector<2x8x128xf32>
    %3 = vector.shape_cast %2 : vector<2x8x128xf32> to vector<16x128xf32>
    %c0_2 = arith.constant 0 : index
    %c0_3 = arith.constant 0 : index
    %c0_4 = arith.constant 0 : index
    %4 = vector.load %arg2[%c0_2, %c0_3, %c0_4] : memref<3x128x128xf32, #tpu.memory_space<vmem>>, vector<1x128x128xf32>
    %5 = vector.shape_cast %4 : vector<1x128x128xf32> to vector<128x128xf32>
    %cst_5 = arith.constant dense<0.000000e+00> : vector<16x128xf32>
    %6 = tpu.matmul %3, %5, %cst_5 {dimension_numbers = #tpu.dot_dimension_numbers<[1], [0], [0], [1], [0, 0, 1, 1], [], []>} : vector<16x128xf32>, vector<128x128xf32>, vector<16x128xf32> -> vector<16x128xf32>
    %7 = arith.addf %1, %6 : vector<16x128xf32>
    %8 = vector.extract_strided_slice %0 {offsets = [0, 1, 0], sizes = [2, 8, 128], strides = [1, 1, 1]} : vector<2x10x128xf32> to vector<2x8x128xf32>
    %9 = vector.shape_cast %8 : vector<2x8x128xf32> to vector<16x128xf32>
    %c1 = arith.constant 1 : index
    %c0_6 = arith.constant 0 : index
    %c0_7 = arith.constant 0 : index
    %10 = vector.load %arg2[%c1, %c0_6, %c0_7] : memref<3x128x128xf32, #tpu.memory_space<vmem>>, vector<1x128x128xf32>
    %11 = vector.shape_cast %10 : vector<1x128x128xf32> to vector<128x128xf32>
    %cst_8 = arith.constant dense<0.000000e+00> : vector<16x128xf32>
    %12 = tpu.matmul %9, %11, %cst_8 {dimension_numbers = #tpu.dot_dimension_numbers<[1], [0], [0], [1], [0, 0, 1, 1], [], []>} : vector<16x128xf32>, vector<128x128xf32>, vector<16x128xf32> -> vector<16x128xf32>
    %13 = arith.addf %7, %12 : vector<16x128xf32>
    %14 = vector.extract_strided_slice %0 {offsets = [0, 2, 0], sizes = [2, 8, 128], strides = [1, 1, 1]} : vector<2x10x128xf32> to vector<2x8x128xf32>
    %15 = vector.shape_cast %14 : vector<2x8x128xf32> to vector<16x128xf32>
    %c2 = arith.constant 2 : index
    %c0_9 = arith.constant 0 : index
    %c0_10 = arith.constant 0 : index
    %16 = vector.load %arg2[%c2, %c0_9, %c0_10] : memref<3x128x128xf32, #tpu.memory_space<vmem>>, vector<1x128x128xf32>
    %17 = vector.shape_cast %16 : vector<1x128x128xf32> to vector<128x128xf32>
    %cst_11 = arith.constant dense<0.000000e+00> : vector<16x128xf32>
    %18 = tpu.matmul %15, %17, %cst_11 {dimension_numbers = #tpu.dot_dimension_numbers<[1], [0], [0], [1], [0, 0, 1, 1], [], []>} : vector<16x128xf32>, vector<128x128xf32>, vector<16x128xf32> -> vector<16x128xf32>
    %19 = arith.addf %13, %18 : vector<16x128xf32>
    %c0_12 = arith.constant 0 : index
    %c0_13 = arith.constant 0 : index
    %20 = vector.load %arg3[%c0_12, %c0_13] : memref<1x128xf32, #tpu.memory_space<vmem>>, vector<1x128xf32>
    %21 = vector.broadcast %20 : vector<1x128xf32> to vector<16x128xf32>
    %22 = arith.addf %19, %21 : vector<16x128xf32>
    %cst_14 = arith.constant dense<0.000000e+00> : vector<128xf32>
    %23 = vector.multi_reduction <add>, %22, %cst_14 [0] : vector<16x128xf32> to vector<128xf32>
    %24 = vector.shape_cast %23 : vector<128xf32> to vector<1x128xf32>
    %cst_15 = arith.constant 1.600000e+01 : f32
    %25 = vector.broadcast %cst_15 : f32 to vector<1x128xf32>
    %26 = arith.divf %24, %25 : vector<1x128xf32>
    %27 = vector.broadcast %26 : vector<1x128xf32> to vector<16x128xf32>
    %28 = arith.subf %22, %27 : vector<16x128xf32>
    %29 = arith.mulf %28, %28 : vector<16x128xf32>
    %cst_16 = arith.constant dense<0.000000e+00> : vector<128xf32>
    %30 = vector.multi_reduction <add>, %29, %cst_16 [0] : vector<16x128xf32> to vector<128xf32>
    %31 = vector.shape_cast %30 : vector<128xf32> to vector<1x128xf32>
    %cst_17 = arith.constant 1.600000e+01 : f32
    %32 = vector.broadcast %cst_17 : f32 to vector<1x128xf32>
    %33 = arith.divf %31, %32 : vector<1x128xf32>
    %34 = vector.broadcast %26 : vector<1x128xf32> to vector<16x128xf32>
    %35 = arith.subf %22, %34 : vector<16x128xf32>
    %cst_18 = arith.constant 9.99999974E-6 : f32
    %36 = vector.broadcast %cst_18 : f32 to vector<1x128xf32>
    %37 = arith.addf %33, %36 : vector<1x128xf32>
    %38 = math.rsqrt %37 : vector<1x128xf32>
    %39 = vector.broadcast %38 : vector<1x128xf32> to vector<16x128xf32>
    %40 = arith.mulf %35, %39 : vector<16x128xf32>
    %c0_19 = arith.constant 0 : index
    %c0_20 = arith.constant 0 : index
    %41 = vector.load %arg4[%c0_19, %c0_20] : memref<1x128xf32, #tpu.memory_space<vmem>>, vector<1x128xf32>
    %42 = vector.broadcast %41 : vector<1x128xf32> to vector<16x128xf32>
    %43 = arith.mulf %40, %42 : vector<16x128xf32>
    %c0_21 = arith.constant 0 : index
    %c0_22 = arith.constant 0 : index
    %44 = vector.load %arg5[%c0_21, %c0_22] : memref<1x128xf32, #tpu.memory_space<vmem>>, vector<1x128xf32>
    %45 = vector.broadcast %44 : vector<1x128xf32> to vector<16x128xf32>
    %46 = arith.addf %43, %45 : vector<16x128xf32>
    %c0_23 = arith.constant 0 : index
    %c0_24 = arith.constant 0 : index
    %c0_25 = arith.constant 0 : index
    %47 = vector.load %arg6[%c0_23, %c0_24, %c0_25] : memref<2x8x128xf32, #tpu.memory_space<vmem>>, vector<2x8x128xf32>
    %48 = vector.shape_cast %47 : vector<2x8x128xf32> to vector<16x128xf32>
    %49 = arith.addf %46, %48 : vector<16x128xf32>
    %cst_26 = arith.constant 0.000000e+00 : f32
    %50 = vector.broadcast %cst_26 : f32 to vector<16x128xf32>
    %51 = arith.maximumf %49, %50 : vector<16x128xf32>
    %52 = vector.shape_cast %51 : vector<16x128xf32> to vector<2x8x128xf32>
    %c0_27 = arith.constant 0 : index
    %c0_28 = arith.constant 0 : index
    %c0_29 = arith.constant 0 : index
    %53 = vector.load %arg7[%c0_27, %c0_28, %c0_29] : memref<2x8x128xf32, #tpu.memory_space<vmem>>, vector<2x8x128xf32>
    tpu.vector_store %arg7[%c0_27, %c0_28, %c0_29], %52 {strides = array<i32>} : memref<2x8x128xf32, #tpu.memory_space<vmem>>, vector<2x8x128xf32>,
    return
  }
  func.func @transform_0(%arg0: i32) -> (i32, i32, i32) {
    %c0_i32 = arith.constant 0 : i32
    %c0_i32_0 = arith.constant 0 : i32
    %c0_i32_1 = arith.constant 0 : i32
    %c0_i32_2 = arith.constant 0 : i32
    return %c0_i32, %c0_i32_0, %c0_i32_1 : i32, i32, i32
  }
  func.func @transform_1(%arg0: i32) -> (i32, i32, i32) {
    %c0_i32 = arith.constant 0 : i32
    %c0_i32_0 = arith.constant 0 : i32
    %c0_i32_1 = arith.constant 0 : i32
    return %c0_i32, %c0_i32_0, %arg0 : i32, i32, i32
  }
  func.func @transform_2(%arg0: i32) -> (i32, i32) {
    %c0_i32 = arith.constant 0 : i32
    %c0_i32_0 = arith.constant 0 : i32
    return %c0_i32, %arg0 : i32, i32
  }
  func.func @transform_3(%arg0: i32) -> (i32, i32) {
    %c0_i32 = arith.constant 0 : i32
    %c0_i32_0 = arith.constant 0 : i32
    return %c0_i32, %arg0 : i32, i32
  }
  func.func @transform_4(%arg0: i32) -> (i32, i32) {
    %c0_i32 = arith.constant 0 : i32
    %c0_i32_0 = arith.constant 0 : i32
    return %c0_i32, %arg0 : i32, i32
  }
  func.func @transform_5(%arg0: i32) -> (i32, i32, i32) {
    %c0_i32 = arith.constant 0 : i32
    %c0_i32_0 = arith.constant 0 : i32
    %c0_i32_1 = arith.constant 0 : i32
    return %c0_i32, %c0_i32_0, %arg0 : i32, i32, i32
  }
  func.func @transform_6(%arg0: i32) -> (i32, i32, i32) {
    %c0_i32 = arith.constant 0 : i32
    %c0_i32_0 = arith.constant 0 : i32
    %c0_i32_1 = arith.constant 0 : i32
    return %c0_i32, %c0_i32_0, %arg0 : i32, i32, i32
  }
}

module attributes {stable_mosaic.version = 11 : i64} {
  func.func @_conv_bn_kernel(%arg0: i32, %arg1: memref<2x4x128xf32, #tpu.memory_space<vmem>>, %arg2: memref<1x128x128xf32, #tpu.memory_space<vmem>>, %arg3: memref<1x128xf32, #tpu.memory_space<vmem>>, %arg4: memref<1x128xf32, #tpu.memory_space<vmem>>, %arg5: memref<1x128xf32, #tpu.memory_space<vmem>>, %arg6: memref<2x4x128xf32, #tpu.memory_space<vmem>>) attributes {dimension_semantics = [#tpu.dimension_semantics<parallel>], iteration_bounds = array<i64: 1>, scalar_prefetch = 0 : i64, scratch_operands = 0 : i64, tpu.core_type = #tpu.core_type<tc>, window_params = [{pipeline_mode = #tpu.pipeline_mode<synchronous>, transform_indices = @transform_0, window_bounds = array<i64: 2, 4, 128>}, {transform_indices = @transform_1, window_bounds = array<i64: 1, 128, 128>}, {transform_indices = @transform_2, window_bounds = array<i64: 1, 128>}, {transform_indices = @transform_3, window_bounds = array<i64: 1, 128>}, {transform_indices = @transform_4, window_bounds = array<i64: 1, 128>}, {transform_indices = @transform_5, window_bounds = array<i64: 2, 4, 128>}]} {
    %c0 = arith.constant 0 : index
    %c0_0 = arith.constant 0 : index
    %c0_1 = arith.constant 0 : index
    %0 = vector.load %arg1[%c0, %c0_0, %c0_1] : memref<2x4x128xf32, #tpu.memory_space<vmem>>, vector<2x4x128xf32>
    %cst = arith.constant 0.000000e+00 : f32
    %1 = vector.broadcast %cst : f32 to vector<8x128xf32>
    %2 = vector.shape_cast %0 : vector<2x4x128xf32> to vector<8x128xf32>
    %c0_2 = arith.constant 0 : index
    %c0_3 = arith.constant 0 : index
    %c0_4 = arith.constant 0 : index
    %3 = vector.load %arg2[%c0_2, %c0_3, %c0_4] : memref<1x128x128xf32, #tpu.memory_space<vmem>>, vector<1x128x128xf32>
    %4 = vector.shape_cast %3 : vector<1x128x128xf32> to vector<128x128xf32>
    %cst_5 = arith.constant dense<0.000000e+00> : vector<8x128xf32>
    %5 = tpu.matmul %2, %4, %cst_5 {dimension_numbers = #tpu.dot_dimension_numbers<[1], [0], [0], [1], [0, 0, 1, 1], [], []>} : vector<8x128xf32>, vector<128x128xf32>, vector<8x128xf32> -> vector<8x128xf32>
    %6 = arith.addf %1, %5 : vector<8x128xf32>
    %c0_6 = arith.constant 0 : index
    %c0_7 = arith.constant 0 : index
    %7 = vector.load %arg3[%c0_6, %c0_7] : memref<1x128xf32, #tpu.memory_space<vmem>>, vector<1x128xf32>
    %8 = vector.broadcast %7 : vector<1x128xf32> to vector<8x128xf32>
    %9 = arith.addf %6, %8 : vector<8x128xf32>
    %cst_8 = arith.constant dense<0.000000e+00> : vector<128xf32>
    %10 = vector.multi_reduction <add>, %9, %cst_8 [0] : vector<8x128xf32> to vector<128xf32>
    %11 = vector.shape_cast %10 : vector<128xf32> to vector<1x128xf32>
    %cst_9 = arith.constant 8.000000e+00 : f32
    %12 = vector.broadcast %cst_9 : f32 to vector<1x128xf32>
    %13 = arith.divf %11, %12 : vector<1x128xf32>
    %14 = vector.broadcast %13 : vector<1x128xf32> to vector<8x128xf32>
    %15 = arith.subf %9, %14 : vector<8x128xf32>
    %16 = arith.mulf %15, %15 : vector<8x128xf32>
    %cst_10 = arith.constant dense<0.000000e+00> : vector<128xf32>
    %17 = vector.multi_reduction <add>, %16, %cst_10 [0] : vector<8x128xf32> to vector<128xf32>
    %18 = vector.shape_cast %17 : vector<128xf32> to vector<1x128xf32>
    %cst_11 = arith.constant 8.000000e+00 : f32
    %19 = vector.broadcast %cst_11 : f32 to vector<1x128xf32>
    %20 = arith.divf %18, %19 : vector<1x128xf32>
    %21 = vector.broadcast %13 : vector<1x128xf32> to vector<8x128xf32>
    %22 = arith.subf %9, %21 : vector<8x128xf32>
    %cst_12 = arith.constant 9.99999974E-6 : f32
    %23 = vector.broadcast %cst_12 : f32 to vector<1x128xf32>
    %24 = arith.addf %20, %23 : vector<1x128xf32>
    %25 = math.rsqrt %24 : vector<1x128xf32>
    %26 = vector.broadcast %25 : vector<1x128xf32> to vector<8x128xf32>
    %27 = arith.mulf %22, %26 : vector<8x128xf32>
    %c0_13 = arith.constant 0 : index
    %c0_14 = arith.constant 0 : index
    %28 = vector.load %arg4[%c0_13, %c0_14] : memref<1x128xf32, #tpu.memory_space<vmem>>, vector<1x128xf32>
    %29 = vector.broadcast %28 : vector<1x128xf32> to vector<8x128xf32>
    %30 = arith.mulf %27, %29 : vector<8x128xf32>
    %c0_15 = arith.constant 0 : index
    %c0_16 = arith.constant 0 : index
    %31 = vector.load %arg5[%c0_15, %c0_16] : memref<1x128xf32, #tpu.memory_space<vmem>>, vector<1x128xf32>
    %32 = vector.broadcast %31 : vector<1x128xf32> to vector<8x128xf32>
    %33 = arith.addf %30, %32 : vector<8x128xf32>
    %34 = vector.shape_cast %33 : vector<8x128xf32> to vector<2x4x128xf32>
    %c0_17 = arith.constant 0 : index
    %c0_18 = arith.constant 0 : index
    %c0_19 = arith.constant 0 : index
    %35 = vector.load %arg6[%c0_17, %c0_18, %c0_19] : memref<2x4x128xf32, #tpu.memory_space<vmem>>, vector<2x4x128xf32>
    tpu.vector_store %arg6[%c0_17, %c0_18, %c0_19], %34 {strides = array<i32>} : memref<2x4x128xf32, #tpu.memory_space<vmem>>, vector<2x4x128xf32>,
    return
  }
  func.func @transform_0(%arg0: i32) -> (i32, i32, i32) {
    %c0_i32 = arith.constant 0 : i32
    %c0_i32_0 = arith.constant 0 : i32
    %c0_i32_1 = arith.constant 0 : i32
    %c0_i32_2 = arith.constant 0 : i32
    return %c0_i32, %c0_i32_0, %c0_i32_1 : i32, i32, i32
  }
  func.func @transform_1(%arg0: i32) -> (i32, i32, i32) {
    %c0_i32 = arith.constant 0 : i32
    %c0_i32_0 = arith.constant 0 : i32
    %c0_i32_1 = arith.constant 0 : i32
    return %c0_i32, %c0_i32_0, %arg0 : i32, i32, i32
  }
  func.func @transform_2(%arg0: i32) -> (i32, i32) {
    %c0_i32 = arith.constant 0 : i32
    %c0_i32_0 = arith.constant 0 : i32
    return %c0_i32, %arg0 : i32, i32
  }
  func.func @transform_3(%arg0: i32) -> (i32, i32) {
    %c0_i32 = arith.constant 0 : i32
    %c0_i32_0 = arith.constant 0 : i32
    return %c0_i32, %arg0 : i32, i32
  }
  func.func @transform_4(%arg0: i32) -> (i32, i32) {
    %c0_i32 = arith.constant 0 : i32
    %c0_i32_0 = arith.constant 0 : i32
    return %c0_i32, %arg0 : i32, i32
  }
  func.func @transform_5(%arg0: i32) -> (i32, i32, i32) {
    %c0_i32 = arith.constant 0 : i32
    %c0_i32_0 = arith.constant 0 : i32
    %c0_i32_1 = arith.constant 0 : i32
    return %c0_i32, %c0_i32_0, %arg0 : i32, i32, i32
  }
}

module attributes {stable_mosaic.version = 11 : i64} {
  func.func @_conv_bn_kernel(%arg0: i32, %arg1: memref<2x5x128xf32, #tpu.memory_space<vmem>>, %arg2: memref<2x5x128xf32, #tpu.memory_space<vmem>>, %arg3: memref<3x128x128xf32, #tpu.memory_space<vmem>>, %arg4: memref<1x128xf32, #tpu.memory_space<vmem>>, %arg5: memref<1x128xf32, #tpu.memory_space<vmem>>, %arg6: memref<1x128xf32, #tpu.memory_space<vmem>>, %arg7: memref<2x4x128xf32, #tpu.memory_space<vmem>>) attributes {dimension_semantics = [#tpu.dimension_semantics<parallel>], iteration_bounds = array<i64: 1>, scalar_prefetch = 0 : i64, scratch_operands = 0 : i64, tpu.core_type = #tpu.core_type<tc>, window_params = [{pipeline_mode = #tpu.pipeline_mode<synchronous>, transform_indices = @transform_0, window_bounds = array<i64: 2, 5, 128>}, {pipeline_mode = #tpu.pipeline_mode<synchronous>, transform_indices = @transform_1, window_bounds = array<i64: 2, 5, 128>}, {transform_indices = @transform_2, window_bounds = array<i64: 3, 128, 128>}, {transform_indices = @transform_3, window_bounds = array<i64: 1, 128>}, {transform_indices = @transform_4, window_bounds = array<i64: 1, 128>}, {transform_indices = @transform_5, window_bounds = array<i64: 1, 128>}, {transform_indices = @transform_6, window_bounds = array<i64: 2, 4, 128>}]} {
    %c0 = arith.constant 0 : index
    %c0_0 = arith.constant 0 : index
    %c0_1 = arith.constant 0 : index
    %0 = vector.load %arg1[%c0, %c0_0, %c0_1] : memref<2x5x128xf32, #tpu.memory_space<vmem>>, vector<2x5x128xf32>
    %c0_2 = arith.constant 0 : index
    %c0_3 = arith.constant 0 : index
    %c0_4 = arith.constant 0 : index
    %1 = vector.load %arg2[%c0_2, %c0_3, %c0_4] : memref<2x5x128xf32, #tpu.memory_space<vmem>>, vector<2x5x128xf32>
    %cst = arith.constant 0.000000e+00 : f32
    %2 = vector.broadcast %cst : f32 to vector<8x128xf32>
    %3 = vector.extract_strided_slice %0 {offsets = [0, 0, 0], sizes = [2, 4, 128], strides = [1, 1, 1]} : vector<2x5x128xf32> to vector<2x4x128xf32>
    %4 = vector.shape_cast %3 : vector<2x4x128xf32> to vector<8x128xf32>
    %c0_5 = arith.constant 0 : index
    %c0_6 = arith.constant 0 : index
    %c0_7 = arith.constant 0 : index
    %5 = vector.load %arg3[%c0_5, %c0_6, %c0_7] : memref<3x128x128xf32, #tpu.memory_space<vmem>>, vector<1x128x128xf32>
    %6 = vector.shape_cast %5 : vector<1x128x128xf32> to vector<128x128xf32>
    %cst_8 = arith.constant dense<0.000000e+00> : vector<8x128xf32>
    %7 = tpu.matmul %4, %6, %cst_8 {dimension_numbers = #tpu.dot_dimension_numbers<[1], [0], [0], [1], [0, 0, 1, 1], [], []>} : vector<8x128xf32>, vector<128x128xf32>, vector<8x128xf32> -> vector<8x128xf32>
    %8 = arith.addf %2, %7 : vector<8x128xf32>
    %9 = vector.extract_strided_slice %1 {offsets = [0, 0, 0], sizes = [2, 4, 128], strides = [1, 1, 1]} : vector<2x5x128xf32> to vector<2x4x128xf32>
    %10 = vector.shape_cast %9 : vector<2x4x128xf32> to vector<8x128xf32>
    %c1 = arith.constant 1 : index
    %c0_9 = arith.constant 0 : index
    %c0_10 = arith.constant 0 : index
    %11 = vector.load %arg3[%c1, %c0_9, %c0_10] : memref<3x128x128xf32, #tpu.memory_space<vmem>>, vector<1x128x128xf32>
    %12 = vector.shape_cast %11 : vector<1x128x128xf32> to vector<128x128xf32>
    %cst_11 = arith.constant dense<0.000000e+00> : vector<8x128xf32>
    %13 = tpu.matmul %10, %12, %cst_11 {dimension_numbers = #tpu.dot_dimension_numbers<[1], [0], [0], [1], [0, 0, 1, 1], [], []>} : vector<8x128xf32>, vector<128x128xf32>, vector<8x128xf32> -> vector<8x128xf32>
    %14 = arith.addf %8, %13 : vector<8x128xf32>
    %15 = vector.extract_strided_slice %0 {offsets = [0, 1, 0], sizes = [2, 4, 128], strides = [1, 1, 1]} : vector<2x5x128xf32> to vector<2x4x128xf32>
    %16 = vector.shape_cast %15 : vector<2x4x128xf32> to vector<8x128xf32>
    %c2 = arith.constant 2 : index
    %c0_12 = arith.constant 0 : index
    %c0_13 = arith.constant 0 : index
    %17 = vector.load %arg3[%c2, %c0_12, %c0_13] : memref<3x128x128xf32, #tpu.memory_space<vmem>>, vector<1x128x128xf32>
    %18 = vector.shape_cast %17 : vector<1x128x128xf32> to vector<128x128xf32>
    %cst_14 = arith.constant dense<0.000000e+00> : vector<8x128xf32>
    %19 = tpu.matmul %16, %18, %cst_14 {dimension_numbers = #tpu.dot_dimension_numbers<[1], [0], [0], [1], [0, 0, 1, 1], [], []>} : vector<8x128xf32>, vector<128x128xf32>, vector<8x128xf32> -> vector<8x128xf32>
    %20 = arith.addf %14, %19 : vector<8x128xf32>
    %c0_15 = arith.constant 0 : index
    %c0_16 = arith.constant 0 : index
    %21 = vector.load %arg4[%c0_15, %c0_16] : memref<1x128xf32, #tpu.memory_space<vmem>>, vector<1x128xf32>
    %22 = vector.broadcast %21 : vector<1x128xf32> to vector<8x128xf32>
    %23 = arith.addf %20, %22 : vector<8x128xf32>
    %cst_17 = arith.constant dense<0.000000e+00> : vector<128xf32>
    %24 = vector.multi_reduction <add>, %23, %cst_17 [0] : vector<8x128xf32> to vector<128xf32>
    %25 = vector.shape_cast %24 : vector<128xf32> to vector<1x128xf32>
    %cst_18 = arith.constant 8.000000e+00 : f32
    %26 = vector.broadcast %cst_18 : f32 to vector<1x128xf32>
    %27 = arith.divf %25, %26 : vector<1x128xf32>
    %28 = vector.broadcast %27 : vector<1x128xf32> to vector<8x128xf32>
    %29 = arith.subf %23, %28 : vector<8x128xf32>
    %30 = arith.mulf %29, %29 : vector<8x128xf32>
    %cst_19 = arith.constant dense<0.000000e+00> : vector<128xf32>
    %31 = vector.multi_reduction <add>, %30, %cst_19 [0] : vector<8x128xf32> to vector<128xf32>
    %32 = vector.shape_cast %31 : vector<128xf32> to vector<1x128xf32>
    %cst_20 = arith.constant 8.000000e+00 : f32
    %33 = vector.broadcast %cst_20 : f32 to vector<1x128xf32>
    %34 = arith.divf %32, %33 : vector<1x128xf32>
    %35 = vector.broadcast %27 : vector<1x128xf32> to vector<8x128xf32>
    %36 = arith.subf %23, %35 : vector<8x128xf32>
    %cst_21 = arith.constant 9.99999974E-6 : f32
    %37 = vector.broadcast %cst_21 : f32 to vector<1x128xf32>
    %38 = arith.addf %34, %37 : vector<1x128xf32>
    %39 = math.rsqrt %38 : vector<1x128xf32>
    %40 = vector.broadcast %39 : vector<1x128xf32> to vector<8x128xf32>
    %41 = arith.mulf %36, %40 : vector<8x128xf32>
    %c0_22 = arith.constant 0 : index
    %c0_23 = arith.constant 0 : index
    %42 = vector.load %arg5[%c0_22, %c0_23] : memref<1x128xf32, #tpu.memory_space<vmem>>, vector<1x128xf32>
    %43 = vector.broadcast %42 : vector<1x128xf32> to vector<8x128xf32>
    %44 = arith.mulf %41, %43 : vector<8x128xf32>
    %c0_24 = arith.constant 0 : index
    %c0_25 = arith.constant 0 : index
    %45 = vector.load %arg6[%c0_24, %c0_25] : memref<1x128xf32, #tpu.memory_space<vmem>>, vector<1x128xf32>
    %46 = vector.broadcast %45 : vector<1x128xf32> to vector<8x128xf32>
    %47 = arith.addf %44, %46 : vector<8x128xf32>
    %cst_26 = arith.constant 0.000000e+00 : f32
    %48 = vector.broadcast %cst_26 : f32 to vector<8x128xf32>
    %49 = arith.maximumf %47, %48 : vector<8x128xf32>
    %50 = vector.shape_cast %49 : vector<8x128xf32> to vector<2x4x128xf32>
    %c0_27 = arith.constant 0 : index
    %c0_28 = arith.constant 0 : index
    %c0_29 = arith.constant 0 : index
    %51 = vector.load %arg7[%c0_27, %c0_28, %c0_29] : memref<2x4x128xf32, #tpu.memory_space<vmem>>, vector<2x4x128xf32>
    tpu.vector_store %arg7[%c0_27, %c0_28, %c0_29], %50 {strides = array<i32>} : memref<2x4x128xf32, #tpu.memory_space<vmem>>, vector<2x4x128xf32>,
    return
  }
  func.func @transform_0(%arg0: i32) -> (i32, i32, i32) {
    %c0_i32 = arith.constant 0 : i32
    %c0_i32_0 = arith.constant 0 : i32
    %c0_i32_1 = arith.constant 0 : i32
    %c0_i32_2 = arith.constant 0 : i32
    return %c0_i32, %c0_i32_0, %c0_i32_1 : i32, i32, i32
  }
  func.func @transform_1(%arg0: i32) -> (i32, i32, i32) {
    %c0_i32 = arith.constant 0 : i32
    %c0_i32_0 = arith.constant 0 : i32
    %c0_i32_1 = arith.constant 0 : i32
    %c0_i32_2 = arith.constant 0 : i32
    return %c0_i32, %c0_i32_0, %c0_i32_1 : i32, i32, i32
  }
  func.func @transform_2(%arg0: i32) -> (i32, i32, i32) {
    %c0_i32 = arith.constant 0 : i32
    %c0_i32_0 = arith.constant 0 : i32
    %c0_i32_1 = arith.constant 0 : i32
    return %c0_i32, %c0_i32_0, %arg0 : i32, i32, i32
  }
  func.func @transform_3(%arg0: i32) -> (i32, i32) {
    %c0_i32 = arith.constant 0 : i32
    %c0_i32_0 = arith.constant 0 : i32
    return %c0_i32, %arg0 : i32, i32
  }
  func.func @transform_4(%arg0: i32) -> (i32, i32) {
    %c0_i32 = arith.constant 0 : i32
    %c0_i32_0 = arith.constant 0 : i32
    return %c0_i32, %arg0 : i32, i32
  }
  func.func @transform_5(%arg0: i32) -> (i32, i32) {
    %c0_i32 = arith.constant 0 : i32
    %c0_i32_0 = arith.constant 0 : i32
    return %c0_i32, %arg0 : i32, i32
  }
  func.func @transform_6(%arg0: i32) -> (i32, i32, i32) {
    %c0_i32 = arith.constant 0 : i32
    %c0_i32_0 = arith.constant 0 : i32
    %c0_i32_1 = arith.constant 0 : i32
    return %c0_i32, %c0_i32_0, %arg0 : i32, i32, i32
  }
}

module attributes {stable_mosaic.version = 11 : i64} {
  func.func @_conv_bn_kernel(%arg0: i32, %arg1: memref<2x6x128xf32, #tpu.memory_space<vmem>>, %arg2: memref<3x128x128xf32, #tpu.memory_space<vmem>>, %arg3: memref<1x128xf32, #tpu.memory_space<vmem>>, %arg4: memref<1x128xf32, #tpu.memory_space<vmem>>, %arg5: memref<1x128xf32, #tpu.memory_space<vmem>>, %arg6: memref<2x4x128xf32, #tpu.memory_space<vmem>>, %arg7: memref<2x4x128xf32, #tpu.memory_space<vmem>>) attributes {dimension_semantics = [#tpu.dimension_semantics<parallel>], iteration_bounds = array<i64: 1>, scalar_prefetch = 0 : i64, scratch_operands = 0 : i64, tpu.core_type = #tpu.core_type<tc>, window_params = [{pipeline_mode = #tpu.pipeline_mode<synchronous>, transform_indices = @transform_0, window_bounds = array<i64: 2, 6, 128>}, {transform_indices = @transform_1, window_bounds = array<i64: 3, 128, 128>}, {transform_indices = @transform_2, window_bounds = array<i64: 1, 128>}, {transform_indices = @transform_3, window_bounds = array<i64: 1, 128>}, {transform_indices = @transform_4, window_bounds = array<i64: 1, 128>}, {transform_indices = @transform_5, window_bounds = array<i64: 2, 4, 128>}, {transform_indices = @transform_6, window_bounds = array<i64: 2, 4, 128>}]} {
    %c0 = arith.constant 0 : index
    %c0_0 = arith.constant 0 : index
    %c0_1 = arith.constant 0 : index
    %0 = vector.load %arg1[%c0, %c0_0, %c0_1] : memref<2x6x128xf32, #tpu.memory_space<vmem>>, vector<2x6x128xf32>
    %cst = arith.constant 0.000000e+00 : f32
    %1 = vector.broadcast %cst : f32 to vector<8x128xf32>
    %2 = vector.extract_strided_slice %0 {offsets = [0, 0, 0], sizes = [2, 4, 128], strides = [1, 1, 1]} : vector<2x6x128xf32> to vector<2x4x128xf32>
    %3 = vector.shape_cast %2 : vector<2x4x128xf32> to vector<8x128xf32>
    %c0_2 = arith.constant 0 : index
    %c0_3 = arith.constant 0 : index
    %c0_4 = arith.constant 0 : index
    %4 = vector.load %arg2[%c0_2, %c0_3, %c0_4] : memref<3x128x128xf32, #tpu.memory_space<vmem>>, vector<1x128x128xf32>
    %5 = vector.shape_cast %4 : vector<1x128x128xf32> to vector<128x128xf32>
    %cst_5 = arith.constant dense<0.000000e+00> : vector<8x128xf32>
    %6 = tpu.matmul %3, %5, %cst_5 {dimension_numbers = #tpu.dot_dimension_numbers<[1], [0], [0], [1], [0, 0, 1, 1], [], []>} : vector<8x128xf32>, vector<128x128xf32>, vector<8x128xf32> -> vector<8x128xf32>
    %7 = arith.addf %1, %6 : vector<8x128xf32>
    %8 = vector.extract_strided_slice %0 {offsets = [0, 1, 0], sizes = [2, 4, 128], strides = [1, 1, 1]} : vector<2x6x128xf32> to vector<2x4x128xf32>
    %9 = vector.shape_cast %8 : vector<2x4x128xf32> to vector<8x128xf32>
    %c1 = arith.constant 1 : index
    %c0_6 = arith.constant 0 : index
    %c0_7 = arith.constant 0 : index
    %10 = vector.load %arg2[%c1, %c0_6, %c0_7] : memref<3x128x128xf32, #tpu.memory_space<vmem>>, vector<1x128x128xf32>
    %11 = vector.shape_cast %10 : vector<1x128x128xf32> to vector<128x128xf32>
    %cst_8 = arith.constant dense<0.000000e+00> : vector<8x128xf32>
    %12 = tpu.matmul %9, %11, %cst_8 {dimension_numbers = #tpu.dot_dimension_numbers<[1], [0], [0], [1], [0, 0, 1, 1], [], []>} : vector<8x128xf32>, vector<128x128xf32>, vector<8x128xf32> -> vector<8x128xf32>
    %13 = arith.addf %7, %12 : vector<8x128xf32>
    %14 = vector.extract_strided_slice %0 {offsets = [0, 2, 0], sizes = [2, 4, 128], strides = [1, 1, 1]} : vector<2x6x128xf32> to vector<2x4x128xf32>
    %15 = vector.shape_cast %14 : vector<2x4x128xf32> to vector<8x128xf32>
    %c2 = arith.constant 2 : index
    %c0_9 = arith.constant 0 : index
    %c0_10 = arith.constant 0 : index
    %16 = vector.load %arg2[%c2, %c0_9, %c0_10] : memref<3x128x128xf32, #tpu.memory_space<vmem>>, vector<1x128x128xf32>
    %17 = vector.shape_cast %16 : vector<1x128x128xf32> to vector<128x128xf32>
    %cst_11 = arith.constant dense<0.000000e+00> : vector<8x128xf32>
    %18 = tpu.matmul %15, %17, %cst_11 {dimension_numbers = #tpu.dot_dimension_numbers<[1], [0], [0], [1], [0, 0, 1, 1], [], []>} : vector<8x128xf32>, vector<128x128xf32>, vector<8x128xf32> -> vector<8x128xf32>
    %19 = arith.addf %13, %18 : vector<8x128xf32>
    %c0_12 = arith.constant 0 : index
    %c0_13 = arith.constant 0 : index
    %20 = vector.load %arg3[%c0_12, %c0_13] : memref<1x128xf32, #tpu.memory_space<vmem>>, vector<1x128xf32>
    %21 = vector.broadcast %20 : vector<1x128xf32> to vector<8x128xf32>
    %22 = arith.addf %19, %21 : vector<8x128xf32>
    %cst_14 = arith.constant dense<0.000000e+00> : vector<128xf32>
    %23 = vector.multi_reduction <add>, %22, %cst_14 [0] : vector<8x128xf32> to vector<128xf32>
    %24 = vector.shape_cast %23 : vector<128xf32> to vector<1x128xf32>
    %cst_15 = arith.constant 8.000000e+00 : f32
    %25 = vector.broadcast %cst_15 : f32 to vector<1x128xf32>
    %26 = arith.divf %24, %25 : vector<1x128xf32>
    %27 = vector.broadcast %26 : vector<1x128xf32> to vector<8x128xf32>
    %28 = arith.subf %22, %27 : vector<8x128xf32>
    %29 = arith.mulf %28, %28 : vector<8x128xf32>
    %cst_16 = arith.constant dense<0.000000e+00> : vector<128xf32>
    %30 = vector.multi_reduction <add>, %29, %cst_16 [0] : vector<8x128xf32> to vector<128xf32>
    %31 = vector.shape_cast %30 : vector<128xf32> to vector<1x128xf32>
    %cst_17 = arith.constant 8.000000e+00 : f32
    %32 = vector.broadcast %cst_17 : f32 to vector<1x128xf32>
    %33 = arith.divf %31, %32 : vector<1x128xf32>
    %34 = vector.broadcast %26 : vector<1x128xf32> to vector<8x128xf32>
    %35 = arith.subf %22, %34 : vector<8x128xf32>
    %cst_18 = arith.constant 9.99999974E-6 : f32
    %36 = vector.broadcast %cst_18 : f32 to vector<1x128xf32>
    %37 = arith.addf %33, %36 : vector<1x128xf32>
    %38 = math.rsqrt %37 : vector<1x128xf32>
    %39 = vector.broadcast %38 : vector<1x128xf32> to vector<8x128xf32>
    %40 = arith.mulf %35, %39 : vector<8x128xf32>
    %c0_19 = arith.constant 0 : index
    %c0_20 = arith.constant 0 : index
    %41 = vector.load %arg4[%c0_19, %c0_20] : memref<1x128xf32, #tpu.memory_space<vmem>>, vector<1x128xf32>
    %42 = vector.broadcast %41 : vector<1x128xf32> to vector<8x128xf32>
    %43 = arith.mulf %40, %42 : vector<8x128xf32>
    %c0_21 = arith.constant 0 : index
    %c0_22 = arith.constant 0 : index
    %44 = vector.load %arg5[%c0_21, %c0_22] : memref<1x128xf32, #tpu.memory_space<vmem>>, vector<1x128xf32>
    %45 = vector.broadcast %44 : vector<1x128xf32> to vector<8x128xf32>
    %46 = arith.addf %43, %45 : vector<8x128xf32>
    %c0_23 = arith.constant 0 : index
    %c0_24 = arith.constant 0 : index
    %c0_25 = arith.constant 0 : index
    %47 = vector.load %arg6[%c0_23, %c0_24, %c0_25] : memref<2x4x128xf32, #tpu.memory_space<vmem>>, vector<2x4x128xf32>
    %48 = vector.shape_cast %47 : vector<2x4x128xf32> to vector<8x128xf32>
    %49 = arith.addf %46, %48 : vector<8x128xf32>
    %cst_26 = arith.constant 0.000000e+00 : f32
    %50 = vector.broadcast %cst_26 : f32 to vector<8x128xf32>
    %51 = arith.maximumf %49, %50 : vector<8x128xf32>
    %52 = vector.shape_cast %51 : vector<8x128xf32> to vector<2x4x128xf32>
    %c0_27 = arith.constant 0 : index
    %c0_28 = arith.constant 0 : index
    %c0_29 = arith.constant 0 : index
    %53 = vector.load %arg7[%c0_27, %c0_28, %c0_29] : memref<2x4x128xf32, #tpu.memory_space<vmem>>, vector<2x4x128xf32>
    tpu.vector_store %arg7[%c0_27, %c0_28, %c0_29], %52 {strides = array<i32>} : memref<2x4x128xf32, #tpu.memory_space<vmem>>, vector<2x4x128xf32>,
    return
  }
  func.func @transform_0(%arg0: i32) -> (i32, i32, i32) {
    %c0_i32 = arith.constant 0 : i32
    %c0_i32_0 = arith.constant 0 : i32
    %c0_i32_1 = arith.constant 0 : i32
    %c0_i32_2 = arith.constant 0 : i32
    return %c0_i32, %c0_i32_0, %c0_i32_1 : i32, i32, i32
  }
  func.func @transform_1(%arg0: i32) -> (i32, i32, i32) {
    %c0_i32 = arith.constant 0 : i32
    %c0_i32_0 = arith.constant 0 : i32
    %c0_i32_1 = arith.constant 0 : i32
    return %c0_i32, %c0_i32_0, %arg0 : i32, i32, i32
  }
  func.func @transform_2(%arg0: i32) -> (i32, i32) {
    %c0_i32 = arith.constant 0 : i32
    %c0_i32_0 = arith.constant 0 : i32
    return %c0_i32, %arg0 : i32, i32
  }
  func.func @transform_3(%arg0: i32) -> (i32, i32) {
    %c0_i32 = arith.constant 0 : i32
    %c0_i32_0 = arith.constant 0 : i32
    return %c0_i32, %arg0 : i32, i32
  }
  func.func @transform_4(%arg0: i32) -> (i32, i32) {
    %c0_i32 = arith.constant 0 : i32
    %c0_i32_0 = arith.constant 0 : i32
    return %c0_i32, %arg0 : i32, i32
  }
  func.func @transform_5(%arg0: i32) -> (i32, i32, i32) {
    %c0_i32 = arith.constant 0 : i32
    %c0_i32_0 = arith.constant 0 : i32
    %c0_i32_1 = arith.constant 0 : i32
    return %c0_i32, %c0_i32_0, %arg0 : i32, i32, i32
  }
  func.func @transform_6(%arg0: i32) -> (i32, i32, i32) {
    %c0_i32 = arith.constant 0 : i32
    %c0_i32_0 = arith.constant 0 : i32
    %c0_i32_1 = arith.constant 0 : i32
    return %c0_i32, %c0_i32_0, %arg0 : i32, i32, i32
  }
}

module attributes {stable_mosaic.version = 11 : i64} {
  func.func @_conv_bn_kernel(%arg0: i32, %arg1: memref<2x6x128xf32, #tpu.memory_space<vmem>>, %arg2: memref<3x128x128xf32, #tpu.memory_space<vmem>>, %arg3: memref<1x128xf32, #tpu.memory_space<vmem>>, %arg4: memref<1x128xf32, #tpu.memory_space<vmem>>, %arg5: memref<1x128xf32, #tpu.memory_space<vmem>>, %arg6: memref<2x4x128xf32, #tpu.memory_space<vmem>>) attributes {dimension_semantics = [#tpu.dimension_semantics<parallel>], iteration_bounds = array<i64: 1>, scalar_prefetch = 0 : i64, scratch_operands = 0 : i64, tpu.core_type = #tpu.core_type<tc>, window_params = [{pipeline_mode = #tpu.pipeline_mode<synchronous>, transform_indices = @transform_0, window_bounds = array<i64: 2, 6, 128>}, {transform_indices = @transform_1, window_bounds = array<i64: 3, 128, 128>}, {transform_indices = @transform_2, window_bounds = array<i64: 1, 128>}, {transform_indices = @transform_3, window_bounds = array<i64: 1, 128>}, {transform_indices = @transform_4, window_bounds = array<i64: 1, 128>}, {transform_indices = @transform_5, window_bounds = array<i64: 2, 4, 128>}]} {
    %c0 = arith.constant 0 : index
    %c0_0 = arith.constant 0 : index
    %c0_1 = arith.constant 0 : index
    %0 = vector.load %arg1[%c0, %c0_0, %c0_1] : memref<2x6x128xf32, #tpu.memory_space<vmem>>, vector<2x6x128xf32>
    %cst = arith.constant 0.000000e+00 : f32
    %1 = vector.broadcast %cst : f32 to vector<8x128xf32>
    %2 = vector.extract_strided_slice %0 {offsets = [0, 0, 0], sizes = [2, 4, 128], strides = [1, 1, 1]} : vector<2x6x128xf32> to vector<2x4x128xf32>
    %3 = vector.shape_cast %2 : vector<2x4x128xf32> to vector<8x128xf32>
    %c0_2 = arith.constant 0 : index
    %c0_3 = arith.constant 0 : index
    %c0_4 = arith.constant 0 : index
    %4 = vector.load %arg2[%c0_2, %c0_3, %c0_4] : memref<3x128x128xf32, #tpu.memory_space<vmem>>, vector<1x128x128xf32>
    %5 = vector.shape_cast %4 : vector<1x128x128xf32> to vector<128x128xf32>
    %cst_5 = arith.constant dense<0.000000e+00> : vector<8x128xf32>
    %6 = tpu.matmul %3, %5, %cst_5 {dimension_numbers = #tpu.dot_dimension_numbers<[1], [0], [0], [1], [0, 0, 1, 1], [], []>} : vector<8x128xf32>, vector<128x128xf32>, vector<8x128xf32> -> vector<8x128xf32>
    %7 = arith.addf %1, %6 : vector<8x128xf32>
    %8 = vector.extract_strided_slice %0 {offsets = [0, 1, 0], sizes = [2, 4, 128], strides = [1, 1, 1]} : vector<2x6x128xf32> to vector<2x4x128xf32>
    %9 = vector.shape_cast %8 : vector<2x4x128xf32> to vector<8x128xf32>
    %c1 = arith.constant 1 : index
    %c0_6 = arith.constant 0 : index
    %c0_7 = arith.constant 0 : index
    %10 = vector.load %arg2[%c1, %c0_6, %c0_7] : memref<3x128x128xf32, #tpu.memory_space<vmem>>, vector<1x128x128xf32>
    %11 = vector.shape_cast %10 : vector<1x128x128xf32> to vector<128x128xf32>
    %cst_8 = arith.constant dense<0.000000e+00> : vector<8x128xf32>
    %12 = tpu.matmul %9, %11, %cst_8 {dimension_numbers = #tpu.dot_dimension_numbers<[1], [0], [0], [1], [0, 0, 1, 1], [], []>} : vector<8x128xf32>, vector<128x128xf32>, vector<8x128xf32> -> vector<8x128xf32>
    %13 = arith.addf %7, %12 : vector<8x128xf32>
    %14 = vector.extract_strided_slice %0 {offsets = [0, 2, 0], sizes = [2, 4, 128], strides = [1, 1, 1]} : vector<2x6x128xf32> to vector<2x4x128xf32>
    %15 = vector.shape_cast %14 : vector<2x4x128xf32> to vector<8x128xf32>
    %c2 = arith.constant 2 : index
    %c0_9 = arith.constant 0 : index
    %c0_10 = arith.constant 0 : index
    %16 = vector.load %arg2[%c2, %c0_9, %c0_10] : memref<3x128x128xf32, #tpu.memory_space<vmem>>, vector<1x128x128xf32>
    %17 = vector.shape_cast %16 : vector<1x128x128xf32> to vector<128x128xf32>
    %cst_11 = arith.constant dense<0.000000e+00> : vector<8x128xf32>
    %18 = tpu.matmul %15, %17, %cst_11 {dimension_numbers = #tpu.dot_dimension_numbers<[1], [0], [0], [1], [0, 0, 1, 1], [], []>} : vector<8x128xf32>, vector<128x128xf32>, vector<8x128xf32> -> vector<8x128xf32>
    %19 = arith.addf %13, %18 : vector<8x128xf32>
    %c0_12 = arith.constant 0 : index
    %c0_13 = arith.constant 0 : index
    %20 = vector.load %arg3[%c0_12, %c0_13] : memref<1x128xf32, #tpu.memory_space<vmem>>, vector<1x128xf32>
    %21 = vector.broadcast %20 : vector<1x128xf32> to vector<8x128xf32>
    %22 = arith.addf %19, %21 : vector<8x128xf32>
    %cst_14 = arith.constant dense<0.000000e+00> : vector<128xf32>
    %23 = vector.multi_reduction <add>, %22, %cst_14 [0] : vector<8x128xf32> to vector<128xf32>
    %24 = vector.shape_cast %23 : vector<128xf32> to vector<1x128xf32>
    %cst_15 = arith.constant 8.000000e+00 : f32
    %25 = vector.broadcast %cst_15 : f32 to vector<1x128xf32>
    %26 = arith.divf %24, %25 : vector<1x128xf32>
    %27 = vector.broadcast %26 : vector<1x128xf32> to vector<8x128xf32>
    %28 = arith.subf %22, %27 : vector<8x128xf32>
    %29 = arith.mulf %28, %28 : vector<8x128xf32>
    %cst_16 = arith.constant dense<0.000000e+00> : vector<128xf32>
    %30 = vector.multi_reduction <add>, %29, %cst_16 [0] : vector<8x128xf32> to vector<128xf32>
    %31 = vector.shape_cast %30 : vector<128xf32> to vector<1x128xf32>
    %cst_17 = arith.constant 8.000000e+00 : f32
    %32 = vector.broadcast %cst_17 : f32 to vector<1x128xf32>
    %33 = arith.divf %31, %32 : vector<1x128xf32>
    %34 = vector.broadcast %26 : vector<1x128xf32> to vector<8x128xf32>
    %35 = arith.subf %22, %34 : vector<8x128xf32>
    %cst_18 = arith.constant 9.99999974E-6 : f32
    %36 = vector.broadcast %cst_18 : f32 to vector<1x128xf32>
    %37 = arith.addf %33, %36 : vector<1x128xf32>
    %38 = math.rsqrt %37 : vector<1x128xf32>
    %39 = vector.broadcast %38 : vector<1x128xf32> to vector<8x128xf32>
    %40 = arith.mulf %35, %39 : vector<8x128xf32>
    %c0_19 = arith.constant 0 : index
    %c0_20 = arith.constant 0 : index
    %41 = vector.load %arg4[%c0_19, %c0_20] : memref<1x128xf32, #tpu.memory_space<vmem>>, vector<1x128xf32>
    %42 = vector.broadcast %41 : vector<1x128xf32> to vector<8x128xf32>
    %43 = arith.mulf %40, %42 : vector<8x128xf32>
    %c0_21 = arith.constant 0 : index
    %c0_22 = arith.constant 0 : index
    %44 = vector.load %arg5[%c0_21, %c0_22] : memref<1x128xf32, #tpu.memory_space<vmem>>, vector<1x128xf32>
    %45 = vector.broadcast %44 : vector<1x128xf32> to vector<8x128xf32>
    %46 = arith.addf %43, %45 : vector<8x128xf32>
    %cst_23 = arith.constant 0.000000e+00 : f32
    %47 = vector.broadcast %cst_23 : f32 to vector<8x128xf32>
    %48 = arith.maximumf %46, %47 : vector<8x128xf32>
    %49 = vector.shape_cast %48 : vector<8x128xf32> to vector<2x4x128xf32>
    %c0_24 = arith.constant 0 : index
    %c0_25 = arith.constant 0 : index
    %c0_26 = arith.constant 0 : index
    %50 = vector.load %arg6[%c0_24, %c0_25, %c0_26] : memref<2x4x128xf32, #tpu.memory_space<vmem>>, vector<2x4x128xf32>
    tpu.vector_store %arg6[%c0_24, %c0_25, %c0_26], %49 {strides = array<i32>} : memref<2x4x128xf32, #tpu.memory_space<vmem>>, vector<2x4x128xf32>,
    return
  }
  func.func @transform_0(%arg0: i32) -> (i32, i32, i32) {
    %c0_i32 = arith.constant 0 : i32
    %c0_i32_0 = arith.constant 0 : i32
    %c0_i32_1 = arith.constant 0 : i32
    %c0_i32_2 = arith.constant 0 : i32
    return %c0_i32, %c0_i32_0, %c0_i32_1 : i32, i32, i32
  }
  func.func @transform_1(%arg0: i32) -> (i32, i32, i32) {
    %c0_i32 = arith.constant 0 : i32
    %c0_i32_0 = arith.constant 0 : i32
    %c0_i32_1 = arith.constant 0 : i32
    return %c0_i32, %c0_i32_0, %arg0 : i32, i32, i32
  }
  func.func @transform_2(%arg0: i32) -> (i32, i32) {
    %c0_i32 = arith.constant 0 : i32
    %c0_i32_0 = arith.constant 0 : i32
    return %c0_i32, %arg0 : i32, i32
  }
  func.func @transform_3(%arg0: i32) -> (i32, i32) {
    %c0_i32 = arith.constant 0 : i32
    %c0_i32_0 = arith.constant 0 : i32
    return %c0_i32, %arg0 : i32, i32
  }
  func.func @transform_4(%arg0: i32) -> (i32, i32) {
    %c0_i32 = arith.constant 0 : i32
    %c0_i32_0 = arith.constant 0 : i32
    return %c0_i32, %arg0 : i32, i32
  }
  func.func @transform_5(%arg0: i32) -> (i32, i32, i32) {
    %c0_i32 = arith.constant 0 : i32
    %c0_i32_0 = arith.constant 0 : i32
    %c0_i32_1 = arith.constant 0 : i32
    return %c0_i32, %c0_i32_0, %arg0 : i32, i32, i32
  }
}

module attributes {stable_mosaic.version = 11 : i64} {
  func.func @_conv_bn_kernel(%arg0: i32, %arg1: memref<2x2x128xf32, #tpu.memory_space<vmem>>, %arg2: memref<1x128x128xf32, #tpu.memory_space<vmem>>, %arg3: memref<1x128xf32, #tpu.memory_space<vmem>>, %arg4: memref<1x128xf32, #tpu.memory_space<vmem>>, %arg5: memref<1x128xf32, #tpu.memory_space<vmem>>, %arg6: memref<2x2x128xf32, #tpu.memory_space<vmem>>) attributes {dimension_semantics = [#tpu.dimension_semantics<parallel>], iteration_bounds = array<i64: 1>, scalar_prefetch = 0 : i64, scratch_operands = 0 : i64, tpu.core_type = #tpu.core_type<tc>, window_params = [{pipeline_mode = #tpu.pipeline_mode<synchronous>, transform_indices = @transform_0, window_bounds = array<i64: 2, 2, 128>}, {transform_indices = @transform_1, window_bounds = array<i64: 1, 128, 128>}, {transform_indices = @transform_2, window_bounds = array<i64: 1, 128>}, {transform_indices = @transform_3, window_bounds = array<i64: 1, 128>}, {transform_indices = @transform_4, window_bounds = array<i64: 1, 128>}, {transform_indices = @transform_5, window_bounds = array<i64: 2, 2, 128>}]} {
    %c0 = arith.constant 0 : index
    %c0_0 = arith.constant 0 : index
    %c0_1 = arith.constant 0 : index
    %0 = vector.load %arg1[%c0, %c0_0, %c0_1] : memref<2x2x128xf32, #tpu.memory_space<vmem>>, vector<2x2x128xf32>
    %cst = arith.constant 0.000000e+00 : f32
    %1 = vector.broadcast %cst : f32 to vector<4x128xf32>
    %2 = vector.shape_cast %0 : vector<2x2x128xf32> to vector<4x128xf32>
    %c0_2 = arith.constant 0 : index
    %c0_3 = arith.constant 0 : index
    %c0_4 = arith.constant 0 : index
    %3 = vector.load %arg2[%c0_2, %c0_3, %c0_4] : memref<1x128x128xf32, #tpu.memory_space<vmem>>, vector<1x128x128xf32>
    %4 = vector.shape_cast %3 : vector<1x128x128xf32> to vector<128x128xf32>
    %cst_5 = arith.constant dense<0.000000e+00> : vector<4x128xf32>
    %5 = tpu.matmul %2, %4, %cst_5 {dimension_numbers = #tpu.dot_dimension_numbers<[1], [0], [0], [1], [0, 0, 1, 1], [], []>} : vector<4x128xf32>, vector<128x128xf32>, vector<4x128xf32> -> vector<4x128xf32>
    %6 = arith.addf %1, %5 : vector<4x128xf32>
    %c0_6 = arith.constant 0 : index
    %c0_7 = arith.constant 0 : index
    %7 = vector.load %arg3[%c0_6, %c0_7] : memref<1x128xf32, #tpu.memory_space<vmem>>, vector<1x128xf32>
    %8 = vector.broadcast %7 : vector<1x128xf32> to vector<4x128xf32>
    %9 = arith.addf %6, %8 : vector<4x128xf32>
    %cst_8 = arith.constant dense<0.000000e+00> : vector<128xf32>
    %10 = vector.multi_reduction <add>, %9, %cst_8 [0] : vector<4x128xf32> to vector<128xf32>
    %11 = vector.shape_cast %10 : vector<128xf32> to vector<1x128xf32>
    %cst_9 = arith.constant 4.000000e+00 : f32
    %12 = vector.broadcast %cst_9 : f32 to vector<1x128xf32>
    %13 = arith.divf %11, %12 : vector<1x128xf32>
    %14 = vector.broadcast %13 : vector<1x128xf32> to vector<4x128xf32>
    %15 = arith.subf %9, %14 : vector<4x128xf32>
    %16 = arith.mulf %15, %15 : vector<4x128xf32>
    %cst_10 = arith.constant dense<0.000000e+00> : vector<128xf32>
    %17 = vector.multi_reduction <add>, %16, %cst_10 [0] : vector<4x128xf32> to vector<128xf32>
    %18 = vector.shape_cast %17 : vector<128xf32> to vector<1x128xf32>
    %cst_11 = arith.constant 4.000000e+00 : f32
    %19 = vector.broadcast %cst_11 : f32 to vector<1x128xf32>
    %20 = arith.divf %18, %19 : vector<1x128xf32>
    %21 = vector.broadcast %13 : vector<1x128xf32> to vector<4x128xf32>
    %22 = arith.subf %9, %21 : vector<4x128xf32>
    %cst_12 = arith.constant 9.99999974E-6 : f32
    %23 = vector.broadcast %cst_12 : f32 to vector<1x128xf32>
    %24 = arith.addf %20, %23 : vector<1x128xf32>
    %25 = math.rsqrt %24 : vector<1x128xf32>
    %26 = vector.broadcast %25 : vector<1x128xf32> to vector<4x128xf32>
    %27 = arith.mulf %22, %26 : vector<4x128xf32>
    %c0_13 = arith.constant 0 : index
    %c0_14 = arith.constant 0 : index
    %28 = vector.load %arg4[%c0_13, %c0_14] : memref<1x128xf32, #tpu.memory_space<vmem>>, vector<1x128xf32>
    %29 = vector.broadcast %28 : vector<1x128xf32> to vector<4x128xf32>
    %30 = arith.mulf %27, %29 : vector<4x128xf32>
    %c0_15 = arith.constant 0 : index
    %c0_16 = arith.constant 0 : index
    %31 = vector.load %arg5[%c0_15, %c0_16] : memref<1x128xf32, #tpu.memory_space<vmem>>, vector<1x128xf32>
    %32 = vector.broadcast %31 : vector<1x128xf32> to vector<4x128xf32>
    %33 = arith.addf %30, %32 : vector<4x128xf32>
    %34 = vector.shape_cast %33 : vector<4x128xf32> to vector<2x2x128xf32>
    %c0_17 = arith.constant 0 : index
    %c0_18 = arith.constant 0 : index
    %c0_19 = arith.constant 0 : index
    %35 = vector.load %arg6[%c0_17, %c0_18, %c0_19] : memref<2x2x128xf32, #tpu.memory_space<vmem>>, vector<2x2x128xf32>
    tpu.vector_store %arg6[%c0_17, %c0_18, %c0_19], %34 {strides = array<i32>} : memref<2x2x128xf32, #tpu.memory_space<vmem>>, vector<2x2x128xf32>,
    return
  }
  func.func @transform_0(%arg0: i32) -> (i32, i32, i32) {
    %c0_i32 = arith.constant 0 : i32
    %c0_i32_0 = arith.constant 0 : i32
    %c0_i32_1 = arith.constant 0 : i32
    %c0_i32_2 = arith.constant 0 : i32
    return %c0_i32, %c0_i32_0, %c0_i32_1 : i32, i32, i32
  }
  func.func @transform_1(%arg0: i32) -> (i32, i32, i32) {
    %c0_i32 = arith.constant 0 : i32
    %c0_i32_0 = arith.constant 0 : i32
    %c0_i32_1 = arith.constant 0 : i32
    return %c0_i32, %c0_i32_0, %arg0 : i32, i32, i32
  }
  func.func @transform_2(%arg0: i32) -> (i32, i32) {
    %c0_i32 = arith.constant 0 : i32
    %c0_i32_0 = arith.constant 0 : i32
    return %c0_i32, %arg0 : i32, i32
  }
  func.func @transform_3(%arg0: i32) -> (i32, i32) {
    %c0_i32 = arith.constant 0 : i32
    %c0_i32_0 = arith.constant 0 : i32
    return %c0_i32, %arg0 : i32, i32
  }
  func.func @transform_4(%arg0: i32) -> (i32, i32) {
    %c0_i32 = arith.constant 0 : i32
    %c0_i32_0 = arith.constant 0 : i32
    return %c0_i32, %arg0 : i32, i32
  }
  func.func @transform_5(%arg0: i32) -> (i32, i32, i32) {
    %c0_i32 = arith.constant 0 : i32
    %c0_i32_0 = arith.constant 0 : i32
    %c0_i32_1 = arith.constant 0 : i32
    return %c0_i32, %c0_i32_0, %arg0 : i32, i32, i32
  }
}

module attributes {stable_mosaic.version = 11 : i64} {
  func.func @_conv_bn_kernel(%arg0: i32, %arg1: memref<2x3x128xf32, #tpu.memory_space<vmem>>, %arg2: memref<2x3x128xf32, #tpu.memory_space<vmem>>, %arg3: memref<3x128x128xf32, #tpu.memory_space<vmem>>, %arg4: memref<1x128xf32, #tpu.memory_space<vmem>>, %arg5: memref<1x128xf32, #tpu.memory_space<vmem>>, %arg6: memref<1x128xf32, #tpu.memory_space<vmem>>, %arg7: memref<2x2x128xf32, #tpu.memory_space<vmem>>) attributes {dimension_semantics = [#tpu.dimension_semantics<parallel>], iteration_bounds = array<i64: 1>, scalar_prefetch = 0 : i64, scratch_operands = 0 : i64, tpu.core_type = #tpu.core_type<tc>, window_params = [{pipeline_mode = #tpu.pipeline_mode<synchronous>, transform_indices = @transform_0, window_bounds = array<i64: 2, 3, 128>}, {pipeline_mode = #tpu.pipeline_mode<synchronous>, transform_indices = @transform_1, window_bounds = array<i64: 2, 3, 128>}, {transform_indices = @transform_2, window_bounds = array<i64: 3, 128, 128>}, {transform_indices = @transform_3, window_bounds = array<i64: 1, 128>}, {transform_indices = @transform_4, window_bounds = array<i64: 1, 128>}, {transform_indices = @transform_5, window_bounds = array<i64: 1, 128>}, {transform_indices = @transform_6, window_bounds = array<i64: 2, 2, 128>}]} {
    %c0 = arith.constant 0 : index
    %c0_0 = arith.constant 0 : index
    %c0_1 = arith.constant 0 : index
    %0 = vector.load %arg1[%c0, %c0_0, %c0_1] : memref<2x3x128xf32, #tpu.memory_space<vmem>>, vector<2x3x128xf32>
    %c0_2 = arith.constant 0 : index
    %c0_3 = arith.constant 0 : index
    %c0_4 = arith.constant 0 : index
    %1 = vector.load %arg2[%c0_2, %c0_3, %c0_4] : memref<2x3x128xf32, #tpu.memory_space<vmem>>, vector<2x3x128xf32>
    %cst = arith.constant 0.000000e+00 : f32
    %2 = vector.broadcast %cst : f32 to vector<4x128xf32>
    %3 = vector.extract_strided_slice %0 {offsets = [0, 0, 0], sizes = [2, 2, 128], strides = [1, 1, 1]} : vector<2x3x128xf32> to vector<2x2x128xf32>
    %4 = vector.shape_cast %3 : vector<2x2x128xf32> to vector<4x128xf32>
    %c0_5 = arith.constant 0 : index
    %c0_6 = arith.constant 0 : index
    %c0_7 = arith.constant 0 : index
    %5 = vector.load %arg3[%c0_5, %c0_6, %c0_7] : memref<3x128x128xf32, #tpu.memory_space<vmem>>, vector<1x128x128xf32>
    %6 = vector.shape_cast %5 : vector<1x128x128xf32> to vector<128x128xf32>
    %cst_8 = arith.constant dense<0.000000e+00> : vector<4x128xf32>
    %7 = tpu.matmul %4, %6, %cst_8 {dimension_numbers = #tpu.dot_dimension_numbers<[1], [0], [0], [1], [0, 0, 1, 1], [], []>} : vector<4x128xf32>, vector<128x128xf32>, vector<4x128xf32> -> vector<4x128xf32>
    %8 = arith.addf %2, %7 : vector<4x128xf32>
    %9 = vector.extract_strided_slice %1 {offsets = [0, 0, 0], sizes = [2, 2, 128], strides = [1, 1, 1]} : vector<2x3x128xf32> to vector<2x2x128xf32>
    %10 = vector.shape_cast %9 : vector<2x2x128xf32> to vector<4x128xf32>
    %c1 = arith.constant 1 : index
    %c0_9 = arith.constant 0 : index
    %c0_10 = arith.constant 0 : index
    %11 = vector.load %arg3[%c1, %c0_9, %c0_10] : memref<3x128x128xf32, #tpu.memory_space<vmem>>, vector<1x128x128xf32>
    %12 = vector.shape_cast %11 : vector<1x128x128xf32> to vector<128x128xf32>
    %cst_11 = arith.constant dense<0.000000e+00> : vector<4x128xf32>
    %13 = tpu.matmul %10, %12, %cst_11 {dimension_numbers = #tpu.dot_dimension_numbers<[1], [0], [0], [1], [0, 0, 1, 1], [], []>} : vector<4x128xf32>, vector<128x128xf32>, vector<4x128xf32> -> vector<4x128xf32>
    %14 = arith.addf %8, %13 : vector<4x128xf32>
    %15 = vector.extract_strided_slice %0 {offsets = [0, 1, 0], sizes = [2, 2, 128], strides = [1, 1, 1]} : vector<2x3x128xf32> to vector<2x2x128xf32>
    %16 = vector.shape_cast %15 : vector<2x2x128xf32> to vector<4x128xf32>
    %c2 = arith.constant 2 : index
    %c0_12 = arith.constant 0 : index
    %c0_13 = arith.constant 0 : index
    %17 = vector.load %arg3[%c2, %c0_12, %c0_13] : memref<3x128x128xf32, #tpu.memory_space<vmem>>, vector<1x128x128xf32>
    %18 = vector.shape_cast %17 : vector<1x128x128xf32> to vector<128x128xf32>
    %cst_14 = arith.constant dense<0.000000e+00> : vector<4x128xf32>
    %19 = tpu.matmul %16, %18, %cst_14 {dimension_numbers = #tpu.dot_dimension_numbers<[1], [0], [0], [1], [0, 0, 1, 1], [], []>} : vector<4x128xf32>, vector<128x128xf32>, vector<4x128xf32> -> vector<4x128xf32>
    %20 = arith.addf %14, %19 : vector<4x128xf32>
    %c0_15 = arith.constant 0 : index
    %c0_16 = arith.constant 0 : index
    %21 = vector.load %arg4[%c0_15, %c0_16] : memref<1x128xf32, #tpu.memory_space<vmem>>, vector<1x128xf32>
    %22 = vector.broadcast %21 : vector<1x128xf32> to vector<4x128xf32>
    %23 = arith.addf %20, %22 : vector<4x128xf32>
    %cst_17 = arith.constant dense<0.000000e+00> : vector<128xf32>
    %24 = vector.multi_reduction <add>, %23, %cst_17 [0] : vector<4x128xf32> to vector<128xf32>
    %25 = vector.shape_cast %24 : vector<128xf32> to vector<1x128xf32>
    %cst_18 = arith.constant 4.000000e+00 : f32
    %26 = vector.broadcast %cst_18 : f32 to vector<1x128xf32>
    %27 = arith.divf %25, %26 : vector<1x128xf32>
    %28 = vector.broadcast %27 : vector<1x128xf32> to vector<4x128xf32>
    %29 = arith.subf %23, %28 : vector<4x128xf32>
    %30 = arith.mulf %29, %29 : vector<4x128xf32>
    %cst_19 = arith.constant dense<0.000000e+00> : vector<128xf32>
    %31 = vector.multi_reduction <add>, %30, %cst_19 [0] : vector<4x128xf32> to vector<128xf32>
    %32 = vector.shape_cast %31 : vector<128xf32> to vector<1x128xf32>
    %cst_20 = arith.constant 4.000000e+00 : f32
    %33 = vector.broadcast %cst_20 : f32 to vector<1x128xf32>
    %34 = arith.divf %32, %33 : vector<1x128xf32>
    %35 = vector.broadcast %27 : vector<1x128xf32> to vector<4x128xf32>
    %36 = arith.subf %23, %35 : vector<4x128xf32>
    %cst_21 = arith.constant 9.99999974E-6 : f32
    %37 = vector.broadcast %cst_21 : f32 to vector<1x128xf32>
    %38 = arith.addf %34, %37 : vector<1x128xf32>
    %39 = math.rsqrt %38 : vector<1x128xf32>
    %40 = vector.broadcast %39 : vector<1x128xf32> to vector<4x128xf32>
    %41 = arith.mulf %36, %40 : vector<4x128xf32>
    %c0_22 = arith.constant 0 : index
    %c0_23 = arith.constant 0 : index
    %42 = vector.load %arg5[%c0_22, %c0_23] : memref<1x128xf32, #tpu.memory_space<vmem>>, vector<1x128xf32>
    %43 = vector.broadcast %42 : vector<1x128xf32> to vector<4x128xf32>
    %44 = arith.mulf %41, %43 : vector<4x128xf32>
    %c0_24 = arith.constant 0 : index
    %c0_25 = arith.constant 0 : index
    %45 = vector.load %arg6[%c0_24, %c0_25] : memref<1x128xf32, #tpu.memory_space<vmem>>, vector<1x128xf32>
    %46 = vector.broadcast %45 : vector<1x128xf32> to vector<4x128xf32>
    %47 = arith.addf %44, %46 : vector<4x128xf32>
    %cst_26 = arith.constant 0.000000e+00 : f32
    %48 = vector.broadcast %cst_26 : f32 to vector<4x128xf32>
    %49 = arith.maximumf %47, %48 : vector<4x128xf32>
    %50 = vector.shape_cast %49 : vector<4x128xf32> to vector<2x2x128xf32>
    %c0_27 = arith.constant 0 : index
    %c0_28 = arith.constant 0 : index
    %c0_29 = arith.constant 0 : index
    %51 = vector.load %arg7[%c0_27, %c0_28, %c0_29] : memref<2x2x128xf32, #tpu.memory_space<vmem>>, vector<2x2x128xf32>
    tpu.vector_store %arg7[%c0_27, %c0_28, %c0_29], %50 {strides = array<i32>} : memref<2x2x128xf32, #tpu.memory_space<vmem>>, vector<2x2x128xf32>,
    return
  }
  func.func @transform_0(%arg0: i32) -> (i32, i32, i32) {
    %c0_i32 = arith.constant 0 : i32
    %c0_i32_0 = arith.constant 0 : i32
    %c0_i32_1 = arith.constant 0 : i32
    %c0_i32_2 = arith.constant 0 : i32
    return %c0_i32, %c0_i32_0, %c0_i32_1 : i32, i32, i32
  }
  func.func @transform_1(%arg0: i32) -> (i32, i32, i32) {
    %c0_i32 = arith.constant 0 : i32
    %c0_i32_0 = arith.constant 0 : i32
    %c0_i32_1 = arith.constant 0 : i32
    %c0_i32_2 = arith.constant 0 : i32
    return %c0_i32, %c0_i32_0, %c0_i32_1 : i32, i32, i32
  }
  func.func @transform_2(%arg0: i32) -> (i32, i32, i32) {
    %c0_i32 = arith.constant 0 : i32
    %c0_i32_0 = arith.constant 0 : i32
    %c0_i32_1 = arith.constant 0 : i32
    return %c0_i32, %c0_i32_0, %arg0 : i32, i32, i32
  }
  func.func @transform_3(%arg0: i32) -> (i32, i32) {
    %c0_i32 = arith.constant 0 : i32
    %c0_i32_0 = arith.constant 0 : i32
    return %c0_i32, %arg0 : i32, i32
  }
  func.func @transform_4(%arg0: i32) -> (i32, i32) {
    %c0_i32 = arith.constant 0 : i32
    %c0_i32_0 = arith.constant 0 : i32
    return %c0_i32, %arg0 : i32, i32
  }
  func.func @transform_5(%arg0: i32) -> (i32, i32) {
    %c0_i32 = arith.constant 0 : i32
    %c0_i32_0 = arith.constant 0 : i32
    return %c0_i32, %arg0 : i32, i32
  }
  func.func @transform_6(%arg0: i32) -> (i32, i32, i32) {
    %c0_i32 = arith.constant 0 : i32
    %c0_i32_0 = arith.constant 0 : i32
    %c0_i32_1 = arith.constant 0 : i32
    return %c0_i32, %c0_i32_0, %arg0 : i32, i32, i32
  }
}

module attributes {stable_mosaic.version = 11 : i64} {
  func.func @_conv_bn_kernel(%arg0: i32, %arg1: memref<2x4x128xf32, #tpu.memory_space<vmem>>, %arg2: memref<3x128x128xf32, #tpu.memory_space<vmem>>, %arg3: memref<1x128xf32, #tpu.memory_space<vmem>>, %arg4: memref<1x128xf32, #tpu.memory_space<vmem>>, %arg5: memref<1x128xf32, #tpu.memory_space<vmem>>, %arg6: memref<2x2x128xf32, #tpu.memory_space<vmem>>) attributes {dimension_semantics = [#tpu.dimension_semantics<parallel>], iteration_bounds = array<i64: 1>, scalar_prefetch = 0 : i64, scratch_operands = 0 : i64, tpu.core_type = #tpu.core_type<tc>, window_params = [{pipeline_mode = #tpu.pipeline_mode<synchronous>, transform_indices = @transform_0, window_bounds = array<i64: 2, 4, 128>}, {transform_indices = @transform_1, window_bounds = array<i64: 3, 128, 128>}, {transform_indices = @transform_2, window_bounds = array<i64: 1, 128>}, {transform_indices = @transform_3, window_bounds = array<i64: 1, 128>}, {transform_indices = @transform_4, window_bounds = array<i64: 1, 128>}, {transform_indices = @transform_5, window_bounds = array<i64: 2, 2, 128>}]} {
    %c0 = arith.constant 0 : index
    %c0_0 = arith.constant 0 : index
    %c0_1 = arith.constant 0 : index
    %0 = vector.load %arg1[%c0, %c0_0, %c0_1] : memref<2x4x128xf32, #tpu.memory_space<vmem>>, vector<2x4x128xf32>
    %cst = arith.constant 0.000000e+00 : f32
    %1 = vector.broadcast %cst : f32 to vector<4x128xf32>
    %2 = vector.extract_strided_slice %0 {offsets = [0, 0, 0], sizes = [2, 2, 128], strides = [1, 1, 1]} : vector<2x4x128xf32> to vector<2x2x128xf32>
    %3 = vector.shape_cast %2 : vector<2x2x128xf32> to vector<4x128xf32>
    %c0_2 = arith.constant 0 : index
    %c0_3 = arith.constant 0 : index
    %c0_4 = arith.constant 0 : index
    %4 = vector.load %arg2[%c0_2, %c0_3, %c0_4] : memref<3x128x128xf32, #tpu.memory_space<vmem>>, vector<1x128x128xf32>
    %5 = vector.shape_cast %4 : vector<1x128x128xf32> to vector<128x128xf32>
    %cst_5 = arith.constant dense<0.000000e+00> : vector<4x128xf32>
    %6 = tpu.matmul %3, %5, %cst_5 {dimension_numbers = #tpu.dot_dimension_numbers<[1], [0], [0], [1], [0, 0, 1, 1], [], []>} : vector<4x128xf32>, vector<128x128xf32>, vector<4x128xf32> -> vector<4x128xf32>
    %7 = arith.addf %1, %6 : vector<4x128xf32>
    %8 = vector.extract_strided_slice %0 {offsets = [0, 1, 0], sizes = [2, 2, 128], strides = [1, 1, 1]} : vector<2x4x128xf32> to vector<2x2x128xf32>
    %9 = vector.shape_cast %8 : vector<2x2x128xf32> to vector<4x128xf32>
    %c1 = arith.constant 1 : index
    %c0_6 = arith.constant 0 : index
    %c0_7 = arith.constant 0 : index
    %10 = vector.load %arg2[%c1, %c0_6, %c0_7] : memref<3x128x128xf32, #tpu.memory_space<vmem>>, vector<1x128x128xf32>
    %11 = vector.shape_cast %10 : vector<1x128x128xf32> to vector<128x128xf32>
    %cst_8 = arith.constant dense<0.000000e+00> : vector<4x128xf32>
    %12 = tpu.matmul %9, %11, %cst_8 {dimension_numbers = #tpu.dot_dimension_numbers<[1], [0], [0], [1], [0, 0, 1, 1], [], []>} : vector<4x128xf32>, vector<128x128xf32>, vector<4x128xf32> -> vector<4x128xf32>
    %13 = arith.addf %7, %12 : vector<4x128xf32>
    %14 = vector.extract_strided_slice %0 {offsets = [0, 2, 0], sizes = [2, 2, 128], strides = [1, 1, 1]} : vector<2x4x128xf32> to vector<2x2x128xf32>
    %15 = vector.shape_cast %14 : vector<2x2x128xf32> to vector<4x128xf32>
    %c2 = arith.constant 2 : index
    %c0_9 = arith.constant 0 : index
    %c0_10 = arith.constant 0 : index
    %16 = vector.load %arg2[%c2, %c0_9, %c0_10] : memref<3x128x128xf32, #tpu.memory_space<vmem>>, vector<1x128x128xf32>
    %17 = vector.shape_cast %16 : vector<1x128x128xf32> to vector<128x128xf32>
    %cst_11 = arith.constant dense<0.000000e+00> : vector<4x128xf32>
    %18 = tpu.matmul %15, %17, %cst_11 {dimension_numbers = #tpu.dot_dimension_numbers<[1], [0], [0], [1], [0, 0, 1, 1], [], []>} : vector<4x128xf32>, vector<128x128xf32>, vector<4x128xf32> -> vector<4x128xf32>
    %19 = arith.addf %13, %18 : vector<4x128xf32>
    %c0_12 = arith.constant 0 : index
    %c0_13 = arith.constant 0 : index
    %20 = vector.load %arg3[%c0_12, %c0_13] : memref<1x128xf32, #tpu.memory_space<vmem>>, vector<1x128xf32>
    %21 = vector.broadcast %20 : vector<1x128xf32> to vector<4x128xf32>
    %22 = arith.addf %19, %21 : vector<4x128xf32>
    %cst_14 = arith.constant dense<0.000000e+00> : vector<128xf32>
    %23 = vector.multi_reduction <add>, %22, %cst_14 [0] : vector<4x128xf32> to vector<128xf32>
    %24 = vector.shape_cast %23 : vector<128xf32> to vector<1x128xf32>
    %cst_15 = arith.constant 4.000000e+00 : f32
    %25 = vector.broadcast %cst_15 : f32 to vector<1x128xf32>
    %26 = arith.divf %24, %25 : vector<1x128xf32>
    %27 = vector.broadcast %26 : vector<1x128xf32> to vector<4x128xf32>
    %28 = arith.subf %22, %27 : vector<4x128xf32>
    %29 = arith.mulf %28, %28 : vector<4x128xf32>
    %cst_16 = arith.constant dense<0.000000e+00> : vector<128xf32>
    %30 = vector.multi_reduction <add>, %29, %cst_16 [0] : vector<4x128xf32> to vector<128xf32>
    %31 = vector.shape_cast %30 : vector<128xf32> to vector<1x128xf32>
    %cst_17 = arith.constant 4.000000e+00 : f32
    %32 = vector.broadcast %cst_17 : f32 to vector<1x128xf32>
    %33 = arith.divf %31, %32 : vector<1x128xf32>
    %34 = vector.broadcast %26 : vector<1x128xf32> to vector<4x128xf32>
    %35 = arith.subf %22, %34 : vector<4x128xf32>
    %cst_18 = arith.constant 9.99999974E-6 : f32
    %36 = vector.broadcast %cst_18 : f32 to vector<1x128xf32>
    %37 = arith.addf %33, %36 : vector<1x128xf32>
    %38 = math.rsqrt %37 : vector<1x128xf32>
    %39 = vector.broadcast %38 : vector<1x128xf32> to vector<4x128xf32>
    %40 = arith.mulf %35, %39 : vector<4x128xf32>
    %c0_19 = arith.constant 0 : index
    %c0_20 = arith.constant 0 : index
    %41 = vector.load %arg4[%c0_19, %c0_20] : memref<1x128xf32, #tpu.memory_space<vmem>>, vector<1x128xf32>
    %42 = vector.broadcast %41 : vector<1x128xf32> to vector<4x128xf32>
    %43 = arith.mulf %40, %42 : vector<4x128xf32>
    %c0_21 = arith.constant 0 : index
    %c0_22 = arith.constant 0 : index
    %44 = vector.load %arg5[%c0_21, %c0_22] : memref<1x128xf32, #tpu.memory_space<vmem>>, vector<1x128xf32>
    %45 = vector.broadcast %44 : vector<1x128xf32> to vector<4x128xf32>
    %46 = arith.addf %43, %45 : vector<4x128xf32>
    %cst_23 = arith.constant 0.000000e+00 : f32
    %47 = vector.broadcast %cst_23 : f32 to vector<4x128xf32>
    %48 = arith.maximumf %46, %47 : vector<4x128xf32>
    %49 = vector.shape_cast %48 : vector<4x128xf32> to vector<2x2x128xf32>
    %c0_24 = arith.constant 0 : index
    %c0_25 = arith.constant 0 : index
    %c0_26 = arith.constant 0 : index
    %50 = vector.load %arg6[%c0_24, %c0_25, %c0_26] : memref<2x2x128xf32, #tpu.memory_space<vmem>>, vector<2x2x128xf32>
    tpu.vector_store %arg6[%c0_24, %c0_25, %c0_26], %49 {strides = array<i32>} : memref<2x2x128xf32, #tpu.memory_space<vmem>>, vector<2x2x128xf32>,
    return
  }
  func.func @transform_0(%arg0: i32) -> (i32, i32, i32) {
    %c0_i32 = arith.constant 0 : i32
    %c0_i32_0 = arith.constant 0 : i32
    %c0_i32_1 = arith.constant 0 : i32
    %c0_i32_2 = arith.constant 0 : i32
    return %c0_i32, %c0_i32_0, %c0_i32_1 : i32, i32, i32
  }
  func.func @transform_1(%arg0: i32) -> (i32, i32, i32) {
    %c0_i32 = arith.constant 0 : i32
    %c0_i32_0 = arith.constant 0 : i32
    %c0_i32_1 = arith.constant 0 : i32
    return %c0_i32, %c0_i32_0, %arg0 : i32, i32, i32
  }
  func.func @transform_2(%arg0: i32) -> (i32, i32) {
    %c0_i32 = arith.constant 0 : i32
    %c0_i32_0 = arith.constant 0 : i32
    return %c0_i32, %arg0 : i32, i32
  }
  func.func @transform_3(%arg0: i32) -> (i32, i32) {
    %c0_i32 = arith.constant 0 : i32
    %c0_i32_0 = arith.constant 0 : i32
    return %c0_i32, %arg0 : i32, i32
  }
  func.func @transform_4(%arg0: i32) -> (i32, i32) {
    %c0_i32 = arith.constant 0 : i32
    %c0_i32_0 = arith.constant 0 : i32
    return %c0_i32, %arg0 : i32, i32
  }
  func.func @transform_5(%arg0: i32) -> (i32, i32, i32) {
    %c0_i32 = arith.constant 0 : i32
    %c0_i32_0 = arith.constant 0 : i32
    %c0_i32_1 = arith.constant 0 : i32
    return %c0_i32, %c0_i32_0, %arg0 : i32, i32, i32
  }
}

module attributes {stable_mosaic.version = 11 : i64} {
  func.func @_conv_bn_kernel(%arg0: i32, %arg1: memref<2x4x128xf32, #tpu.memory_space<vmem>>, %arg2: memref<3x128x128xf32, #tpu.memory_space<vmem>>, %arg3: memref<1x128xf32, #tpu.memory_space<vmem>>, %arg4: memref<1x128xf32, #tpu.memory_space<vmem>>, %arg5: memref<1x128xf32, #tpu.memory_space<vmem>>, %arg6: memref<2x2x128xf32, #tpu.memory_space<vmem>>, %arg7: memref<2x2x128xf32, #tpu.memory_space<vmem>>) attributes {dimension_semantics = [#tpu.dimension_semantics<parallel>], iteration_bounds = array<i64: 1>, scalar_prefetch = 0 : i64, scratch_operands = 0 : i64, tpu.core_type = #tpu.core_type<tc>, window_params = [{pipeline_mode = #tpu.pipeline_mode<synchronous>, transform_indices = @transform_0, window_bounds = array<i64: 2, 4, 128>}, {transform_indices = @transform_1, window_bounds = array<i64: 3, 128, 128>}, {transform_indices = @transform_2, window_bounds = array<i64: 1, 128>}, {transform_indices = @transform_3, window_bounds = array<i64: 1, 128>}, {transform_indices = @transform_4, window_bounds = array<i64: 1, 128>}, {transform_indices = @transform_5, window_bounds = array<i64: 2, 2, 128>}, {transform_indices = @transform_6, window_bounds = array<i64: 2, 2, 128>}]} {
    %c0 = arith.constant 0 : index
    %c0_0 = arith.constant 0 : index
    %c0_1 = arith.constant 0 : index
    %0 = vector.load %arg1[%c0, %c0_0, %c0_1] : memref<2x4x128xf32, #tpu.memory_space<vmem>>, vector<2x4x128xf32>
    %cst = arith.constant 0.000000e+00 : f32
    %1 = vector.broadcast %cst : f32 to vector<4x128xf32>
    %2 = vector.extract_strided_slice %0 {offsets = [0, 0, 0], sizes = [2, 2, 128], strides = [1, 1, 1]} : vector<2x4x128xf32> to vector<2x2x128xf32>
    %3 = vector.shape_cast %2 : vector<2x2x128xf32> to vector<4x128xf32>
    %c0_2 = arith.constant 0 : index
    %c0_3 = arith.constant 0 : index
    %c0_4 = arith.constant 0 : index
    %4 = vector.load %arg2[%c0_2, %c0_3, %c0_4] : memref<3x128x128xf32, #tpu.memory_space<vmem>>, vector<1x128x128xf32>
    %5 = vector.shape_cast %4 : vector<1x128x128xf32> to vector<128x128xf32>
    %cst_5 = arith.constant dense<0.000000e+00> : vector<4x128xf32>
    %6 = tpu.matmul %3, %5, %cst_5 {dimension_numbers = #tpu.dot_dimension_numbers<[1], [0], [0], [1], [0, 0, 1, 1], [], []>} : vector<4x128xf32>, vector<128x128xf32>, vector<4x128xf32> -> vector<4x128xf32>
    %7 = arith.addf %1, %6 : vector<4x128xf32>
    %8 = vector.extract_strided_slice %0 {offsets = [0, 1, 0], sizes = [2, 2, 128], strides = [1, 1, 1]} : vector<2x4x128xf32> to vector<2x2x128xf32>
    %9 = vector.shape_cast %8 : vector<2x2x128xf32> to vector<4x128xf32>
    %c1 = arith.constant 1 : index
    %c0_6 = arith.constant 0 : index
    %c0_7 = arith.constant 0 : index
    %10 = vector.load %arg2[%c1, %c0_6, %c0_7] : memref<3x128x128xf32, #tpu.memory_space<vmem>>, vector<1x128x128xf32>
    %11 = vector.shape_cast %10 : vector<1x128x128xf32> to vector<128x128xf32>
    %cst_8 = arith.constant dense<0.000000e+00> : vector<4x128xf32>
    %12 = tpu.matmul %9, %11, %cst_8 {dimension_numbers = #tpu.dot_dimension_numbers<[1], [0], [0], [1], [0, 0, 1, 1], [], []>} : vector<4x128xf32>, vector<128x128xf32>, vector<4x128xf32> -> vector<4x128xf32>
    %13 = arith.addf %7, %12 : vector<4x128xf32>
    %14 = vector.extract_strided_slice %0 {offsets = [0, 2, 0], sizes = [2, 2, 128], strides = [1, 1, 1]} : vector<2x4x128xf32> to vector<2x2x128xf32>
    %15 = vector.shape_cast %14 : vector<2x2x128xf32> to vector<4x128xf32>
    %c2 = arith.constant 2 : index
    %c0_9 = arith.constant 0 : index
    %c0_10 = arith.constant 0 : index
    %16 = vector.load %arg2[%c2, %c0_9, %c0_10] : memref<3x128x128xf32, #tpu.memory_space<vmem>>, vector<1x128x128xf32>
    %17 = vector.shape_cast %16 : vector<1x128x128xf32> to vector<128x128xf32>
    %cst_11 = arith.constant dense<0.000000e+00> : vector<4x128xf32>
    %18 = tpu.matmul %15, %17, %cst_11 {dimension_numbers = #tpu.dot_dimension_numbers<[1], [0], [0], [1], [0, 0, 1, 1], [], []>} : vector<4x128xf32>, vector<128x128xf32>, vector<4x128xf32> -> vector<4x128xf32>
    %19 = arith.addf %13, %18 : vector<4x128xf32>
    %c0_12 = arith.constant 0 : index
    %c0_13 = arith.constant 0 : index
    %20 = vector.load %arg3[%c0_12, %c0_13] : memref<1x128xf32, #tpu.memory_space<vmem>>, vector<1x128xf32>
    %21 = vector.broadcast %20 : vector<1x128xf32> to vector<4x128xf32>
    %22 = arith.addf %19, %21 : vector<4x128xf32>
    %cst_14 = arith.constant dense<0.000000e+00> : vector<128xf32>
    %23 = vector.multi_reduction <add>, %22, %cst_14 [0] : vector<4x128xf32> to vector<128xf32>
    %24 = vector.shape_cast %23 : vector<128xf32> to vector<1x128xf32>
    %cst_15 = arith.constant 4.000000e+00 : f32
    %25 = vector.broadcast %cst_15 : f32 to vector<1x128xf32>
    %26 = arith.divf %24, %25 : vector<1x128xf32>
    %27 = vector.broadcast %26 : vector<1x128xf32> to vector<4x128xf32>
    %28 = arith.subf %22, %27 : vector<4x128xf32>
    %29 = arith.mulf %28, %28 : vector<4x128xf32>
    %cst_16 = arith.constant dense<0.000000e+00> : vector<128xf32>
    %30 = vector.multi_reduction <add>, %29, %cst_16 [0] : vector<4x128xf32> to vector<128xf32>
    %31 = vector.shape_cast %30 : vector<128xf32> to vector<1x128xf32>
    %cst_17 = arith.constant 4.000000e+00 : f32
    %32 = vector.broadcast %cst_17 : f32 to vector<1x128xf32>
    %33 = arith.divf %31, %32 : vector<1x128xf32>
    %34 = vector.broadcast %26 : vector<1x128xf32> to vector<4x128xf32>
    %35 = arith.subf %22, %34 : vector<4x128xf32>
    %cst_18 = arith.constant 9.99999974E-6 : f32
    %36 = vector.broadcast %cst_18 : f32 to vector<1x128xf32>
    %37 = arith.addf %33, %36 : vector<1x128xf32>
    %38 = math.rsqrt %37 : vector<1x128xf32>
    %39 = vector.broadcast %38 : vector<1x128xf32> to vector<4x128xf32>
    %40 = arith.mulf %35, %39 : vector<4x128xf32>
    %c0_19 = arith.constant 0 : index
    %c0_20 = arith.constant 0 : index
    %41 = vector.load %arg4[%c0_19, %c0_20] : memref<1x128xf32, #tpu.memory_space<vmem>>, vector<1x128xf32>
    %42 = vector.broadcast %41 : vector<1x128xf32> to vector<4x128xf32>
    %43 = arith.mulf %40, %42 : vector<4x128xf32>
    %c0_21 = arith.constant 0 : index
    %c0_22 = arith.constant 0 : index
    %44 = vector.load %arg5[%c0_21, %c0_22] : memref<1x128xf32, #tpu.memory_space<vmem>>, vector<1x128xf32>
    %45 = vector.broadcast %44 : vector<1x128xf32> to vector<4x128xf32>
    %46 = arith.addf %43, %45 : vector<4x128xf32>
    %c0_23 = arith.constant 0 : index
    %c0_24 = arith.constant 0 : index
    %c0_25 = arith.constant 0 : index
    %47 = vector.load %arg6[%c0_23, %c0_24, %c0_25] : memref<2x2x128xf32, #tpu.memory_space<vmem>>, vector<2x2x128xf32>
    %48 = vector.shape_cast %47 : vector<2x2x128xf32> to vector<4x128xf32>
    %49 = arith.addf %46, %48 : vector<4x128xf32>
    %cst_26 = arith.constant 0.000000e+00 : f32
    %50 = vector.broadcast %cst_26 : f32 to vector<4x128xf32>
    %51 = arith.maximumf %49, %50 : vector<4x128xf32>
    %52 = vector.shape_cast %51 : vector<4x128xf32> to vector<2x2x128xf32>
    %c0_27 = arith.constant 0 : index
    %c0_28 = arith.constant 0 : index
    %c0_29 = arith.constant 0 : index
    %53 = vector.load %arg7[%c0_27, %c0_28, %c0_29] : memref<2x2x128xf32, #tpu.memory_space<vmem>>, vector<2x2x128xf32>
    tpu.vector_store %arg7[%c0_27, %c0_28, %c0_29], %52 {strides = array<i32>} : memref<2x2x128xf32, #tpu.memory_space<vmem>>, vector<2x2x128xf32>,
    return
  }
  func.func @transform_0(%arg0: i32) -> (i32, i32, i32) {
    %c0_i32 = arith.constant 0 : i32
    %c0_i32_0 = arith.constant 0 : i32
    %c0_i32_1 = arith.constant 0 : i32
    %c0_i32_2 = arith.constant 0 : i32
    return %c0_i32, %c0_i32_0, %c0_i32_1 : i32, i32, i32
  }
  func.func @transform_1(%arg0: i32) -> (i32, i32, i32) {
    %c0_i32 = arith.constant 0 : i32
    %c0_i32_0 = arith.constant 0 : i32
    %c0_i32_1 = arith.constant 0 : i32
    return %c0_i32, %c0_i32_0, %arg0 : i32, i32, i32
  }
  func.func @transform_2(%arg0: i32) -> (i32, i32) {
    %c0_i32 = arith.constant 0 : i32
    %c0_i32_0 = arith.constant 0 : i32
    return %c0_i32, %arg0 : i32, i32
  }
  func.func @transform_3(%arg0: i32) -> (i32, i32) {
    %c0_i32 = arith.constant 0 : i32
    %c0_i32_0 = arith.constant 0 : i32
    return %c0_i32, %arg0 : i32, i32
  }
  func.func @transform_4(%arg0: i32) -> (i32, i32) {
    %c0_i32 = arith.constant 0 : i32
    %c0_i32_0 = arith.constant 0 : i32
    return %c0_i32, %arg0 : i32, i32
  }
  func.func @transform_5(%arg0: i32) -> (i32, i32, i32) {
    %c0_i32 = arith.constant 0 : i32
    %c0_i32_0 = arith.constant 0 : i32
    %c0_i32_1 = arith.constant 0 : i32
    return %c0_i32, %c0_i32_0, %arg0 : i32, i32, i32
  }
  func.func @transform_6(%arg0: i32) -> (i32, i32, i32) {
    %c0_i32 = arith.constant 0 : i32
    %c0_i32_0 = arith.constant 0 : i32
    %c0_i32_1 = arith.constant 0 : i32
    return %c0_i32, %c0_i32_0, %arg0 : i32, i32, i32
  }
}

module attributes {stable_mosaic.version = 11 : i64} {
  func.func @_conv_bn_kernel(%arg0: i32, %arg1: memref<2x1x128xf32, #tpu.memory_space<vmem>>, %arg2: memref<1x128x128xf32, #tpu.memory_space<vmem>>, %arg3: memref<1x128xf32, #tpu.memory_space<vmem>>, %arg4: memref<1x128xf32, #tpu.memory_space<vmem>>, %arg5: memref<1x128xf32, #tpu.memory_space<vmem>>, %arg6: memref<2x1x128xf32, #tpu.memory_space<vmem>>) attributes {dimension_semantics = [#tpu.dimension_semantics<parallel>], iteration_bounds = array<i64: 1>, scalar_prefetch = 0 : i64, scratch_operands = 0 : i64, tpu.core_type = #tpu.core_type<tc>, window_params = [{pipeline_mode = #tpu.pipeline_mode<synchronous>, transform_indices = @transform_0, window_bounds = array<i64: 2, 1, 128>}, {transform_indices = @transform_1, window_bounds = array<i64: 1, 128, 128>}, {transform_indices = @transform_2, window_bounds = array<i64: 1, 128>}, {transform_indices = @transform_3, window_bounds = array<i64: 1, 128>}, {transform_indices = @transform_4, window_bounds = array<i64: 1, 128>}, {transform_indices = @transform_5, window_bounds = array<i64: 2, 1, 128>}]} {
    %c0 = arith.constant 0 : index
    %c0_0 = arith.constant 0 : index
    %c0_1 = arith.constant 0 : index
    %0 = vector.load %arg1[%c0, %c0_0, %c0_1] : memref<2x1x128xf32, #tpu.memory_space<vmem>>, vector<2x1x128xf32>
    %cst = arith.constant 0.000000e+00 : f32
    %1 = vector.broadcast %cst : f32 to vector<2x128xf32>
    %2 = vector.shape_cast %0 : vector<2x1x128xf32> to vector<2x128xf32>
    %c0_2 = arith.constant 0 : index
    %c0_3 = arith.constant 0 : index
    %c0_4 = arith.constant 0 : index
    %3 = vector.load %arg2[%c0_2, %c0_3, %c0_4] : memref<1x128x128xf32, #tpu.memory_space<vmem>>, vector<1x128x128xf32>
    %4 = vector.shape_cast %3 : vector<1x128x128xf32> to vector<128x128xf32>
    %cst_5 = arith.constant dense<0.000000e+00> : vector<2x128xf32>
    %5 = tpu.matmul %2, %4, %cst_5 {dimension_numbers = #tpu.dot_dimension_numbers<[1], [0], [0], [1], [0, 0, 1, 1], [], []>} : vector<2x128xf32>, vector<128x128xf32>, vector<2x128xf32> -> vector<2x128xf32>
    %6 = arith.addf %1, %5 : vector<2x128xf32>
    %c0_6 = arith.constant 0 : index
    %c0_7 = arith.constant 0 : index
    %7 = vector.load %arg3[%c0_6, %c0_7] : memref<1x128xf32, #tpu.memory_space<vmem>>, vector<1x128xf32>
    %8 = vector.broadcast %7 : vector<1x128xf32> to vector<2x128xf32>
    %9 = arith.addf %6, %8 : vector<2x128xf32>
    %cst_8 = arith.constant dense<0.000000e+00> : vector<128xf32>
    %10 = vector.multi_reduction <add>, %9, %cst_8 [0] : vector<2x128xf32> to vector<128xf32>
    %11 = vector.shape_cast %10 : vector<128xf32> to vector<1x128xf32>
    %cst_9 = arith.constant 2.000000e+00 : f32
    %12 = vector.broadcast %cst_9 : f32 to vector<1x128xf32>
    %13 = arith.divf %11, %12 : vector<1x128xf32>
    %14 = vector.broadcast %13 : vector<1x128xf32> to vector<2x128xf32>
    %15 = arith.subf %9, %14 : vector<2x128xf32>
    %16 = arith.mulf %15, %15 : vector<2x128xf32>
    %cst_10 = arith.constant dense<0.000000e+00> : vector<128xf32>
    %17 = vector.multi_reduction <add>, %16, %cst_10 [0] : vector<2x128xf32> to vector<128xf32>
    %18 = vector.shape_cast %17 : vector<128xf32> to vector<1x128xf32>
    %cst_11 = arith.constant 2.000000e+00 : f32
    %19 = vector.broadcast %cst_11 : f32 to vector<1x128xf32>
    %20 = arith.divf %18, %19 : vector<1x128xf32>
    %21 = vector.broadcast %13 : vector<1x128xf32> to vector<2x128xf32>
    %22 = arith.subf %9, %21 : vector<2x128xf32>
    %cst_12 = arith.constant 9.99999974E-6 : f32
    %23 = vector.broadcast %cst_12 : f32 to vector<1x128xf32>
    %24 = arith.addf %20, %23 : vector<1x128xf32>
    %25 = math.rsqrt %24 : vector<1x128xf32>
    %26 = vector.broadcast %25 : vector<1x128xf32> to vector<2x128xf32>
    %27 = arith.mulf %22, %26 : vector<2x128xf32>
    %c0_13 = arith.constant 0 : index
    %c0_14 = arith.constant 0 : index
    %28 = vector.load %arg4[%c0_13, %c0_14] : memref<1x128xf32, #tpu.memory_space<vmem>>, vector<1x128xf32>
    %29 = vector.broadcast %28 : vector<1x128xf32> to vector<2x128xf32>
    %30 = arith.mulf %27, %29 : vector<2x128xf32>
    %c0_15 = arith.constant 0 : index
    %c0_16 = arith.constant 0 : index
    %31 = vector.load %arg5[%c0_15, %c0_16] : memref<1x128xf32, #tpu.memory_space<vmem>>, vector<1x128xf32>
    %32 = vector.broadcast %31 : vector<1x128xf32> to vector<2x128xf32>
    %33 = arith.addf %30, %32 : vector<2x128xf32>
    %34 = vector.shape_cast %33 : vector<2x128xf32> to vector<2x1x128xf32>
    %c0_17 = arith.constant 0 : index
    %c0_18 = arith.constant 0 : index
    %c0_19 = arith.constant 0 : index
    %35 = vector.load %arg6[%c0_17, %c0_18, %c0_19] : memref<2x1x128xf32, #tpu.memory_space<vmem>>, vector<2x1x128xf32>
    tpu.vector_store %arg6[%c0_17, %c0_18, %c0_19], %34 {strides = array<i32>} : memref<2x1x128xf32, #tpu.memory_space<vmem>>, vector<2x1x128xf32>,
    return
  }
  func.func @transform_0(%arg0: i32) -> (i32, i32, i32) {
    %c0_i32 = arith.constant 0 : i32
    %c0_i32_0 = arith.constant 0 : i32
    %c0_i32_1 = arith.constant 0 : i32
    %c0_i32_2 = arith.constant 0 : i32
    return %c0_i32, %c0_i32_0, %c0_i32_1 : i32, i32, i32
  }
  func.func @transform_1(%arg0: i32) -> (i32, i32, i32) {
    %c0_i32 = arith.constant 0 : i32
    %c0_i32_0 = arith.constant 0 : i32
    %c0_i32_1 = arith.constant 0 : i32
    return %c0_i32, %c0_i32_0, %arg0 : i32, i32, i32
  }
  func.func @transform_2(%arg0: i32) -> (i32, i32) {
    %c0_i32 = arith.constant 0 : i32
    %c0_i32_0 = arith.constant 0 : i32
    return %c0_i32, %arg0 : i32, i32
  }
  func.func @transform_3(%arg0: i32) -> (i32, i32) {
    %c0_i32 = arith.constant 0 : i32
    %c0_i32_0 = arith.constant 0 : i32
    return %c0_i32, %arg0 : i32, i32
  }
  func.func @transform_4(%arg0: i32) -> (i32, i32) {
    %c0_i32 = arith.constant 0 : i32
    %c0_i32_0 = arith.constant 0 : i32
    return %c0_i32, %arg0 : i32, i32
  }
  func.func @transform_5(%arg0: i32) -> (i32, i32, i32) {
    %c0_i32 = arith.constant 0 : i32
    %c0_i32_0 = arith.constant 0 : i32
    %c0_i32_1 = arith.constant 0 : i32
    return %c0_i32, %c0_i32_0, %arg0 : i32, i32, i32
  }
}

module attributes {stable_mosaic.version = 11 : i64} {
  func.func @_conv_bn_kernel(%arg0: i32, %arg1: memref<2x2x128xf32, #tpu.memory_space<vmem>>, %arg2: memref<2x2x128xf32, #tpu.memory_space<vmem>>, %arg3: memref<3x128x128xf32, #tpu.memory_space<vmem>>, %arg4: memref<1x128xf32, #tpu.memory_space<vmem>>, %arg5: memref<1x128xf32, #tpu.memory_space<vmem>>, %arg6: memref<1x128xf32, #tpu.memory_space<vmem>>, %arg7: memref<2x1x128xf32, #tpu.memory_space<vmem>>) attributes {dimension_semantics = [#tpu.dimension_semantics<parallel>], iteration_bounds = array<i64: 1>, scalar_prefetch = 0 : i64, scratch_operands = 0 : i64, tpu.core_type = #tpu.core_type<tc>, window_params = [{pipeline_mode = #tpu.pipeline_mode<synchronous>, transform_indices = @transform_0, window_bounds = array<i64: 2, 2, 128>}, {pipeline_mode = #tpu.pipeline_mode<synchronous>, transform_indices = @transform_1, window_bounds = array<i64: 2, 2, 128>}, {transform_indices = @transform_2, window_bounds = array<i64: 3, 128, 128>}, {transform_indices = @transform_3, window_bounds = array<i64: 1, 128>}, {transform_indices = @transform_4, window_bounds = array<i64: 1, 128>}, {transform_indices = @transform_5, window_bounds = array<i64: 1, 128>}, {transform_indices = @transform_6, window_bounds = array<i64: 2, 1, 128>}]} {
    %c0 = arith.constant 0 : index
    %c0_0 = arith.constant 0 : index
    %c0_1 = arith.constant 0 : index
    %0 = vector.load %arg1[%c0, %c0_0, %c0_1] : memref<2x2x128xf32, #tpu.memory_space<vmem>>, vector<2x2x128xf32>
    %c0_2 = arith.constant 0 : index
    %c0_3 = arith.constant 0 : index
    %c0_4 = arith.constant 0 : index
    %1 = vector.load %arg2[%c0_2, %c0_3, %c0_4] : memref<2x2x128xf32, #tpu.memory_space<vmem>>, vector<2x2x128xf32>
    %cst = arith.constant 0.000000e+00 : f32
    %2 = vector.broadcast %cst : f32 to vector<2x128xf32>
    %3 = vector.extract_strided_slice %0 {offsets = [0, 0, 0], sizes = [2, 1, 128], strides = [1, 1, 1]} : vector<2x2x128xf32> to vector<2x1x128xf32>
    %4 = vector.shape_cast %3 : vector<2x1x128xf32> to vector<2x128xf32>
    %c0_5 = arith.constant 0 : index
    %c0_6 = arith.constant 0 : index
    %c0_7 = arith.constant 0 : index
    %5 = vector.load %arg3[%c0_5, %c0_6, %c0_7] : memref<3x128x128xf32, #tpu.memory_space<vmem>>, vector<1x128x128xf32>
    %6 = vector.shape_cast %5 : vector<1x128x128xf32> to vector<128x128xf32>
    %cst_8 = arith.constant dense<0.000000e+00> : vector<2x128xf32>
    %7 = tpu.matmul %4, %6, %cst_8 {dimension_numbers = #tpu.dot_dimension_numbers<[1], [0], [0], [1], [0, 0, 1, 1], [], []>} : vector<2x128xf32>, vector<128x128xf32>, vector<2x128xf32> -> vector<2x128xf32>
    %8 = arith.addf %2, %7 : vector<2x128xf32>
    %9 = vector.extract_strided_slice %1 {offsets = [0, 0, 0], sizes = [2, 1, 128], strides = [1, 1, 1]} : vector<2x2x128xf32> to vector<2x1x128xf32>
    %10 = vector.shape_cast %9 : vector<2x1x128xf32> to vector<2x128xf32>
    %c1 = arith.constant 1 : index
    %c0_9 = arith.constant 0 : index
    %c0_10 = arith.constant 0 : index
    %11 = vector.load %arg3[%c1, %c0_9, %c0_10] : memref<3x128x128xf32, #tpu.memory_space<vmem>>, vector<1x128x128xf32>
    %12 = vector.shape_cast %11 : vector<1x128x128xf32> to vector<128x128xf32>
    %cst_11 = arith.constant dense<0.000000e+00> : vector<2x128xf32>
    %13 = tpu.matmul %10, %12, %cst_11 {dimension_numbers = #tpu.dot_dimension_numbers<[1], [0], [0], [1], [0, 0, 1, 1], [], []>} : vector<2x128xf32>, vector<128x128xf32>, vector<2x128xf32> -> vector<2x128xf32>
    %14 = arith.addf %8, %13 : vector<2x128xf32>
    %15 = vector.extract_strided_slice %0 {offsets = [0, 1, 0], sizes = [2, 1, 128], strides = [1, 1, 1]} : vector<2x2x128xf32> to vector<2x1x128xf32>
    %16 = vector.shape_cast %15 : vector<2x1x128xf32> to vector<2x128xf32>
    %c2 = arith.constant 2 : index
    %c0_12 = arith.constant 0 : index
    %c0_13 = arith.constant 0 : index
    %17 = vector.load %arg3[%c2, %c0_12, %c0_13] : memref<3x128x128xf32, #tpu.memory_space<vmem>>, vector<1x128x128xf32>
    %18 = vector.shape_cast %17 : vector<1x128x128xf32> to vector<128x128xf32>
    %cst_14 = arith.constant dense<0.000000e+00> : vector<2x128xf32>
    %19 = tpu.matmul %16, %18, %cst_14 {dimension_numbers = #tpu.dot_dimension_numbers<[1], [0], [0], [1], [0, 0, 1, 1], [], []>} : vector<2x128xf32>, vector<128x128xf32>, vector<2x128xf32> -> vector<2x128xf32>
    %20 = arith.addf %14, %19 : vector<2x128xf32>
    %c0_15 = arith.constant 0 : index
    %c0_16 = arith.constant 0 : index
    %21 = vector.load %arg4[%c0_15, %c0_16] : memref<1x128xf32, #tpu.memory_space<vmem>>, vector<1x128xf32>
    %22 = vector.broadcast %21 : vector<1x128xf32> to vector<2x128xf32>
    %23 = arith.addf %20, %22 : vector<2x128xf32>
    %cst_17 = arith.constant dense<0.000000e+00> : vector<128xf32>
    %24 = vector.multi_reduction <add>, %23, %cst_17 [0] : vector<2x128xf32> to vector<128xf32>
    %25 = vector.shape_cast %24 : vector<128xf32> to vector<1x128xf32>
    %cst_18 = arith.constant 2.000000e+00 : f32
    %26 = vector.broadcast %cst_18 : f32 to vector<1x128xf32>
    %27 = arith.divf %25, %26 : vector<1x128xf32>
    %28 = vector.broadcast %27 : vector<1x128xf32> to vector<2x128xf32>
    %29 = arith.subf %23, %28 : vector<2x128xf32>
    %30 = arith.mulf %29, %29 : vector<2x128xf32>
    %cst_19 = arith.constant dense<0.000000e+00> : vector<128xf32>
    %31 = vector.multi_reduction <add>, %30, %cst_19 [0] : vector<2x128xf32> to vector<128xf32>
    %32 = vector.shape_cast %31 : vector<128xf32> to vector<1x128xf32>
    %cst_20 = arith.constant 2.000000e+00 : f32
    %33 = vector.broadcast %cst_20 : f32 to vector<1x128xf32>
    %34 = arith.divf %32, %33 : vector<1x128xf32>
    %35 = vector.broadcast %27 : vector<1x128xf32> to vector<2x128xf32>
    %36 = arith.subf %23, %35 : vector<2x128xf32>
    %cst_21 = arith.constant 9.99999974E-6 : f32
    %37 = vector.broadcast %cst_21 : f32 to vector<1x128xf32>
    %38 = arith.addf %34, %37 : vector<1x128xf32>
    %39 = math.rsqrt %38 : vector<1x128xf32>
    %40 = vector.broadcast %39 : vector<1x128xf32> to vector<2x128xf32>
    %41 = arith.mulf %36, %40 : vector<2x128xf32>
    %c0_22 = arith.constant 0 : index
    %c0_23 = arith.constant 0 : index
    %42 = vector.load %arg5[%c0_22, %c0_23] : memref<1x128xf32, #tpu.memory_space<vmem>>, vector<1x128xf32>
    %43 = vector.broadcast %42 : vector<1x128xf32> to vector<2x128xf32>
    %44 = arith.mulf %41, %43 : vector<2x128xf32>
    %c0_24 = arith.constant 0 : index
    %c0_25 = arith.constant 0 : index
    %45 = vector.load %arg6[%c0_24, %c0_25] : memref<1x128xf32, #tpu.memory_space<vmem>>, vector<1x128xf32>
    %46 = vector.broadcast %45 : vector<1x128xf32> to vector<2x128xf32>
    %47 = arith.addf %44, %46 : vector<2x128xf32>
    %cst_26 = arith.constant 0.000000e+00 : f32
    %48 = vector.broadcast %cst_26 : f32 to vector<2x128xf32>
    %49 = arith.maximumf %47, %48 : vector<2x128xf32>
    %50 = vector.shape_cast %49 : vector<2x128xf32> to vector<2x1x128xf32>
    %c0_27 = arith.constant 0 : index
    %c0_28 = arith.constant 0 : index
    %c0_29 = arith.constant 0 : index
    %51 = vector.load %arg7[%c0_27, %c0_28, %c0_29] : memref<2x1x128xf32, #tpu.memory_space<vmem>>, vector<2x1x128xf32>
    tpu.vector_store %arg7[%c0_27, %c0_28, %c0_29], %50 {strides = array<i32>} : memref<2x1x128xf32, #tpu.memory_space<vmem>>, vector<2x1x128xf32>,
    return
  }
  func.func @transform_0(%arg0: i32) -> (i32, i32, i32) {
    %c0_i32 = arith.constant 0 : i32
    %c0_i32_0 = arith.constant 0 : i32
    %c0_i32_1 = arith.constant 0 : i32
    %c0_i32_2 = arith.constant 0 : i32
    return %c0_i32, %c0_i32_0, %c0_i32_1 : i32, i32, i32
  }
  func.func @transform_1(%arg0: i32) -> (i32, i32, i32) {
    %c0_i32 = arith.constant 0 : i32
    %c0_i32_0 = arith.constant 0 : i32
    %c0_i32_1 = arith.constant 0 : i32
    %c0_i32_2 = arith.constant 0 : i32
    return %c0_i32, %c0_i32_0, %c0_i32_1 : i32, i32, i32
  }
  func.func @transform_2(%arg0: i32) -> (i32, i32, i32) {
    %c0_i32 = arith.constant 0 : i32
    %c0_i32_0 = arith.constant 0 : i32
    %c0_i32_1 = arith.constant 0 : i32
    return %c0_i32, %c0_i32_0, %arg0 : i32, i32, i32
  }
  func.func @transform_3(%arg0: i32) -> (i32, i32) {
    %c0_i32 = arith.constant 0 : i32
    %c0_i32_0 = arith.constant 0 : i32
    return %c0_i32, %arg0 : i32, i32
  }
  func.func @transform_4(%arg0: i32) -> (i32, i32) {
    %c0_i32 = arith.constant 0 : i32
    %c0_i32_0 = arith.constant 0 : i32
    return %c0_i32, %arg0 : i32, i32
  }
  func.func @transform_5(%arg0: i32) -> (i32, i32) {
    %c0_i32 = arith.constant 0 : i32
    %c0_i32_0 = arith.constant 0 : i32
    return %c0_i32, %arg0 : i32, i32
  }
  func.func @transform_6(%arg0: i32) -> (i32, i32, i32) {
    %c0_i32 = arith.constant 0 : i32
    %c0_i32_0 = arith.constant 0 : i32
    %c0_i32_1 = arith.constant 0 : i32
    return %c0_i32, %c0_i32_0, %arg0 : i32, i32, i32
  }
}

module attributes {stable_mosaic.version = 11 : i64} {
  func.func @_conv_bn_kernel(%arg0: i32, %arg1: memref<2x3x128xf32, #tpu.memory_space<vmem>>, %arg2: memref<3x128x128xf32, #tpu.memory_space<vmem>>, %arg3: memref<1x128xf32, #tpu.memory_space<vmem>>, %arg4: memref<1x128xf32, #tpu.memory_space<vmem>>, %arg5: memref<1x128xf32, #tpu.memory_space<vmem>>, %arg6: memref<2x1x128xf32, #tpu.memory_space<vmem>>, %arg7: memref<2x1x128xf32, #tpu.memory_space<vmem>>) attributes {dimension_semantics = [#tpu.dimension_semantics<parallel>], iteration_bounds = array<i64: 1>, scalar_prefetch = 0 : i64, scratch_operands = 0 : i64, tpu.core_type = #tpu.core_type<tc>, window_params = [{pipeline_mode = #tpu.pipeline_mode<synchronous>, transform_indices = @transform_0, window_bounds = array<i64: 2, 3, 128>}, {transform_indices = @transform_1, window_bounds = array<i64: 3, 128, 128>}, {transform_indices = @transform_2, window_bounds = array<i64: 1, 128>}, {transform_indices = @transform_3, window_bounds = array<i64: 1, 128>}, {transform_indices = @transform_4, window_bounds = array<i64: 1, 128>}, {transform_indices = @transform_5, window_bounds = array<i64: 2, 1, 128>}, {transform_indices = @transform_6, window_bounds = array<i64: 2, 1, 128>}]} {
    %c0 = arith.constant 0 : index
    %c0_0 = arith.constant 0 : index
    %c0_1 = arith.constant 0 : index
    %0 = vector.load %arg1[%c0, %c0_0, %c0_1] : memref<2x3x128xf32, #tpu.memory_space<vmem>>, vector<2x3x128xf32>
    %cst = arith.constant 0.000000e+00 : f32
    %1 = vector.broadcast %cst : f32 to vector<2x128xf32>
    %2 = vector.extract_strided_slice %0 {offsets = [0, 0, 0], sizes = [2, 1, 128], strides = [1, 1, 1]} : vector<2x3x128xf32> to vector<2x1x128xf32>
    %3 = vector.shape_cast %2 : vector<2x1x128xf32> to vector<2x128xf32>
    %c0_2 = arith.constant 0 : index
    %c0_3 = arith.constant 0 : index
    %c0_4 = arith.constant 0 : index
    %4 = vector.load %arg2[%c0_2, %c0_3, %c0_4] : memref<3x128x128xf32, #tpu.memory_space<vmem>>, vector<1x128x128xf32>
    %5 = vector.shape_cast %4 : vector<1x128x128xf32> to vector<128x128xf32>
    %cst_5 = arith.constant dense<0.000000e+00> : vector<2x128xf32>
    %6 = tpu.matmul %3, %5, %cst_5 {dimension_numbers = #tpu.dot_dimension_numbers<[1], [0], [0], [1], [0, 0, 1, 1], [], []>} : vector<2x128xf32>, vector<128x128xf32>, vector<2x128xf32> -> vector<2x128xf32>
    %7 = arith.addf %1, %6 : vector<2x128xf32>
    %8 = vector.extract_strided_slice %0 {offsets = [0, 1, 0], sizes = [2, 1, 128], strides = [1, 1, 1]} : vector<2x3x128xf32> to vector<2x1x128xf32>
    %9 = vector.shape_cast %8 : vector<2x1x128xf32> to vector<2x128xf32>
    %c1 = arith.constant 1 : index
    %c0_6 = arith.constant 0 : index
    %c0_7 = arith.constant 0 : index
    %10 = vector.load %arg2[%c1, %c0_6, %c0_7] : memref<3x128x128xf32, #tpu.memory_space<vmem>>, vector<1x128x128xf32>
    %11 = vector.shape_cast %10 : vector<1x128x128xf32> to vector<128x128xf32>
    %cst_8 = arith.constant dense<0.000000e+00> : vector<2x128xf32>
    %12 = tpu.matmul %9, %11, %cst_8 {dimension_numbers = #tpu.dot_dimension_numbers<[1], [0], [0], [1], [0, 0, 1, 1], [], []>} : vector<2x128xf32>, vector<128x128xf32>, vector<2x128xf32> -> vector<2x128xf32>
    %13 = arith.addf %7, %12 : vector<2x128xf32>
    %14 = vector.extract_strided_slice %0 {offsets = [0, 2, 0], sizes = [2, 1, 128], strides = [1, 1, 1]} : vector<2x3x128xf32> to vector<2x1x128xf32>
    %15 = vector.shape_cast %14 : vector<2x1x128xf32> to vector<2x128xf32>
    %c2 = arith.constant 2 : index
    %c0_9 = arith.constant 0 : index
    %c0_10 = arith.constant 0 : index
    %16 = vector.load %arg2[%c2, %c0_9, %c0_10] : memref<3x128x128xf32, #tpu.memory_space<vmem>>, vector<1x128x128xf32>
    %17 = vector.shape_cast %16 : vector<1x128x128xf32> to vector<128x128xf32>
    %cst_11 = arith.constant dense<0.000000e+00> : vector<2x128xf32>
    %18 = tpu.matmul %15, %17, %cst_11 {dimension_numbers = #tpu.dot_dimension_numbers<[1], [0], [0], [1], [0, 0, 1, 1], [], []>} : vector<2x128xf32>, vector<128x128xf32>, vector<2x128xf32> -> vector<2x128xf32>
    %19 = arith.addf %13, %18 : vector<2x128xf32>
    %c0_12 = arith.constant 0 : index
    %c0_13 = arith.constant 0 : index
    %20 = vector.load %arg3[%c0_12, %c0_13] : memref<1x128xf32, #tpu.memory_space<vmem>>, vector<1x128xf32>
    %21 = vector.broadcast %20 : vector<1x128xf32> to vector<2x128xf32>
    %22 = arith.addf %19, %21 : vector<2x128xf32>
    %cst_14 = arith.constant dense<0.000000e+00> : vector<128xf32>
    %23 = vector.multi_reduction <add>, %22, %cst_14 [0] : vector<2x128xf32> to vector<128xf32>
    %24 = vector.shape_cast %23 : vector<128xf32> to vector<1x128xf32>
    %cst_15 = arith.constant 2.000000e+00 : f32
    %25 = vector.broadcast %cst_15 : f32 to vector<1x128xf32>
    %26 = arith.divf %24, %25 : vector<1x128xf32>
    %27 = vector.broadcast %26 : vector<1x128xf32> to vector<2x128xf32>
    %28 = arith.subf %22, %27 : vector<2x128xf32>
    %29 = arith.mulf %28, %28 : vector<2x128xf32>
    %cst_16 = arith.constant dense<0.000000e+00> : vector<128xf32>
    %30 = vector.multi_reduction <add>, %29, %cst_16 [0] : vector<2x128xf32> to vector<128xf32>
    %31 = vector.shape_cast %30 : vector<128xf32> to vector<1x128xf32>
    %cst_17 = arith.constant 2.000000e+00 : f32
    %32 = vector.broadcast %cst_17 : f32 to vector<1x128xf32>
    %33 = arith.divf %31, %32 : vector<1x128xf32>
    %34 = vector.broadcast %26 : vector<1x128xf32> to vector<2x128xf32>
    %35 = arith.subf %22, %34 : vector<2x128xf32>
    %cst_18 = arith.constant 9.99999974E-6 : f32
    %36 = vector.broadcast %cst_18 : f32 to vector<1x128xf32>
    %37 = arith.addf %33, %36 : vector<1x128xf32>
    %38 = math.rsqrt %37 : vector<1x128xf32>
    %39 = vector.broadcast %38 : vector<1x128xf32> to vector<2x128xf32>
    %40 = arith.mulf %35, %39 : vector<2x128xf32>
    %c0_19 = arith.constant 0 : index
    %c0_20 = arith.constant 0 : index
    %41 = vector.load %arg4[%c0_19, %c0_20] : memref<1x128xf32, #tpu.memory_space<vmem>>, vector<1x128xf32>
    %42 = vector.broadcast %41 : vector<1x128xf32> to vector<2x128xf32>
    %43 = arith.mulf %40, %42 : vector<2x128xf32>
    %c0_21 = arith.constant 0 : index
    %c0_22 = arith.constant 0 : index
    %44 = vector.load %arg5[%c0_21, %c0_22] : memref<1x128xf32, #tpu.memory_space<vmem>>, vector<1x128xf32>
    %45 = vector.broadcast %44 : vector<1x128xf32> to vector<2x128xf32>
    %46 = arith.addf %43, %45 : vector<2x128xf32>
    %c0_23 = arith.constant 0 : index
    %c0_24 = arith.constant 0 : index
    %c0_25 = arith.constant 0 : index
    %47 = vector.load %arg6[%c0_23, %c0_24, %c0_25] : memref<2x1x128xf32, #tpu.memory_space<vmem>>, vector<2x1x128xf32>
    %48 = vector.shape_cast %47 : vector<2x1x128xf32> to vector<2x128xf32>
    %49 = arith.addf %46, %48 : vector<2x128xf32>
    %cst_26 = arith.constant 0.000000e+00 : f32
    %50 = vector.broadcast %cst_26 : f32 to vector<2x128xf32>
    %51 = arith.maximumf %49, %50 : vector<2x128xf32>
    %52 = vector.shape_cast %51 : vector<2x128xf32> to vector<2x1x128xf32>
    %c0_27 = arith.constant 0 : index
    %c0_28 = arith.constant 0 : index
    %c0_29 = arith.constant 0 : index
    %53 = vector.load %arg7[%c0_27, %c0_28, %c0_29] : memref<2x1x128xf32, #tpu.memory_space<vmem>>, vector<2x1x128xf32>
    tpu.vector_store %arg7[%c0_27, %c0_28, %c0_29], %52 {strides = array<i32>} : memref<2x1x128xf32, #tpu.memory_space<vmem>>, vector<2x1x128xf32>,
    return
  }
  func.func @transform_0(%arg0: i32) -> (i32, i32, i32) {
    %c0_i32 = arith.constant 0 : i32
    %c0_i32_0 = arith.constant 0 : i32
    %c0_i32_1 = arith.constant 0 : i32
    %c0_i32_2 = arith.constant 0 : i32
    return %c0_i32, %c0_i32_0, %c0_i32_1 : i32, i32, i32
  }
  func.func @transform_1(%arg0: i32) -> (i32, i32, i32) {
    %c0_i32 = arith.constant 0 : i32
    %c0_i32_0 = arith.constant 0 : i32
    %c0_i32_1 = arith.constant 0 : i32
    return %c0_i32, %c0_i32_0, %arg0 : i32, i32, i32
  }
  func.func @transform_2(%arg0: i32) -> (i32, i32) {
    %c0_i32 = arith.constant 0 : i32
    %c0_i32_0 = arith.constant 0 : i32
    return %c0_i32, %arg0 : i32, i32
  }
  func.func @transform_3(%arg0: i32) -> (i32, i32) {
    %c0_i32 = arith.constant 0 : i32
    %c0_i32_0 = arith.constant 0 : i32
    return %c0_i32, %arg0 : i32, i32
  }
  func.func @transform_4(%arg0: i32) -> (i32, i32) {
    %c0_i32 = arith.constant 0 : i32
    %c0_i32_0 = arith.constant 0 : i32
    return %c0_i32, %arg0 : i32, i32
  }
  func.func @transform_5(%arg0: i32) -> (i32, i32, i32) {
    %c0_i32 = arith.constant 0 : i32
    %c0_i32_0 = arith.constant 0 : i32
    %c0_i32_1 = arith.constant 0 : i32
    return %c0_i32, %c0_i32_0, %arg0 : i32, i32, i32
  }
  func.func @transform_6(%arg0: i32) -> (i32, i32, i32) {
    %c0_i32 = arith.constant 0 : i32
    %c0_i32_0 = arith.constant 0 : i32
    %c0_i32_1 = arith.constant 0 : i32
    return %c0_i32, %c0_i32_0, %arg0 : i32, i32, i32
  }
}

module attributes {stable_mosaic.version = 11 : i64} {
  func.func @_conv_bn_kernel(%arg0: i32, %arg1: memref<2x3x128xf32, #tpu.memory_space<vmem>>, %arg2: memref<3x128x128xf32, #tpu.memory_space<vmem>>, %arg3: memref<1x128xf32, #tpu.memory_space<vmem>>, %arg4: memref<1x128xf32, #tpu.memory_space<vmem>>, %arg5: memref<1x128xf32, #tpu.memory_space<vmem>>, %arg6: memref<2x1x128xf32, #tpu.memory_space<vmem>>) attributes {dimension_semantics = [#tpu.dimension_semantics<parallel>], iteration_bounds = array<i64: 1>, scalar_prefetch = 0 : i64, scratch_operands = 0 : i64, tpu.core_type = #tpu.core_type<tc>, window_params = [{pipeline_mode = #tpu.pipeline_mode<synchronous>, transform_indices = @transform_0, window_bounds = array<i64: 2, 3, 128>}, {transform_indices = @transform_1, window_bounds = array<i64: 3, 128, 128>}, {transform_indices = @transform_2, window_bounds = array<i64: 1, 128>}, {transform_indices = @transform_3, window_bounds = array<i64: 1, 128>}, {transform_indices = @transform_4, window_bounds = array<i64: 1, 128>}, {transform_indices = @transform_5, window_bounds = array<i64: 2, 1, 128>}]} {
    %c0 = arith.constant 0 : index
    %c0_0 = arith.constant 0 : index
    %c0_1 = arith.constant 0 : index
    %0 = vector.load %arg1[%c0, %c0_0, %c0_1] : memref<2x3x128xf32, #tpu.memory_space<vmem>>, vector<2x3x128xf32>
    %cst = arith.constant 0.000000e+00 : f32
    %1 = vector.broadcast %cst : f32 to vector<2x128xf32>
    %2 = vector.extract_strided_slice %0 {offsets = [0, 0, 0], sizes = [2, 1, 128], strides = [1, 1, 1]} : vector<2x3x128xf32> to vector<2x1x128xf32>
    %3 = vector.shape_cast %2 : vector<2x1x128xf32> to vector<2x128xf32>
    %c0_2 = arith.constant 0 : index
    %c0_3 = arith.constant 0 : index
    %c0_4 = arith.constant 0 : index
    %4 = vector.load %arg2[%c0_2, %c0_3, %c0_4] : memref<3x128x128xf32, #tpu.memory_space<vmem>>, vector<1x128x128xf32>
    %5 = vector.shape_cast %4 : vector<1x128x128xf32> to vector<128x128xf32>
    %cst_5 = arith.constant dense<0.000000e+00> : vector<2x128xf32>
    %6 = tpu.matmul %3, %5, %cst_5 {dimension_numbers = #tpu.dot_dimension_numbers<[1], [0], [0], [1], [0, 0, 1, 1], [], []>} : vector<2x128xf32>, vector<128x128xf32>, vector<2x128xf32> -> vector<2x128xf32>
    %7 = arith.addf %1, %6 : vector<2x128xf32>
    %8 = vector.extract_strided_slice %0 {offsets = [0, 1, 0], sizes = [2, 1, 128], strides = [1, 1, 1]} : vector<2x3x128xf32> to vector<2x1x128xf32>
    %9 = vector.shape_cast %8 : vector<2x1x128xf32> to vector<2x128xf32>
    %c1 = arith.constant 1 : index
    %c0_6 = arith.constant 0 : index
    %c0_7 = arith.constant 0 : index
    %10 = vector.load %arg2[%c1, %c0_6, %c0_7] : memref<3x128x128xf32, #tpu.memory_space<vmem>>, vector<1x128x128xf32>
    %11 = vector.shape_cast %10 : vector<1x128x128xf32> to vector<128x128xf32>
    %cst_8 = arith.constant dense<0.000000e+00> : vector<2x128xf32>
    %12 = tpu.matmul %9, %11, %cst_8 {dimension_numbers = #tpu.dot_dimension_numbers<[1], [0], [0], [1], [0, 0, 1, 1], [], []>} : vector<2x128xf32>, vector<128x128xf32>, vector<2x128xf32> -> vector<2x128xf32>
    %13 = arith.addf %7, %12 : vector<2x128xf32>
    %14 = vector.extract_strided_slice %0 {offsets = [0, 2, 0], sizes = [2, 1, 128], strides = [1, 1, 1]} : vector<2x3x128xf32> to vector<2x1x128xf32>
    %15 = vector.shape_cast %14 : vector<2x1x128xf32> to vector<2x128xf32>
    %c2 = arith.constant 2 : index
    %c0_9 = arith.constant 0 : index
    %c0_10 = arith.constant 0 : index
    %16 = vector.load %arg2[%c2, %c0_9, %c0_10] : memref<3x128x128xf32, #tpu.memory_space<vmem>>, vector<1x128x128xf32>
    %17 = vector.shape_cast %16 : vector<1x128x128xf32> to vector<128x128xf32>
    %cst_11 = arith.constant dense<0.000000e+00> : vector<2x128xf32>
    %18 = tpu.matmul %15, %17, %cst_11 {dimension_numbers = #tpu.dot_dimension_numbers<[1], [0], [0], [1], [0, 0, 1, 1], [], []>} : vector<2x128xf32>, vector<128x128xf32>, vector<2x128xf32> -> vector<2x128xf32>
    %19 = arith.addf %13, %18 : vector<2x128xf32>
    %c0_12 = arith.constant 0 : index
    %c0_13 = arith.constant 0 : index
    %20 = vector.load %arg3[%c0_12, %c0_13] : memref<1x128xf32, #tpu.memory_space<vmem>>, vector<1x128xf32>
    %21 = vector.broadcast %20 : vector<1x128xf32> to vector<2x128xf32>
    %22 = arith.addf %19, %21 : vector<2x128xf32>
    %cst_14 = arith.constant dense<0.000000e+00> : vector<128xf32>
    %23 = vector.multi_reduction <add>, %22, %cst_14 [0] : vector<2x128xf32> to vector<128xf32>
    %24 = vector.shape_cast %23 : vector<128xf32> to vector<1x128xf32>
    %cst_15 = arith.constant 2.000000e+00 : f32
    %25 = vector.broadcast %cst_15 : f32 to vector<1x128xf32>
    %26 = arith.divf %24, %25 : vector<1x128xf32>
    %27 = vector.broadcast %26 : vector<1x128xf32> to vector<2x128xf32>
    %28 = arith.subf %22, %27 : vector<2x128xf32>
    %29 = arith.mulf %28, %28 : vector<2x128xf32>
    %cst_16 = arith.constant dense<0.000000e+00> : vector<128xf32>
    %30 = vector.multi_reduction <add>, %29, %cst_16 [0] : vector<2x128xf32> to vector<128xf32>
    %31 = vector.shape_cast %30 : vector<128xf32> to vector<1x128xf32>
    %cst_17 = arith.constant 2.000000e+00 : f32
    %32 = vector.broadcast %cst_17 : f32 to vector<1x128xf32>
    %33 = arith.divf %31, %32 : vector<1x128xf32>
    %34 = vector.broadcast %26 : vector<1x128xf32> to vector<2x128xf32>
    %35 = arith.subf %22, %34 : vector<2x128xf32>
    %cst_18 = arith.constant 9.99999974E-6 : f32
    %36 = vector.broadcast %cst_18 : f32 to vector<1x128xf32>
    %37 = arith.addf %33, %36 : vector<1x128xf32>
    %38 = math.rsqrt %37 : vector<1x128xf32>
    %39 = vector.broadcast %38 : vector<1x128xf32> to vector<2x128xf32>
    %40 = arith.mulf %35, %39 : vector<2x128xf32>
    %c0_19 = arith.constant 0 : index
    %c0_20 = arith.constant 0 : index
    %41 = vector.load %arg4[%c0_19, %c0_20] : memref<1x128xf32, #tpu.memory_space<vmem>>, vector<1x128xf32>
    %42 = vector.broadcast %41 : vector<1x128xf32> to vector<2x128xf32>
    %43 = arith.mulf %40, %42 : vector<2x128xf32>
    %c0_21 = arith.constant 0 : index
    %c0_22 = arith.constant 0 : index
    %44 = vector.load %arg5[%c0_21, %c0_22] : memref<1x128xf32, #tpu.memory_space<vmem>>, vector<1x128xf32>
    %45 = vector.broadcast %44 : vector<1x128xf32> to vector<2x128xf32>
    %46 = arith.addf %43, %45 : vector<2x128xf32>
    %cst_23 = arith.constant 0.000000e+00 : f32
    %47 = vector.broadcast %cst_23 : f32 to vector<2x128xf32>
    %48 = arith.maximumf %46, %47 : vector<2x128xf32>
    %49 = vector.shape_cast %48 : vector<2x128xf32> to vector<2x1x128xf32>
    %c0_24 = arith.constant 0 : index
    %c0_25 = arith.constant 0 : index
    %c0_26 = arith.constant 0 : index
    %50 = vector.load %arg6[%c0_24, %c0_25, %c0_26] : memref<2x1x128xf32, #tpu.memory_space<vmem>>, vector<2x1x128xf32>
    tpu.vector_store %arg6[%c0_24, %c0_25, %c0_26], %49 {strides = array<i32>} : memref<2x1x128xf32, #tpu.memory_space<vmem>>, vector<2x1x128xf32>,
    return
  }
  func.func @transform_0(%arg0: i32) -> (i32, i32, i32) {
    %c0_i32 = arith.constant 0 : i32
    %c0_i32_0 = arith.constant 0 : i32
    %c0_i32_1 = arith.constant 0 : i32
    %c0_i32_2 = arith.constant 0 : i32
    return %c0_i32, %c0_i32_0, %c0_i32_1 : i32, i32, i32
  }
  func.func @transform_1(%arg0: i32) -> (i32, i32, i32) {
    %c0_i32 = arith.constant 0 : i32
    %c0_i32_0 = arith.constant 0 : i32
    %c0_i32_1 = arith.constant 0 : i32
    return %c0_i32, %c0_i32_0, %arg0 : i32, i32, i32
  }
  func.func @transform_2(%arg0: i32) -> (i32, i32) {
    %c0_i32 = arith.constant 0 : i32
    %c0_i32_0 = arith.constant 0 : i32
    return %c0_i32, %arg0 : i32, i32
  }
  func.func @transform_3(%arg0: i32) -> (i32, i32) {
    %c0_i32 = arith.constant 0 : i32
    %c0_i32_0 = arith.constant 0 : i32
    return %c0_i32, %arg0 : i32, i32
  }
  func.func @transform_4(%arg0: i32) -> (i32, i32) {
    %c0_i32 = arith.constant 0 : i32
    %c0_i32_0 = arith.constant 0 : i32
    return %c0_i32, %arg0 : i32, i32
  }
  func.func @transform_5(%arg0: i32) -> (i32, i32, i32) {
    %c0_i32 = arith.constant 0 : i32
    %c0_i32_0 = arith.constant 0 : i32
    %c0_i32_1 = arith.constant 0 : i32
    return %c0_i32, %c0_i32_0, %arg0 : i32, i32, i32
  }
}

module attributes {stable_mosaic.version = 11 : i64} {
  func.func @_pool_fc_kernel(%arg0: i32, %arg1: memref<2x1x128xf32, #tpu.memory_space<vmem>>, %arg2: memref<128x128xf32, #tpu.memory_space<vmem>>, %arg3: memref<1x128xf32, #tpu.memory_space<vmem>>, %arg4: memref<2x128xf32, #tpu.memory_space<vmem>>) attributes {dimension_semantics = [#tpu.dimension_semantics<parallel>], iteration_bounds = array<i64: 1>, scalar_prefetch = 0 : i64, scratch_operands = 0 : i64, tpu.core_type = #tpu.core_type<tc>, window_params = [{pipeline_mode = #tpu.pipeline_mode<synchronous>, transform_indices = @transform_0, window_bounds = array<i64: 2, 1, 128>}, {transform_indices = @transform_1, window_bounds = array<i64: 128, 128>}, {transform_indices = @transform_2, window_bounds = array<i64: 1, 128>}, {transform_indices = @transform_3, window_bounds = array<i64: 2, 128>}]} {
    %c0 = arith.constant 0 : index
    %c0_0 = arith.constant 0 : index
    %c0_1 = arith.constant 0 : index
    %0 = vector.load %arg1[%c0, %c0_0, %c0_1] : memref<2x1x128xf32, #tpu.memory_space<vmem>>, vector<2x1x128xf32>
    %cst = arith.constant dense<0.000000e+00> : vector<2x128xf32>
    %1 = vector.multi_reduction <add>, %0, %cst [1] : vector<2x1x128xf32> to vector<2x128xf32>
    %cst_2 = arith.constant 1.000000e+00 : f32
    %2 = vector.broadcast %cst_2 : f32 to vector<2x128xf32>
    %3 = arith.divf %1, %2 : vector<2x128xf32>
    %c0_3 = arith.constant 0 : index
    %c0_4 = arith.constant 0 : index
    %4 = vector.load %arg2[%c0_3, %c0_4] : memref<128x128xf32, #tpu.memory_space<vmem>>, vector<128x128xf32>
    %cst_5 = arith.constant dense<0.000000e+00> : vector<2x128xf32>
    %5 = tpu.matmul %3, %4, %cst_5 {dimension_numbers = #tpu.dot_dimension_numbers<[1], [0], [0], [1], [0, 0, 1, 1], [], []>} : vector<2x128xf32>, vector<128x128xf32>, vector<2x128xf32> -> vector<2x128xf32>
    %c0_6 = arith.constant 0 : index
    %c0_7 = arith.constant 0 : index
    %6 = vector.load %arg3[%c0_6, %c0_7] : memref<1x128xf32, #tpu.memory_space<vmem>>, vector<1x128xf32>
    %7 = vector.broadcast %6 : vector<1x128xf32> to vector<2x128xf32>
    %8 = arith.addf %5, %7 : vector<2x128xf32>
    %c0_8 = arith.constant 0 : index
    %c0_9 = arith.constant 0 : index
    %9 = vector.load %arg4[%c0_8, %c0_9] : memref<2x128xf32, #tpu.memory_space<vmem>>, vector<2x128xf32>
    tpu.vector_store %arg4[%c0_8, %c0_9], %8 {strides = array<i32>} : memref<2x128xf32, #tpu.memory_space<vmem>>, vector<2x128xf32>,
    return
  }
  func.func @transform_0(%arg0: i32) -> (i32, i32, i32) {
    %c0_i32 = arith.constant 0 : i32
    %c0_i32_0 = arith.constant 0 : i32
    %c0_i32_1 = arith.constant 0 : i32
    %c0_i32_2 = arith.constant 0 : i32
    return %c0_i32, %c0_i32_0, %c0_i32_1 : i32, i32, i32
  }
  func.func @transform_1(%arg0: i32) -> (i32, i32) {
    %c0_i32 = arith.constant 0 : i32
    %c0_i32_0 = arith.constant 0 : i32
    return %c0_i32, %arg0 : i32, i32
  }
  func.func @transform_2(%arg0: i32) -> (i32, i32) {
    %c0_i32 = arith.constant 0 : i32
    %c0_i32_0 = arith.constant 0 : i32
    return %c0_i32, %arg0 : i32, i32
  }
  func.func @transform_3(%arg0: i32) -> (i32, i32) {
    %c0_i32 = arith.constant 0 : i32
    %c0_i32_0 = arith.constant 0 : i32
    return %c0_i32, %arg0 : i32, i32
  }
}

</mosaic_0001>

<llo_original>
// kernel: _lambda_.23
$region0: #{_lambda_.23}
  #allocation0 [shape = 'u32[]', space=smem, size = 0x4, offset = 0x4, fixed_abs, tag = 'smem constant byte address 0x4 - core index']
  #allocation1 [shape = 'u32[144,128]{1,0:T(1,128)}', space=vmem, size = 0x12000, scoped, tag = 'internal scratch']
  %s0 = inlined_call_operand.vmem [shape: f32[2,9,128], index: 0, kind: input, shape index: {}]
  %s1 = inlined_call_operand.vmem [shape: f32[2,9,128], index: 1, kind: input, shape index: {}]
  %s2 = inlined_call_operand.vmem [shape: f32[2,8,128], index: 2, kind: output, shape index: {}]
  %s3 = sld [smem:[#allocation0]]
  $region18: #{_lambda_.23} parent=0
    _
  %s5 = ssub.s32 1, %s3
  %s6 = scalar_select 0, %s5, %s3
  // Predicated region
  $region2: #{_lambda_.23} parent=0 // pred_check
    _
  $region3: #{_lambda_.23} parent=0 // pred_check_branch
    %8 = sbr.rel (0) target = $region5
  $region4: #{_lambda_.23} parent=0 // pred_region
    _
  $region5: #{_lambda_.23} parent=0 // pred_fallthru
    _
  // Predicated region
  $region6: #{_lambda_.23} parent=0 // pred_check
    _
  $region7: #{_lambda_.23} parent=0 // pred_check_branch
    %10 = sbr.rel (0) target = $region9
  $region8: #{_lambda_.23} parent=0 // pred_region
    _
  $region9: #{_lambda_.23} parent=0 // pred_fallthru
    _
  %v11 = vld [vmem:[%s0] sm:$0xff]
  %v12 = vld [vmem:[%s0 + $0x8] sm:$0x1]
  %v13 = vld [vmem:[%s0 + $0x10] sm:$0xff]
  %v14 = vld [vmem:[%s0 + $0x18] sm:$0x1]
  %v15 = vld [vmem:[%s1] sm:$0xff]
  %v16 = vld [vmem:[%s1 + $0x10] sm:$0xff]
  %v17 = vmax.f32 %v11, %v15
  %v18 = vmax.f32 %v13, %v16
  %vm23 = vcmask 1046528
  %v24 = vrot.slane %v11, 1
  %v25 = vrot.slane %v12, 1
  %v26 = vsel %vm23, %v24, %v25
  %v27 = vrot.slane %v13, 1
  %v28 = vrot.slane %v14, 1
  %v29 = vsel %vm23, %v27, %v28
  %v32 = vmax.f32 %v17, %v26
  %v33 = vmax.f32 %v18, %v29
  %34 = vst [vmem:[%s2] sm:$0xff] %v32
  %35 = vst [vmem:[%s2 + $0x8] sm:$0xff] %v33
  // Predicated region
  $region10: #{_lambda_.23} parent=0 // pred_check
    _
  $region11: #{_lambda_.23} parent=0 // pred_check_branch
    %37 = sbr.rel (0) target = $region13
  $region12: #{_lambda_.23} parent=0 // pred_region
    _
  $region13: #{_lambda_.23} parent=0 // pred_fallthru
    _
  // Predicated region
  $region14: #{_lambda_.23} parent=0 // pred_check
    _
  $region15: #{_lambda_.23} parent=0 // pred_check_branch
    %39 = sbr.rel (0) target = $region17
  $region16: #{_lambda_.23} parent=0 // pred_region
    _
  $region17: #{_lambda_.23} parent=0 // pred_fallthru
    _

// kernel: _lambda_.24
$region0: #{_lambda_.24}
  #allocation0 [shape = 'u32[]', space=smem, size = 0x4, offset = 0x4, fixed_abs, tag = 'smem constant byte address 0x4 - core index']
  #allocation1 [shape = 'u32[144,128]{1,0:T(1,128)}', space=vmem, size = 0x12000, scoped, tag = 'internal scratch']
  %s0 = inlined_call_operand.vmem [shape: f32[2,10,128], index: 0, kind: input, shape index: {}]
  %s1 = inlined_call_operand.vmem [shape: f32[3,128,128], index: 1, kind: input, shape index: {}]
  %s2 = inlined_call_operand.vmem [shape: f32[1,128], index: 2, kind: input, shape index: {}]
  %s3 = inlined_call_operand.vmem [shape: f32[1,128], index: 3, kind: input, shape index: {}]
  %s4 = inlined_call_operand.vmem [shape: f32[1,128], index: 4, kind: input, shape index: {}]
  %s5 = inlined_call_operand.vmem [shape: f32[2,8,128], index: 5, kind: output, shape index: {}]
  %s6 = sld [smem:[#allocation0]]
  $region30: #{_lambda_.24} parent=0
    _
  %s8 = ssub.s32 1, %s6
  %s9 = scalar_select 0, %s8, %s6
  // Predicated region
  $region2: #{_lambda_.24} parent=0 // pred_check
    _
  $region3: #{_lambda_.24} parent=0 // pred_check_branch
    %11 = sbr.rel (0) target = $region5
  $region4: #{_lambda_.24} parent=0 // pred_region
    _
  $region5: #{_lambda_.24} parent=0 // pred_fallthru
    _
  // Predicated region
  $region6: #{_lambda_.24} parent=0 // pred_check
    _
  $region7: #{_lambda_.24} parent=0 // pred_check_branch
    %13 = sbr.rel (0) target = $region9
  $region8: #{_lambda_.24} parent=0 // pred_region
    _
  $region9: #{_lambda_.24} parent=0 // pred_fallthru
    _
  // Predicated region
  $region10: #{_lambda_.24} parent=0 // pred_check
    _
  $region11: #{_lambda_.24} parent=0 // pred_check_branch
    %15 = sbr.rel (0) target = $region13
  $region12: #{_lambda_.24} parent=0 // pred_region
    _
  $region13: #{_lambda_.24} parent=0 // pred_fallthru
    _
  // Predicated region
  $region14: #{_lambda_.24} parent=0 // pred_check
    _
  $region15: #{_lambda_.24} parent=0 // pred_check_branch
    %17 = sbr.rel (0) target = $region17
  $region16: #{_lambda_.24} parent=0 // pred_region
    _
  $region17: #{_lambda_.24} parent=0 // pred_fallthru
    _
  // Predicated region
  $region18: #{_lambda_.24} parent=0 // pred_check
    _
  $region19: #{_lambda_.24} parent=0 // pred_check_branch
    %19 = sbr.rel (0) target = $region21
  $region20: #{_lambda_.24} parent=0 // pred_region
    _
  $region21: #{_lambda_.24} parent=0 // pred_fallthru
    _
  %v20 = vld [vmem:[%s0] sm:$0xff]
  %v21 = vld [vmem:[%s0 + $0x8] sm:$0x3]
  %v22 = vld [vmem:[%s0 + $0x10] sm:$0xff]
  %v23 = vld [vmem:[%s0 + $0x18] sm:$0x3]
  %v24 = vld [vmem:[%s1] sm:$0xff]
  %v25 = vld [vmem:[%s1 + $0x8] sm:$0xff]
  %v26 = vld [vmem:[%s1 + $0x10] sm:$0xff]
  %v27 = vld [vmem:[%s1 + $0x18] sm:$0xff]
  %v28 = vld [vmem:[%s1 + $0x20] sm:$0xff]
  %v29 = vld [vmem:[%s1 + $0x28] sm:$0xff]
  %v30 = vld [vmem:[%s1 + $0x30] sm:$0xff]
  %v31 = vld [vmem:[%s1 + $0x38] sm:$0xff]
  %v32 = vld [vmem:[%s1 + $0x40] sm:$0xff]
  %v33 = vld [vmem:[%s1 + $0x48] sm:$0xff]
  %v34 = vld [vmem:[%s1 + $0x50] sm:$0xff]
  %v35 = vld [vmem:[%s1 + $0x58] sm:$0xff]
  %v36 = vld [vmem:[%s1 + $0x60] sm:$0xff]
  %v37 = vld [vmem:[%s1 + $0x68] sm:$0xff]
  %v38 = vld [vmem:[%s1 + $0x70] sm:$0xff]
  %v39 = vld [vmem:[%s1 + $0x78] sm:$0xff]
  %vm44 = vcmask 1046528
  %v45 = vrot.slane %v20, 1
  %v46 = vrot.slane %v21, 1
  %v47 = vsel %vm44, %v45, %v46
  %v48 = vrot.slane %v22, 1
  %v49 = vrot.slane %v23, 1
  %v50 = vsel %vm44, %v48, %v49
  %s53 = scalar_lea.vmem %s1, 128
  %v54 = vld [vmem:[%s53] sm:$0xff]
  %v55 = vld [vmem:[%s53 + $0x8] sm:$0xff]
  %v56 = vld [vmem:[%s53 + $0x10] sm:$0xff]
  %v57 = vld [vmem:[%s53 + $0x18] sm:$0xff]
  %v58 = vld [vmem:[%s53 + $0x20] sm:$0xff]
  %v59 = vld [vmem:[%s53 + $0x28] sm:$0xff]
  %v60 = vld [vmem:[%s53 + $0x30] sm:$0xff]
  %v61 = vld [vmem:[%s53 + $0x38] sm:$0xff]
  %v62 = vld [vmem:[%s53 + $0x40] sm:$0xff]
  %v63 = vld [vmem:[%s53 + $0x48] sm:$0xff]
  %v64 = vld [vmem:[%s53 + $0x50] sm:$0xff]
  %v65 = vld [vmem:[%s53 + $0x58] sm:$0xff]
  %v66 = vld [vmem:[%s53 + $0x60] sm:$0xff]
  %v67 = vld [vmem:[%s53 + $0x68] sm:$0xff]
  %v68 = vld [vmem:[%s53 + $0x70] sm:$0xff]
  %v69 = vld [vmem:[%s53 + $0x78] sm:$0xff]
  %70 = vmatprep.subr.mxu0 0.0
  %71 = vmatpush1.msra.mxu0 %v54
  %72 = vmatprep.subr.mxu0 0.0
  %73 = vmatpush1.msra.mxu0 %v55
  %74 = vmatprep.subr.mxu0 0.0
  %75 = vmatpush1.msra.mxu0 %v56
  %76 = vmatprep.subr.mxu0 0.0
  %77 = vmatpush1.msra.mxu0 %v57
  %78 = vmatprep.subr.mxu0 0.0
  %79 = vmatpush1.msra.mxu0 %v58
  %80 = vmatprep.subr.mxu0 0.0
  %81 = vmatpush1.msra.mxu0 %v59
  %82 = vmatprep.subr.mxu0 0.0
  %83 = vmatpush1.msra.mxu0 %v60
  %84 = vmatprep.subr.mxu0 0.0
  %85 = vmatpush1.msra.mxu0 %v61
  %86 = vmatprep.subr.mxu0 0.0
  %87 = vmatpush1.msra.mxu0 %v62
  %88 = vmatprep.subr.mxu0 0.0
  %89 = vmatpush1.msra.mxu0 %v63
  %90 = vmatprep.subr.mxu0 0.0
  %91 = vmatpush1.msra.mxu0 %v64
  %92 = vmatprep.subr.mxu0 0.0
  %93 = vmatpush1.msra.mxu0 %v65
  %94 = vmatprep.subr.mxu0 0.0
  %95 = vmatpush1.msra.mxu0 %v66
  %96 = vmatprep.subr.mxu0 0.0
  %97 = vmatpush1.msra.mxu0 %v67
  %98 = vmatprep.subr.mxu0 0.0
  %99 = vmatpush1.msra.mxu0 %v68
  %100 = vmatprep.subr.mxu0 0.0
  %101 = vmatpush1.msra.mxu0 %v69
  %102 = vmatprep.subr.mxu0 0.0
  %103 = vmatpush1.msra.mxu0 0.0
  %104 = vmatprep.subr.mxu0 0.0
  %105 = vmatpush1.msra.mxu0 0.0
  %106 = vmatprep.subr.mxu0 0.0
  %107 = vmatpush1.msra.mxu0 0.0
  %108 = vmatprep.subr.mxu0 0.0
  %109 = vmatpush1.msra.mxu0 0.0
  %110 = vmatprep.subr.mxu0 0.0
  %111 = vmatpush1.msra.mxu0 0.0
  %112 = vmatprep.subr.mxu0 0.0
  %113 = vmatpush1.msra.mxu0 0.0
  %114 = vmatprep.subr.mxu0 0.0
  %115 = vmatpush1.msra.mxu0 0.0
  %116 = vmatprep.subr.mxu0 0.0
  %117 = vmatpush1.msra.mxu0 0.0
  %118 = vmatprep.subr.mxu0 0.0
  %119 = vmatpush1.msra.mxu0 0.0
  %120 = vmatprep.subr.mxu0 0.0
  %121 = vmatpush1.msra.mxu0 0.0
  %122 = vmatprep.subr.mxu0 0.0
  %123 = vmatpush1.msra.mxu0 0.0
  %124 = vmatprep.subr.mxu0 0.0
  %125 = vmatpush1.msra.mxu0 0.0
  %126 = vmatprep.subr.mxu0 0.0
  %127 = vmatpush1.msra.mxu0 0.0
  %128 = vmatprep.subr.mxu0 0.0
  %129 = vmatpush1.msra.mxu0 0.0
  %130 = vmatprep.subr.mxu0 0.0
  %131 = vmatpush1.msra.mxu0 0.0
  %132 = vmatprep.subr.mxu0 0.0
  %133 = vmatpush1.msra.mxu0 0.0
  %134 = vmatprep.mubr.f32.mxu0 0.0
  %135 = vmatmul.mubr.f32.gmra.mrb[0].mxu0 %v47
  %v136 = vpop.f32.mrb[0].mxu0
  %v137 = vadd.f32 0.0, %v136
  %v138 = vpop.f32.mrb[0].mxu0
  %139 = vmatprep.mubr.f32.mxu0 0.0
  %140 = vmatmul.mubr.f32.gmra.mrb[0].mxu0 %v50
  %v141 = vpop.f32.mrb[0].mxu0
  %v142 = vadd.f32 0.0, %v141
  %v143 = vpop.f32.mrb[0].mxu0
  %144 = vdwg.mxu0
  %145 = vmatprep.subr.mxu0 0.0
  %146 = vmatpush1.msra.mxu0 %v24
  %147 = vmatprep.subr.mxu0 0.0
  %148 = vmatpush1.msra.mxu0 %v25
  %149 = vmatprep.subr.mxu0 0.0
  %150 = vmatpush1.msra.mxu0 %v26
  %151 = vmatprep.subr.mxu0 0.0
  %152 = vmatpush1.msra.mxu0 %v27
  %153 = vmatprep.subr.mxu0 0.0
  %154 = vmatpush1.msra.mxu0 %v28
  %155 = vmatprep.subr.mxu0 0.0
  %156 = vmatpush1.msra.mxu0 %v29
  %157 = vmatprep.subr.mxu0 0.0
  %158 = vmatpush1.msra.mxu0 %v30
  %159 = vmatprep.subr.mxu0 0.0
  %160 = vmatpush1.msra.mxu0 %v31
  %161 = vmatprep.subr.mxu0 0.0
  %162 = vmatpush1.msra.mxu0 %v32
  %163 = vmatprep.subr.mxu0 0.0
  %164 = vmatpush1.msra.mxu0 %v33
  %165 = vmatprep.subr.mxu0 0.0
  %166 = vmatpush1.msra.mxu0 %v34
  %167 = vmatprep.subr.mxu0 0.0
  %168 = vmatpush1.msra.mxu0 %v35
  %169 = vmatprep.subr.mxu0 0.0
  %170 = vmatpush1.msra.mxu0 %v36
  %171 = vmatprep.subr.mxu0 0.0
  %172 = vmatpush1.msra.mxu0 %v37
  %173 = vmatprep.subr.mxu0 0.0
  %174 = vmatpush1.msra.mxu0 %v38
  %175 = vmatprep.subr.mxu0 0.0
  %176 = vmatpush1.msra.mxu0 %v39
  %177 = vmatprep.subr.mxu0 0.0
  %178 = vmatpush1.msra.mxu0 0.0
  %179 = vmatprep.subr.mxu0 0.0
  %180 = vmatpush1.msra.mxu0 0.0
  %181 = vmatprep.subr.mxu0 0.0
  %182 = vmatpush1.msra.mxu0 0.0
  %183 = vmatprep.subr.mxu0 0.0
  %184 = vmatpush1.msra.mxu0 0.0
  %185 = vmatprep.subr.mxu0 0.0
  %186 = vmatpush1.msra.mxu0 0.0
  %187 = vmatprep.subr.mxu0 0.0
  %188 = vmatpush1.msra.mxu0 0.0
  %189 = vmatprep.subr.mxu0 0.0
  %190 = vmatpush1.msra.mxu0 0.0
  %191 = vmatprep.subr.mxu0 0.0
  %192 = vmatpush1.msra.mxu0 0.0
  %193 = vmatprep.subr.mxu0 0.0
  %194 = vmatpush1.msra.mxu0 0.0
  %195 = vmatprep.subr.mxu0 0.0
  %196 = vmatpush1.msra.mxu0 0.0
  %197 = vmatprep.subr.mxu0 0.0
  %198 = vmatpush1.msra.mxu0 0.0
  %199 = vmatprep.subr.mxu0 0.0
  %200 = vmatpush1.msra.mxu0 0.0
  %201 = vmatprep.subr.mxu0 0.0
  %202 = vmatpush1.msra.mxu0 0.0
  %203 = vmatprep.subr.mxu0 0.0
  %204 = vmatpush1.msra.mxu0 0.0
  %205 = vmatprep.subr.mxu0 0.0
  %206 = vmatpush1.msra.mxu0 0.0
  %207 = vmatprep.subr.mxu0 0.0
  %208 = vmatpush1.msra.mxu0 0.0
  %209 = vmatprep.mubr.f32.mxu0 0.0
  %210 = vmatmul.mubr.f32.gmra.mrb[0].mxu0 %v20
  %v211 = vpop.f32.mrb[0].mxu0
  %v212 = vadd.f32 %v137, %v211
  %v213 = vpop.f32.mrb[0].mxu0
  %214 = vmatprep.mubr.f32.mxu0 0.0
  %215 = vmatmul.mubr.f32.gmra.mrb[0].mxu0 %v22
  %v216 = vpop.f32.mrb[0].mxu0
  %v217 = vadd.f32 %v142, %v216
  %v218 = vpop.f32.mrb[0].mxu0
  %219 = vdwg.mxu0
  %vm220 = vcmask 1045504
  %v221 = vrot.slane %v20, 2
  %v222 = vrot.slane %v21, 2
  %v223 = vsel %vm220, %v221, %v222
  %v224 = vrot.slane %v22, 2
  %v225 = vrot.slane %v23, 2
  %v226 = vsel %vm220, %v224, %v225
  %s229 = scalar_lea.vmem %s1, 256
  %v230 = vld [vmem:[%s229] sm:$0xff]
  %v231 = vld [vmem:[%s229 + $0x8] sm:$0xff]
  %v232 = vld [vmem:[%s229 + $0x10] sm:$0xff]
  %v233 = vld [vmem:[%s229 + $0x18] sm:$0xff]
  %v234 = vld [vmem:[%s229 + $0x20] sm:$0xff]
  %v235 = vld [vmem:[%s229 + $0x28] sm:$0xff]
  %v236 = vld [vmem:[%s229 + $0x30] sm:$0xff]
  %v237 = vld [vmem:[%s229 + $0x38] sm:$0xff]
  %v238 = vld [vmem:[%s229 + $0x40] sm:$0xff]
  %v239 = vld [vmem:[%s229 + $0x48] sm:$0xff]
  %v240 = vld [vmem:[%s229 + $0x50] sm:$0xff]
  %v241 = vld [vmem:[%s229 + $0x58] sm:$0xff]
  %v242 = vld [vmem:[%s229 + $0x60] sm:$0xff]
  %v243 = vld [vmem:[%s229 + $0x68] sm:$0xff]
  %v244 = vld [vmem:[%s229 + $0x70] sm:$0xff]
  %v245 = vld [vmem:[%s229 + $0x78] sm:$0xff]
  %246 = vmatprep.subr.mxu0 0.0
  %247 = vmatpush1.msra.mxu0 %v230
  %248 = vmatprep.subr.mxu0 0.0
  %249 = vmatpush1.msra.mxu0 %v231
  %250 = vmatprep.subr.mxu0 0.0
  %251 = vmatpush1.msra.mxu0 %v232
  %252 = vmatprep.subr.mxu0 0.0
  %253 = vmatpush1.msra.mxu0 %v233
  %254 = vmatprep.subr.mxu0 0.0
  %255 = vmatpush1.msra.mxu0 %v234
  %256 = vmatprep.subr.mxu0 0.0
  %257 = vmatpush1.msra.mxu0 %v235
  %258 = vmatprep.subr.mxu0 0.0
  %259 = vmatpush1.msra.mxu0 %v236
  %260 = vmatprep.subr.mxu0 0.0
  %261 = vmatpush1.msra.mxu0 %v237
  %262 = vmatprep.subr.mxu0 0.0
  %263 = vmatpush1.msra.mxu0 %v238
  %264 = vmatprep.subr.mxu0 0.0
  %265 = vmatpush1.msra.mxu0 %v239
  %266 = vmatprep.subr.mxu0 0.0
  %267 = vmatpush1.msra.mxu0 %v240
  %268 = vmatprep.subr.mxu0 0.0
  %269 = vmatpush1.msra.mxu0 %v241
  %270 = vmatprep.subr.mxu0 0.0
  %271 = vmatpush1.msra.mxu0 %v242
  %272 = vmatprep.subr.mxu0 0.0
  %273 = vmatpush1.msra.mxu0 %v243
  %274 = vmatprep.subr.mxu0 0.0
  %275 = vmatpush1.msra.mxu0 %v244
  %276 = vmatprep.subr.mxu0 0.0
  %277 = vmatpush1.msra.mxu0 %v245
  %278 = vmatprep.subr.mxu0 0.0
  %279 = vmatpush1.msra.mxu0 0.0
  %280 = vmatprep.subr.mxu0 0.0
  %281 = vmatpush1.msra.mxu0 0.0
  %282 = vmatprep.subr.mxu0 0.0
  %283 = vmatpush1.msra.mxu0 0.0
  %284 = vmatprep.subr.mxu0 0.0
  %285 = vmatpush1.msra.mxu0 0.0
  %286 = vmatprep.subr.mxu0 0.0
  %287 = vmatpush1.msra.mxu0 0.0
  %288 = vmatprep.subr.mxu0 0.0
  %289 = vmatpush1.msra.mxu0 0.0
  %290 = vmatprep.subr.mxu0 0.0
  %291 = vmatpush1.msra.mxu0 0.0
  %292 = vmatprep.subr.mxu0 0.0
  %293 = vmatpush1.msra.mxu0 0.0
  %294 = vmatprep.subr.mxu0 0.0
  %295 = vmatpush1.msra.mxu0 0.0
  %296 = vmatprep.subr.mxu0 0.0
  %297 = vmatpush1.msra.mxu0 0.0
  %298 = vmatprep.subr.mxu0 0.0
  %299 = vmatpush1.msra.mxu0 0.0
  %300 = vmatprep.subr.mxu0 0.0
  %301 = vmatpush1.msra.mxu0 0.0
  %302 = vmatprep.subr.mxu0 0.0
  %303 = vmatpush1.msra.mxu0 0.0
  %304 = vmatprep.subr.mxu0 0.0
  %305 = vmatpush1.msra.mxu0 0.0
  %306 = vmatprep.subr.mxu0 0.0
  %307 = vmatpush1.msra.mxu0 0.0
  %308 = vmatprep.subr.mxu0 0.0
  %309 = vmatpush1.msra.mxu0 0.0
  %310 = vmatprep.mubr.f32.mxu0 0.0
  %311 = vmatmul.mubr.f32.gmra.mrb[0].mxu0 %v223
  %v312 = vpop.f32.mrb[0].mxu0
  %v313 = vadd.f32 0.0, %v312
  %v314 = vpop.f32.mrb[0].mxu0
  %315 = vmatprep.mubr.f32.mxu0 0.0
  %316 = vmatmul.mubr.f32.gmra.mrb[0].mxu0 %v226
  %v317 = vpop.f32.mrb[0].mxu0
  %v318 = vadd.f32 0.0, %v317
  %v319 = vpop.f32.mrb[0].mxu0
  %320 = vdwg.mxu0
  %v321 = vadd.f32 %v212, %v313
  %v322 = vadd.f32 %v217, %v318
  %v323 = vld [vmem:[%s2] sm:$0x1]
  %v325 = vlaneseq
  %v326 = vshrl.u32 %v325, 7
  %v327 = vsub.s32 0, %v326
  %v328 = vrot.slane %v323, %v327
  %v330 = vadd.f32 %v321, %v328
  %v331 = vadd.f32 %v322, %v328
  %v332 = vadd.f32 %v330, %v331
  %v333 = vrot.slane %v332, 4
  %v334 = vadd.f32 %v332, %v333
  %v335 = vrot.slane %v334, 2
  %v336 = vadd.f32 %v334, %v335
  %v337 = vrot.slane %v336, 1
  %v338 = vadd.f32 %v336, %v337
  %v339 = vrcp.pop 16.0
  %v340 = vmul.f32 %v338, %v339
  %v341 = vsub.f32 %v330, %v340
  %v342 = vsub.f32 %v331, %v340
  %v343 = vmul.f32 %v341, %v341
  %v344 = vmul.f32 %v342, %v342
  %v345 = vadd.f32 %v343, %v344
  %v346 = vrot.slane %v345, 4
  %v347 = vadd.f32 %v345, %v346
  %v348 = vrot.slane %v347, 2
  %v349 = vadd.f32 %v347, %v348
  %v350 = vrot.slane %v349, 1
  %v351 = vadd.f32 %v349, %v350
  %v352 = vmul.f32 %v351, %v339
  %v353 = vadd.f32 %v352, 1e-05
  %v354 = vrsqrt.pop %v353
  %v355 = vmul.f32 %v341, %v354
  %v356 = vmul.f32 %v342, %v354
  %v357 = vld [vmem:[%s3] sm:$0x1]
  %v359 = vlaneseq
  %v360 = vshrl.u32 %v359, 7
  %v361 = vsub.s32 0, %v360
  %v362 = vrot.slane %v357, %v361
  %v364 = vmul.f32 %v355, %v362
  %v365 = vmul.f32 %v356, %v362
  %v366 = vld [vmem:[%s4] sm:$0x1]
  %v368 = vlaneseq
  %v369 = vshrl.u32 %v368, 7
  %v370 = vsub.s32 0, %v369
  %v371 = vrot.slane %v366, %v370
  %v373 = vadd.f32 %v364, %v371
  %v374 = vadd.f32 %v365, %v371
  %v375 = vmax.f32 %v373, 0.0
  %v376 = vmax.f32 %v374, 0.0
  %377 = vst [vmem:[%s5] sm:$0xff] %v375
  %378 = vst [vmem:[%s5 + $0x8] sm:$0xff] %v376
  // Predicated region
  $region22: #{_lambda_.24} parent=0 // pred_check
    _
  $region23: #{_lambda_.24} parent=0 // pred_check_branch
    %380 = sbr.rel (0) target = $region25
  $region24: #{_lambda_.24} parent=0 // pred_region
    _
  $region25: #{_lambda_.24} parent=0 // pred_fallthru
    _
  // Predicated region
  $region26: #{_lambda_.24} parent=0 // pred_check
    _
  $region27: #{_lambda_.24} parent=0 // pred_check_branch
    %382 = sbr.rel (0) target = $region29
  $region28: #{_lambda_.24} parent=0 // pred_region
    _
  $region29: #{_lambda_.24} parent=0 // pred_fallthru
    _

// kernel: _lambda_.25
$region0: #{_lambda_.25}
  #allocation0 [shape = 'u32[]', space=smem, size = 0x4, offset = 0x4, fixed_abs, tag = 'smem constant byte address 0x4 - core index']
  #allocation1 [shape = 'u32[144,128]{1,0:T(1,128)}', space=vmem, size = 0x12000, scoped, tag = 'internal scratch']
  %s0 = inlined_call_operand.vmem [shape: f32[2,10,128], index: 0, kind: input, shape index: {}]
  %s1 = inlined_call_operand.vmem [shape: f32[3,128,128], index: 1, kind: input, shape index: {}]
  %s2 = inlined_call_operand.vmem [shape: f32[1,128], index: 2, kind: input, shape index: {}]
  %s3 = inlined_call_operand.vmem [shape: f32[1,128], index: 3, kind: input, shape index: {}]
  %s4 = inlined_call_operand.vmem [shape: f32[1,128], index: 4, kind: input, shape index: {}]
  %s5 = inlined_call_operand.vmem [shape: f32[2,8,128], index: 5, kind: input, shape index: {}]
  %s6 = inlined_call_operand.vmem [shape: f32[2,8,128], index: 6, kind: output, shape index: {}]
  %s7 = sld [smem:[#allocation0]]
  $region34: #{_lambda_.25} parent=0
    _
  %s9 = ssub.s32 1, %s7
  %s10 = scalar_select 0, %s9, %s7
  // Predicated region
  $region2: #{_lambda_.25} parent=0 // pred_check
    _
  $region3: #{_lambda_.25} parent=0 // pred_check_branch
    %12 = sbr.rel (0) target = $region5
  $region4: #{_lambda_.25} parent=0 // pred_region
    _
  $region5: #{_lambda_.25} parent=0 // pred_fallthru
    _
  // Predicated region
  $region6: #{_lambda_.25} parent=0 // pred_check
    _
  $region7: #{_lambda_.25} parent=0 // pred_check_branch
    %14 = sbr.rel (0) target = $region9
  $region8: #{_lambda_.25} parent=0 // pred_region
    _
  $region9: #{_lambda_.25} parent=0 // pred_fallthru
    _
  // Predicated region
  $region10: #{_lambda_.25} parent=0 // pred_check
    _
  $region11: #{_lambda_.25} parent=0 // pred_check_branch
    %16 = sbr.rel (0) target = $region13
  $region12: #{_lambda_.25} parent=0 // pred_region
    _
  $region13: #{_lambda_.25} parent=0 // pred_fallthru
    _
  // Predicated region
  $region14: #{_lambda_.25} parent=0 // pred_check
    _
  $region15: #{_lambda_.25} parent=0 // pred_check_branch
    %18 = sbr.rel (0) target = $region17
  $region16: #{_lambda_.25} parent=0 // pred_region
    _
  $region17: #{_lambda_.25} parent=0 // pred_fallthru
    _
  // Predicated region
  $region18: #{_lambda_.25} parent=0 // pred_check
    _
  $region19: #{_lambda_.25} parent=0 // pred_check_branch
    %20 = sbr.rel (0) target = $region21
  $region20: #{_lambda_.25} parent=0 // pred_region
    _
  $region21: #{_lambda_.25} parent=0 // pred_fallthru
    _
  // Predicated region
  $region22: #{_lambda_.25} parent=0 // pred_check
    _
  $region23: #{_lambda_.25} parent=0 // pred_check_branch
    %22 = sbr.rel (0) target = $region25
  $region24: #{_lambda_.25} parent=0 // pred_region
    _
  $region25: #{_lambda_.25} parent=0 // pred_fallthru
    _
  %v23 = vld [vmem:[%s0] sm:$0xff]
  %v24 = vld [vmem:[%s0 + $0x8] sm:$0x3]
  %v25 = vld [vmem:[%s0 + $0x10] sm:$0xff]
  %v26 = vld [vmem:[%s0 + $0x18] sm:$0x3]
  %v27 = vld [vmem:[%s1] sm:$0xff]
  %v28 = vld [vmem:[%s1 + $0x8] sm:$0xff]
  %v29 = vld [vmem:[%s1 + $0x10] sm:$0xff]
  %v30 = vld [vmem:[%s1 + $0x18] sm:$0xff]
  %v31 = vld [vmem:[%s1 + $0x20] sm:$0xff]
  %v32 = vld [vmem:[%s1 + $0x28] sm:$0xff]
  %v33 = vld [vmem:[%s1 + $0x30] sm:$0xff]
  %v34 = vld [vmem:[%s1 + $0x38] sm:$0xff]
  %v35 = vld [vmem:[%s1 + $0x40] sm:$0xff]
  %v36 = vld [vmem:[%s1 + $0x48] sm:$0xff]
  %v37 = vld [vmem:[%s1 + $0x50] sm:$0xff]
  %v38 = vld [vmem:[%s1 + $0x58] sm:$0xff]
  %v39 = vld [vmem:[%s1 + $0x60] sm:$0xff]
  %v40 = vld [vmem:[%s1 + $0x68] sm:$0xff]
  %v41 = vld [vmem:[%s1 + $0x70] sm:$0xff]
  %v42 = vld [vmem:[%s1 + $0x78] sm:$0xff]
  %vm47 = vcmask 1046528
  %v48 = vrot.slane %v23, 1
  %v49 = vrot.slane %v24, 1
  %v50 = vsel %vm47, %v48, %v49
  %v51 = vrot.slane %v25, 1
  %v52 = vrot.slane %v26, 1
  %v53 = vsel %vm47, %v51, %v52
  %s56 = scalar_lea.vmem %s1, 128
  %v57 = vld [vmem:[%s56] sm:$0xff]
  %v58 = vld [vmem:[%s56 + $0x8] sm:$0xff]
  %v59 = vld [vmem:[%s56 + $0x10] sm:$0xff]
  %v60 = vld [vmem:[%s56 + $0x18] sm:$0xff]
  %v61 = vld [vmem:[%s56 + $0x20] sm:$0xff]
  %v62 = vld [vmem:[%s56 + $0x28] sm:$0xff]
  %v63 = vld [vmem:[%s56 + $0x30] sm:$0xff]
  %v64 = vld [vmem:[%s56 + $0x38] sm:$0xff]
  %v65 = vld [vmem:[%s56 + $0x40] sm:$0xff]
  %v66 = vld [vmem:[%s56 + $0x48] sm:$0xff]
  %v67 = vld [vmem:[%s56 + $0x50] sm:$0xff]
  %v68 = vld [vmem:[%s56 + $0x58] sm:$0xff]
  %v69 = vld [vmem:[%s56 + $0x60] sm:$0xff]
  %v70 = vld [vmem:[%s56 + $0x68] sm:$0xff]
  %v71 = vld [vmem:[%s56 + $0x70] sm:$0xff]
  %v72 = vld [vmem:[%s56 + $0x78] sm:$0xff]
  %73 = vmatprep.subr.mxu0 0.0
  %74 = vmatpush1.msra.mxu0 %v57
  %75 = vmatprep.subr.mxu0 0.0
  %76 = vmatpush1.msra.mxu0 %v58
  %77 = vmatprep.subr.mxu0 0.0
  %78 = vmatpush1.msra.mxu0 %v59
  %79 = vmatprep.subr.mxu0 0.0
  %80 = vmatpush1.msra.mxu0 %v60
  %81 = vmatprep.subr.mxu0 0.0
  %82 = vmatpush1.msra.mxu0 %v61
  %83 = vmatprep.subr.mxu0 0.0
  %84 = vmatpush1.msra.mxu0 %v62
  %85 = vmatprep.subr.mxu0 0.0
  %86 = vmatpush1.msra.mxu0 %v63
  %87 = vmatprep.subr.mxu0 0.0
  %88 = vmatpush1.msra.mxu0 %v64
  %89 = vmatprep.subr.mxu0 0.0
  %90 = vmatpush1.msra.mxu0 %v65
  %91 = vmatprep.subr.mxu0 0.0
  %92 = vmatpush1.msra.mxu0 %v66
  %93 = vmatprep.subr.mxu0 0.0
  %94 = vmatpush1.msra.mxu0 %v67
  %95 = vmatprep.subr.mxu0 0.0
  %96 = vmatpush1.msra.mxu0 %v68
  %97 = vmatprep.subr.mxu0 0.0
  %98 = vmatpush1.msra.mxu0 %v69
  %99 = vmatprep.subr.mxu0 0.0
  %100 = vmatpush1.msra.mxu0 %v70
  %101 = vmatprep.subr.mxu0 0.0
  %102 = vmatpush1.msra.mxu0 %v71
  %103 = vmatprep.subr.mxu0 0.0
  %104 = vmatpush1.msra.mxu0 %v72
  %105 = vmatprep.subr.mxu0 0.0
  %106 = vmatpush1.msra.mxu0 0.0
  %107 = vmatprep.subr.mxu0 0.0
  %108 = vmatpush1.msra.mxu0 0.0
  %109 = vmatprep.subr.mxu0 0.0
  %110 = vmatpush1.msra.mxu0 0.0
  %111 = vmatprep.subr.mxu0 0.0
  %112 = vmatpush1.msra.mxu0 0.0
  %113 = vmatprep.subr.mxu0 0.0
  %114 = vmatpush1.msra.mxu0 0.0
  %115 = vmatprep.subr.mxu0 0.0
  %116 = vmatpush1.msra.mxu0 0.0
  %117 = vmatprep.subr.mxu0 0.0
  %118 = vmatpush1.msra.mxu0 0.0
  %119 = vmatprep.subr.mxu0 0.0
  %120 = vmatpush1.msra.mxu0 0.0
  %121 = vmatprep.subr.mxu0 0.0
  %122 = vmatpush1.msra.mxu0 0.0
  %123 = vmatprep.subr.mxu0 0.0
  %124 = vmatpush1.msra.mxu0 0.0
  %125 = vmatprep.subr.mxu0 0.0
  %126 = vmatpush1.msra.mxu0 0.0
  %127 = vmatprep.subr.mxu0 0.0
  %128 = vmatpush1.msra.mxu0 0.0
  %129 = vmatprep.subr.mxu0 0.0
  %130 = vmatpush1.msra.mxu0 0.0
  %131 = vmatprep.subr.mxu0 0.0
  %132 = vmatpush1.msra.mxu0 0.0
  %133 = vmatprep.subr.mxu0 0.0
  %134 = vmatpush1.msra.mxu0 0.0
  %135 = vmatprep.subr.mxu0 0.0
  %136 = vmatpush1.msra.mxu0 0.0
  %137 = vmatprep.mubr.f32.mxu0 0.0
  %138 = vmatmul.mubr.f32.gmra.mrb[0].mxu0 %v50
  %v139 = vpop.f32.mrb[0].mxu0
  %v140 = vadd.f32 0.0, %v139
  %v141 = vpop.f32.mrb[0].mxu0
  %142 = vmatprep.mubr.f32.mxu0 0.0
  %143 = vmatmul.mubr.f32.gmra.mrb[0].mxu0 %v53
  %v144 = vpop.f32.mrb[0].mxu0
  %v145 = vadd.f32 0.0, %v144
  %v146 = vpop.f32.mrb[0].mxu0
  %147 = vdwg.mxu0
  %148 = vmatprep.subr.mxu0 0.0
  %149 = vmatpush1.msra.mxu0 %v27
  %150 = vmatprep.subr.mxu0 0.0
  %151 = vmatpush1.msra.mxu0 %v28
  %152 = vmatprep.subr.mxu0 0.0
  %153 = vmatpush1.msra.mxu0 %v29
  %154 = vmatprep.subr.mxu0 0.0
  %155 = vmatpush1.msra.mxu0 %v30
  %156 = vmatprep.subr.mxu0 0.0
  %157 = vmatpush1.msra.mxu0 %v31
  %158 = vmatprep.subr.mxu0 0.0
  %159 = vmatpush1.msra.mxu0 %v32
  %160 = vmatprep.subr.mxu0 0.0
  %161 = vmatpush1.msra.mxu0 %v33
  %162 = vmatprep.subr.mxu0 0.0
  %163 = vmatpush1.msra.mxu0 %v34
  %164 = vmatprep.subr.mxu0 0.0
  %165 = vmatpush1.msra.mxu0 %v35
  %166 = vmatprep.subr.mxu0 0.0
  %167 = vmatpush1.msra.mxu0 %v36
  %168 = vmatprep.subr.mxu0 0.0
  %169 = vmatpush1.msra.mxu0 %v37
  %170 = vmatprep.subr.mxu0 0.0
  %171 = vmatpush1.msra.mxu0 %v38
  %172 = vmatprep.subr.mxu0 0.0
  %173 = vmatpush1.msra.mxu0 %v39
  %174 = vmatprep.subr.mxu0 0.0
  %175 = vmatpush1.msra.mxu0 %v40
  %176 = vmatprep.subr.mxu0 0.0
  %177 = vmatpush1.msra.mxu0 %v41
  %178 = vmatprep.subr.mxu0 0.0
  %179 = vmatpush1.msra.mxu0 %v42
  %180 = vmatprep.subr.mxu0 0.0
  %181 = vmatpush1.msra.mxu0 0.0
  %182 = vmatprep.subr.mxu0 0.0
  %183 = vmatpush1.msra.mxu0 0.0
  %184 = vmatprep.subr.mxu0 0.0
  %185 = vmatpush1.msra.mxu0 0.0
  %186 = vmatprep.subr.mxu0 0.0
  %187 = vmatpush1.msra.mxu0 0.0
  %188 = vmatprep.subr.mxu0 0.0
  %189 = vmatpush1.msra.mxu0 0.0
  %190 = vmatprep.subr.mxu0 0.0
  %191 = vmatpush1.msra.mxu0 0.0
  %192 = vmatprep.subr.mxu0 0.0
  %193 = vmatpush1.msra.mxu0 0.0
  %194 = vmatprep.subr.mxu0 0.0
  %195 = vmatpush1.msra.mxu0 0.0
  %196 = vmatprep.subr.mxu0 0.0
  %197 = vmatpush1.msra.mxu0 0.0
  %198 = vmatprep.subr.mxu0 0.0
  %199 = vmatpush1.msra.mxu0 0.0
  %200 = vmatprep.subr.mxu0 0.0
  %201 = vmatpush1.msra.mxu0 0.0
  %202 = vmatprep.subr.mxu0 0.0
  %203 = vmatpush1.msra.mxu0 0.0
  %204 = vmatprep.subr.mxu0 0.0
  %205 = vmatpush1.msra.mxu0 0.0
  %206 = vmatprep.subr.mxu0 0.0
  %207 = vmatpush1.msra.mxu0 0.0
  %208 = vmatprep.subr.mxu0 0.0
  %209 = vmatpush1.msra.mxu0 0.0
  %210 = vmatprep.subr.mxu0 0.0
  %211 = vmatpush1.msra.mxu0 0.0
  %212 = vmatprep.mubr.f32.mxu0 0.0
  %213 = vmatmul.mubr.f32.gmra.mrb[0].mxu0 %v23
  %v214 = vpop.f32.mrb[0].mxu0
  %v215 = vadd.f32 %v140, %v214
  %v216 = vpop.f32.mrb[0].mxu0
  %217 = vmatprep.mubr.f32.mxu0 0.0
  %218 = vmatmul.mubr.f32.gmra.mrb[0].mxu0 %v25
  %v219 = vpop.f32.mrb[0].mxu0
  %v220 = vadd.f32 %v145, %v219
  %v221 = vpop.f32.mrb[0].mxu0
  %222 = vdwg.mxu0
  %vm223 = vcmask 1045504
  %v224 = vrot.slane %v23, 2
  %v225 = vrot.slane %v24, 2
  %v226 = vsel %vm223, %v224, %v225
  %v227 = vrot.slane %v25, 2
  %v228 = vrot.slane %v26, 2
  %v229 = vsel %vm223, %v227, %v228
  %s232 = scalar_lea.vmem %s1, 256
  %v233 = vld [vmem:[%s232] sm:$0xff]
  %v234 = vld [vmem:[%s232 + $0x8] sm:$0xff]
  %v235 = vld [vmem:[%s232 + $0x10] sm:$0xff]
  %v236 = vld [vmem:[%s232 + $0x18] sm:$0xff]
  %v237 = vld [vmem:[%s232 + $0x20] sm:$0xff]
  %v238 = vld [vmem:[%s232 + $0x28] sm:$0xff]
  %v239 = vld [vmem:[%s232 + $0x30] sm:$0xff]
  %v240 = vld [vmem:[%s232 + $0x38] sm:$0xff]
  %v241 = vld [vmem:[%s232 + $0x40] sm:$0xff]
  %v242 = vld [vmem:[%s232 + $0x48] sm:$0xff]
  %v243 = vld [vmem:[%s232 + $0x50] sm:$0xff]
  %v244 = vld [vmem:[%s232 + $0x58] sm:$0xff]
  %v245 = vld [vmem:[%s232 + $0x60] sm:$0xff]
  %v246 = vld [vmem:[%s232 + $0x68] sm:$0xff]
  %v247 = vld [vmem:[%s232 + $0x70] sm:$0xff]
  %v248 = vld [vmem:[%s232 + $0x78] sm:$0xff]
  %249 = vmatprep.subr.mxu0 0.0
  %250 = vmatpush1.msra.mxu0 %v233
  %251 = vmatprep.subr.mxu0 0.0
  %252 = vmatpush1.msra.mxu0 %v234
  %253 = vmatprep.subr.mxu0 0.0
  %254 = vmatpush1.msra.mxu0 %v235
  %255 = vmatprep.subr.mxu0 0.0
  %256 = vmatpush1.msra.mxu0 %v236
  %257 = vmatprep.subr.mxu0 0.0
  %258 = vmatpush1.msra.mxu0 %v237
  %259 = vmatprep.subr.mxu0 0.0
  %260 = vmatpush1.msra.mxu0 %v238
  %261 = vmatprep.subr.mxu0 0.0
  %262 = vmatpush1.msra.mxu0 %v239
  %263 = vmatprep.subr.mxu0 0.0
  %264 = vmatpush1.msra.mxu0 %v240
  %265 = vmatprep.subr.mxu0 0.0
  %266 = vmatpush1.msra.mxu0 %v241
  %267 = vmatprep.subr.mxu0 0.0
  %268 = vmatpush1.msra.mxu0 %v242
  %269 = vmatprep.subr.mxu0 0.0
  %270 = vmatpush1.msra.mxu0 %v243
  %271 = vmatprep.subr.mxu0 0.0
  %272 = vmatpush1.msra.mxu0 %v244
  %273 = vmatprep.subr.mxu0 0.0
  %274 = vmatpush1.msra.mxu0 %v245
  %275 = vmatprep.subr.mxu0 0.0
  %276 = vmatpush1.msra.mxu0 %v246
  %277 = vmatprep.subr.mxu0 0.0
  %278 = vmatpush1.msra.mxu0 %v247
  %279 = vmatprep.subr.mxu0 0.0
  %280 = vmatpush1.msra.mxu0 %v248
  %281 = vmatprep.subr.mxu0 0.0
  %282 = vmatpush1.msra.mxu0 0.0
  %283 = vmatprep.subr.mxu0 0.0
  %284 = vmatpush1.msra.mxu0 0.0
  %285 = vmatprep.subr.mxu0 0.0
  %286 = vmatpush1.msra.mxu0 0.0
  %287 = vmatprep.subr.mxu0 0.0
  %288 = vmatpush1.msra.mxu0 0.0
  %289 = vmatprep.subr.mxu0 0.0
  %290 = vmatpush1.msra.mxu0 0.0
  %291 = vmatprep.subr.mxu0 0.0
  %292 = vmatpush1.msra.mxu0 0.0
  %293 = vmatprep.subr.mxu0 0.0
  %294 = vmatpush1.msra.mxu0 0.0
  %295 = vmatprep.subr.mxu0 0.0
  %296 = vmatpush1.msra.mxu0 0.0
  %297 = vmatprep.subr.mxu0 0.0
  %298 = vmatpush1.msra.mxu0 0.0
  %299 = vmatprep.subr.mxu0 0.0
  %300 = vmatpush1.msra.mxu0 0.0
  %301 = vmatprep.subr.mxu0 0.0
  %302 = vmatpush1.msra.mxu0 0.0
  %303 = vmatprep.subr.mxu0 0.0
  %304 = vmatpush1.msra.mxu0 0.0
  %305 = vmatprep.subr.mxu0 0.0
  %306 = vmatpush1.msra.mxu0 0.0
  %307 = vmatprep.subr.mxu0 0.0
  %308 = vmatpush1.msra.mxu0 0.0
  %309 = vmatprep.subr.mxu0 0.0
  %310 = vmatpush1.msra.mxu0 0.0
  %311 = vmatprep.subr.mxu0 0.0
  %312 = vmatpush1.msra.mxu0 0.0
  %313 = vmatprep.mubr.f32.mxu0 0.0
  %314 = vmatmul.mubr.f32.gmra.mrb[0].mxu0 %v226
  %v315 = vpop.f32.mrb[0].mxu0
  %v316 = vadd.f32 0.0, %v315
  %v317 = vpop.f32.mrb[0].mxu0
  %318 = vmatprep.mubr.f32.mxu0 0.0
  %319 = vmatmul.mubr.f32.gmra.mrb[0].mxu0 %v229
  %v320 = vpop.f32.mrb[0].mxu0
  %v321 = vadd.f32 0.0, %v320
  %v322 = vpop.f32.mrb[0].mxu0
  %323 = vdwg.mxu0
  %v324 = vadd.f32 %v215, %v316
  %v325 = vadd.f32 %v220, %v321
  %v326 = vld [vmem:[%s2] sm:$0x1]
  %v328 = vlaneseq
  %v329 = vshrl.u32 %v328, 7
  %v330 = vsub.s32 0, %v329
  %v331 = vrot.slane %v326, %v330
  %v333 = vadd.f32 %v324, %v331
  %v334 = vadd.f32 %v325, %v331
  %v335 = vadd.f32 %v333, %v334
  %v336 = vrot.slane %v335, 4
  %v337 = vadd.f32 %v335, %v336
  %v338 = vrot.slane %v337, 2
  %v339 = vadd.f32 %v337, %v338
  %v340 = vrot.slane %v339, 1
  %v341 = vadd.f32 %v339, %v340
  %v342 = vrcp.pop 16.0
  %v343 = vmul.f32 %v341, %v342
  %v344 = vsub.f32 %v333, %v343
  %v345 = vsub.f32 %v334, %v343
  %v346 = vmul.f32 %v344, %v344
  %v347 = vmul.f32 %v345, %v345
  %v348 = vadd.f32 %v346, %v347
  %v349 = vrot.slane %v348, 4
  %v350 = vadd.f32 %v348, %v349
  %v351 = vrot.slane %v350, 2
  %v352 = vadd.f32 %v350, %v351
  %v353 = vrot.slane %v352, 1
  %v354 = vadd.f32 %v352, %v353
  %v355 = vmul.f32 %v354, %v342
  %v356 = vadd.f32 %v355, 1e-05
  %v357 = vrsqrt.pop %v356
  %v358 = vmul.f32 %v344, %v357
  %v359 = vmul.f32 %v345, %v357
  %v360 = vld [vmem:[%s3] sm:$0x1]
  %v362 = vlaneseq
  %v363 = vshrl.u32 %v362, 7
  %v364 = vsub.s32 0, %v363
  %v365 = vrot.slane %v360, %v364
  %v367 = vmul.f32 %v358, %v365
  %v368 = vmul.f32 %v359, %v365
  %v369 = vld [vmem:[%s4] sm:$0x1]
  %v371 = vlaneseq
  %v372 = vshrl.u32 %v371, 7
  %v373 = vsub.s32 0, %v372
  %v374 = vrot.slane %v369, %v373
  %v376 = vadd.f32 %v367, %v374
  %v377 = vadd.f32 %v368, %v374
  %v378 = vld [vmem:[%s5] sm:$0xff]
  %v379 = vld [vmem:[%s5 + $0x8] sm:$0xff]
  %v380 = vadd.f32 %v376, %v378
  %v381 = vadd.f32 %v377, %v379
  %v382 = vmax.f32 %v380, 0.0
  %v383 = vmax.f32 %v381, 0.0
  %384 = vst [vmem:[%s6] sm:$0xff] %v382
  %385 = vst [vmem:[%s6 + $0x8] sm:$0xff] %v383
  // Predicated region
  $region26: #{_lambda_.25} parent=0 // pred_check
    _
  $region27: #{_lambda_.25} parent=0 // pred_check_branch
    %387 = sbr.rel (0) target = $region29
  $region28: #{_lambda_.25} parent=0 // pred_region
    _
  $region29: #{_lambda_.25} parent=0 // pred_fallthru
    _
  // Predicated region
  $region30: #{_lambda_.25} parent=0 // pred_check
    _
  $region31: #{_lambda_.25} parent=0 // pred_check_branch
    %389 = sbr.rel (0) target = $region33
  $region32: #{_lambda_.25} parent=0 // pred_region
    _
  $region33: #{_lambda_.25} parent=0 // pred_fallthru
    _

// kernel: _lambda_.22
$region0: #{_lambda_.22}
  #allocation0 [shape = 'u32[]', space=smem, size = 0x4, offset = 0x4, fixed_abs, tag = 'smem constant byte address 0x4 - core index']
  #allocation1 [shape = 'u32[144,128]{1,0:T(1,128)}', space=vmem, size = 0x12000, scoped, tag = 'internal scratch']
  %s0 = inlined_call_operand.vmem [shape: f32[2,19,128], index: 0, kind: input, shape index: {}]
  %s1 = inlined_call_operand.vmem [shape: f32[2,19,128], index: 1, kind: input, shape index: {}]
  %s2 = inlined_call_operand.hbm [shape: f32[7,128,128], index: 2, kind: input, shape index: {}]
  %s3 = inlined_call_operand.vmem [shape: f32[1,128], index: 3, kind: input, shape index: {}]
  %s4 = inlined_call_operand.vmem [shape: f32[1,128], index: 4, kind: input, shape index: {}]
  %s5 = inlined_call_operand.vmem [shape: f32[1,128], index: 5, kind: input, shape index: {}]
  %s6 = inlined_call_operand.vmem [shape: f32[2,16,128], index: 6, kind: output, shape index: {}]
  %s7 = sld [smem:[#allocation0]]
  $region38: #{_lambda_.22} parent=0
    _
  %s9 = ssub.s32 1, %s7
  %s10 = scalar_select 0, %s9, %s7
  $region1: #{_lambda_.22} parent=0
    #allocation2 [shape = 'u8[458752]{0}', space=vmem, size = 0x70000, scoped, tag = 'input window, operand 2, single buffered']
    #allocation3 [shape = 's32[1]{0}', space=sflag, size = 0x4, scoped, tag = 'scoped memory for _lambda_.22']
    %11 = vsyncpa [#allocation3], 0
    // Predicated region
    $region2: #{_lambda_.22} parent=1 // pred_check
      _
    $region3: #{_lambda_.22} parent=1 // pred_check_branch
      %13 = sbr.rel (0) target = $region5
    $region4: #{_lambda_.22} parent=1 // pred_region
      _
    $region5: #{_lambda_.22} parent=1 // pred_fallthru
      _
    // Predicated region
    $region6: #{_lambda_.22} parent=1 // pred_check
      _
    $region7: #{_lambda_.22} parent=1 // pred_check_branch
      %15 = sbr.rel (0) target = $region9
    $region8: #{_lambda_.22} parent=1 // pred_region
      _
    $region9: #{_lambda_.22} parent=1 // pred_fallthru
      _
    // Predicated region
    $region10: #{_lambda_.22} parent=1 // pred_check
      _
    $region11: #{_lambda_.22} parent=1 // pred_check_branch
      %17 = sbr.rel (0) target = $region13
    $region12: #{_lambda_.22} parent=1 // pred_region
      %s19 = ssub.s32 14336, 14336
      %20 = vsyncadd [#allocation3], %s19
      %s21 = sshll.u32 [#allocation2], 4
      %s22 = int_to_ptr.vmem [resolvable:$true] %s21
      %27 = dma.hbm_to_vmem [thread:$0]  %s2, 14336, %s22, [#allocation3], 128, 128, 8
    $region13: #{_lambda_.22} parent=1 // pred_fallthru
      _
    // Predicated region
    $region14: #{_lambda_.22} parent=1 // pred_check
      _
    $region15: #{_lambda_.22} parent=1 // pred_check_branch
      %29 = sbr.rel (0) target = $region17
    $region16: #{_lambda_.22} parent=1 // pred_region
      _
    $region17: #{_lambda_.22} parent=1 // pred_fallthru
      _
    // Predicated region
    $region18: #{_lambda_.22} parent=1 // pred_check
      _
    $region19: #{_lambda_.22} parent=1 // pred_check_branch
      %31 = sbr.rel (0) target = $region21
    $region20: #{_lambda_.22} parent=1 // pred_region
      _
    $region21: #{_lambda_.22} parent=1 // pred_fallthru
      _
    // Predicated region
    $region22: #{_lambda_.22} parent=1 // pred_check
      _
    $region23: #{_lambda_.22} parent=1 // pred_check_branch
      %33 = sbr.rel (0) target = $region25
    $region24: #{_lambda_.22} parent=1 // pred_region
      _
    $region25: #{_lambda_.22} parent=1 // pred_fallthru
      _
    // Predicated region
    $region26: #{_lambda_.22} parent=1 // pred_check
      _
    $region27: #{_lambda_.22} parent=1 // pred_check_branch
      %35 = sbr.rel (0) target = $region29
    $region28: #{_lambda_.22} parent=1 // pred_region
      %36 = dma.done [#allocation3], 14336
    $region29: #{_lambda_.22} parent=1 // pred_fallthru
      _
    %v37 = vld [vmem:[%s0] sm:$0xff]
    %v38 = vld [vmem:[%s0 + $0x8] sm:$0xff]
    %v39 = vld [vmem:[%s0 + $0x10] sm:$0x7]
    %v40 = vld [vmem:[%s0 + $0x18] sm:$0xff]
    %v41 = vld [vmem:[%s0 + $0x20] sm:$0xff]
    %v42 = vld [vmem:[%s0 + $0x28] sm:$0x7]
    %v43 = vld [vmem:[%s1] sm:$0xff]
    %v44 = vld [vmem:[%s1 + $0x8] sm:$0xff]
    %v45 = vld [vmem:[%s1 + $0x10] sm:$0x7]
    %v46 = vld [vmem:[%s1 + $0x18] sm:$0xff]
    %v47 = vld [vmem:[%s1 + $0x20] sm:$0xff]
    %v48 = vld [vmem:[%s1 + $0x28] sm:$0x7]
    %v49 = vld [vmem:[#allocation2] sm:$0xff]
    %v50 = vld [vmem:[#allocation2 + $0x8] sm:$0xff]
    %v51 = vld [vmem:[#allocation2 + $0x10] sm:$0xff]
    %v52 = vld [vmem:[#allocation2 + $0x18] sm:$0xff]
    %v53 = vld [vmem:[#allocation2 + $0x20] sm:$0xff]
    %v54 = vld [vmem:[#allocation2 + $0x28] sm:$0xff]
    %v55 = vld [vmem:[#allocation2 + $0x30] sm:$0xff]
    %v56 = vld [vmem:[#allocation2 + $0x38] sm:$0xff]
    %v57 = vld [vmem:[#allocation2 + $0x40] sm:$0xff]
    %v58 = vld [vmem:[#allocation2 + $0x48] sm:$0xff]
    %v59 = vld [vmem:[#allocation2 + $0x50] sm:$0xff]
    %v60 = vld [vmem:[#allocation2 + $0x58] sm:$0xff]
    %v61 = vld [vmem:[#allocation2 + $0x60] sm:$0xff]
    %v62 = vld [vmem:[#allocation2 + $0x68] sm:$0xff]
    %v63 = vld [vmem:[#allocation2 + $0x70] sm:$0xff]
    %v64 = vld [vmem:[#allocation2 + $0x78] sm:$0xff]
    %s65 = scalar_lea.vmem [#allocation2], 128
    %v66 = vld [vmem:[%s65] sm:$0xff]
    %v67 = vld [vmem:[%s65 + $0x8] sm:$0xff]
    %v68 = vld [vmem:[%s65 + $0x10] sm:$0xff]
    %v69 = vld [vmem:[%s65 + $0x18] sm:$0xff]
    %v70 = vld [vmem:[%s65 + $0x20] sm:$0xff]
    %v71 = vld [vmem:[%s65 + $0x28] sm:$0xff]
    %v72 = vld [vmem:[%s65 + $0x30] sm:$0xff]
    %v73 = vld [vmem:[%s65 + $0x38] sm:$0xff]
    %v74 = vld [vmem:[%s65 + $0x40] sm:$0xff]
    %v75 = vld [vmem:[%s65 + $0x48] sm:$0xff]
    %v76 = vld [vmem:[%s65 + $0x50] sm:$0xff]
    %v77 = vld [vmem:[%s65 + $0x58] sm:$0xff]
    %v78 = vld [vmem:[%s65 + $0x60] sm:$0xff]
    %v79 = vld [vmem:[%s65 + $0x68] sm:$0xff]
    %v80 = vld [vmem:[%s65 + $0x70] sm:$0xff]
    %v81 = vld [vmem:[%s65 + $0x78] sm:$0xff]
    %82 = vmatprep.subr.mxu0 0.0
    %83 = vmatpush1.msra.mxu0 %v66
    %84 = vmatprep.subr.mxu0 0.0
    %85 = vmatpush1.msra.mxu0 %v67
    %86 = vmatprep.subr.mxu0 0.0
    %87 = vmatpush1.msra.mxu0 %v68
    %88 = vmatprep.subr.mxu0 0.0
    %89 = vmatpush1.msra.mxu0 %v69
    %90 = vmatprep.subr.mxu0 0.0
    %91 = vmatpush1.msra.mxu0 %v70
    %92 = vmatprep.subr.mxu0 0.0
    %93 = vmatpush1.msra.mxu0 %v71
    %94 = vmatprep.subr.mxu0 0.0
    %95 = vmatpush1.msra.mxu0 %v72
    %96 = vmatprep.subr.mxu0 0.0
    %97 = vmatpush1.msra.mxu0 %v73
    %98 = vmatprep.subr.mxu0 0.0
    %99 = vmatpush1.msra.mxu0 %v74
    %100 = vmatprep.subr.mxu0 0.0
    %101 = vmatpush1.msra.mxu0 %v75
    %102 = vmatprep.subr.mxu0 0.0
    %103 = vmatpush1.msra.mxu0 %v76
    %104 = vmatprep.subr.mxu0 0.0
    %105 = vmatpush1.msra.mxu0 %v77
    %106 = vmatprep.subr.mxu0 0.0
    %107 = vmatpush1.msra.mxu0 %v78
    %108 = vmatprep.subr.mxu0 0.0
    %109 = vmatpush1.msra.mxu0 %v79
    %110 = vmatprep.subr.mxu0 0.0
    %111 = vmatpush1.msra.mxu0 %v80
    %112 = vmatprep.subr.mxu0 0.0
    %113 = vmatpush1.msra.mxu0 %v81
    %114 = vmatprep.subr.mxu0 0.0
    %115 = vmatpush1.msra.mxu0 0.0
    %116 = vmatprep.subr.mxu0 0.0
    %117 = vmatpush1.msra.mxu0 0.0
    %118 = vmatprep.subr.mxu0 0.0
    %119 = vmatpush1.msra.mxu0 0.0
    %120 = vmatprep.subr.mxu0 0.0
    %121 = vmatpush1.msra.mxu0 0.0
    %122 = vmatprep.subr.mxu0 0.0
    %123 = vmatpush1.msra.mxu0 0.0
    %124 = vmatprep.subr.mxu0 0.0
    %125 = vmatpush1.msra.mxu0 0.0
    %126 = vmatprep.subr.mxu0 0.0
    %127 = vmatpush1.msra.mxu0 0.0
    %128 = vmatprep.subr.mxu0 0.0
    %129 = vmatpush1.msra.mxu0 0.0
    %130 = vmatprep.subr.mxu0 0.0
    %131 = vmatpush1.msra.mxu0 0.0
    %132 = vmatprep.subr.mxu0 0.0
    %133 = vmatpush1.msra.mxu0 0.0
    %134 = vmatprep.subr.mxu0 0.0
    %135 = vmatpush1.msra.mxu0 0.0
    %136 = vmatprep.subr.mxu0 0.0
    %137 = vmatpush1.msra.mxu0 0.0
    %138 = vmatprep.subr.mxu0 0.0
    %139 = vmatpush1.msra.mxu0 0.0
    %140 = vmatprep.subr.mxu0 0.0
    %141 = vmatpush1.msra.mxu0 0.0
    %142 = vmatprep.subr.mxu0 0.0
    %143 = vmatpush1.msra.mxu0 0.0
    %144 = vmatprep.subr.mxu0 0.0
    %145 = vmatpush1.msra.mxu0 0.0
    %146 = vmatprep.mubr.f32.mxu0 0.0
    %147 = vmatmul.mubr.f32.gmra.mrb[0].mxu0 %v43
    %v148 = vpop.f32.mrb[0].mxu0
    %v149 = vadd.f32 0.0, %v148
    %v150 = vpop.f32.mrb[0].mxu0
    %151 = vmatprep.mubr.f32.mxu0 0.0
    %152 = vmatmul.mubr.f32.gmra.mrb[0].mxu0 %v44
    %v153 = vpop.f32.mrb[0].mxu0
    %v154 = vadd.f32 0.0, %v153
    %v155 = vpop.f32.mrb[0].mxu0
    %156 = vmatprep.mubr.f32.mxu0 0.0
    %157 = vmatmul.mubr.f32.gmra.mrb[0].mxu0 %v46
    %v158 = vpop.f32.mrb[0].mxu0
    %v159 = vadd.f32 0.0, %v158
    %v160 = vpop.f32.mrb[0].mxu0
    %161 = vmatprep.mubr.f32.mxu0 0.0
    %162 = vmatmul.mubr.f32.gmra.mrb[0].mxu0 %v47
    %v163 = vpop.f32.mrb[0].mxu0
    %v164 = vadd.f32 0.0, %v163
    %v165 = vpop.f32.mrb[0].mxu0
    %166 = vdwg.mxu0
    %167 = vmatprep.subr.mxu0 0.0
    %168 = vmatpush1.msra.mxu0 %v49
    %169 = vmatprep.subr.mxu0 0.0
    %170 = vmatpush1.msra.mxu0 %v50
    %171 = vmatprep.subr.mxu0 0.0
    %172 = vmatpush1.msra.mxu0 %v51
    %173 = vmatprep.subr.mxu0 0.0
    %174 = vmatpush1.msra.mxu0 %v52
    %175 = vmatprep.subr.mxu0 0.0
    %176 = vmatpush1.msra.mxu0 %v53
    %177 = vmatprep.subr.mxu0 0.0
    %178 = vmatpush1.msra.mxu0 %v54
    %179 = vmatprep.subr.mxu0 0.0
    %180 = vmatpush1.msra.mxu0 %v55
    %181 = vmatprep.subr.mxu0 0.0
    %182 = vmatpush1.msra.mxu0 %v56
    %183 = vmatprep.subr.mxu0 0.0
    %184 = vmatpush1.msra.mxu0 %v57
    %185 = vmatprep.subr.mxu0 0.0
    %186 = vmatpush1.msra.mxu0 %v58
    %187 = vmatprep.subr.mxu0 0.0
    %188 = vmatpush1.msra.mxu0 %v59
    %189 = vmatprep.subr.mxu0 0.0
    %190 = vmatpush1.msra.mxu0 %v60
    %191 = vmatprep.subr.mxu0 0.0
    %192 = vmatpush1.msra.mxu0 %v61
    %193 = vmatprep.subr.mxu0 0.0
    %194 = vmatpush1.msra.mxu0 %v62
    %195 = vmatprep.subr.mxu0 0.0
    %196 = vmatpush1.msra.mxu0 %v63
    %197 = vmatprep.subr.mxu0 0.0
    %198 = vmatpush1.msra.mxu0 %v64
    %199 = vmatprep.subr.mxu0 0.0
    %200 = vmatpush1.msra.mxu0 0.0
    %201 = vmatprep.subr.mxu0 0.0
    %202 = vmatpush1.msra.mxu0 0.0
    %203 = vmatprep.subr.mxu0 0.0
    %204 = vmatpush1.msra.mxu0 0.0
    %205 = vmatprep.subr.mxu0 0.0
    %206 = vmatpush1.msra.mxu0 0.0
    %207 = vmatprep.subr.mxu0 0.0
    %208 = vmatpush1.msra.mxu0 0.0
    %209 = vmatprep.subr.mxu0 0.0
    %210 = vmatpush1.msra.mxu0 0.0
    %211 = vmatprep.subr.mxu0 0.0
    %212 = vmatpush1.msra.mxu0 0.0
    %213 = vmatprep.subr.mxu0 0.0
    %214 = vmatpush1.msra.mxu0 0.0
    %215 = vmatprep.subr.mxu0 0.0
    %216 = vmatpush1.msra.mxu0 0.0
    %217 = vmatprep.subr.mxu0 0.0
    %218 = vmatpush1.msra.mxu0 0.0
    %219 = vmatprep.subr.mxu0 0.0
    %220 = vmatpush1.msra.mxu0 0.0
    %221 = vmatprep.subr.mxu0 0.0
    %222 = vmatpush1.msra.mxu0 0.0
    %223 = vmatprep.subr.mxu0 0.0
    %224 = vmatpush1.msra.mxu0 0.0
    %225 = vmatprep.subr.mxu0 0.0
    %226 = vmatpush1.msra.mxu0 0.0
    %227 = vmatprep.subr.mxu0 0.0
    %228 = vmatpush1.msra.mxu0 0.0
    %229 = vmatprep.subr.mxu0 0.0
    %230 = vmatpush1.msra.mxu0 0.0
    %231 = vmatprep.mubr.f32.mxu0 0.0
    %232 = vmatmul.mubr.f32.gmra.mrb[0].mxu0 %v37
    %v233 = vpop.f32.mrb[0].mxu0
    %v234 = vadd.f32 %v149, %v233
    %v235 = vpop.f32.mrb[0].mxu0
    %236 = vmatprep.mubr.f32.mxu0 0.0
    %237 = vmatmul.mubr.f32.gmra.mrb[0].mxu0 %v38
    %v238 = vpop.f32.mrb[0].mxu0
    %v239 = vadd.f32 %v154, %v238
    %v240 = vpop.f32.mrb[0].mxu0
    %241 = vmatprep.mubr.f32.mxu0 0.0
    %242 = vmatmul.mubr.f32.gmra.mrb[0].mxu0 %v40
    %v243 = vpop.f32.mrb[0].mxu0
    %v244 = vadd.f32 %v159, %v243
    %v245 = vpop.f32.mrb[0].mxu0
    %246 = vmatprep.mubr.f32.mxu0 0.0
    %247 = vmatmul.mubr.f32.gmra.mrb[0].mxu0 %v41
    %v248 = vpop.f32.mrb[0].mxu0
    %v249 = vadd.f32 %v164, %v248
    %v250 = vpop.f32.mrb[0].mxu0
    %251 = vdwg.mxu0
    %vm258 = vcmask 1046528
    %v259 = vrot.slane %v37, 1
    %v260 = vrot.slane %v38, 1
    %v261 = vsel %vm258, %v259, %v260
    %v262 = vrot.slane %v39, 1
    %v263 = vsel %vm258, %v260, %v262
    %v264 = vrot.slane %v40, 1
    %v265 = vrot.slane %v41, 1
    %v266 = vsel %vm258, %v264, %v265
    %v267 = vrot.slane %v42, 1
    %v268 = vsel %vm258, %v265, %v267
    %s273 = scalar_lea.vmem [#allocation2], 256
    %v274 = vld [vmem:[%s273] sm:$0xff]
    %v275 = vld [vmem:[%s273 + $0x8] sm:$0xff]
    %v276 = vld [vmem:[%s273 + $0x10] sm:$0xff]
    %v277 = vld [vmem:[%s273 + $0x18] sm:$0xff]
    %v278 = vld [vmem:[%s273 + $0x20] sm:$0xff]
    %v279 = vld [vmem:[%s273 + $0x28] sm:$0xff]
    %v280 = vld [vmem:[%s273 + $0x30] sm:$0xff]
    %v281 = vld [vmem:[%s273 + $0x38] sm:$0xff]
    %v282 = vld [vmem:[%s273 + $0x40] sm:$0xff]
    %v283 = vld [vmem:[%s273 + $0x48] sm:$0xff]
    %v284 = vld [vmem:[%s273 + $0x50] sm:$0xff]
    %v285 = vld [vmem:[%s273 + $0x58] sm:$0xff]
    %v286 = vld [vmem:[%s273 + $0x60] sm:$0xff]
    %v287 = vld [vmem:[%s273 + $0x68] sm:$0xff]
    %v288 = vld [vmem:[%s273 + $0x70] sm:$0xff]
    %v289 = vld [vmem:[%s273 + $0x78] sm:$0xff]
    %290 = vmatprep.subr.mxu0 0.0
    %291 = vmatpush1.msra.mxu0 %v274
    %292 = vmatprep.subr.mxu0 0.0
    %293 = vmatpush1.msra.mxu0 %v275
    %294 = vmatprep.subr.mxu0 0.0
    %295 = vmatpush1.msra.mxu0 %v276
    %296 = vmatprep.subr.mxu0 0.0
    %297 = vmatpush1.msra.mxu0 %v277
    %298 = vmatprep.subr.mxu0 0.0
    %299 = vmatpush1.msra.mxu0 %v278
    %300 = vmatprep.subr.mxu0 0.0
    %301 = vmatpush1.msra.mxu0 %v279
    %302 = vmatprep.subr.mxu0 0.0
    %303 = vmatpush1.msra.mxu0 %v280
    %304 = vmatprep.subr.mxu0 0.0
    %305 = vmatpush1.msra.mxu0 %v281
    %306 = vmatprep.subr.mxu0 0.0
    %307 = vmatpush1.msra.mxu0 %v282
    %308 = vmatprep.subr.mxu0 0.0
    %309 = vmatpush1.msra.mxu0 %v283
    %310 = vmatprep.subr.mxu0 0.0
    %311 = vmatpush1.msra.mxu0 %v284
    %312 = vmatprep.subr.mxu0 0.0
    %313 = vmatpush1.msra.mxu0 %v285
    %314 = vmatprep.subr.mxu0 0.0
    %315 = vmatpush1.msra.mxu0 %v286
    %316 = vmatprep.subr.mxu0 0.0
    %317 = vmatpush1.msra.mxu0 %v287
    %318 = vmatprep.subr.mxu0 0.0
    %319 = vmatpush1.msra.mxu0 %v288
    %320 = vmatprep.subr.mxu0 0.0
    %321 = vmatpush1.msra.mxu0 %v289
    %322 = vmatprep.subr.mxu0 0.0
    %323 = vmatpush1.msra.mxu0 0.0
    %324 = vmatprep.subr.mxu0 0.0
    %325 = vmatpush1.msra.mxu0 0.0
    %326 = vmatprep.subr.mxu0 0.0
    %327 = vmatpush1.msra.mxu0 0.0
    %328 = vmatprep.subr.mxu0 0.0
    %329 = vmatpush1.msra.mxu0 0.0
    %330 = vmatprep.subr.mxu0 0.0
    %331 = vmatpush1.msra.mxu0 0.0
    %332 = vmatprep.subr.mxu0 0.0
    %333 = vmatpush1.msra.mxu0 0.0
    %334 = vmatprep.subr.mxu0 0.0
    %335 = vmatpush1.msra.mxu0 0.0
    %336 = vmatprep.subr.mxu0 0.0
    %337 = vmatpush1.msra.mxu0 0.0
    %338 = vmatprep.subr.mxu0 0.0
    %339 = vmatpush1.msra.mxu0 0.0
    %340 = vmatprep.subr.mxu0 0.0
    %341 = vmatpush1.msra.mxu0 0.0
    %342 = vmatprep.subr.mxu0 0.0
    %343 = vmatpush1.msra.mxu0 0.0
    %344 = vmatprep.subr.mxu0 0.0
    %345 = vmatpush1.msra.mxu0 0.0
    %346 = vmatprep.subr.mxu0 0.0
    %347 = vmatpush1.msra.mxu0 0.0
    %348 = vmatprep.subr.mxu0 0.0
    %349 = vmatpush1.msra.mxu0 0.0
    %350 = vmatprep.subr.mxu0 0.0
    %351 = vmatpush1.msra.mxu0 0.0
    %352 = vmatprep.subr.mxu0 0.0
    %353 = vmatpush1.msra.mxu0 0.0
    %354 = vmatprep.mubr.f32.mxu0 0.0
    %355 = vmatmul.mubr.f32.gmra.mrb[0].mxu0 %v261
    %v356 = vpop.f32.mrb[0].mxu0
    %v357 = vadd.f32 0.0, %v356
    %v358 = vpop.f32.mrb[0].mxu0
    %359 = vmatprep.mubr.f32.mxu0 0.0
    %360 = vmatmul.mubr.f32.gmra.mrb[0].mxu0 %v263
    %v361 = vpop.f32.mrb[0].mxu0
    %v362 = vadd.f32 0.0, %v361
    %v363 = vpop.f32.mrb[0].mxu0
    %364 = vmatprep.mubr.f32.mxu0 0.0
    %365 = vmatmul.mubr.f32.gmra.mrb[0].mxu0 %v266
    %v366 = vpop.f32.mrb[0].mxu0
    %v367 = vadd.f32 0.0, %v366
    %v368 = vpop.f32.mrb[0].mxu0
    %369 = vmatprep.mubr.f32.mxu0 0.0
    %370 = vmatmul.mubr.f32.gmra.mrb[0].mxu0 %v268
    %v371 = vpop.f32.mrb[0].mxu0
    %v372 = vadd.f32 0.0, %v371
    %v373 = vpop.f32.mrb[0].mxu0
    %374 = vdwg.mxu0
    %v375 = vadd.f32 %v234, %v357
    %v376 = vadd.f32 %v239, %v362
    %v377 = vadd.f32 %v244, %v367
    %v378 = vadd.f32 %v249, %v372
    %v385 = vrot.slane %v43, 1
    %v386 = vrot.slane %v44, 1
    %v387 = vsel %vm258, %v385, %v386
    %v388 = vrot.slane %v45, 1
    %v389 = vsel %vm258, %v386, %v388
    %v390 = vrot.slane %v46, 1
    %v391 = vrot.slane %v47, 1
    %v392 = vsel %vm258, %v390, %v391
    %v393 = vrot.slane %v48, 1
    %v394 = vsel %vm258, %v391, %v393
    %s399 = scalar_lea.vmem [#allocation2], 384
    %v400 = vld [vmem:[%s399] sm:$0xff]
    %v401 = vld [vmem:[%s399 + $0x8] sm:$0xff]
    %v402 = vld [vmem:[%s399 + $0x10] sm:$0xff]
    %v403 = vld [vmem:[%s399 + $0x18] sm:$0xff]
    %v404 = vld [vmem:[%s399 + $0x20] sm:$0xff]
    %v405 = vld [vmem:[%s399 + $0x28] sm:$0xff]
    %v406 = vld [vmem:[%s399 + $0x30] sm:$0xff]
    %v407 = vld [vmem:[%s399 + $0x38] sm:$0xff]
    %v408 = vld [vmem:[%s399 + $0x40] sm:$0xff]
    %v409 = vld [vmem:[%s399 + $0x48] sm:$0xff]
    %v410 = vld [vmem:[%s399 + $0x50] sm:$0xff]
    %v411 = vld [vmem:[%s399 + $0x58] sm:$0xff]
    %v412 = vld [vmem:[%s399 + $0x60] sm:$0xff]
    %v413 = vld [vmem:[%s399 + $0x68] sm:$0xff]
    %v414 = vld [vmem:[%s399 + $0x70] sm:$0xff]
    %v415 = vld [vmem:[%s399 + $0x78] sm:$0xff]
    %416 = vmatprep.subr.mxu0 0.0
    %417 = vmatpush1.msra.mxu0 %v400
    %418 = vmatprep.subr.mxu0 0.0
    %419 = vmatpush1.msra.mxu0 %v401
    %420 = vmatprep.subr.mxu0 0.0
    %421 = vmatpush1.msra.mxu0 %v402
    %422 = vmatprep.subr.mxu0 0.0
    %423 = vmatpush1.msra.mxu0 %v403
    %424 = vmatprep.subr.mxu0 0.0
    %425 = vmatpush1.msra.mxu0 %v404
    %426 = vmatprep.subr.mxu0 0.0
    %427 = vmatpush1.msra.mxu0 %v405
    %428 = vmatprep.subr.mxu0 0.0
    %429 = vmatpush1.msra.mxu0 %v406
    %430 = vmatprep.subr.mxu0 0.0
    %431 = vmatpush1.msra.mxu0 %v407
    %432 = vmatprep.subr.mxu0 0.0
    %433 = vmatpush1.msra.mxu0 %v408
    %434 = vmatprep.subr.mxu0 0.0
    %435 = vmatpush1.msra.mxu0 %v409
    %436 = vmatprep.subr.mxu0 0.0
    %437 = vmatpush1.msra.mxu0 %v410
    %438 = vmatprep.subr.mxu0 0.0
    %439 = vmatpush1.msra.mxu0 %v411
    %440 = vmatprep.subr.mxu0 0.0
    %441 = vmatpush1.msra.mxu0 %v412
    %442 = vmatprep.subr.mxu0 0.0
    %443 = vmatpush1.msra.mxu0 %v413
    %444 = vmatprep.subr.mxu0 0.0
    %445 = vmatpush1.msra.mxu0 %v414
    %446 = vmatprep.subr.mxu0 0.0
    %447 = vmatpush1.msra.mxu0 %v415
    %448 = vmatprep.subr.mxu0 0.0
    %449 = vmatpush1.msra.mxu0 0.0
    %450 = vmatprep.subr.mxu0 0.0
    %451 = vmatpush1.msra.mxu0 0.0
    %452 = vmatprep.subr.mxu0 0.0
    %453 = vmatpush1.msra.mxu0 0.0
    %454 = vmatprep.subr.mxu0 0.0
    %455 = vmatpush1.msra.mxu0 0.0
    %456 = vmatprep.subr.mxu0 0.0
    %457 = vmatpush1.msra.mxu0 0.0
    %458 = vmatprep.subr.mxu0 0.0
    %459 = vmatpush1.msra.mxu0 0.0
    %460 = vmatprep.subr.mxu0 0.0
    %461 = vmatpush1.msra.mxu0 0.0
    %462 = vmatprep.subr.mxu0 0.0
    %463 = vmatpush1.msra.mxu0 0.0
    %464 = vmatprep.subr.mxu0 0.0
    %465 = vmatpush1.msra.mxu0 0.0
    %466 = vmatprep.subr.mxu0 0.0
    %467 = vmatpush1.msra.mxu0 0.0
    %468 = vmatprep.subr.mxu0 0.0
    %469 = vmatpush1.msra.mxu0 0.0
    %470 = vmatprep.subr.mxu0 0.0
    %471 = vmatpush1.msra.mxu0 0.0
    %472 = vmatprep.subr.mxu0 0.0
    %473 = vmatpush1.msra.mxu0 0.0
    %474 = vmatprep.subr.mxu0 0.0
    %475 = vmatpush1.msra.mxu0 0.0
    %476 = vmatprep.subr.mxu0 0.0
    %477 = vmatpush1.msra.mxu0 0.0
    %478 = vmatprep.subr.mxu0 0.0
    %479 = vmatpush1.msra.mxu0 0.0
    %480 = vmatprep.mubr.f32.mxu0 0.0
    %481 = vmatmul.mubr.f32.gmra.mrb[0].mxu0 %v387
    %v482 = vpop.f32.mrb[0].mxu0
    %v483 = vadd.f32 0.0, %v482
    %v484 = vpop.f32.mrb[0].mxu0
    %485 = vmatprep.mubr.f32.mxu0 0.0
    %486 = vmatmul.mubr.f32.gmra.mrb[0].mxu0 %v389
    %v487 = vpop.f32.mrb[0].mxu0
    %v488 = vadd.f32 0.0, %v487
    %v489 = vpop.f32.mrb[0].mxu0
    %490 = vmatprep.mubr.f32.mxu0 0.0
    %491 = vmatmul.mubr.f32.gmra.mrb[0].mxu0 %v392
    %v492 = vpop.f32.mrb[0].mxu0
    %v493 = vadd.f32 0.0, %v492
    %v494 = vpop.f32.mrb[0].mxu0
    %495 = vmatprep.mubr.f32.mxu0 0.0
    %496 = vmatmul.mubr.f32.gmra.mrb[0].mxu0 %v394
    %v497 = vpop.f32.mrb[0].mxu0
    %v498 = vadd.f32 0.0, %v497
    %v499 = vpop.f32.mrb[0].mxu0
    %500 = vdwg.mxu0
    %v501 = vadd.f32 %v375, %v483
    %v502 = vadd.f32 %v376, %v488
    %v503 = vadd.f32 %v377, %v493
    %v504 = vadd.f32 %v378, %v498
    %vm505 = vcmask 1045504
    %v506 = vrot.slane %v37, 2
    %v507 = vrot.slane %v38, 2
    %v508 = vsel %vm505, %v506, %v507
    %v509 = vrot.slane %v39, 2
    %v510 = vsel %vm505, %v507, %v509
    %v511 = vrot.slane %v40, 2
    %v512 = vrot.slane %v41, 2
    %v513 = vsel %vm505, %v511, %v512
    %v514 = vrot.slane %v42, 2
    %v515 = vsel %vm505, %v512, %v514
    %s520 = scalar_lea.vmem [#allocation2], 512
    %v521 = vld [vmem:[%s520] sm:$0xff]
    %v522 = vld [vmem:[%s520 + $0x8] sm:$0xff]
    %v523 = vld [vmem:[%s520 + $0x10] sm:$0xff]
    %v524 = vld [vmem:[%s520 + $0x18] sm:$0xff]
    %v525 = vld [vmem:[%s520 + $0x20] sm:$0xff]
    %v526 = vld [vmem:[%s520 + $0x28] sm:$0xff]
    %v527 = vld [vmem:[%s520 + $0x30] sm:$0xff]
    %v528 = vld [vmem:[%s520 + $0x38] sm:$0xff]
    %v529 = vld [vmem:[%s520 + $0x40] sm:$0xff]
    %v530 = vld [vmem:[%s520 + $0x48] sm:$0xff]
    %v531 = vld [vmem:[%s520 + $0x50] sm:$0xff]
    %v532 = vld [vmem:[%s520 + $0x58] sm:$0xff]
    %v533 = vld [vmem:[%s520 + $0x60] sm:$0xff]
    %v534 = vld [vmem:[%s520 + $0x68] sm:$0xff]
    %v535 = vld [vmem:[%s520 + $0x70] sm:$0xff]
    %v536 = vld [vmem:[%s520 + $0x78] sm:$0xff]
    %537 = vmatprep.subr.mxu0 0.0
    %538 = vmatpush1.msra.mxu0 %v521
    %539 = vmatprep.subr.mxu0 0.0
    %540 = vmatpush1.msra.mxu0 %v522
    %541 = vmatprep.subr.mxu0 0.0
    %542 = vmatpush1.msra.mxu0 %v523
    %543 = vmatprep.subr.mxu0 0.0
    %544 = vmatpush1.msra.mxu0 %v524
    %545 = vmatprep.subr.mxu0 0.0
    %546 = vmatpush1.msra.mxu0 %v525
    %547 = vmatprep.subr.mxu0 0.0
    %548 = vmatpush1.msra.mxu0 %v526
    %549 = vmatprep.subr.mxu0 0.0
    %550 = vmatpush1.msra.mxu0 %v527
    %551 = vmatprep.subr.mxu0 0.0
    %552 = vmatpush1.msra.mxu0 %v528
    %553 = vmatprep.subr.mxu0 0.0
    %554 = vmatpush1.msra.mxu0 %v529
    %555 = vmatprep.subr.mxu0 0.0
    %556 = vmatpush1.msra.mxu0 %v530
    %557 = vmatprep.subr.mxu0 0.0
    %558 = vmatpush1.msra.mxu0 %v531
    %559 = vmatprep.subr.mxu0 0.0
    %560 = vmatpush1.msra.mxu0 %v532
    %561 = vmatprep.subr.mxu0 0.0
    %562 = vmatpush1.msra.mxu0 %v533
    %563 = vmatprep.subr.mxu0 0.0
    %564 = vmatpush1.msra.mxu0 %v534
    %565 = vmatprep.subr.mxu0 0.0
    %566 = vmatpush1.msra.mxu0 %v535
    %567 = vmatprep.subr.mxu0 0.0
    %568 = vmatpush1.msra.mxu0 %v536
    %569 = vmatprep.subr.mxu0 0.0
    %570 = vmatpush1.msra.mxu0 0.0
    %571 = vmatprep.subr.mxu0 0.0
    %572 = vmatpush1.msra.mxu0 0.0
    %573 = vmatprep.subr.mxu0 0.0
    %574 = vmatpush1.msra.mxu0 0.0
    %575 = vmatprep.subr.mxu0 0.0
    %576 = vmatpush1.msra.mxu0 0.0
    %577 = vmatprep.subr.mxu0 0.0
    %578 = vmatpush1.msra.mxu0 0.0
    %579 = vmatprep.subr.mxu0 0.0
    %580 = vmatpush1.msra.mxu0 0.0
    %581 = vmatprep.subr.mxu0 0.0
    %582 = vmatpush1.msra.mxu0 0.0
    %583 = vmatprep.subr.mxu0 0.0
    %584 = vmatpush1.msra.mxu0 0.0
    %585 = vmatprep.subr.mxu0 0.0
    %586 = vmatpush1.msra.mxu0 0.0
    %587 = vmatprep.subr.mxu0 0.0
    %588 = vmatpush1.msra.mxu0 0.0
    %589 = vmatprep.subr.mxu0 0.0
    %590 = vmatpush1.msra.mxu0 0.0
    %591 = vmatprep.subr.mxu0 0.0
    %592 = vmatpush1.msra.mxu0 0.0
    %593 = vmatprep.subr.mxu0 0.0
    %594 = vmatpush1.msra.mxu0 0.0
    %595 = vmatprep.subr.mxu0 0.0
    %596 = vmatpush1.msra.mxu0 0.0
    %597 = vmatprep.subr.mxu0 0.0
    %598 = vmatpush1.msra.mxu0 0.0
    %599 = vmatprep.subr.mxu0 0.0
    %600 = vmatpush1.msra.mxu0 0.0
    %601 = vmatprep.mubr.f32.mxu0 0.0
    %602 = vmatmul.mubr.f32.gmra.mrb[0].mxu0 %v508
    %v603 = vpop.f32.mrb[0].mxu0
    %v604 = vadd.f32 0.0, %v603
    %v605 = vpop.f32.mrb[0].mxu0
    %606 = vmatprep.mubr.f32.mxu0 0.0
    %607 = vmatmul.mubr.f32.gmra.mrb[0].mxu0 %v510
    %v608 = vpop.f32.mrb[0].mxu0
    %v609 = vadd.f32 0.0, %v608
    %v610 = vpop.f32.mrb[0].mxu0
    %611 = vmatprep.mubr.f32.mxu0 0.0
    %612 = vmatmul.mubr.f32.gmra.mrb[0].mxu0 %v513
    %v613 = vpop.f32.mrb[0].mxu0
    %v614 = vadd.f32 0.0, %v613
    %v615 = vpop.f32.mrb[0].mxu0
    %616 = vmatprep.mubr.f32.mxu0 0.0
    %617 = vmatmul.mubr.f32.gmra.mrb[0].mxu0 %v515
    %v618 = vpop.f32.mrb[0].mxu0
    %v619 = vadd.f32 0.0, %v618
    %v620 = vpop.f32.mrb[0].mxu0
    %621 = vdwg.mxu0
    %v622 = vadd.f32 %v501, %v604
    %v623 = vadd.f32 %v502, %v609
    %v624 = vadd.f32 %v503, %v614
    %v625 = vadd.f32 %v504, %v619
    %v626 = vrot.slane %v43, 2
    %v627 = vrot.slane %v44, 2
    %v628 = vsel %vm505, %v626, %v627
    %v629 = vrot.slane %v45, 2
    %v630 = vsel %vm505, %v627, %v629
    %v631 = vrot.slane %v46, 2
    %v632 = vrot.slane %v47, 2
    %v633 = vsel %vm505, %v631, %v632
    %v634 = vrot.slane %v48, 2
    %v635 = vsel %vm505, %v632, %v634
    %s640 = scalar_lea.vmem [#allocation2], 640
    %v641 = vld [vmem:[%s640] sm:$0xff]
    %v642 = vld [vmem:[%s640 + $0x8] sm:$0xff]
    %v643 = vld [vmem:[%s640 + $0x10] sm:$0xff]
    %v644 = vld [vmem:[%s640 + $0x18] sm:$0xff]
    %v645 = vld [vmem:[%s640 + $0x20] sm:$0xff]
    %v646 = vld [vmem:[%s640 + $0x28] sm:$0xff]
    %v647 = vld [vmem:[%s640 + $0x30] sm:$0xff]
    %v648 = vld [vmem:[%s640 + $0x38] sm:$0xff]
    %v649 = vld [vmem:[%s640 + $0x40] sm:$0xff]
    %v650 = vld [vmem:[%s640 + $0x48] sm:$0xff]
    %v651 = vld [vmem:[%s640 + $0x50] sm:$0xff]
    %v652 = vld [vmem:[%s640 + $0x58] sm:$0xff]
    %v653 = vld [vmem:[%s640 + $0x60] sm:$0xff]
    %v654 = vld [vmem:[%s640 + $0x68] sm:$0xff]
    %v655 = vld [vmem:[%s640 + $0x70] sm:$0xff]
    %v656 = vld [vmem:[%s640 + $0x78] sm:$0xff]
    %657 = vmatprep.subr.mxu0 0.0
    %658 = vmatpush1.msra.mxu0 %v641
    %659 = vmatprep.subr.mxu0 0.0
    %660 = vmatpush1.msra.mxu0 %v642
    %661 = vmatprep.subr.mxu0 0.0
    %662 = vmatpush1.msra.mxu0 %v643
    %663 = vmatprep.subr.mxu0 0.0
    %664 = vmatpush1.msra.mxu0 %v644
    %665 = vmatprep.subr.mxu0 0.0
    %666 = vmatpush1.msra.mxu0 %v645
    %667 = vmatprep.subr.mxu0 0.0
    %668 = vmatpush1.msra.mxu0 %v646
    %669 = vmatprep.subr.mxu0 0.0
    %670 = vmatpush1.msra.mxu0 %v647
    %671 = vmatprep.subr.mxu0 0.0
    %672 = vmatpush1.msra.mxu0 %v648
    %673 = vmatprep.subr.mxu0 0.0
    %674 = vmatpush1.msra.mxu0 %v649
    %675 = vmatprep.subr.mxu0 0.0
    %676 = vmatpush1.msra.mxu0 %v650
    %677 = vmatprep.subr.mxu0 0.0
    %678 = vmatpush1.msra.mxu0 %v651
    %679 = vmatprep.subr.mxu0 0.0
    %680 = vmatpush1.msra.mxu0 %v652
    %681 = vmatprep.subr.mxu0 0.0
    %682 = vmatpush1.msra.mxu0 %v653
    %683 = vmatprep.subr.mxu0 0.0
    %684 = vmatpush1.msra.mxu0 %v654
    %685 = vmatprep.subr.mxu0 0.0
    %686 = vmatpush1.msra.mxu0 %v655
    %687 = vmatprep.subr.mxu0 0.0
    %688 = vmatpush1.msra.mxu0 %v656
    %689 = vmatprep.subr.mxu0 0.0
    %690 = vmatpush1.msra.mxu0 0.0
    %691 = vmatprep.subr.mxu0 0.0
    %692 = vmatpush1.msra.mxu0 0.0
    %693 = vmatprep.subr.mxu0 0.0
    %694 = vmatpush1.msra.mxu0 0.0
    %695 = vmatprep.subr.mxu0 0.0
    %696 = vmatpush1.msra.mxu0 0.0
    %697 = vmatprep.subr.mxu0 0.0
    %698 = vmatpush1.msra.mxu0 0.0
    %699 = vmatprep.subr.mxu0 0.0
    %700 = vmatpush1.msra.mxu0 0.0
    %701 = vmatprep.subr.mxu0 0.0
    %702 = vmatpush1.msra.mxu0 0.0
    %703 = vmatprep.subr.mxu0 0.0
    %704 = vmatpush1.msra.mxu0 0.0
    %705 = vmatprep.subr.mxu0 0.0
    %706 = vmatpush1.msra.mxu0 0.0
    %707 = vmatprep.subr.mxu0 0.0
    %708 = vmatpush1.msra.mxu0 0.0
    %709 = vmatprep.subr.mxu0 0.0
    %710 = vmatpush1.msra.mxu0 0.0
    %711 = vmatprep.subr.mxu0 0.0
    %712 = vmatpush1.msra.mxu0 0.0
    %713 = vmatprep.subr.mxu0 0.0
    %714 = vmatpush1.msra.mxu0 0.0
    %715 = vmatprep.subr.mxu0 0.0
    %716 = vmatpush1.msra.mxu0 0.0
    %717 = vmatprep.subr.mxu0 0.0
    %718 = vmatpush1.msra.mxu0 0.0
    %719 = vmatprep.subr.mxu0 0.0
    %720 = vmatpush1.msra.mxu0 0.0
    %721 = vmatprep.mubr.f32.mxu0 0.0
    %722 = vmatmul.mubr.f32.gmra.mrb[0].mxu0 %v628
    %v723 = vpop.f32.mrb[0].mxu0
    %v724 = vadd.f32 0.0, %v723
    %v725 = vpop.f32.mrb[0].mxu0
    %726 = vmatprep.mubr.f32.mxu0 0.0
    %727 = vmatmul.mubr.f32.gmra.mrb[0].mxu0 %v630
    %v728 = vpop.f32.mrb[0].mxu0
    %v729 = vadd.f32 0.0, %v728
    %v730 = vpop.f32.mrb[0].mxu0
    %731 = vmatprep.mubr.f32.mxu0 0.0
    %732 = vmatmul.mubr.f32.gmra.mrb[0].mxu0 %v633
    %v733 = vpop.f32.mrb[0].mxu0
    %v734 = vadd.f32 0.0, %v733
    %v735 = vpop.f32.mrb[0].mxu0
    %736 = vmatprep.mubr.f32.mxu0 0.0
    %737 = vmatmul.mubr.f32.gmra.mrb[0].mxu0 %v635
    %v738 = vpop.f32.mrb[0].mxu0
    %v739 = vadd.f32 0.0, %v738
    %v740 = vpop.f32.mrb[0].mxu0
    %741 = vdwg.mxu0
    %v742 = vadd.f32 %v622, %v724
    %v743 = vadd.f32 %v623, %v729
    %v744 = vadd.f32 %v624, %v734
    %v745 = vadd.f32 %v625, %v739
    %vm746 = vcmask 1044480
    %v747 = vrot.slane %v37, 3
    %v748 = vrot.slane %v38, 3
    %v749 = vsel %vm746, %v747, %v748
    %v750 = vrot.slane %v39, 3
    %v751 = vsel %vm746, %v748, %v750
    %v752 = vrot.slane %v40, 3
    %v753 = vrot.slane %v41, 3
    %v754 = vsel %vm746, %v752, %v753
    %v755 = vrot.slane %v42, 3
    %v756 = vsel %vm746, %v753, %v755
    %s761 = scalar_lea.vmem [#allocation2], 768
    %v762 = vld [vmem:[%s761] sm:$0xff]
    %v763 = vld [vmem:[%s761 + $0x8] sm:$0xff]
    %v764 = vld [vmem:[%s761 + $0x10] sm:$0xff]
    %v765 = vld [vmem:[%s761 + $0x18] sm:$0xff]
    %v766 = vld [vmem:[%s761 + $0x20] sm:$0xff]
    %v767 = vld [vmem:[%s761 + $0x28] sm:$0xff]
    %v768 = vld [vmem:[%s761 + $0x30] sm:$0xff]
    %v769 = vld [vmem:[%s761 + $0x38] sm:$0xff]
    %v770 = vld [vmem:[%s761 + $0x40] sm:$0xff]
    %v771 = vld [vmem:[%s761 + $0x48] sm:$0xff]
    %v772 = vld [vmem:[%s761 + $0x50] sm:$0xff]
    %v773 = vld [vmem:[%s761 + $0x58] sm:$0xff]
    %v774 = vld [vmem:[%s761 + $0x60] sm:$0xff]
    %v775 = vld [vmem:[%s761 + $0x68] sm:$0xff]
    %v776 = vld [vmem:[%s761 + $0x70] sm:$0xff]
    %v777 = vld [vmem:[%s761 + $0x78] sm:$0xff]
    %778 = vmatprep.subr.mxu0 0.0
    %779 = vmatpush1.msra.mxu0 %v762
    %780 = vmatprep.subr.mxu0 0.0
    %781 = vmatpush1.msra.mxu0 %v763
    %782 = vmatprep.subr.mxu0 0.0
    %783 = vmatpush1.msra.mxu0 %v764
    %784 = vmatprep.subr.mxu0 0.0
    %785 = vmatpush1.msra.mxu0 %v765
    %786 = vmatprep.subr.mxu0 0.0
    %787 = vmatpush1.msra.mxu0 %v766
    %788 = vmatprep.subr.mxu0 0.0
    %789 = vmatpush1.msra.mxu0 %v767
    %790 = vmatprep.subr.mxu0 0.0
    %791 = vmatpush1.msra.mxu0 %v768
    %792 = vmatprep.subr.mxu0 0.0
    %793 = vmatpush1.msra.mxu0 %v769
    %794 = vmatprep.subr.mxu0 0.0
    %795 = vmatpush1.msra.mxu0 %v770
    %796 = vmatprep.subr.mxu0 0.0
    %797 = vmatpush1.msra.mxu0 %v771
    %798 = vmatprep.subr.mxu0 0.0
    %799 = vmatpush1.msra.mxu0 %v772
    %800 = vmatprep.subr.mxu0 0.0
    %801 = vmatpush1.msra.mxu0 %v773
    %802 = vmatprep.subr.mxu0 0.0
    %803 = vmatpush1.msra.mxu0 %v774
    %804 = vmatprep.subr.mxu0 0.0
    %805 = vmatpush1.msra.mxu0 %v775
    %806 = vmatprep.subr.mxu0 0.0
    %807 = vmatpush1.msra.mxu0 %v776
    %808 = vmatprep.subr.mxu0 0.0
    %809 = vmatpush1.msra.mxu0 %v777
    %810 = vmatprep.subr.mxu0 0.0
    %811 = vmatpush1.msra.mxu0 0.0
    %812 = vmatprep.subr.mxu0 0.0
    %813 = vmatpush1.msra.mxu0 0.0
    %814 = vmatprep.subr.mxu0 0.0
    %815 = vmatpush1.msra.mxu0 0.0
    %816 = vmatprep.subr.mxu0 0.0
    %817 = vmatpush1.msra.mxu0 0.0
    %818 = vmatprep.subr.mxu0 0.0
    %819 = vmatpush1.msra.mxu0 0.0
    %820 = vmatprep.subr.mxu0 0.0
    %821 = vmatpush1.msra.mxu0 0.0
    %822 = vmatprep.subr.mxu0 0.0
    %823 = vmatpush1.msra.mxu0 0.0
    %824 = vmatprep.subr.mxu0 0.0
    %825 = vmatpush1.msra.mxu0 0.0
    %826 = vmatprep.subr.mxu0 0.0
    %827 = vmatpush1.msra.mxu0 0.0
    %828 = vmatprep.subr.mxu0 0.0
    %829 = vmatpush1.msra.mxu0 0.0
    %830 = vmatprep.subr.mxu0 0.0
    %831 = vmatpush1.msra.mxu0 0.0
    %832 = vmatprep.subr.mxu0 0.0
    %833 = vmatpush1.msra.mxu0 0.0
    %834 = vmatprep.subr.mxu0 0.0
    %835 = vmatpush1.msra.mxu0 0.0
    %836 = vmatprep.subr.mxu0 0.0
    %837 = vmatpush1.msra.mxu0 0.0
    %838 = vmatprep.subr.mxu0 0.0
    %839 = vmatpush1.msra.mxu0 0.0
    %840 = vmatprep.subr.mxu0 0.0
    %841 = vmatpush1.msra.mxu0 0.0
    %842 = vmatprep.mubr.f32.mxu0 0.0
    %843 = vmatmul.mubr.f32.gmra.mrb[0].mxu0 %v749
    %v844 = vpop.f32.mrb[0].mxu0
    %v845 = vadd.f32 0.0, %v844
    %v846 = vpop.f32.mrb[0].mxu0
    %847 = vmatprep.mubr.f32.mxu0 0.0
    %848 = vmatmul.mubr.f32.gmra.mrb[0].mxu0 %v751
    %v849 = vpop.f32.mrb[0].mxu0
    %v850 = vadd.f32 0.0, %v849
    %v851 = vpop.f32.mrb[0].mxu0
    %852 = vmatprep.mubr.f32.mxu0 0.0
    %853 = vmatmul.mubr.f32.gmra.mrb[0].mxu0 %v754
    %v854 = vpop.f32.mrb[0].mxu0
    %v855 = vadd.f32 0.0, %v854
    %v856 = vpop.f32.mrb[0].mxu0
    %857 = vmatprep.mubr.f32.mxu0 0.0
    %858 = vmatmul.mubr.f32.gmra.mrb[0].mxu0 %v756
    %v859 = vpop.f32.mrb[0].mxu0
    %v860 = vadd.f32 0.0, %v859
    %v861 = vpop.f32.mrb[0].mxu0
    %862 = vdwg.mxu0
    %v863 = vadd.f32 %v742, %v845
    %v864 = vadd.f32 %v743, %v850
    %v865 = vadd.f32 %v744, %v855
    %v866 = vadd.f32 %v745, %v860
    %v867 = vld [vmem:[%s3] sm:$0x1]
    %v869 = vlaneseq
    %v870 = vshrl.u32 %v869, 7
    %v871 = vsub.s32 0, %v870
    %v872 = vrot.slane %v867, %v871
    %v874 = vadd.f32 %v863, %v872
    %v875 = vadd.f32 %v864, %v872
    %v876 = vadd.f32 %v865, %v872
    %v877 = vadd.f32 %v866, %v872
    %v878 = vadd.f32 %v874, %v875
    %v879 = vadd.f32 %v878, %v876
    %v880 = vadd.f32 %v879, %v877
    %v881 = vrot.slane %v880, 4
    %v882 = vadd.f32 %v880, %v881
    %v883 = vrot.slane %v882, 2
    %v884 = vadd.f32 %v882, %v883
    %v885 = vrot.slane %v884, 1
    %v886 = vadd.f32 %v884, %v885
    %v887 = vrcp.pop 32.0
    %v888 = vmul.f32 %v886, %v887
    %v889 = vsub.f32 %v874, %v888
    %v890 = vsub.f32 %v875, %v888
    %v891 = vsub.f32 %v876, %v888
    %v892 = vsub.f32 %v877, %v888
    %v893 = vmul.f32 %v889, %v889
    %v894 = vmul.f32 %v890, %v890
    %v895 = vmul.f32 %v891, %v891
    %v896 = vmul.f32 %v892, %v892
    %v897 = vadd.f32 %v893, %v894
    %v898 = vadd.f32 %v897, %v895
    %v899 = vadd.f32 %v898, %v896
    %v900 = vrot.slane %v899, 4
    %v901 = vadd.f32 %v899, %v900
    %v902 = vrot.slane %v901, 2
    %v903 = vadd.f32 %v901, %v902
    %v904 = vrot.slane %v903, 1
    %v905 = vadd.f32 %v903, %v904
    %v906 = vmul.f32 %v905, %v887
    %v907 = vadd.f32 %v906, 1e-05
    %v908 = vrsqrt.pop %v907
    %v909 = vmul.f32 %v889, %v908
    %v910 = vmul.f32 %v890, %v908
    %v911 = vmul.f32 %v891, %v908
    %v912 = vmul.f32 %v892, %v908
    %v913 = vld [vmem:[%s4] sm:$0x1]
    %v915 = vlaneseq
    %v916 = vshrl.u32 %v915, 7
    %v917 = vsub.s32 0, %v916
    %v918 = vrot.slane %v913, %v917
    %v920 = vmul.f32 %v909, %v918
    %v921 = vmul.f32 %v910, %v918
    %v922 = vmul.f32 %v911, %v918
    %v923 = vmul.f32 %v912, %v918
    %v924 = vld [vmem:[%s5] sm:$0x1]
    %v926 = vlaneseq
    %v927 = vshrl.u32 %v926, 7
    %v928 = vsub.s32 0, %v927
    %v929 = vrot.slane %v924, %v928
    %v931 = vadd.f32 %v920, %v929
    %v932 = vadd.f32 %v921, %v929
    %v933 = vadd.f32 %v922, %v929
    %v934 = vadd.f32 %v923, %v929
    %v935 = vmax.f32 %v931, 0.0
    %v936 = vmax.f32 %v932, 0.0
    %v937 = vmax.f32 %v933, 0.0
    %v938 = vmax.f32 %v934, 0.0
    %939 = vst [vmem:[%s6] sm:$0xff] %v935
    %940 = vst [vmem:[%s6 + $0x8] sm:$0xff] %v936
    %941 = vst [vmem:[%s6 + $0x10] sm:$0xff] %v937
    %942 = vst [vmem:[%s6 + $0x18] sm:$0xff] %v938
    // Predicated region
    $region30: #{_lambda_.22} parent=1 // pred_check
      _
    $region31: #{_lambda_.22} parent=1 // pred_check_branch
      %944 = sbr.rel (0) target = $region33
    $region32: #{_lambda_.22} parent=1 // pred_region
      _
    $region33: #{_lambda_.22} parent=1 // pred_fallthru
      _
    // Predicated region
    $region34: #{_lambda_.22} parent=1 // pred_check
      _
    $region35: #{_lambda_.22} parent=1 // pred_check_branch
      %946 = sbr.rel (0) target = $region37
    $region36: #{_lambda_.22} parent=1 // pred_region
      _
    $region37: #{_lambda_.22} parent=1 // pred_fallthru
      _
    %947 = vsyncpa [#allocation3], 1

// kernel: _lambda_.28
$region0: #{_lambda_.28}
  #allocation0 [shape = 'u32[]', space=smem, size = 0x4, offset = 0x4, fixed_abs, tag = 'smem constant byte address 0x4 - core index']
  #allocation1 [shape = 'u32[144,128]{1,0:T(1,128)}', space=vmem, size = 0x12000, scoped, tag = 'internal scratch']
  %s0 = inlined_call_operand.vmem [shape: f32[2,4,128], index: 0, kind: input, shape index: {}]
  %s1 = inlined_call_operand.vmem [shape: f32[1,128,128], index: 1, kind: input, shape index: {}]
  %s2 = inlined_call_operand.vmem [shape: f32[1,128], index: 2, kind: input, shape index: {}]
  %s3 = inlined_call_operand.vmem [shape: f32[1,128], index: 3, kind: input, shape index: {}]
  %s4 = inlined_call_operand.vmem [shape: f32[1,128], index: 4, kind: input, shape index: {}]
  %s5 = inlined_call_operand.vmem [shape: f32[2,4,128], index: 5, kind: output, shape index: {}]
  %s6 = sld [smem:[#allocation0]]
  $region30: #{_lambda_.28} parent=0
    _
  %s8 = ssub.s32 1, %s6
  %s9 = scalar_select 0, %s8, %s6
  // Predicated region
  $region2: #{_lambda_.28} parent=0 // pred_check
    _
  $region3: #{_lambda_.28} parent=0 // pred_check_branch
    %11 = sbr.rel (0) target = $region5
  $region4: #{_lambda_.28} parent=0 // pred_region
    _
  $region5: #{_lambda_.28} parent=0 // pred_fallthru
    _
  // Predicated region
  $region6: #{_lambda_.28} parent=0 // pred_check
    _
  $region7: #{_lambda_.28} parent=0 // pred_check_branch
    %13 = sbr.rel (0) target = $region9
  $region8: #{_lambda_.28} parent=0 // pred_region
    _
  $region9: #{_lambda_.28} parent=0 // pred_fallthru
    _
  // Predicated region
  $region10: #{_lambda_.28} parent=0 // pred_check
    _
  $region11: #{_lambda_.28} parent=0 // pred_check_branch
    %15 = sbr.rel (0) target = $region13
  $region12: #{_lambda_.28} parent=0 // pred_region
    _
  $region13: #{_lambda_.28} parent=0 // pred_fallthru
    _
  // Predicated region
  $region14: #{_lambda_.28} parent=0 // pred_check
    _
  $region15: #{_lambda_.28} parent=0 // pred_check_branch
    %17 = sbr.rel (0) target = $region17
  $region16: #{_lambda_.28} parent=0 // pred_region
    _
  $region17: #{_lambda_.28} parent=0 // pred_fallthru
    _
  // Predicated region
  $region18: #{_lambda_.28} parent=0 // pred_check
    _
  $region19: #{_lambda_.28} parent=0 // pred_check_branch
    %19 = sbr.rel (0) target = $region21
  $region20: #{_lambda_.28} parent=0 // pred_region
    _
  $region21: #{_lambda_.28} parent=0 // pred_fallthru
    _
  %v20 = vld [vmem:[%s0] sm:$0xf]
  %v21 = vld [vmem:[%s0 + $0x4] sm:$0xf]
  %v22 = vld [vmem:[%s1] sm:$0xff]
  %v23 = vld [vmem:[%s1 + $0x8] sm:$0xff]
  %v24 = vld [vmem:[%s1 + $0x10] sm:$0xff]
  %v25 = vld [vmem:[%s1 + $0x18] sm:$0xff]
  %v26 = vld [vmem:[%s1 + $0x20] sm:$0xff]
  %v27 = vld [vmem:[%s1 + $0x28] sm:$0xff]
  %v28 = vld [vmem:[%s1 + $0x30] sm:$0xff]
  %v29 = vld [vmem:[%s1 + $0x38] sm:$0xff]
  %v30 = vld [vmem:[%s1 + $0x40] sm:$0xff]
  %v31 = vld [vmem:[%s1 + $0x48] sm:$0xff]
  %v32 = vld [vmem:[%s1 + $0x50] sm:$0xff]
  %v33 = vld [vmem:[%s1 + $0x58] sm:$0xff]
  %v34 = vld [vmem:[%s1 + $0x60] sm:$0xff]
  %v35 = vld [vmem:[%s1 + $0x68] sm:$0xff]
  %v36 = vld [vmem:[%s1 + $0x70] sm:$0xff]
  %v37 = vld [vmem:[%s1 + $0x78] sm:$0xff]
  %v38 = vld [vmem:[%s2] sm:$0x1]
  %v40 = vlaneseq
  %v41 = vshrl.u32 %v40, 7
  %v42 = vsub.s32 0, %v41
  %v43 = vrot.slane %v38, %v42
  %v47 = vcombine.low %v20, %v21
  %49 = vmatprep.subr.mxu0 0.0
  %50 = vmatpush1.msra.mxu0 %v22
  %51 = vmatprep.subr.mxu0 0.0
  %52 = vmatpush1.msra.mxu0 %v23
  %53 = vmatprep.subr.mxu0 0.0
  %54 = vmatpush1.msra.mxu0 %v24
  %55 = vmatprep.subr.mxu0 0.0
  %56 = vmatpush1.msra.mxu0 %v25
  %57 = vmatprep.subr.mxu0 0.0
  %58 = vmatpush1.msra.mxu0 %v26
  %59 = vmatprep.subr.mxu0 0.0
  %60 = vmatpush1.msra.mxu0 %v27
  %61 = vmatprep.subr.mxu0 0.0
  %62 = vmatpush1.msra.mxu0 %v28
  %63 = vmatprep.subr.mxu0 0.0
  %64 = vmatpush1.msra.mxu0 %v29
  %65 = vmatprep.subr.mxu0 0.0
  %66 = vmatpush1.msra.mxu0 %v30
  %67 = vmatprep.subr.mxu0 0.0
  %68 = vmatpush1.msra.mxu0 %v31
  %69 = vmatprep.subr.mxu0 0.0
  %70 = vmatpush1.msra.mxu0 %v32
  %71 = vmatprep.subr.mxu0 0.0
  %72 = vmatpush1.msra.mxu0 %v33
  %73 = vmatprep.subr.mxu0 0.0
  %74 = vmatpush1.msra.mxu0 %v34
  %75 = vmatprep.subr.mxu0 0.0
  %76 = vmatpush1.msra.mxu0 %v35
  %77 = vmatprep.subr.mxu0 0.0
  %78 = vmatpush1.msra.mxu0 %v36
  %79 = vmatprep.subr.mxu0 0.0
  %80 = vmatpush1.msra.mxu0 %v37
  %81 = vmatprep.subr.mxu0 0.0
  %82 = vmatpush1.msra.mxu0 0.0
  %83 = vmatprep.subr.mxu0 0.0
  %84 = vmatpush1.msra.mxu0 0.0
  %85 = vmatprep.subr.mxu0 0.0
  %86 = vmatpush1.msra.mxu0 0.0
  %87 = vmatprep.subr.mxu0 0.0
  %88 = vmatpush1.msra.mxu0 0.0
  %89 = vmatprep.subr.mxu0 0.0
  %90 = vmatpush1.msra.mxu0 0.0
  %91 = vmatprep.subr.mxu0 0.0
  %92 = vmatpush1.msra.mxu0 0.0
  %93 = vmatprep.subr.mxu0 0.0
  %94 = vmatpush1.msra.mxu0 0.0
  %95 = vmatprep.subr.mxu0 0.0
  %96 = vmatpush1.msra.mxu0 0.0
  %97 = vmatprep.subr.mxu0 0.0
  %98 = vmatpush1.msra.mxu0 0.0
  %99 = vmatprep.subr.mxu0 0.0
  %100 = vmatpush1.msra.mxu0 0.0
  %101 = vmatprep.subr.mxu0 0.0
  %102 = vmatpush1.msra.mxu0 0.0
  %103 = vmatprep.subr.mxu0 0.0
  %104 = vmatpush1.msra.mxu0 0.0
  %105 = vmatprep.subr.mxu0 0.0
  %106 = vmatpush1.msra.mxu0 0.0
  %107 = vmatprep.subr.mxu0 0.0
  %108 = vmatpush1.msra.mxu0 0.0
  %109 = vmatprep.subr.mxu0 0.0
  %110 = vmatpush1.msra.mxu0 0.0
  %111 = vmatprep.subr.mxu0 0.0
  %112 = vmatpush1.msra.mxu0 0.0
  %113 = vmatprep.mubr.f32.mxu0 0.0
  %114 = vmatmul.mubr.f32.gmra.mrb[0].mxu0 %v47
  %v115 = vpop.f32.mrb[0].mxu0
  %v116 = vadd.f32 %v43, %v115
  %v117 = vpop.f32.mrb[0].mxu0
  %118 = vdwg.mxu0
  %v119 = vrot.slane %v116, 4
  %v120 = vadd.f32 %v116, %v119
  %v121 = vrot.slane %v120, 2
  %v122 = vadd.f32 %v120, %v121
  %v123 = vrot.slane %v122, 1
  %v124 = vadd.f32 %v122, %v123
  %v125 = vrcp.pop 8.0
  %v126 = vmul.f32 %v124, %v125
  %v127 = vsub.f32 %v116, %v126
  %v128 = vmul.f32 %v127, %v127
  %v129 = vrot.slane %v128, 4
  %v130 = vadd.f32 %v128, %v129
  %v131 = vrot.slane %v130, 2
  %v132 = vadd.f32 %v130, %v131
  %v133 = vrot.slane %v132, 1
  %v134 = vadd.f32 %v132, %v133
  %v135 = vmul.f32 %v134, %v125
  %v136 = vadd.f32 %v135, 1e-05
  %v137 = vrsqrt.pop %v136
  %v138 = vmul.f32 %v127, %v137
  %v139 = vld [vmem:[%s3] sm:$0x1]
  %v141 = vlaneseq
  %v142 = vshrl.u32 %v141, 7
  %v143 = vsub.s32 0, %v142
  %v144 = vrot.slane %v139, %v143
  %v146 = vmul.f32 %v138, %v144
  %v147 = vld [vmem:[%s4] sm:$0x1]
  %v149 = vlaneseq
  %v150 = vshrl.u32 %v149, 7
  %v151 = vsub.s32 0, %v150
  %v152 = vrot.slane %v147, %v151
  %v154 = vadd.f32 %v146, %v152
  %v156 = vcombine.high %v154, %v154
  %158 = vst [vmem:[%s5] sm:$0xf] %v154
  %159 = vst [vmem:[%s5 + $0x4] sm:$0xf] %v156
  // Predicated region
  $region22: #{_lambda_.28} parent=0 // pred_check
    _
  $region23: #{_lambda_.28} parent=0 // pred_check_branch
    %161 = sbr.rel (0) target = $region25
  $region24: #{_lambda_.28} parent=0 // pred_region
    _
  $region25: #{_lambda_.28} parent=0 // pred_fallthru
    _
  // Predicated region
  $region26: #{_lambda_.28} parent=0 // pred_check
    _
  $region27: #{_lambda_.28} parent=0 // pred_check_branch
    %163 = sbr.rel (0) target = $region29
  $region28: #{_lambda_.28} parent=0 // pred_region
    _
  $region29: #{_lambda_.28} parent=0 // pred_fallthru
    _

// kernel: _lambda_.29
$region0: #{_lambda_.29}
  #allocation0 [shape = 'u32[]', space=smem, size = 0x4, offset = 0x4, fixed_abs, tag = 'smem constant byte address 0x4 - core index']
  #allocation1 [shape = 'u32[144,128]{1,0:T(1,128)}', space=vmem, size = 0x12000, scoped, tag = 'internal scratch']
  %s0 = inlined_call_operand.vmem [shape: f32[2,5,128], index: 0, kind: input, shape index: {}]
  %s1 = inlined_call_operand.vmem [shape: f32[2,5,128], index: 1, kind: input, shape index: {}]
  %s2 = inlined_call_operand.vmem [shape: f32[3,128,128], index: 2, kind: input, shape index: {}]
  %s3 = inlined_call_operand.vmem [shape: f32[1,128], index: 3, kind: input, shape index: {}]
  %s4 = inlined_call_operand.vmem [shape: f32[1,128], index: 4, kind: input, shape index: {}]
  %s5 = inlined_call_operand.vmem [shape: f32[1,128], index: 5, kind: input, shape index: {}]
  %s6 = inlined_call_operand.vmem [shape: f32[2,4,128], index: 6, kind: output, shape index: {}]
  %s7 = sld [smem:[#allocation0]]
  $region34: #{_lambda_.29} parent=0
    _
  %s9 = ssub.s32 1, %s7
  %s10 = scalar_select 0, %s9, %s7
  // Predicated region
  $region2: #{_lambda_.29} parent=0 // pred_check
    _
  $region3: #{_lambda_.29} parent=0 // pred_check_branch
    %12 = sbr.rel (0) target = $region5
  $region4: #{_lambda_.29} parent=0 // pred_region
    _
  $region5: #{_lambda_.29} parent=0 // pred_fallthru
    _
  // Predicated region
  $region6: #{_lambda_.29} parent=0 // pred_check
    _
  $region7: #{_lambda_.29} parent=0 // pred_check_branch
    %14 = sbr.rel (0) target = $region9
  $region8: #{_lambda_.29} parent=0 // pred_region
    _
  $region9: #{_lambda_.29} parent=0 // pred_fallthru
    _
  // Predicated region
  $region10: #{_lambda_.29} parent=0 // pred_check
    _
  $region11: #{_lambda_.29} parent=0 // pred_check_branch
    %16 = sbr.rel (0) target = $region13
  $region12: #{_lambda_.29} parent=0 // pred_region
    _
  $region13: #{_lambda_.29} parent=0 // pred_fallthru
    _
  // Predicated region
  $region14: #{_lambda_.29} parent=0 // pred_check
    _
  $region15: #{_lambda_.29} parent=0 // pred_check_branch
    %18 = sbr.rel (0) target = $region17
  $region16: #{_lambda_.29} parent=0 // pred_region
    _
  $region17: #{_lambda_.29} parent=0 // pred_fallthru
    _
  // Predicated region
  $region18: #{_lambda_.29} parent=0 // pred_check
    _
  $region19: #{_lambda_.29} parent=0 // pred_check_branch
    %20 = sbr.rel (0) target = $region21
  $region20: #{_lambda_.29} parent=0 // pred_region
    _
  $region21: #{_lambda_.29} parent=0 // pred_fallthru
    _
  // Predicated region
  $region22: #{_lambda_.29} parent=0 // pred_check
    _
  $region23: #{_lambda_.29} parent=0 // pred_check_branch
    %22 = sbr.rel (0) target = $region25
  $region24: #{_lambda_.29} parent=0 // pred_region
    _
  $region25: #{_lambda_.29} parent=0 // pred_fallthru
    _
  %v23 = vld [vmem:[%s0] sm:$0x1f]
  %v24 = vld [vmem:[%s0 + $0x8] sm:$0x1f]
  %v25 = vld [vmem:[%s1] sm:$0x1f]
  %v26 = vld [vmem:[%s1 + $0x8] sm:$0x1f]
  %v27 = vld [vmem:[%s2] sm:$0xff]
  %v28 = vld [vmem:[%s2 + $0x8] sm:$0xff]
  %v29 = vld [vmem:[%s2 + $0x10] sm:$0xff]
  %v30 = vld [vmem:[%s2 + $0x18] sm:$0xff]
  %v31 = vld [vmem:[%s2 + $0x20] sm:$0xff]
  %v32 = vld [vmem:[%s2 + $0x28] sm:$0xff]
  %v33 = vld [vmem:[%s2 + $0x30] sm:$0xff]
  %v34 = vld [vmem:[%s2 + $0x38] sm:$0xff]
  %v35 = vld [vmem:[%s2 + $0x40] sm:$0xff]
  %v36 = vld [vmem:[%s2 + $0x48] sm:$0xff]
  %v37 = vld [vmem:[%s2 + $0x50] sm:$0xff]
  %v38 = vld [vmem:[%s2 + $0x58] sm:$0xff]
  %v39 = vld [vmem:[%s2 + $0x60] sm:$0xff]
  %v40 = vld [vmem:[%s2 + $0x68] sm:$0xff]
  %v41 = vld [vmem:[%s2 + $0x70] sm:$0xff]
  %v42 = vld [vmem:[%s2 + $0x78] sm:$0xff]
  %s43 = scalar_lea.vmem %s2, 128
  %v44 = vld [vmem:[%s43] sm:$0xff]
  %v45 = vld [vmem:[%s43 + $0x8] sm:$0xff]
  %v46 = vld [vmem:[%s43 + $0x10] sm:$0xff]
  %v47 = vld [vmem:[%s43 + $0x18] sm:$0xff]
  %v48 = vld [vmem:[%s43 + $0x20] sm:$0xff]
  %v49 = vld [vmem:[%s43 + $0x28] sm:$0xff]
  %v50 = vld [vmem:[%s43 + $0x30] sm:$0xff]
  %v51 = vld [vmem:[%s43 + $0x38] sm:$0xff]
  %v52 = vld [vmem:[%s43 + $0x40] sm:$0xff]
  %v53 = vld [vmem:[%s43 + $0x48] sm:$0xff]
  %v54 = vld [vmem:[%s43 + $0x50] sm:$0xff]
  %v55 = vld [vmem:[%s43 + $0x58] sm:$0xff]
  %v56 = vld [vmem:[%s43 + $0x60] sm:$0xff]
  %v57 = vld [vmem:[%s43 + $0x68] sm:$0xff]
  %v58 = vld [vmem:[%s43 + $0x70] sm:$0xff]
  %v59 = vld [vmem:[%s43 + $0x78] sm:$0xff]
  %v62 = vcombine.low %v25, %v26
  %64 = vmatprep.subr.mxu0 0.0
  %65 = vmatpush1.msra.mxu0 %v44
  %66 = vmatprep.subr.mxu0 0.0
  %67 = vmatpush1.msra.mxu0 %v45
  %68 = vmatprep.subr.mxu0 0.0
  %69 = vmatpush1.msra.mxu0 %v46
  %70 = vmatprep.subr.mxu0 0.0
  %71 = vmatpush1.msra.mxu0 %v47
  %72 = vmatprep.subr.mxu0 0.0
  %73 = vmatpush1.msra.mxu0 %v48
  %74 = vmatprep.subr.mxu0 0.0
  %75 = vmatpush1.msra.mxu0 %v49
  %76 = vmatprep.subr.mxu0 0.0
  %77 = vmatpush1.msra.mxu0 %v50
  %78 = vmatprep.subr.mxu0 0.0
  %79 = vmatpush1.msra.mxu0 %v51
  %80 = vmatprep.subr.mxu0 0.0
  %81 = vmatpush1.msra.mxu0 %v52
  %82 = vmatprep.subr.mxu0 0.0
  %83 = vmatpush1.msra.mxu0 %v53
  %84 = vmatprep.subr.mxu0 0.0
  %85 = vmatpush1.msra.mxu0 %v54
  %86 = vmatprep.subr.mxu0 0.0
  %87 = vmatpush1.msra.mxu0 %v55
  %88 = vmatprep.subr.mxu0 0.0
  %89 = vmatpush1.msra.mxu0 %v56
  %90 = vmatprep.subr.mxu0 0.0
  %91 = vmatpush1.msra.mxu0 %v57
  %92 = vmatprep.subr.mxu0 0.0
  %93 = vmatpush1.msra.mxu0 %v58
  %94 = vmatprep.subr.mxu0 0.0
  %95 = vmatpush1.msra.mxu0 %v59
  %96 = vmatprep.subr.mxu0 0.0
  %97 = vmatpush1.msra.mxu0 0.0
  %98 = vmatprep.subr.mxu0 0.0
  %99 = vmatpush1.msra.mxu0 0.0
  %100 = vmatprep.subr.mxu0 0.0
  %101 = vmatpush1.msra.mxu0 0.0
  %102 = vmatprep.subr.mxu0 0.0
  %103 = vmatpush1.msra.mxu0 0.0
  %104 = vmatprep.subr.mxu0 0.0
  %105 = vmatpush1.msra.mxu0 0.0
  %106 = vmatprep.subr.mxu0 0.0
  %107 = vmatpush1.msra.mxu0 0.0
  %108 = vmatprep.subr.mxu0 0.0
  %109 = vmatpush1.msra.mxu0 0.0
  %110 = vmatprep.subr.mxu0 0.0
  %111 = vmatpush1.msra.mxu0 0.0
  %112 = vmatprep.subr.mxu0 0.0
  %113 = vmatpush1.msra.mxu0 0.0
  %114 = vmatprep.subr.mxu0 0.0
  %115 = vmatpush1.msra.mxu0 0.0
  %116 = vmatprep.subr.mxu0 0.0
  %117 = vmatpush1.msra.mxu0 0.0
  %118 = vmatprep.subr.mxu0 0.0
  %119 = vmatpush1.msra.mxu0 0.0
  %120 = vmatprep.subr.mxu0 0.0
  %121 = vmatpush1.msra.mxu0 0.0
  %122 = vmatprep.subr.mxu0 0.0
  %123 = vmatpush1.msra.mxu0 0.0
  %124 = vmatprep.subr.mxu0 0.0
  %125 = vmatpush1.msra.mxu0 0.0
  %126 = vmatprep.subr.mxu0 0.0
  %127 = vmatpush1.msra.mxu0 0.0
  %128 = vmatprep.mubr.f32.mxu0 0.0
  %129 = vmatmul.mubr.f32.gmra.mrb[0].mxu0 %v62
  %v130 = vpop.f32.mrb[0].mxu0
  %v131 = vadd.f32 0.0, %v130
  %v132 = vpop.f32.mrb[0].mxu0
  %133 = vdwg.mxu0
  %v136 = vcombine.low %v23, %v24
  %138 = vmatprep.subr.mxu0 0.0
  %139 = vmatpush1.msra.mxu0 %v27
  %140 = vmatprep.subr.mxu0 0.0
  %141 = vmatpush1.msra.mxu0 %v28
  %142 = vmatprep.subr.mxu0 0.0
  %143 = vmatpush1.msra.mxu0 %v29
  %144 = vmatprep.subr.mxu0 0.0
  %145 = vmatpush1.msra.mxu0 %v30
  %146 = vmatprep.subr.mxu0 0.0
  %147 = vmatpush1.msra.mxu0 %v31
  %148 = vmatprep.subr.mxu0 0.0
  %149 = vmatpush1.msra.mxu0 %v32
  %150 = vmatprep.subr.mxu0 0.0
  %151 = vmatpush1.msra.mxu0 %v33
  %152 = vmatprep.subr.mxu0 0.0
  %153 = vmatpush1.msra.mxu0 %v34
  %154 = vmatprep.subr.mxu0 0.0
  %155 = vmatpush1.msra.mxu0 %v35
  %156 = vmatprep.subr.mxu0 0.0
  %157 = vmatpush1.msra.mxu0 %v36
  %158 = vmatprep.subr.mxu0 0.0
  %159 = vmatpush1.msra.mxu0 %v37
  %160 = vmatprep.subr.mxu0 0.0
  %161 = vmatpush1.msra.mxu0 %v38
  %162 = vmatprep.subr.mxu0 0.0
  %163 = vmatpush1.msra.mxu0 %v39
  %164 = vmatprep.subr.mxu0 0.0
  %165 = vmatpush1.msra.mxu0 %v40
  %166 = vmatprep.subr.mxu0 0.0
  %167 = vmatpush1.msra.mxu0 %v41
  %168 = vmatprep.subr.mxu0 0.0
  %169 = vmatpush1.msra.mxu0 %v42
  %170 = vmatprep.subr.mxu0 0.0
  %171 = vmatpush1.msra.mxu0 0.0
  %172 = vmatprep.subr.mxu0 0.0
  %173 = vmatpush1.msra.mxu0 0.0
  %174 = vmatprep.subr.mxu0 0.0
  %175 = vmatpush1.msra.mxu0 0.0
  %176 = vmatprep.subr.mxu0 0.0
  %177 = vmatpush1.msra.mxu0 0.0
  %178 = vmatprep.subr.mxu0 0.0
  %179 = vmatpush1.msra.mxu0 0.0
  %180 = vmatprep.subr.mxu0 0.0
  %181 = vmatpush1.msra.mxu0 0.0
  %182 = vmatprep.subr.mxu0 0.0
  %183 = vmatpush1.msra.mxu0 0.0
  %184 = vmatprep.subr.mxu0 0.0
  %185 = vmatpush1.msra.mxu0 0.0
  %186 = vmatprep.subr.mxu0 0.0
  %187 = vmatpush1.msra.mxu0 0.0
  %188 = vmatprep.subr.mxu0 0.0
  %189 = vmatpush1.msra.mxu0 0.0
  %190 = vmatprep.subr.mxu0 0.0
  %191 = vmatpush1.msra.mxu0 0.0
  %192 = vmatprep.subr.mxu0 0.0
  %193 = vmatpush1.msra.mxu0 0.0
  %194 = vmatprep.subr.mxu0 0.0
  %195 = vmatpush1.msra.mxu0 0.0
  %196 = vmatprep.subr.mxu0 0.0
  %197 = vmatpush1.msra.mxu0 0.0
  %198 = vmatprep.subr.mxu0 0.0
  %199 = vmatpush1.msra.mxu0 0.0
  %200 = vmatprep.subr.mxu0 0.0
  %201 = vmatpush1.msra.mxu0 0.0
  %202 = vmatprep.mubr.f32.mxu0 0.0
  %203 = vmatmul.mubr.f32.gmra.mrb[0].mxu0 %v136
  %v204 = vpop.f32.mrb[0].mxu0
  %v205 = vadd.f32 %v131, %v204
  %v206 = vpop.f32.mrb[0].mxu0
  %207 = vdwg.mxu0
  %v208 = vcombine.high %v23, %v23
  %v209 = vcombine.high %v24, %v24
  %vm210 = vcmask 1042432
  %vm211 = vcmask 1046532
  %vm212 = vmor %vm210, %vm211
  %v213 = vrot.slane %v23, 5
  %v214 = vrot.slane %v213, 4
  %v215 = vrot.slane %v208, 5
  %v216 = vsel %vm212, %v214, %v215
  %v217 = vrot.slane %v24, 5
  %v218 = vrot.slane %v217, 4
  %v219 = vrot.slane %v209, 5
  %v220 = vsel %vm212, %v218, %v219
  %s221 = scalar_lea.vmem %s2, 256
  %v222 = vld [vmem:[%s221] sm:$0xff]
  %v223 = vld [vmem:[%s221 + $0x8] sm:$0xff]
  %v224 = vld [vmem:[%s221 + $0x10] sm:$0xff]
  %v225 = vld [vmem:[%s221 + $0x18] sm:$0xff]
  %v226 = vld [vmem:[%s221 + $0x20] sm:$0xff]
  %v227 = vld [vmem:[%s221 + $0x28] sm:$0xff]
  %v228 = vld [vmem:[%s221 + $0x30] sm:$0xff]
  %v229 = vld [vmem:[%s221 + $0x38] sm:$0xff]
  %v230 = vld [vmem:[%s221 + $0x40] sm:$0xff]
  %v231 = vld [vmem:[%s221 + $0x48] sm:$0xff]
  %v232 = vld [vmem:[%s221 + $0x50] sm:$0xff]
  %v233 = vld [vmem:[%s221 + $0x58] sm:$0xff]
  %v234 = vld [vmem:[%s221 + $0x60] sm:$0xff]
  %v235 = vld [vmem:[%s221 + $0x68] sm:$0xff]
  %v236 = vld [vmem:[%s221 + $0x70] sm:$0xff]
  %v237 = vld [vmem:[%s221 + $0x78] sm:$0xff]
  %v238 = vcombine.low %v216, %v220
  %240 = vmatprep.subr.mxu0 0.0
  %241 = vmatpush1.msra.mxu0 %v222
  %242 = vmatprep.subr.mxu0 0.0
  %243 = vmatpush1.msra.mxu0 %v223
  %244 = vmatprep.subr.mxu0 0.0
  %245 = vmatpush1.msra.mxu0 %v224
  %246 = vmatprep.subr.mxu0 0.0
  %247 = vmatpush1.msra.mxu0 %v225
  %248 = vmatprep.subr.mxu0 0.0
  %249 = vmatpush1.msra.mxu0 %v226
  %250 = vmatprep.subr.mxu0 0.0
  %251 = vmatpush1.msra.mxu0 %v227
  %252 = vmatprep.subr.mxu0 0.0
  %253 = vmatpush1.msra.mxu0 %v228
  %254 = vmatprep.subr.mxu0 0.0
  %255 = vmatpush1.msra.mxu0 %v229
  %256 = vmatprep.subr.mxu0 0.0
  %257 = vmatpush1.msra.mxu0 %v230
  %258 = vmatprep.subr.mxu0 0.0
  %259 = vmatpush1.msra.mxu0 %v231
  %260 = vmatprep.subr.mxu0 0.0
  %261 = vmatpush1.msra.mxu0 %v232
  %262 = vmatprep.subr.mxu0 0.0
  %263 = vmatpush1.msra.mxu0 %v233
  %264 = vmatprep.subr.mxu0 0.0
  %265 = vmatpush1.msra.mxu0 %v234
  %266 = vmatprep.subr.mxu0 0.0
  %267 = vmatpush1.msra.mxu0 %v235
  %268 = vmatprep.subr.mxu0 0.0
  %269 = vmatpush1.msra.mxu0 %v236
  %270 = vmatprep.subr.mxu0 0.0
  %271 = vmatpush1.msra.mxu0 %v237
  %272 = vmatprep.subr.mxu0 0.0
  %273 = vmatpush1.msra.mxu0 0.0
  %274 = vmatprep.subr.mxu0 0.0
  %275 = vmatpush1.msra.mxu0 0.0
  %276 = vmatprep.subr.mxu0 0.0
  %277 = vmatpush1.msra.mxu0 0.0
  %278 = vmatprep.subr.mxu0 0.0
  %279 = vmatpush1.msra.mxu0 0.0
  %280 = vmatprep.subr.mxu0 0.0
  %281 = vmatpush1.msra.mxu0 0.0
  %282 = vmatprep.subr.mxu0 0.0
  %283 = vmatpush1.msra.mxu0 0.0
  %284 = vmatprep.subr.mxu0 0.0
  %285 = vmatpush1.msra.mxu0 0.0
  %286 = vmatprep.subr.mxu0 0.0
  %287 = vmatpush1.msra.mxu0 0.0
  %288 = vmatprep.subr.mxu0 0.0
  %289 = vmatpush1.msra.mxu0 0.0
  %290 = vmatprep.subr.mxu0 0.0
  %291 = vmatpush1.msra.mxu0 0.0
  %292 = vmatprep.subr.mxu0 0.0
  %293 = vmatpush1.msra.mxu0 0.0
  %294 = vmatprep.subr.mxu0 0.0
  %295 = vmatpush1.msra.mxu0 0.0
  %296 = vmatprep.subr.mxu0 0.0
  %297 = vmatpush1.msra.mxu0 0.0
  %298 = vmatprep.subr.mxu0 0.0
  %299 = vmatpush1.msra.mxu0 0.0
  %300 = vmatprep.subr.mxu0 0.0
  %301 = vmatpush1.msra.mxu0 0.0
  %302 = vmatprep.subr.mxu0 0.0
  %303 = vmatpush1.msra.mxu0 0.0
  %304 = vmatprep.mubr.f32.mxu0 0.0
  %305 = vmatmul.mubr.f32.gmra.mrb[0].mxu0 %v238
  %v306 = vpop.f32.mrb[0].mxu0
  %v307 = vadd.f32 0.0, %v306
  %v308 = vpop.f32.mrb[0].mxu0
  %309 = vdwg.mxu0
  %v310 = vadd.f32 %v205, %v307
  %v311 = vld [vmem:[%s3] sm:$0x1]
  %v313 = vlaneseq
  %v314 = vshrl.u32 %v313, 7
  %v315 = vsub.s32 0, %v314
  %v316 = vrot.slane %v311, %v315
  %v318 = vadd.f32 %v310, %v316
  %v319 = vrot.slane %v318, 4
  %v320 = vadd.f32 %v318, %v319
  %v321 = vrot.slane %v320, 2
  %v322 = vadd.f32 %v320, %v321
  %v323 = vrot.slane %v322, 1
  %v324 = vadd.f32 %v322, %v323
  %v325 = vrcp.pop 8.0
  %v326 = vmul.f32 %v324, %v325
  %v327 = vsub.f32 %v318, %v326
  %v328 = vmul.f32 %v327, %v327
  %v329 = vrot.slane %v328, 4
  %v330 = vadd.f32 %v328, %v329
  %v331 = vrot.slane %v330, 2
  %v332 = vadd.f32 %v330, %v331
  %v333 = vrot.slane %v332, 1
  %v334 = vadd.f32 %v332, %v333
  %v335 = vmul.f32 %v334, %v325
  %v336 = vadd.f32 %v335, 1e-05
  %v337 = vrsqrt.pop %v336
  %v338 = vmul.f32 %v327, %v337
  %v339 = vld [vmem:[%s4] sm:$0x1]
  %v341 = vlaneseq
  %v342 = vshrl.u32 %v341, 7
  %v343 = vsub.s32 0, %v342
  %v344 = vrot.slane %v339, %v343
  %v346 = vmul.f32 %v338, %v344
  %v347 = vld [vmem:[%s5] sm:$0x1]
  %v349 = vlaneseq
  %v350 = vshrl.u32 %v349, 7
  %v351 = vsub.s32 0, %v350
  %v352 = vrot.slane %v347, %v351
  %v354 = vadd.f32 %v346, %v352
  %v355 = vmax.f32 %v354, 0.0
  %v357 = vcombine.high %v355, %v355
  %359 = vst [vmem:[%s6] sm:$0xf] %v355
  %360 = vst [vmem:[%s6 + $0x4] sm:$0xf] %v357
  // Predicated region
  $region26: #{_lambda_.29} parent=0 // pred_check
    _
  $region27: #{_lambda_.29} parent=0 // pred_check_branch
    %362 = sbr.rel (0) target = $region29
  $region28: #{_lambda_.29} parent=0 // pred_region
    _
  $region29: #{_lambda_.29} parent=0 // pred_fallthru
    _
  // Predicated region
  $region30: #{_lambda_.29} parent=0 // pred_check
    _
  $region31: #{_lambda_.29} parent=0 // pred_check_branch
    %364 = sbr.rel (0) target = $region33
  $region32: #{_lambda_.29} parent=0 // pred_region
    _
  $region33: #{_lambda_.29} parent=0 // pred_fallthru
    _

// kernel: _lambda_.31
$region0: #{_lambda_.31}
  #allocation0 [shape = 'u32[]', space=smem, size = 0x4, offset = 0x4, fixed_abs, tag = 'smem constant byte address 0x4 - core index']
  #allocation1 [shape = 'u32[144,128]{1,0:T(1,128)}', space=vmem, size = 0x12000, scoped, tag = 'internal scratch']
  %s0 = inlined_call_operand.vmem [shape: f32[2,6,128], index: 0, kind: input, shape index: {}]
  %s1 = inlined_call_operand.vmem [shape: f32[3,128,128], index: 1, kind: input, shape index: {}]
  %s2 = inlined_call_operand.vmem [shape: f32[1,128], index: 2, kind: input, shape index: {}]
  %s3 = inlined_call_operand.vmem [shape: f32[1,128], index: 3, kind: input, shape index: {}]
  %s4 = inlined_call_operand.vmem [shape: f32[1,128], index: 4, kind: input, shape index: {}]
  %s5 = inlined_call_operand.vmem [shape: f32[2,4,128], index: 5, kind: output, shape index: {}]
  %s6 = sld [smem:[#allocation0]]
  $region30: #{_lambda_.31} parent=0
    _
  %s8 = ssub.s32 1, %s6
  %s9 = scalar_select 0, %s8, %s6
  // Predicated region
  $region2: #{_lambda_.31} parent=0 // pred_check
    _
  $region3: #{_lambda_.31} parent=0 // pred_check_branch
    %11 = sbr.rel (0) target = $region5
  $region4: #{_lambda_.31} parent=0 // pred_region
    _
  $region5: #{_lambda_.31} parent=0 // pred_fallthru
    _
  // Predicated region
  $region6: #{_lambda_.31} parent=0 // pred_check
    _
  $region7: #{_lambda_.31} parent=0 // pred_check_branch
    %13 = sbr.rel (0) target = $region9
  $region8: #{_lambda_.31} parent=0 // pred_region
    _
  $region9: #{_lambda_.31} parent=0 // pred_fallthru
    _
  // Predicated region
  $region10: #{_lambda_.31} parent=0 // pred_check
    _
  $region11: #{_lambda_.31} parent=0 // pred_check_branch
    %15 = sbr.rel (0) target = $region13
  $region12: #{_lambda_.31} parent=0 // pred_region
    _
  $region13: #{_lambda_.31} parent=0 // pred_fallthru
    _
  // Predicated region
  $region14: #{_lambda_.31} parent=0 // pred_check
    _
  $region15: #{_lambda_.31} parent=0 // pred_check_branch
    %17 = sbr.rel (0) target = $region17
  $region16: #{_lambda_.31} parent=0 // pred_region
    _
  $region17: #{_lambda_.31} parent=0 // pred_fallthru
    _
  // Predicated region
  $region18: #{_lambda_.31} parent=0 // pred_check
    _
  $region19: #{_lambda_.31} parent=0 // pred_check_branch
    %19 = sbr.rel (0) target = $region21
  $region20: #{_lambda_.31} parent=0 // pred_region
    _
  $region21: #{_lambda_.31} parent=0 // pred_fallthru
    _
  %v20 = vld [vmem:[%s0] sm:$0x3f]
  %v21 = vld [vmem:[%s0 + $0x8] sm:$0x3f]
  %v22 = vld [vmem:[%s1] sm:$0xff]
  %v23 = vld [vmem:[%s1 + $0x8] sm:$0xff]
  %v24 = vld [vmem:[%s1 + $0x10] sm:$0xff]
  %v25 = vld [vmem:[%s1 + $0x18] sm:$0xff]
  %v26 = vld [vmem:[%s1 + $0x20] sm:$0xff]
  %v27 = vld [vmem:[%s1 + $0x28] sm:$0xff]
  %v28 = vld [vmem:[%s1 + $0x30] sm:$0xff]
  %v29 = vld [vmem:[%s1 + $0x38] sm:$0xff]
  %v30 = vld [vmem:[%s1 + $0x40] sm:$0xff]
  %v31 = vld [vmem:[%s1 + $0x48] sm:$0xff]
  %v32 = vld [vmem:[%s1 + $0x50] sm:$0xff]
  %v33 = vld [vmem:[%s1 + $0x58] sm:$0xff]
  %v34 = vld [vmem:[%s1 + $0x60] sm:$0xff]
  %v35 = vld [vmem:[%s1 + $0x68] sm:$0xff]
  %v36 = vld [vmem:[%s1 + $0x70] sm:$0xff]
  %v37 = vld [vmem:[%s1 + $0x78] sm:$0xff]
  %v40 = vcombine.high %v20, %v20
  %v41 = vcombine.high %v21, %v21
  %vm42 = vcmask 1042432
  %vm43 = vcmask 1046532
  %vm44 = vmor %vm42, %vm43
  %v45 = vrot.slane %v20, 5
  %v46 = vrot.slane %v45, 4
  %v47 = vrot.slane %v40, 5
  %v48 = vsel %vm44, %v46, %v47
  %v49 = vrot.slane %v21, 5
  %v50 = vrot.slane %v49, 4
  %v51 = vrot.slane %v41, 5
  %v52 = vsel %vm44, %v50, %v51
  %s53 = scalar_lea.vmem %s1, 128
  %v54 = vld [vmem:[%s53] sm:$0xff]
  %v55 = vld [vmem:[%s53 + $0x8] sm:$0xff]
  %v56 = vld [vmem:[%s53 + $0x10] sm:$0xff]
  %v57 = vld [vmem:[%s53 + $0x18] sm:$0xff]
  %v58 = vld [vmem:[%s53 + $0x20] sm:$0xff]
  %v59 = vld [vmem:[%s53 + $0x28] sm:$0xff]
  %v60 = vld [vmem:[%s53 + $0x30] sm:$0xff]
  %v61 = vld [vmem:[%s53 + $0x38] sm:$0xff]
  %v62 = vld [vmem:[%s53 + $0x40] sm:$0xff]
  %v63 = vld [vmem:[%s53 + $0x48] sm:$0xff]
  %v64 = vld [vmem:[%s53 + $0x50] sm:$0xff]
  %v65 = vld [vmem:[%s53 + $0x58] sm:$0xff]
  %v66 = vld [vmem:[%s53 + $0x60] sm:$0xff]
  %v67 = vld [vmem:[%s53 + $0x68] sm:$0xff]
  %v68 = vld [vmem:[%s53 + $0x70] sm:$0xff]
  %v69 = vld [vmem:[%s53 + $0x78] sm:$0xff]
  %v70 = vcombine.low %v48, %v52
  %72 = vmatprep.subr.mxu0 0.0
  %73 = vmatpush1.msra.mxu0 %v54
  %74 = vmatprep.subr.mxu0 0.0
  %75 = vmatpush1.msra.mxu0 %v55
  %76 = vmatprep.subr.mxu0 0.0
  %77 = vmatpush1.msra.mxu0 %v56
  %78 = vmatprep.subr.mxu0 0.0
  %79 = vmatpush1.msra.mxu0 %v57
  %80 = vmatprep.subr.mxu0 0.0
  %81 = vmatpush1.msra.mxu0 %v58
  %82 = vmatprep.subr.mxu0 0.0
  %83 = vmatpush1.msra.mxu0 %v59
  %84 = vmatprep.subr.mxu0 0.0
  %85 = vmatpush1.msra.mxu0 %v60
  %86 = vmatprep.subr.mxu0 0.0
  %87 = vmatpush1.msra.mxu0 %v61
  %88 = vmatprep.subr.mxu0 0.0
  %89 = vmatpush1.msra.mxu0 %v62
  %90 = vmatprep.subr.mxu0 0.0
  %91 = vmatpush1.msra.mxu0 %v63
  %92 = vmatprep.subr.mxu0 0.0
  %93 = vmatpush1.msra.mxu0 %v64
  %94 = vmatprep.subr.mxu0 0.0
  %95 = vmatpush1.msra.mxu0 %v65
  %96 = vmatprep.subr.mxu0 0.0
  %97 = vmatpush1.msra.mxu0 %v66
  %98 = vmatprep.subr.mxu0 0.0
  %99 = vmatpush1.msra.mxu0 %v67
  %100 = vmatprep.subr.mxu0 0.0
  %101 = vmatpush1.msra.mxu0 %v68
  %102 = vmatprep.subr.mxu0 0.0
  %103 = vmatpush1.msra.mxu0 %v69
  %104 = vmatprep.subr.mxu0 0.0
  %105 = vmatpush1.msra.mxu0 0.0
  %106 = vmatprep.subr.mxu0 0.0
  %107 = vmatpush1.msra.mxu0 0.0
  %108 = vmatprep.subr.mxu0 0.0
  %109 = vmatpush1.msra.mxu0 0.0
  %110 = vmatprep.subr.mxu0 0.0
  %111 = vmatpush1.msra.mxu0 0.0
  %112 = vmatprep.subr.mxu0 0.0
  %113 = vmatpush1.msra.mxu0 0.0
  %114 = vmatprep.subr.mxu0 0.0
  %115 = vmatpush1.msra.mxu0 0.0
  %116 = vmatprep.subr.mxu0 0.0
  %117 = vmatpush1.msra.mxu0 0.0
  %118 = vmatprep.subr.mxu0 0.0
  %119 = vmatpush1.msra.mxu0 0.0
  %120 = vmatprep.subr.mxu0 0.0
  %121 = vmatpush1.msra.mxu0 0.0
  %122 = vmatprep.subr.mxu0 0.0
  %123 = vmatpush1.msra.mxu0 0.0
  %124 = vmatprep.subr.mxu0 0.0
  %125 = vmatpush1.msra.mxu0 0.0
  %126 = vmatprep.subr.mxu0 0.0
  %127 = vmatpush1.msra.mxu0 0.0
  %128 = vmatprep.subr.mxu0 0.0
  %129 = vmatpush1.msra.mxu0 0.0
  %130 = vmatprep.subr.mxu0 0.0
  %131 = vmatpush1.msra.mxu0 0.0
  %132 = vmatprep.subr.mxu0 0.0
  %133 = vmatpush1.msra.mxu0 0.0
  %134 = vmatprep.subr.mxu0 0.0
  %135 = vmatpush1.msra.mxu0 0.0
  %136 = vmatprep.mubr.f32.mxu0 0.0
  %137 = vmatmul.mubr.f32.gmra.mrb[0].mxu0 %v70
  %v138 = vpop.f32.mrb[0].mxu0
  %v139 = vadd.f32 0.0, %v138
  %v140 = vpop.f32.mrb[0].mxu0
  %141 = vdwg.mxu0
  %v142 = vcombine.low %v20, %v21
  %144 = vmatprep.subr.mxu0 0.0
  %145 = vmatpush1.msra.mxu0 %v22
  %146 = vmatprep.subr.mxu0 0.0
  %147 = vmatpush1.msra.mxu0 %v23
  %148 = vmatprep.subr.mxu0 0.0
  %149 = vmatpush1.msra.mxu0 %v24
  %150 = vmatprep.subr.mxu0 0.0
  %151 = vmatpush1.msra.mxu0 %v25
  %152 = vmatprep.subr.mxu0 0.0
  %153 = vmatpush1.msra.mxu0 %v26
  %154 = vmatprep.subr.mxu0 0.0
  %155 = vmatpush1.msra.mxu0 %v27
  %156 = vmatprep.subr.mxu0 0.0
  %157 = vmatpush1.msra.mxu0 %v28
  %158 = vmatprep.subr.mxu0 0.0
  %159 = vmatpush1.msra.mxu0 %v29
  %160 = vmatprep.subr.mxu0 0.0
  %161 = vmatpush1.msra.mxu0 %v30
  %162 = vmatprep.subr.mxu0 0.0
  %163 = vmatpush1.msra.mxu0 %v31
  %164 = vmatprep.subr.mxu0 0.0
  %165 = vmatpush1.msra.mxu0 %v32
  %166 = vmatprep.subr.mxu0 0.0
  %167 = vmatpush1.msra.mxu0 %v33
  %168 = vmatprep.subr.mxu0 0.0
  %169 = vmatpush1.msra.mxu0 %v34
  %170 = vmatprep.subr.mxu0 0.0
  %171 = vmatpush1.msra.mxu0 %v35
  %172 = vmatprep.subr.mxu0 0.0
  %173 = vmatpush1.msra.mxu0 %v36
  %174 = vmatprep.subr.mxu0 0.0
  %175 = vmatpush1.msra.mxu0 %v37
  %176 = vmatprep.subr.mxu0 0.0
  %177 = vmatpush1.msra.mxu0 0.0
  %178 = vmatprep.subr.mxu0 0.0
  %179 = vmatpush1.msra.mxu0 0.0
  %180 = vmatprep.subr.mxu0 0.0
  %181 = vmatpush1.msra.mxu0 0.0
  %182 = vmatprep.subr.mxu0 0.0
  %183 = vmatpush1.msra.mxu0 0.0
  %184 = vmatprep.subr.mxu0 0.0
  %185 = vmatpush1.msra.mxu0 0.0
  %186 = vmatprep.subr.mxu0 0.0
  %187 = vmatpush1.msra.mxu0 0.0
  %188 = vmatprep.subr.mxu0 0.0
  %189 = vmatpush1.msra.mxu0 0.0
  %190 = vmatprep.subr.mxu0 0.0
  %191 = vmatpush1.msra.mxu0 0.0
  %192 = vmatprep.subr.mxu0 0.0
  %193 = vmatpush1.msra.mxu0 0.0
  %194 = vmatprep.subr.mxu0 0.0
  %195 = vmatpush1.msra.mxu0 0.0
  %196 = vmatprep.subr.mxu0 0.0
  %197 = vmatpush1.msra.mxu0 0.0
  %198 = vmatprep.subr.mxu0 0.0
  %199 = vmatpush1.msra.mxu0 0.0
  %200 = vmatprep.subr.mxu0 0.0
  %201 = vmatpush1.msra.mxu0 0.0
  %202 = vmatprep.subr.mxu0 0.0
  %203 = vmatpush1.msra.mxu0 0.0
  %204 = vmatprep.subr.mxu0 0.0
  %205 = vmatpush1.msra.mxu0 0.0
  %206 = vmatprep.subr.mxu0 0.0
  %207 = vmatpush1.msra.mxu0 0.0
  %208 = vmatprep.mubr.f32.mxu0 0.0
  %209 = vmatmul.mubr.f32.gmra.mrb[0].mxu0 %v142
  %v210 = vpop.f32.mrb[0].mxu0
  %v211 = vadd.f32 %v139, %v210
  %v212 = vpop.f32.mrb[0].mxu0
  %213 = vdwg.mxu0
  %vm214 = vcmask 1041408
  %vm215 = vcmask 1045508
  %vm216 = vmor %vm214, %vm215
  %v217 = vrot.slane %v20, 6
  %v218 = vrot.slane %v217, 4
  %v219 = vrot.slane %v40, 6
  %v220 = vsel %vm216, %v218, %v219
  %v221 = vrot.slane %v21, 6
  %v222 = vrot.slane %v221, 4
  %v223 = vrot.slane %v41, 6
  %v224 = vsel %vm216, %v222, %v223
  %s225 = scalar_lea.vmem %s1, 256
  %v226 = vld [vmem:[%s225] sm:$0xff]
  %v227 = vld [vmem:[%s225 + $0x8] sm:$0xff]
  %v228 = vld [vmem:[%s225 + $0x10] sm:$0xff]
  %v229 = vld [vmem:[%s225 + $0x18] sm:$0xff]
  %v230 = vld [vmem:[%s225 + $0x20] sm:$0xff]
  %v231 = vld [vmem:[%s225 + $0x28] sm:$0xff]
  %v232 = vld [vmem:[%s225 + $0x30] sm:$0xff]
  %v233 = vld [vmem:[%s225 + $0x38] sm:$0xff]
  %v234 = vld [vmem:[%s225 + $0x40] sm:$0xff]
  %v235 = vld [vmem:[%s225 + $0x48] sm:$0xff]
  %v236 = vld [vmem:[%s225 + $0x50] sm:$0xff]
  %v237 = vld [vmem:[%s225 + $0x58] sm:$0xff]
  %v238 = vld [vmem:[%s225 + $0x60] sm:$0xff]
  %v239 = vld [vmem:[%s225 + $0x68] sm:$0xff]
  %v240 = vld [vmem:[%s225 + $0x70] sm:$0xff]
  %v241 = vld [vmem:[%s225 + $0x78] sm:$0xff]
  %v242 = vcombine.low %v220, %v224
  %244 = vmatprep.subr.mxu0 0.0
  %245 = vmatpush1.msra.mxu0 %v226
  %246 = vmatprep.subr.mxu0 0.0
  %247 = vmatpush1.msra.mxu0 %v227
  %248 = vmatprep.subr.mxu0 0.0
  %249 = vmatpush1.msra.mxu0 %v228
  %250 = vmatprep.subr.mxu0 0.0
  %251 = vmatpush1.msra.mxu0 %v229
  %252 = vmatprep.subr.mxu0 0.0
  %253 = vmatpush1.msra.mxu0 %v230
  %254 = vmatprep.subr.mxu0 0.0
  %255 = vmatpush1.msra.mxu0 %v231
  %256 = vmatprep.subr.mxu0 0.0
  %257 = vmatpush1.msra.mxu0 %v232
  %258 = vmatprep.subr.mxu0 0.0
  %259 = vmatpush1.msra.mxu0 %v233
  %260 = vmatprep.subr.mxu0 0.0
  %261 = vmatpush1.msra.mxu0 %v234
  %262 = vmatprep.subr.mxu0 0.0
  %263 = vmatpush1.msra.mxu0 %v235
  %264 = vmatprep.subr.mxu0 0.0
  %265 = vmatpush1.msra.mxu0 %v236
  %266 = vmatprep.subr.mxu0 0.0
  %267 = vmatpush1.msra.mxu0 %v237
  %268 = vmatprep.subr.mxu0 0.0
  %269 = vmatpush1.msra.mxu0 %v238
  %270 = vmatprep.subr.mxu0 0.0
  %271 = vmatpush1.msra.mxu0 %v239
  %272 = vmatprep.subr.mxu0 0.0
  %273 = vmatpush1.msra.mxu0 %v240
  %274 = vmatprep.subr.mxu0 0.0
  %275 = vmatpush1.msra.mxu0 %v241
  %276 = vmatprep.subr.mxu0 0.0
  %277 = vmatpush1.msra.mxu0 0.0
  %278 = vmatprep.subr.mxu0 0.0
  %279 = vmatpush1.msra.mxu0 0.0
  %280 = vmatprep.subr.mxu0 0.0
  %281 = vmatpush1.msra.mxu0 0.0
  %282 = vmatprep.subr.mxu0 0.0
  %283 = vmatpush1.msra.mxu0 0.0
  %284 = vmatprep.subr.mxu0 0.0
  %285 = vmatpush1.msra.mxu0 0.0
  %286 = vmatprep.subr.mxu0 0.0
  %287 = vmatpush1.msra.mxu0 0.0
  %288 = vmatprep.subr.mxu0 0.0
  %289 = vmatpush1.msra.mxu0 0.0
  %290 = vmatprep.subr.mxu0 0.0
  %291 = vmatpush1.msra.mxu0 0.0
  %292 = vmatprep.subr.mxu0 0.0
  %293 = vmatpush1.msra.mxu0 0.0
  %294 = vmatprep.subr.mxu0 0.0
  %295 = vmatpush1.msra.mxu0 0.0
  %296 = vmatprep.subr.mxu0 0.0
  %297 = vmatpush1.msra.mxu0 0.0
  %298 = vmatprep.subr.mxu0 0.0
  %299 = vmatpush1.msra.mxu0 0.0
  %300 = vmatprep.subr.mxu0 0.0
  %301 = vmatpush1.msra.mxu0 0.0
  %302 = vmatprep.subr.mxu0 0.0
  %303 = vmatpush1.msra.mxu0 0.0
  %304 = vmatprep.subr.mxu0 0.0
  %305 = vmatpush1.msra.mxu0 0.0
  %306 = vmatprep.subr.mxu0 0.0
  %307 = vmatpush1.msra.mxu0 0.0
  %308 = vmatprep.mubr.f32.mxu0 0.0
  %309 = vmatmul.mubr.f32.gmra.mrb[0].mxu0 %v242
  %v310 = vpop.f32.mrb[0].mxu0
  %v311 = vadd.f32 0.0, %v310
  %v312 = vpop.f32.mrb[0].mxu0
  %313 = vdwg.mxu0
  %v314 = vadd.f32 %v211, %v311
  %v315 = vld [vmem:[%s2] sm:$0x1]
  %v317 = vlaneseq
  %v318 = vshrl.u32 %v317, 7
  %v319 = vsub.s32 0, %v318
  %v320 = vrot.slane %v315, %v319
  %v322 = vadd.f32 %v314, %v320
  %v323 = vrot.slane %v322, 4
  %v324 = vadd.f32 %v322, %v323
  %v325 = vrot.slane %v324, 2
  %v326 = vadd.f32 %v324, %v325
  %v327 = vrot.slane %v326, 1
  %v328 = vadd.f32 %v326, %v327
  %v329 = vrcp.pop 8.0
  %v330 = vmul.f32 %v328, %v329
  %v331 = vsub.f32 %v322, %v330
  %v332 = vmul.f32 %v331, %v331
  %v333 = vrot.slane %v332, 4
  %v334 = vadd.f32 %v332, %v333
  %v335 = vrot.slane %v334, 2
  %v336 = vadd.f32 %v334, %v335
  %v337 = vrot.slane %v336, 1
  %v338 = vadd.f32 %v336, %v337
  %v339 = vmul.f32 %v338, %v329
  %v340 = vadd.f32 %v339, 1e-05
  %v341 = vrsqrt.pop %v340
  %v342 = vmul.f32 %v331, %v341
  %v343 = vld [vmem:[%s3] sm:$0x1]
  %v345 = vlaneseq
  %v346 = vshrl.u32 %v345, 7
  %v347 = vsub.s32 0, %v346
  %v348 = vrot.slane %v343, %v347
  %v350 = vmul.f32 %v342, %v348
  %v351 = vld [vmem:[%s4] sm:$0x1]
  %v353 = vlaneseq
  %v354 = vshrl.u32 %v353, 7
  %v355 = vsub.s32 0, %v354
  %v356 = vrot.slane %v351, %v355
  %v358 = vadd.f32 %v350, %v356
  %v359 = vmax.f32 %v358, 0.0
  %v361 = vcombine.high %v359, %v359
  %363 = vst [vmem:[%s5] sm:$0xf] %v359
  %364 = vst [vmem:[%s5 + $0x4] sm:$0xf] %v361
  // Predicated region
  $region22: #{_lambda_.31} parent=0 // pred_check
    _
  $region23: #{_lambda_.31} parent=0 // pred_check_branch
    %366 = sbr.rel (0) target = $region25
  $region24: #{_lambda_.31} parent=0 // pred_region
    _
  $region25: #{_lambda_.31} parent=0 // pred_fallthru
    _
  // Predicated region
  $region26: #{_lambda_.31} parent=0 // pred_check
    _
  $region27: #{_lambda_.31} parent=0 // pred_check_branch
    %368 = sbr.rel (0) target = $region29
  $region28: #{_lambda_.31} parent=0 // pred_region
    _
  $region29: #{_lambda_.31} parent=0 // pred_fallthru
    _

// kernel: _lambda_.30
$region0: #{_lambda_.30}
  #allocation0 [shape = 'u32[]', space=smem, size = 0x4, offset = 0x4, fixed_abs, tag = 'smem constant byte address 0x4 - core index']
  #allocation1 [shape = 'u32[144,128]{1,0:T(1,128)}', space=vmem, size = 0x12000, scoped, tag = 'internal scratch']
  %s0 = inlined_call_operand.vmem [shape: f32[2,6,128], index: 0, kind: input, shape index: {}]
  %s1 = inlined_call_operand.vmem [shape: f32[3,128,128], index: 1, kind: input, shape index: {}]
  %s2 = inlined_call_operand.vmem [shape: f32[1,128], index: 2, kind: input, shape index: {}]
  %s3 = inlined_call_operand.vmem [shape: f32[1,128], index: 3, kind: input, shape index: {}]
  %s4 = inlined_call_operand.vmem [shape: f32[1,128], index: 4, kind: input, shape index: {}]
  %s5 = inlined_call_operand.vmem [shape: f32[2,4,128], index: 5, kind: input, shape index: {}]
  %s6 = inlined_call_operand.vmem [shape: f32[2,4,128], index: 6, kind: output, shape index: {}]
  %s7 = sld [smem:[#allocation0]]
  $region34: #{_lambda_.30} parent=0
    _
  %s9 = ssub.s32 1, %s7
  %s10 = scalar_select 0, %s9, %s7
  // Predicated region
  $region2: #{_lambda_.30} parent=0 // pred_check
    _
  $region3: #{_lambda_.30} parent=0 // pred_check_branch
    %12 = sbr.rel (0) target = $region5
  $region4: #{_lambda_.30} parent=0 // pred_region
    _
  $region5: #{_lambda_.30} parent=0 // pred_fallthru
    _
  // Predicated region
  $region6: #{_lambda_.30} parent=0 // pred_check
    _
  $region7: #{_lambda_.30} parent=0 // pred_check_branch
    %14 = sbr.rel (0) target = $region9
  $region8: #{_lambda_.30} parent=0 // pred_region
    _
  $region9: #{_lambda_.30} parent=0 // pred_fallthru
    _
  // Predicated region
  $region10: #{_lambda_.30} parent=0 // pred_check
    _
  $region11: #{_lambda_.30} parent=0 // pred_check_branch
    %16 = sbr.rel (0) target = $region13
  $region12: #{_lambda_.30} parent=0 // pred_region
    _
  $region13: #{_lambda_.30} parent=0 // pred_fallthru
    _
  // Predicated region
  $region14: #{_lambda_.30} parent=0 // pred_check
    _
  $region15: #{_lambda_.30} parent=0 // pred_check_branch
    %18 = sbr.rel (0) target = $region17
  $region16: #{_lambda_.30} parent=0 // pred_region
    _
  $region17: #{_lambda_.30} parent=0 // pred_fallthru
    _
  // Predicated region
  $region18: #{_lambda_.30} parent=0 // pred_check
    _
  $region19: #{_lambda_.30} parent=0 // pred_check_branch
    %20 = sbr.rel (0) target = $region21
  $region20: #{_lambda_.30} parent=0 // pred_region
    _
  $region21: #{_lambda_.30} parent=0 // pred_fallthru
    _
  // Predicated region
  $region22: #{_lambda_.30} parent=0 // pred_check
    _
  $region23: #{_lambda_.30} parent=0 // pred_check_branch
    %22 = sbr.rel (0) target = $region25
  $region24: #{_lambda_.30} parent=0 // pred_region
    _
  $region25: #{_lambda_.30} parent=0 // pred_fallthru
    _
  %v23 = vld [vmem:[%s0] sm:$0x3f]
  %v24 = vld [vmem:[%s0 + $0x8] sm:$0x3f]
  %v25 = vld [vmem:[%s1] sm:$0xff]
  %v26 = vld [vmem:[%s1 + $0x8] sm:$0xff]
  %v27 = vld [vmem:[%s1 + $0x10] sm:$0xff]
  %v28 = vld [vmem:[%s1 + $0x18] sm:$0xff]
  %v29 = vld [vmem:[%s1 + $0x20] sm:$0xff]
  %v30 = vld [vmem:[%s1 + $0x28] sm:$0xff]
  %v31 = vld [vmem:[%s1 + $0x30] sm:$0xff]
  %v32 = vld [vmem:[%s1 + $0x38] sm:$0xff]
  %v33 = vld [vmem:[%s1 + $0x40] sm:$0xff]
  %v34 = vld [vmem:[%s1 + $0x48] sm:$0xff]
  %v35 = vld [vmem:[%s1 + $0x50] sm:$0xff]
  %v36 = vld [vmem:[%s1 + $0x58] sm:$0xff]
  %v37 = vld [vmem:[%s1 + $0x60] sm:$0xff]
  %v38 = vld [vmem:[%s1 + $0x68] sm:$0xff]
  %v39 = vld [vmem:[%s1 + $0x70] sm:$0xff]
  %v40 = vld [vmem:[%s1 + $0x78] sm:$0xff]
  %v43 = vcombine.high %v23, %v23
  %v44 = vcombine.high %v24, %v24
  %vm45 = vcmask 1042432
  %vm46 = vcmask 1046532
  %vm47 = vmor %vm45, %vm46
  %v48 = vrot.slane %v23, 5
  %v49 = vrot.slane %v48, 4
  %v50 = vrot.slane %v43, 5
  %v51 = vsel %vm47, %v49, %v50
  %v52 = vrot.slane %v24, 5
  %v53 = vrot.slane %v52, 4
  %v54 = vrot.slane %v44, 5
  %v55 = vsel %vm47, %v53, %v54
  %s56 = scalar_lea.vmem %s1, 128
  %v57 = vld [vmem:[%s56] sm:$0xff]
  %v58 = vld [vmem:[%s56 + $0x8] sm:$0xff]
  %v59 = vld [vmem:[%s56 + $0x10] sm:$0xff]
  %v60 = vld [vmem:[%s56 + $0x18] sm:$0xff]
  %v61 = vld [vmem:[%s56 + $0x20] sm:$0xff]
  %v62 = vld [vmem:[%s56 + $0x28] sm:$0xff]
  %v63 = vld [vmem:[%s56 + $0x30] sm:$0xff]
  %v64 = vld [vmem:[%s56 + $0x38] sm:$0xff]
  %v65 = vld [vmem:[%s56 + $0x40] sm:$0xff]
  %v66 = vld [vmem:[%s56 + $0x48] sm:$0xff]
  %v67 = vld [vmem:[%s56 + $0x50] sm:$0xff]
  %v68 = vld [vmem:[%s56 + $0x58] sm:$0xff]
  %v69 = vld [vmem:[%s56 + $0x60] sm:$0xff]
  %v70 = vld [vmem:[%s56 + $0x68] sm:$0xff]
  %v71 = vld [vmem:[%s56 + $0x70] sm:$0xff]
  %v72 = vld [vmem:[%s56 + $0x78] sm:$0xff]
  %v73 = vcombine.low %v51, %v55
  %75 = vmatprep.subr.mxu0 0.0
  %76 = vmatpush1.msra.mxu0 %v57
  %77 = vmatprep.subr.mxu0 0.0
  %78 = vmatpush1.msra.mxu0 %v58
  %79 = vmatprep.subr.mxu0 0.0
  %80 = vmatpush1.msra.mxu0 %v59
  %81 = vmatprep.subr.mxu0 0.0
  %82 = vmatpush1.msra.mxu0 %v60
  %83 = vmatprep.subr.mxu0 0.0
  %84 = vmatpush1.msra.mxu0 %v61
  %85 = vmatprep.subr.mxu0 0.0
  %86 = vmatpush1.msra.mxu0 %v62
  %87 = vmatprep.subr.mxu0 0.0
  %88 = vmatpush1.msra.mxu0 %v63
  %89 = vmatprep.subr.mxu0 0.0
  %90 = vmatpush1.msra.mxu0 %v64
  %91 = vmatprep.subr.mxu0 0.0
  %92 = vmatpush1.msra.mxu0 %v65
  %93 = vmatprep.subr.mxu0 0.0
  %94 = vmatpush1.msra.mxu0 %v66
  %95 = vmatprep.subr.mxu0 0.0
  %96 = vmatpush1.msra.mxu0 %v67
  %97 = vmatprep.subr.mxu0 0.0
  %98 = vmatpush1.msra.mxu0 %v68
  %99 = vmatprep.subr.mxu0 0.0
  %100 = vmatpush1.msra.mxu0 %v69
  %101 = vmatprep.subr.mxu0 0.0
  %102 = vmatpush1.msra.mxu0 %v70
  %103 = vmatprep.subr.mxu0 0.0
  %104 = vmatpush1.msra.mxu0 %v71
  %105 = vmatprep.subr.mxu0 0.0
  %106 = vmatpush1.msra.mxu0 %v72
  %107 = vmatprep.subr.mxu0 0.0
  %108 = vmatpush1.msra.mxu0 0.0
  %109 = vmatprep.subr.mxu0 0.0
  %110 = vmatpush1.msra.mxu0 0.0
  %111 = vmatprep.subr.mxu0 0.0
  %112 = vmatpush1.msra.mxu0 0.0
  %113 = vmatprep.subr.mxu0 0.0
  %114 = vmatpush1.msra.mxu0 0.0
  %115 = vmatprep.subr.mxu0 0.0
  %116 = vmatpush1.msra.mxu0 0.0
  %117 = vmatprep.subr.mxu0 0.0
  %118 = vmatpush1.msra.mxu0 0.0
  %119 = vmatprep.subr.mxu0 0.0
  %120 = vmatpush1.msra.mxu0 0.0
  %121 = vmatprep.subr.mxu0 0.0
  %122 = vmatpush1.msra.mxu0 0.0
  %123 = vmatprep.subr.mxu0 0.0
  %124 = vmatpush1.msra.mxu0 0.0
  %125 = vmatprep.subr.mxu0 0.0
  %126 = vmatpush1.msra.mxu0 0.0
  %127 = vmatprep.subr.mxu0 0.0
  %128 = vmatpush1.msra.mxu0 0.0
  %129 = vmatprep.subr.mxu0 0.0
  %130 = vmatpush1.msra.mxu0 0.0
  %131 = vmatprep.subr.mxu0 0.0
  %132 = vmatpush1.msra.mxu0 0.0
  %133 = vmatprep.subr.mxu0 0.0
  %134 = vmatpush1.msra.mxu0 0.0
  %135 = vmatprep.subr.mxu0 0.0
  %136 = vmatpush1.msra.mxu0 0.0
  %137 = vmatprep.subr.mxu0 0.0
  %138 = vmatpush1.msra.mxu0 0.0
  %139 = vmatprep.mubr.f32.mxu0 0.0
  %140 = vmatmul.mubr.f32.gmra.mrb[0].mxu0 %v73
  %v141 = vpop.f32.mrb[0].mxu0
  %v142 = vadd.f32 0.0, %v141
  %v143 = vpop.f32.mrb[0].mxu0
  %144 = vdwg.mxu0
  %v145 = vcombine.low %v23, %v24
  %147 = vmatprep.subr.mxu0 0.0
  %148 = vmatpush1.msra.mxu0 %v25
  %149 = vmatprep.subr.mxu0 0.0
  %150 = vmatpush1.msra.mxu0 %v26
  %151 = vmatprep.subr.mxu0 0.0
  %152 = vmatpush1.msra.mxu0 %v27
  %153 = vmatprep.subr.mxu0 0.0
  %154 = vmatpush1.msra.mxu0 %v28
  %155 = vmatprep.subr.mxu0 0.0
  %156 = vmatpush1.msra.mxu0 %v29
  %157 = vmatprep.subr.mxu0 0.0
  %158 = vmatpush1.msra.mxu0 %v30
  %159 = vmatprep.subr.mxu0 0.0
  %160 = vmatpush1.msra.mxu0 %v31
  %161 = vmatprep.subr.mxu0 0.0
  %162 = vmatpush1.msra.mxu0 %v32
  %163 = vmatprep.subr.mxu0 0.0
  %164 = vmatpush1.msra.mxu0 %v33
  %165 = vmatprep.subr.mxu0 0.0
  %166 = vmatpush1.msra.mxu0 %v34
  %167 = vmatprep.subr.mxu0 0.0
  %168 = vmatpush1.msra.mxu0 %v35
  %169 = vmatprep.subr.mxu0 0.0
  %170 = vmatpush1.msra.mxu0 %v36
  %171 = vmatprep.subr.mxu0 0.0
  %172 = vmatpush1.msra.mxu0 %v37
  %173 = vmatprep.subr.mxu0 0.0
  %174 = vmatpush1.msra.mxu0 %v38
  %175 = vmatprep.subr.mxu0 0.0
  %176 = vmatpush1.msra.mxu0 %v39
  %177 = vmatprep.subr.mxu0 0.0
  %178 = vmatpush1.msra.mxu0 %v40
  %179 = vmatprep.subr.mxu0 0.0
  %180 = vmatpush1.msra.mxu0 0.0
  %181 = vmatprep.subr.mxu0 0.0
  %182 = vmatpush1.msra.mxu0 0.0
  %183 = vmatprep.subr.mxu0 0.0
  %184 = vmatpush1.msra.mxu0 0.0
  %185 = vmatprep.subr.mxu0 0.0
  %186 = vmatpush1.msra.mxu0 0.0
  %187 = vmatprep.subr.mxu0 0.0
  %188 = vmatpush1.msra.mxu0 0.0
  %189 = vmatprep.subr.mxu0 0.0
  %190 = vmatpush1.msra.mxu0 0.0
  %191 = vmatprep.subr.mxu0 0.0
  %192 = vmatpush1.msra.mxu0 0.0
  %193 = vmatprep.subr.mxu0 0.0
  %194 = vmatpush1.msra.mxu0 0.0
  %195 = vmatprep.subr.mxu0 0.0
  %196 = vmatpush1.msra.mxu0 0.0
  %197 = vmatprep.subr.mxu0 0.0
  %198 = vmatpush1.msra.mxu0 0.0
  %199 = vmatprep.subr.mxu0 0.0
  %200 = vmatpush1.msra.mxu0 0.0
  %201 = vmatprep.subr.mxu0 0.0
  %202 = vmatpush1.msra.mxu0 0.0
  %203 = vmatprep.subr.mxu0 0.0
  %204 = vmatpush1.msra.mxu0 0.0
  %205 = vmatprep.subr.mxu0 0.0
  %206 = vmatpush1.msra.mxu0 0.0
  %207 = vmatprep.subr.mxu0 0.0
  %208 = vmatpush1.msra.mxu0 0.0
  %209 = vmatprep.subr.mxu0 0.0
  %210 = vmatpush1.msra.mxu0 0.0
  %211 = vmatprep.mubr.f32.mxu0 0.0
  %212 = vmatmul.mubr.f32.gmra.mrb[0].mxu0 %v145
  %v213 = vpop.f32.mrb[0].mxu0
  %v214 = vadd.f32 %v142, %v213
  %v215 = vpop.f32.mrb[0].mxu0
  %216 = vdwg.mxu0
  %vm217 = vcmask 1041408
  %vm218 = vcmask 1045508
  %vm219 = vmor %vm217, %vm218
  %v220 = vrot.slane %v23, 6
  %v221 = vrot.slane %v220, 4
  %v222 = vrot.slane %v43, 6
  %v223 = vsel %vm219, %v221, %v222
  %v224 = vrot.slane %v24, 6
  %v225 = vrot.slane %v224, 4
  %v226 = vrot.slane %v44, 6
  %v227 = vsel %vm219, %v225, %v226
  %s228 = scalar_lea.vmem %s1, 256
  %v229 = vld [vmem:[%s228] sm:$0xff]
  %v230 = vld [vmem:[%s228 + $0x8] sm:$0xff]
  %v231 = vld [vmem:[%s228 + $0x10] sm:$0xff]
  %v232 = vld [vmem:[%s228 + $0x18] sm:$0xff]
  %v233 = vld [vmem:[%s228 + $0x20] sm:$0xff]
  %v234 = vld [vmem:[%s228 + $0x28] sm:$0xff]
  %v235 = vld [vmem:[%s228 + $0x30] sm:$0xff]
  %v236 = vld [vmem:[%s228 + $0x38] sm:$0xff]
  %v237 = vld [vmem:[%s228 + $0x40] sm:$0xff]
  %v238 = vld [vmem:[%s228 + $0x48] sm:$0xff]
  %v239 = vld [vmem:[%s228 + $0x50] sm:$0xff]
  %v240 = vld [vmem:[%s228 + $0x58] sm:$0xff]
  %v241 = vld [vmem:[%s228 + $0x60] sm:$0xff]
  %v242 = vld [vmem:[%s228 + $0x68] sm:$0xff]
  %v243 = vld [vmem:[%s228 + $0x70] sm:$0xff]
  %v244 = vld [vmem:[%s228 + $0x78] sm:$0xff]
  %v245 = vcombine.low %v223, %v227
  %247 = vmatprep.subr.mxu0 0.0
  %248 = vmatpush1.msra.mxu0 %v229
  %249 = vmatprep.subr.mxu0 0.0
  %250 = vmatpush1.msra.mxu0 %v230
  %251 = vmatprep.subr.mxu0 0.0
  %252 = vmatpush1.msra.mxu0 %v231
  %253 = vmatprep.subr.mxu0 0.0
  %254 = vmatpush1.msra.mxu0 %v232
  %255 = vmatprep.subr.mxu0 0.0
  %256 = vmatpush1.msra.mxu0 %v233
  %257 = vmatprep.subr.mxu0 0.0
  %258 = vmatpush1.msra.mxu0 %v234
  %259 = vmatprep.subr.mxu0 0.0
  %260 = vmatpush1.msra.mxu0 %v235
  %261 = vmatprep.subr.mxu0 0.0
  %262 = vmatpush1.msra.mxu0 %v236
  %263 = vmatprep.subr.mxu0 0.0
  %264 = vmatpush1.msra.mxu0 %v237
  %265 = vmatprep.subr.mxu0 0.0
  %266 = vmatpush1.msra.mxu0 %v238
  %267 = vmatprep.subr.mxu0 0.0
  %268 = vmatpush1.msra.mxu0 %v239
  %269 = vmatprep.subr.mxu0 0.0
  %270 = vmatpush1.msra.mxu0 %v240
  %271 = vmatprep.subr.mxu0 0.0
  %272 = vmatpush1.msra.mxu0 %v241
  %273 = vmatprep.subr.mxu0 0.0
  %274 = vmatpush1.msra.mxu0 %v242
  %275 = vmatprep.subr.mxu0 0.0
  %276 = vmatpush1.msra.mxu0 %v243
  %277 = vmatprep.subr.mxu0 0.0
  %278 = vmatpush1.msra.mxu0 %v244
  %279 = vmatprep.subr.mxu0 0.0
  %280 = vmatpush1.msra.mxu0 0.0
  %281 = vmatprep.subr.mxu0 0.0
  %282 = vmatpush1.msra.mxu0 0.0
  %283 = vmatprep.subr.mxu0 0.0
  %284 = vmatpush1.msra.mxu0 0.0
  %285 = vmatprep.subr.mxu0 0.0
  %286 = vmatpush1.msra.mxu0 0.0
  %287 = vmatprep.subr.mxu0 0.0
  %288 = vmatpush1.msra.mxu0 0.0
  %289 = vmatprep.subr.mxu0 0.0
  %290 = vmatpush1.msra.mxu0 0.0
  %291 = vmatprep.subr.mxu0 0.0
  %292 = vmatpush1.msra.mxu0 0.0
  %293 = vmatprep.subr.mxu0 0.0
  %294 = vmatpush1.msra.mxu0 0.0
  %295 = vmatprep.subr.mxu0 0.0
  %296 = vmatpush1.msra.mxu0 0.0
  %297 = vmatprep.subr.mxu0 0.0
  %298 = vmatpush1.msra.mxu0 0.0
  %299 = vmatprep.subr.mxu0 0.0
  %300 = vmatpush1.msra.mxu0 0.0
  %301 = vmatprep.subr.mxu0 0.0
  %302 = vmatpush1.msra.mxu0 0.0
  %303 = vmatprep.subr.mxu0 0.0
  %304 = vmatpush1.msra.mxu0 0.0
  %305 = vmatprep.subr.mxu0 0.0
  %306 = vmatpush1.msra.mxu0 0.0
  %307 = vmatprep.subr.mxu0 0.0
  %308 = vmatpush1.msra.mxu0 0.0
  %309 = vmatprep.subr.mxu0 0.0
  %310 = vmatpush1.msra.mxu0 0.0
  %311 = vmatprep.mubr.f32.mxu0 0.0
  %312 = vmatmul.mubr.f32.gmra.mrb[0].mxu0 %v245
  %v313 = vpop.f32.mrb[0].mxu0
  %v314 = vadd.f32 0.0, %v313
  %v315 = vpop.f32.mrb[0].mxu0
  %316 = vdwg.mxu0
  %v317 = vadd.f32 %v214, %v314
  %v318 = vld [vmem:[%s2] sm:$0x1]
  %v320 = vlaneseq
  %v321 = vshrl.u32 %v320, 7
  %v322 = vsub.s32 0, %v321
  %v323 = vrot.slane %v318, %v322
  %v325 = vadd.f32 %v317, %v323
  %v326 = vrot.slane %v325, 4
  %v327 = vadd.f32 %v325, %v326
  %v328 = vrot.slane %v327, 2
  %v329 = vadd.f32 %v327, %v328
  %v330 = vrot.slane %v329, 1
  %v331 = vadd.f32 %v329, %v330
  %v332 = vrcp.pop 8.0
  %v333 = vmul.f32 %v331, %v332
  %v334 = vsub.f32 %v325, %v333
  %v335 = vmul.f32 %v334, %v334
  %v336 = vrot.slane %v335, 4
  %v337 = vadd.f32 %v335, %v336
  %v338 = vrot.slane %v337, 2
  %v339 = vadd.f32 %v337, %v338
  %v340 = vrot.slane %v339, 1
  %v341 = vadd.f32 %v339, %v340
  %v342 = vmul.f32 %v341, %v332
  %v343 = vadd.f32 %v342, 1e-05
  %v344 = vrsqrt.pop %v343
  %v345 = vmul.f32 %v334, %v344
  %v346 = vld [vmem:[%s3] sm:$0x1]
  %v348 = vlaneseq
  %v349 = vshrl.u32 %v348, 7
  %v350 = vsub.s32 0, %v349
  %v351 = vrot.slane %v346, %v350
  %v353 = vmul.f32 %v345, %v351
  %v354 = vld [vmem:[%s4] sm:$0x1]
  %v356 = vlaneseq
  %v357 = vshrl.u32 %v356, 7
  %v358 = vsub.s32 0, %v357
  %v359 = vrot.slane %v354, %v358
  %v361 = vadd.f32 %v353, %v359
  %v362 = vld [vmem:[%s5] sm:$0xf]
  %v363 = vld [vmem:[%s5 + $0x4] sm:$0xf]
  %v366 = vcombine.low %v362, %v363
  %v368 = vadd.f32 %v361, %v366
  %v369 = vmax.f32 %v368, 0.0
  %v371 = vcombine.high %v369, %v369
  %373 = vst [vmem:[%s6] sm:$0xf] %v369
  %374 = vst [vmem:[%s6 + $0x4] sm:$0xf] %v371
  // Predicated region
  $region26: #{_lambda_.30} parent=0 // pred_check
    _
  $region27: #{_lambda_.30} parent=0 // pred_check_branch
    %376 = sbr.rel (0) target = $region29
  $region28: #{_lambda_.30} parent=0 // pred_region
    _
  $region29: #{_lambda_.30} parent=0 // pred_fallthru
    _
  // Predicated region
  $region30: #{_lambda_.30} parent=0 // pred_check
    _
  $region31: #{_lambda_.30} parent=0 // pred_check_branch
    %378 = sbr.rel (0) target = $region33
  $region32: #{_lambda_.30} parent=0 // pred_region
    _
  $region33: #{_lambda_.30} parent=0 // pred_fallthru
    _

// kernel: _lambda_.33
$region0: #{_lambda_.33}
  #allocation0 [shape = 'u32[]', space=smem, size = 0x4, offset = 0x4, fixed_abs, tag = 'smem constant byte address 0x4 - core index']
  #allocation1 [shape = 'u32[144,128]{1,0:T(1,128)}', space=vmem, size = 0x12000, scoped, tag = 'internal scratch']
  %s0 = inlined_call_operand.vmem [shape: f32[2,2,128], index: 0, kind: input, shape index: {}]
  %s1 = inlined_call_operand.vmem [shape: f32[1,128,128], index: 1, kind: input, shape index: {}]
  %s2 = inlined_call_operand.vmem [shape: f32[1,128], index: 2, kind: input, shape index: {}]
  %s3 = inlined_call_operand.vmem [shape: f32[1,128], index: 3, kind: input, shape index: {}]
  %s4 = inlined_call_operand.vmem [shape: f32[1,128], index: 4, kind: input, shape index: {}]
  %s5 = inlined_call_operand.vmem [shape: f32[2,2,128], index: 5, kind: output, shape index: {}]
  %s6 = sld [smem:[#allocation0]]
  $region30: #{_lambda_.33} parent=0
    _
  %s8 = ssub.s32 1, %s6
  %s9 = scalar_select 0, %s8, %s6
  // Predicated region
  $region2: #{_lambda_.33} parent=0 // pred_check
    _
  $region3: #{_lambda_.33} parent=0 // pred_check_branch
    %11 = sbr.rel (0) target = $region5
  $region4: #{_lambda_.33} parent=0 // pred_region
    _
  $region5: #{_lambda_.33} parent=0 // pred_fallthru
    _
  // Predicated region
  $region6: #{_lambda_.33} parent=0 // pred_check
    _
  $region7: #{_lambda_.33} parent=0 // pred_check_branch
    %13 = sbr.rel (0) target = $region9
  $region8: #{_lambda_.33} parent=0 // pred_region
    _
  $region9: #{_lambda_.33} parent=0 // pred_fallthru
    _
  // Predicated region
  $region10: #{_lambda_.33} parent=0 // pred_check
    _
  $region11: #{_lambda_.33} parent=0 // pred_check_branch
    %15 = sbr.rel (0) target = $region13
  $region12: #{_lambda_.33} parent=0 // pred_region
    _
  $region13: #{_lambda_.33} parent=0 // pred_fallthru
    _
  // Predicated region
  $region14: #{_lambda_.33} parent=0 // pred_check
    _
  $region15: #{_lambda_.33} parent=0 // pred_check_branch
    %17 = sbr.rel (0) target = $region17
  $region16: #{_lambda_.33} parent=0 // pred_region
    _
  $region17: #{_lambda_.33} parent=0 // pred_fallthru
    _
  // Predicated region
  $region18: #{_lambda_.33} parent=0 // pred_check
    _
  $region19: #{_lambda_.33} parent=0 // pred_check_branch
    %19 = sbr.rel (0) target = $region21
  $region20: #{_lambda_.33} parent=0 // pred_region
    _
  $region21: #{_lambda_.33} parent=0 // pred_fallthru
    _
  %v20 = vld [vmem:[%s0] sm:$0x3]
  %v21 = vld [vmem:[%s0 + $0x2] sm:$0x3]
  %v22 = vld [vmem:[%s1] sm:$0xff]
  %v23 = vld [vmem:[%s1 + $0x8] sm:$0xff]
  %v24 = vld [vmem:[%s1 + $0x10] sm:$0xff]
  %v25 = vld [vmem:[%s1 + $0x18] sm:$0xff]
  %v26 = vld [vmem:[%s1 + $0x20] sm:$0xff]
  %v27 = vld [vmem:[%s1 + $0x28] sm:$0xff]
  %v28 = vld [vmem:[%s1 + $0x30] sm:$0xff]
  %v29 = vld [vmem:[%s1 + $0x38] sm:$0xff]
  %v30 = vld [vmem:[%s1 + $0x40] sm:$0xff]
  %v31 = vld [vmem:[%s1 + $0x48] sm:$0xff]
  %v32 = vld [vmem:[%s1 + $0x50] sm:$0xff]
  %v33 = vld [vmem:[%s1 + $0x58] sm:$0xff]
  %v34 = vld [vmem:[%s1 + $0x60] sm:$0xff]
  %v35 = vld [vmem:[%s1 + $0x68] sm:$0xff]
  %v36 = vld [vmem:[%s1 + $0x70] sm:$0xff]
  %v37 = vld [vmem:[%s1 + $0x78] sm:$0xff]
  %v38 = vld [vmem:[%s2] sm:$0x1]
  %v40 = vlaneseq
  %v41 = vshrl.u32 %v40, 7
  %v42 = vsub.s32 0, %v41
  %v43 = vrot.slane %v38, %v42
  %v47 = vcombine.low %v20, %v21
  %v49 = vunpack.c.l.s4 1983009808
  %v50 = vunpack.c.0.s8 %v49
  %v51 = vlaneseq
  %v52 = vshrl.u32 %v51, 7
  %v53 = vsub.s32 %v50, %v52
  %v54 = vrot.slane %v47, %v53
  %56 = vmatprep.subr.mxu0 0.0
  %57 = vmatpush1.msra.mxu0 %v22
  %58 = vmatprep.subr.mxu0 0.0
  %59 = vmatpush1.msra.mxu0 %v23
  %60 = vmatprep.subr.mxu0 0.0
  %61 = vmatpush1.msra.mxu0 %v24
  %62 = vmatprep.subr.mxu0 0.0
  %63 = vmatpush1.msra.mxu0 %v25
  %64 = vmatprep.subr.mxu0 0.0
  %65 = vmatpush1.msra.mxu0 %v26
  %66 = vmatprep.subr.mxu0 0.0
  %67 = vmatpush1.msra.mxu0 %v27
  %68 = vmatprep.subr.mxu0 0.0
  %69 = vmatpush1.msra.mxu0 %v28
  %70 = vmatprep.subr.mxu0 0.0
  %71 = vmatpush1.msra.mxu0 %v29
  %72 = vmatprep.subr.mxu0 0.0
  %73 = vmatpush1.msra.mxu0 %v30
  %74 = vmatprep.subr.mxu0 0.0
  %75 = vmatpush1.msra.mxu0 %v31
  %76 = vmatprep.subr.mxu0 0.0
  %77 = vmatpush1.msra.mxu0 %v32
  %78 = vmatprep.subr.mxu0 0.0
  %79 = vmatpush1.msra.mxu0 %v33
  %80 = vmatprep.subr.mxu0 0.0
  %81 = vmatpush1.msra.mxu0 %v34
  %82 = vmatprep.subr.mxu0 0.0
  %83 = vmatpush1.msra.mxu0 %v35
  %84 = vmatprep.subr.mxu0 0.0
  %85 = vmatpush1.msra.mxu0 %v36
  %86 = vmatprep.subr.mxu0 0.0
  %87 = vmatpush1.msra.mxu0 %v37
  %88 = vmatprep.subr.mxu0 0.0
  %89 = vmatpush1.msra.mxu0 0.0
  %90 = vmatprep.subr.mxu0 0.0
  %91 = vmatpush1.msra.mxu0 0.0
  %92 = vmatprep.subr.mxu0 0.0
  %93 = vmatpush1.msra.mxu0 0.0
  %94 = vmatprep.subr.mxu0 0.0
  %95 = vmatpush1.msra.mxu0 0.0
  %96 = vmatprep.subr.mxu0 0.0
  %97 = vmatpush1.msra.mxu0 0.0
  %98 = vmatprep.subr.mxu0 0.0
  %99 = vmatpush1.msra.mxu0 0.0
  %100 = vmatprep.subr.mxu0 0.0
  %101 = vmatpush1.msra.mxu0 0.0
  %102 = vmatprep.subr.mxu0 0.0
  %103 = vmatpush1.msra.mxu0 0.0
  %104 = vmatprep.subr.mxu0 0.0
  %105 = vmatpush1.msra.mxu0 0.0
  %106 = vmatprep.subr.mxu0 0.0
  %107 = vmatpush1.msra.mxu0 0.0
  %108 = vmatprep.subr.mxu0 0.0
  %109 = vmatpush1.msra.mxu0 0.0
  %110 = vmatprep.subr.mxu0 0.0
  %111 = vmatpush1.msra.mxu0 0.0
  %112 = vmatprep.subr.mxu0 0.0
  %113 = vmatpush1.msra.mxu0 0.0
  %114 = vmatprep.subr.mxu0 0.0
  %115 = vmatpush1.msra.mxu0 0.0
  %116 = vmatprep.subr.mxu0 0.0
  %117 = vmatpush1.msra.mxu0 0.0
  %118 = vmatprep.subr.mxu0 0.0
  %119 = vmatpush1.msra.mxu0 0.0
  %120 = vmatprep.mubr.f32.mxu0 0.0
  %121 = vmatmul.mubr.f32.gmra.mrb[0].mxu0 %v54
  %v122 = vpop.f32.mrb[0].mxu0
  %v123 = vadd.f32 %v43, %v122
  %v124 = vpop.f32.mrb[0].mxu0
  %125 = vdwg.mxu0
  %vm126 = vcmask 1043456
  %v127 = vsel %vm126, %v123, 0.0
  %v128 = vrot.slane %v127, 4
  %v129 = vadd.f32 %v127, %v128
  %v130 = vrot.slane %v129, 2
  %v131 = vadd.f32 %v129, %v130
  %v132 = vrot.slane %v131, 1
  %v133 = vadd.f32 %v131, %v132
  %v134 = vrcp.pop 4.0
  %v135 = vmul.f32 %v133, %v134
  %v136 = vsub.f32 %v123, %v135
  %v137 = vmul.f32 %v136, %v136
  %v138 = vsel %vm126, %v137, 0.0
  %v139 = vrot.slane %v138, 4
  %v140 = vadd.f32 %v138, %v139
  %v141 = vrot.slane %v140, 2
  %v142 = vadd.f32 %v140, %v141
  %v143 = vrot.slane %v142, 1
  %v144 = vadd.f32 %v142, %v143
  %v145 = vmul.f32 %v144, %v134
  %v146 = vadd.f32 %v145, 1e-05
  %v147 = vrsqrt.pop %v146
  %v148 = vmul.f32 %v136, %v147
  %v149 = vld [vmem:[%s3] sm:$0x1]
  %v151 = vlaneseq
  %v152 = vshrl.u32 %v151, 7
  %v153 = vsub.s32 0, %v152
  %v154 = vrot.slane %v149, %v153
  %v156 = vmul.f32 %v148, %v154
  %v157 = vld [vmem:[%s4] sm:$0x1]
  %v159 = vlaneseq
  %v160 = vshrl.u32 %v159, 7
  %v161 = vsub.s32 0, %v160
  %v162 = vrot.slane %v157, %v161
  %v164 = vadd.f32 %v156, %v162
  %v167 = vunpack.c.l.s4 1983009808
  %v168 = vunpack.c.0.s8 %v167
  %v169 = vlaneseq
  %v170 = vshrl.u32 %v169, 7
  %v171 = vsub.s32 %v168, %v170
  %v172 = vrot.slane %v164, %v171
  %v173 = vcombine.high %v172, %v172
  %176 = vst [vmem:[%s5] sm:$0x3] %v172
  %177 = vst [vmem:[%s5 + $0x2] sm:$0x3] %v173
  // Predicated region
  $region22: #{_lambda_.33} parent=0 // pred_check
    _
  $region23: #{_lambda_.33} parent=0 // pred_check_branch
    %179 = sbr.rel (0) target = $region25
  $region24: #{_lambda_.33} parent=0 // pred_region
    _
  $region25: #{_lambda_.33} parent=0 // pred_fallthru
    _
  // Predicated region
  $region26: #{_lambda_.33} parent=0 // pred_check
    _
  $region27: #{_lambda_.33} parent=0 // pred_check_branch
    %181 = sbr.rel (0) target = $region29
  $region28: #{_lambda_.33} parent=0 // pred_region
    _
  $region29: #{_lambda_.33} parent=0 // pred_fallthru
    _

// kernel: _lambda_.34
$region0: #{_lambda_.34}
  #allocation0 [shape = 'u32[]', space=smem, size = 0x4, offset = 0x4, fixed_abs, tag = 'smem constant byte address 0x4 - core index']
  #allocation1 [shape = 'u32[144,128]{1,0:T(1,128)}', space=vmem, size = 0x12000, scoped, tag = 'internal scratch']
  %s0 = inlined_call_operand.vmem [shape: f32[2,3,128], index: 0, kind: input, shape index: {}]
  %s1 = inlined_call_operand.vmem [shape: f32[2,3,128], index: 1, kind: input, shape index: {}]
  %s2 = inlined_call_operand.vmem [shape: f32[3,128,128], index: 2, kind: input, shape index: {}]
  %s3 = inlined_call_operand.vmem [shape: f32[1,128], index: 3, kind: input, shape index: {}]
  %s4 = inlined_call_operand.vmem [shape: f32[1,128], index: 4, kind: input, shape index: {}]
  %s5 = inlined_call_operand.vmem [shape: f32[1,128], index: 5, kind: input, shape index: {}]
  %s6 = inlined_call_operand.vmem [shape: f32[2,2,128], index: 6, kind: output, shape index: {}]
  %s7 = sld [smem:[#allocation0]]
  $region34: #{_lambda_.34} parent=0
    _
  %s9 = ssub.s32 1, %s7
  %s10 = scalar_select 0, %s9, %s7
  // Predicated region
  $region2: #{_lambda_.34} parent=0 // pred_check
    _
  $region3: #{_lambda_.34} parent=0 // pred_check_branch
    %12 = sbr.rel (0) target = $region5
  $region4: #{_lambda_.34} parent=0 // pred_region
    _
  $region5: #{_lambda_.34} parent=0 // pred_fallthru
    _
  // Predicated region
  $region6: #{_lambda_.34} parent=0 // pred_check
    _
  $region7: #{_lambda_.34} parent=0 // pred_check_branch
    %14 = sbr.rel (0) target = $region9
  $region8: #{_lambda_.34} parent=0 // pred_region
    _
  $region9: #{_lambda_.34} parent=0 // pred_fallthru
    _
  // Predicated region
  $region10: #{_lambda_.34} parent=0 // pred_check
    _
  $region11: #{_lambda_.34} parent=0 // pred_check_branch
    %16 = sbr.rel (0) target = $region13
  $region12: #{_lambda_.34} parent=0 // pred_region
    _
  $region13: #{_lambda_.34} parent=0 // pred_fallthru
    _
  // Predicated region
  $region14: #{_lambda_.34} parent=0 // pred_check
    _
  $region15: #{_lambda_.34} parent=0 // pred_check_branch
    %18 = sbr.rel (0) target = $region17
  $region16: #{_lambda_.34} parent=0 // pred_region
    _
  $region17: #{_lambda_.34} parent=0 // pred_fallthru
    _
  // Predicated region
  $region18: #{_lambda_.34} parent=0 // pred_check
    _
  $region19: #{_lambda_.34} parent=0 // pred_check_branch
    %20 = sbr.rel (0) target = $region21
  $region20: #{_lambda_.34} parent=0 // pred_region
    _
  $region21: #{_lambda_.34} parent=0 // pred_fallthru
    _
  // Predicated region
  $region22: #{_lambda_.34} parent=0 // pred_check
    _
  $region23: #{_lambda_.34} parent=0 // pred_check_branch
    %22 = sbr.rel (0) target = $region25
  $region24: #{_lambda_.34} parent=0 // pred_region
    _
  $region25: #{_lambda_.34} parent=0 // pred_fallthru
    _
  %v23 = vld [vmem:[%s0] sm:$0x7]
  %v24 = vld [vmem:[%s0 + $0x4] sm:$0x7]
  %v25 = vld [vmem:[%s1] sm:$0x7]
  %v26 = vld [vmem:[%s1 + $0x4] sm:$0x7]
  %v27 = vld [vmem:[%s2] sm:$0xff]
  %v28 = vld [vmem:[%s2 + $0x8] sm:$0xff]
  %v29 = vld [vmem:[%s2 + $0x10] sm:$0xff]
  %v30 = vld [vmem:[%s2 + $0x18] sm:$0xff]
  %v31 = vld [vmem:[%s2 + $0x20] sm:$0xff]
  %v32 = vld [vmem:[%s2 + $0x28] sm:$0xff]
  %v33 = vld [vmem:[%s2 + $0x30] sm:$0xff]
  %v34 = vld [vmem:[%s2 + $0x38] sm:$0xff]
  %v35 = vld [vmem:[%s2 + $0x40] sm:$0xff]
  %v36 = vld [vmem:[%s2 + $0x48] sm:$0xff]
  %v37 = vld [vmem:[%s2 + $0x50] sm:$0xff]
  %v38 = vld [vmem:[%s2 + $0x58] sm:$0xff]
  %v39 = vld [vmem:[%s2 + $0x60] sm:$0xff]
  %v40 = vld [vmem:[%s2 + $0x68] sm:$0xff]
  %v41 = vld [vmem:[%s2 + $0x70] sm:$0xff]
  %v42 = vld [vmem:[%s2 + $0x78] sm:$0xff]
  %s43 = scalar_lea.vmem %s2, 128
  %v44 = vld [vmem:[%s43] sm:$0xff]
  %v45 = vld [vmem:[%s43 + $0x8] sm:$0xff]
  %v46 = vld [vmem:[%s43 + $0x10] sm:$0xff]
  %v47 = vld [vmem:[%s43 + $0x18] sm:$0xff]
  %v48 = vld [vmem:[%s43 + $0x20] sm:$0xff]
  %v49 = vld [vmem:[%s43 + $0x28] sm:$0xff]
  %v50 = vld [vmem:[%s43 + $0x30] sm:$0xff]
  %v51 = vld [vmem:[%s43 + $0x38] sm:$0xff]
  %v52 = vld [vmem:[%s43 + $0x40] sm:$0xff]
  %v53 = vld [vmem:[%s43 + $0x48] sm:$0xff]
  %v54 = vld [vmem:[%s43 + $0x50] sm:$0xff]
  %v55 = vld [vmem:[%s43 + $0x58] sm:$0xff]
  %v56 = vld [vmem:[%s43 + $0x60] sm:$0xff]
  %v57 = vld [vmem:[%s43 + $0x68] sm:$0xff]
  %v58 = vld [vmem:[%s43 + $0x70] sm:$0xff]
  %v59 = vld [vmem:[%s43 + $0x78] sm:$0xff]
  %v62 = vcombine.low %v25, %v26
  %v64 = vunpack.c.l.s4 1983009808
  %v65 = vunpack.c.0.s8 %v64
  %v66 = vlaneseq
  %v67 = vshrl.u32 %v66, 7
  %v68 = vsub.s32 %v65, %v67
  %v69 = vrot.slane %v62, %v68
  %71 = vmatprep.subr.mxu0 0.0
  %72 = vmatpush1.msra.mxu0 %v44
  %73 = vmatprep.subr.mxu0 0.0
  %74 = vmatpush1.msra.mxu0 %v45
  %75 = vmatprep.subr.mxu0 0.0
  %76 = vmatpush1.msra.mxu0 %v46
  %77 = vmatprep.subr.mxu0 0.0
  %78 = vmatpush1.msra.mxu0 %v47
  %79 = vmatprep.subr.mxu0 0.0
  %80 = vmatpush1.msra.mxu0 %v48
  %81 = vmatprep.subr.mxu0 0.0
  %82 = vmatpush1.msra.mxu0 %v49
  %83 = vmatprep.subr.mxu0 0.0
  %84 = vmatpush1.msra.mxu0 %v50
  %85 = vmatprep.subr.mxu0 0.0
  %86 = vmatpush1.msra.mxu0 %v51
  %87 = vmatprep.subr.mxu0 0.0
  %88 = vmatpush1.msra.mxu0 %v52
  %89 = vmatprep.subr.mxu0 0.0
  %90 = vmatpush1.msra.mxu0 %v53
  %91 = vmatprep.subr.mxu0 0.0
  %92 = vmatpush1.msra.mxu0 %v54
  %93 = vmatprep.subr.mxu0 0.0
  %94 = vmatpush1.msra.mxu0 %v55
  %95 = vmatprep.subr.mxu0 0.0
  %96 = vmatpush1.msra.mxu0 %v56
  %97 = vmatprep.subr.mxu0 0.0
  %98 = vmatpush1.msra.mxu0 %v57
  %99 = vmatprep.subr.mxu0 0.0
  %100 = vmatpush1.msra.mxu0 %v58
  %101 = vmatprep.subr.mxu0 0.0
  %102 = vmatpush1.msra.mxu0 %v59
  %103 = vmatprep.subr.mxu0 0.0
  %104 = vmatpush1.msra.mxu0 0.0
  %105 = vmatprep.subr.mxu0 0.0
  %106 = vmatpush1.msra.mxu0 0.0
  %107 = vmatprep.subr.mxu0 0.0
  %108 = vmatpush1.msra.mxu0 0.0
  %109 = vmatprep.subr.mxu0 0.0
  %110 = vmatpush1.msra.mxu0 0.0
  %111 = vmatprep.subr.mxu0 0.0
  %112 = vmatpush1.msra.mxu0 0.0
  %113 = vmatprep.subr.mxu0 0.0
  %114 = vmatpush1.msra.mxu0 0.0
  %115 = vmatprep.subr.mxu0 0.0
  %116 = vmatpush1.msra.mxu0 0.0
  %117 = vmatprep.subr.mxu0 0.0
  %118 = vmatpush1.msra.mxu0 0.0
  %119 = vmatprep.subr.mxu0 0.0
  %120 = vmatpush1.msra.mxu0 0.0
  %121 = vmatprep.subr.mxu0 0.0
  %122 = vmatpush1.msra.mxu0 0.0
  %123 = vmatprep.subr.mxu0 0.0
  %124 = vmatpush1.msra.mxu0 0.0
  %125 = vmatprep.subr.mxu0 0.0
  %126 = vmatpush1.msra.mxu0 0.0
  %127 = vmatprep.subr.mxu0 0.0
  %128 = vmatpush1.msra.mxu0 0.0
  %129 = vmatprep.subr.mxu0 0.0
  %130 = vmatpush1.msra.mxu0 0.0
  %131 = vmatprep.subr.mxu0 0.0
  %132 = vmatpush1.msra.mxu0 0.0
  %133 = vmatprep.subr.mxu0 0.0
  %134 = vmatpush1.msra.mxu0 0.0
  %135 = vmatprep.mubr.f32.mxu0 0.0
  %136 = vmatmul.mubr.f32.gmra.mrb[0].mxu0 %v69
  %v137 = vpop.f32.mrb[0].mxu0
  %v138 = vadd.f32 0.0, %v137
  %v139 = vpop.f32.mrb[0].mxu0
  %140 = vdwg.mxu0
  %v143 = vcombine.low %v23, %v24
  %v145 = vunpack.c.l.s4 1983009808
  %v146 = vunpack.c.0.s8 %v145
  %v147 = vlaneseq
  %v148 = vshrl.u32 %v147, 7
  %v149 = vsub.s32 %v146, %v148
  %v150 = vrot.slane %v143, %v149
  %152 = vmatprep.subr.mxu0 0.0
  %153 = vmatpush1.msra.mxu0 %v27
  %154 = vmatprep.subr.mxu0 0.0
  %155 = vmatpush1.msra.mxu0 %v28
  %156 = vmatprep.subr.mxu0 0.0
  %157 = vmatpush1.msra.mxu0 %v29
  %158 = vmatprep.subr.mxu0 0.0
  %159 = vmatpush1.msra.mxu0 %v30
  %160 = vmatprep.subr.mxu0 0.0
  %161 = vmatpush1.msra.mxu0 %v31
  %162 = vmatprep.subr.mxu0 0.0
  %163 = vmatpush1.msra.mxu0 %v32
  %164 = vmatprep.subr.mxu0 0.0
  %165 = vmatpush1.msra.mxu0 %v33
  %166 = vmatprep.subr.mxu0 0.0
  %167 = vmatpush1.msra.mxu0 %v34
  %168 = vmatprep.subr.mxu0 0.0
  %169 = vmatpush1.msra.mxu0 %v35
  %170 = vmatprep.subr.mxu0 0.0
  %171 = vmatpush1.msra.mxu0 %v36
  %172 = vmatprep.subr.mxu0 0.0
  %173 = vmatpush1.msra.mxu0 %v37
  %174 = vmatprep.subr.mxu0 0.0
  %175 = vmatpush1.msra.mxu0 %v38
  %176 = vmatprep.subr.mxu0 0.0
  %177 = vmatpush1.msra.mxu0 %v39
  %178 = vmatprep.subr.mxu0 0.0
  %179 = vmatpush1.msra.mxu0 %v40
  %180 = vmatprep.subr.mxu0 0.0
  %181 = vmatpush1.msra.mxu0 %v41
  %182 = vmatprep.subr.mxu0 0.0
  %183 = vmatpush1.msra.mxu0 %v42
  %184 = vmatprep.subr.mxu0 0.0
  %185 = vmatpush1.msra.mxu0 0.0
  %186 = vmatprep.subr.mxu0 0.0
  %187 = vmatpush1.msra.mxu0 0.0
  %188 = vmatprep.subr.mxu0 0.0
  %189 = vmatpush1.msra.mxu0 0.0
  %190 = vmatprep.subr.mxu0 0.0
  %191 = vmatpush1.msra.mxu0 0.0
  %192 = vmatprep.subr.mxu0 0.0
  %193 = vmatpush1.msra.mxu0 0.0
  %194 = vmatprep.subr.mxu0 0.0
  %195 = vmatpush1.msra.mxu0 0.0
  %196 = vmatprep.subr.mxu0 0.0
  %197 = vmatpush1.msra.mxu0 0.0
  %198 = vmatprep.subr.mxu0 0.0
  %199 = vmatpush1.msra.mxu0 0.0
  %200 = vmatprep.subr.mxu0 0.0
  %201 = vmatpush1.msra.mxu0 0.0
  %202 = vmatprep.subr.mxu0 0.0
  %203 = vmatpush1.msra.mxu0 0.0
  %204 = vmatprep.subr.mxu0 0.0
  %205 = vmatpush1.msra.mxu0 0.0
  %206 = vmatprep.subr.mxu0 0.0
  %207 = vmatpush1.msra.mxu0 0.0
  %208 = vmatprep.subr.mxu0 0.0
  %209 = vmatpush1.msra.mxu0 0.0
  %210 = vmatprep.subr.mxu0 0.0
  %211 = vmatpush1.msra.mxu0 0.0
  %212 = vmatprep.subr.mxu0 0.0
  %213 = vmatpush1.msra.mxu0 0.0
  %214 = vmatprep.subr.mxu0 0.0
  %215 = vmatpush1.msra.mxu0 0.0
  %216 = vmatprep.mubr.f32.mxu0 0.0
  %217 = vmatmul.mubr.f32.gmra.mrb[0].mxu0 %v150
  %v218 = vpop.f32.mrb[0].mxu0
  %v219 = vadd.f32 %v138, %v218
  %v220 = vpop.f32.mrb[0].mxu0
  %221 = vdwg.mxu0
  %v223 = vunpack.c.l.s4 1983009808
  %v224 = vunpack.c.0.s8 %v223
  %v225 = vlaneseq
  %v226 = vshrl.u32 %v225, 7
  %v227 = vsub.s32 %v224, %v226
  %v228 = vrot.slane %v23, %v227
  %v229 = vcombine.high %v228, %v228
  %v231 = vunpack.c.l.s4 1983009808
  %v232 = vunpack.c.0.s8 %v231
  %v233 = vlaneseq
  %v234 = vshrl.u32 %v233, 7
  %v235 = vsub.s32 %v232, %v234
  %v236 = vrot.slane %v24, %v235
  %v237 = vcombine.high %v236, %v236
  %vm238 = vcmask 1040384
  %vm239 = vcmask 1042434
  %vm240 = vmor %vm238, %vm239
  %vm241 = vcmask 1044484
  %vm242 = vmor %vm240, %vm241
  %vm243 = vcmask 1046534
  %vm244 = vmor %vm242, %vm243
  %v245 = vrot.slane %v228, 7
  %v246 = vrot.slane %v245, 2
  %v247 = vrot.slane %v229, 7
  %v248 = vsel %vm244, %v246, %v247
  %v249 = vrot.slane %v236, 7
  %v250 = vrot.slane %v249, 2
  %v251 = vrot.slane %v237, 7
  %v252 = vsel %vm244, %v250, %v251
  %s253 = scalar_lea.vmem %s2, 256
  %v254 = vld [vmem:[%s253] sm:$0xff]
  %v255 = vld [vmem:[%s253 + $0x8] sm:$0xff]
  %v256 = vld [vmem:[%s253 + $0x10] sm:$0xff]
  %v257 = vld [vmem:[%s253 + $0x18] sm:$0xff]
  %v258 = vld [vmem:[%s253 + $0x20] sm:$0xff]
  %v259 = vld [vmem:[%s253 + $0x28] sm:$0xff]
  %v260 = vld [vmem:[%s253 + $0x30] sm:$0xff]
  %v261 = vld [vmem:[%s253 + $0x38] sm:$0xff]
  %v262 = vld [vmem:[%s253 + $0x40] sm:$0xff]
  %v263 = vld [vmem:[%s253 + $0x48] sm:$0xff]
  %v264 = vld [vmem:[%s253 + $0x50] sm:$0xff]
  %v265 = vld [vmem:[%s253 + $0x58] sm:$0xff]
  %v266 = vld [vmem:[%s253 + $0x60] sm:$0xff]
  %v267 = vld [vmem:[%s253 + $0x68] sm:$0xff]
  %v268 = vld [vmem:[%s253 + $0x70] sm:$0xff]
  %v269 = vld [vmem:[%s253 + $0x78] sm:$0xff]
  %v270 = vcombine.low %v248, %v252
  %v272 = vunpack.c.l.s4 1983009808
  %v273 = vunpack.c.0.s8 %v272
  %v274 = vlaneseq
  %v275 = vshrl.u32 %v274, 7
  %v276 = vsub.s32 %v273, %v275
  %v277 = vrot.slane %v270, %v276
  %279 = vmatprep.subr.mxu0 0.0
  %280 = vmatpush1.msra.mxu0 %v254
  %281 = vmatprep.subr.mxu0 0.0
  %282 = vmatpush1.msra.mxu0 %v255
  %283 = vmatprep.subr.mxu0 0.0
  %284 = vmatpush1.msra.mxu0 %v256
  %285 = vmatprep.subr.mxu0 0.0
  %286 = vmatpush1.msra.mxu0 %v257
  %287 = vmatprep.subr.mxu0 0.0
  %288 = vmatpush1.msra.mxu0 %v258
  %289 = vmatprep.subr.mxu0 0.0
  %290 = vmatpush1.msra.mxu0 %v259
  %291 = vmatprep.subr.mxu0 0.0
  %292 = vmatpush1.msra.mxu0 %v260
  %293 = vmatprep.subr.mxu0 0.0
  %294 = vmatpush1.msra.mxu0 %v261
  %295 = vmatprep.subr.mxu0 0.0
  %296 = vmatpush1.msra.mxu0 %v262
  %297 = vmatprep.subr.mxu0 0.0
  %298 = vmatpush1.msra.mxu0 %v263
  %299 = vmatprep.subr.mxu0 0.0
  %300 = vmatpush1.msra.mxu0 %v264
  %301 = vmatprep.subr.mxu0 0.0
  %302 = vmatpush1.msra.mxu0 %v265
  %303 = vmatprep.subr.mxu0 0.0
  %304 = vmatpush1.msra.mxu0 %v266
  %305 = vmatprep.subr.mxu0 0.0
  %306 = vmatpush1.msra.mxu0 %v267
  %307 = vmatprep.subr.mxu0 0.0
  %308 = vmatpush1.msra.mxu0 %v268
  %309 = vmatprep.subr.mxu0 0.0
  %310 = vmatpush1.msra.mxu0 %v269
  %311 = vmatprep.subr.mxu0 0.0
  %312 = vmatpush1.msra.mxu0 0.0
  %313 = vmatprep.subr.mxu0 0.0
  %314 = vmatpush1.msra.mxu0 0.0
  %315 = vmatprep.subr.mxu0 0.0
  %316 = vmatpush1.msra.mxu0 0.0
  %317 = vmatprep.subr.mxu0 0.0
  %318 = vmatpush1.msra.mxu0 0.0
  %319 = vmatprep.subr.mxu0 0.0
  %320 = vmatpush1.msra.mxu0 0.0
  %321 = vmatprep.subr.mxu0 0.0
  %322 = vmatpush1.msra.mxu0 0.0
  %323 = vmatprep.subr.mxu0 0.0
  %324 = vmatpush1.msra.mxu0 0.0
  %325 = vmatprep.subr.mxu0 0.0
  %326 = vmatpush1.msra.mxu0 0.0
  %327 = vmatprep.subr.mxu0 0.0
  %328 = vmatpush1.msra.mxu0 0.0
  %329 = vmatprep.subr.mxu0 0.0
  %330 = vmatpush1.msra.mxu0 0.0
  %331 = vmatprep.subr.mxu0 0.0
  %332 = vmatpush1.msra.mxu0 0.0
  %333 = vmatprep.subr.mxu0 0.0
  %334 = vmatpush1.msra.mxu0 0.0
  %335 = vmatprep.subr.mxu0 0.0
  %336 = vmatpush1.msra.mxu0 0.0
  %337 = vmatprep.subr.mxu0 0.0
  %338 = vmatpush1.msra.mxu0 0.0
  %339 = vmatprep.subr.mxu0 0.0
  %340 = vmatpush1.msra.mxu0 0.0
  %341 = vmatprep.subr.mxu0 0.0
  %342 = vmatpush1.msra.mxu0 0.0
  %343 = vmatprep.mubr.f32.mxu0 0.0
  %344 = vmatmul.mubr.f32.gmra.mrb[0].mxu0 %v277
  %v345 = vpop.f32.mrb[0].mxu0
  %v346 = vadd.f32 0.0, %v345
  %v347 = vpop.f32.mrb[0].mxu0
  %348 = vdwg.mxu0
  %v349 = vadd.f32 %v219, %v346
  %v350 = vld [vmem:[%s3] sm:$0x1]
  %v352 = vlaneseq
  %v353 = vshrl.u32 %v352, 7
  %v354 = vsub.s32 0, %v353
  %v355 = vrot.slane %v350, %v354
  %v357 = vadd.f32 %v349, %v355
  %vm358 = vcmask 1043456
  %v359 = vsel %vm358, %v357, 0.0
  %v360 = vrot.slane %v359, 4
  %v361 = vadd.f32 %v359, %v360
  %v362 = vrot.slane %v361, 2
  %v363 = vadd.f32 %v361, %v362
  %v364 = vrot.slane %v363, 1
  %v365 = vadd.f32 %v363, %v364
  %v366 = vrcp.pop 4.0
  %v367 = vmul.f32 %v365, %v366
  %v368 = vsub.f32 %v357, %v367
  %v369 = vmul.f32 %v368, %v368
  %v370 = vsel %vm358, %v369, 0.0
  %v371 = vrot.slane %v370, 4
  %v372 = vadd.f32 %v370, %v371
  %v373 = vrot.slane %v372, 2
  %v374 = vadd.f32 %v372, %v373
  %v375 = vrot.slane %v374, 1
  %v376 = vadd.f32 %v374, %v375
  %v377 = vmul.f32 %v376, %v366
  %v378 = vadd.f32 %v377, 1e-05
  %v379 = vrsqrt.pop %v378
  %v380 = vmul.f32 %v368, %v379
  %v381 = vld [vmem:[%s4] sm:$0x1]
  %v383 = vlaneseq
  %v384 = vshrl.u32 %v383, 7
  %v385 = vsub.s32 0, %v384
  %v386 = vrot.slane %v381, %v385
  %v388 = vmul.f32 %v380, %v386
  %v389 = vld [vmem:[%s5] sm:$0x1]
  %v391 = vlaneseq
  %v392 = vshrl.u32 %v391, 7
  %v393 = vsub.s32 0, %v392
  %v394 = vrot.slane %v389, %v393
  %v396 = vadd.f32 %v388, %v394
  %v397 = vmax.f32 %v396, 0.0
  %v400 = vunpack.c.l.s4 1983009808
  %v401 = vunpack.c.0.s8 %v400
  %v402 = vlaneseq
  %v403 = vshrl.u32 %v402, 7
  %v404 = vsub.s32 %v401, %v403
  %v405 = vrot.slane %v397, %v404
  %v406 = vcombine.high %v405, %v405
  %409 = vst [vmem:[%s6] sm:$0x3] %v405
  %410 = vst [vmem:[%s6 + $0x2] sm:$0x3] %v406
  // Predicated region
  $region26: #{_lambda_.34} parent=0 // pred_check
    _
  $region27: #{_lambda_.34} parent=0 // pred_check_branch
    %412 = sbr.rel (0) target = $region29
  $region28: #{_lambda_.34} parent=0 // pred_region
    _
  $region29: #{_lambda_.34} parent=0 // pred_fallthru
    _
  // Predicated region
  $region30: #{_lambda_.34} parent=0 // pred_check
    _
  $region31: #{_lambda_.34} parent=0 // pred_check_branch
    %414 = sbr.rel (0) target = $region33
  $region32: #{_lambda_.34} parent=0 // pred_region
    _
  $region33: #{_lambda_.34} parent=0 // pred_fallthru
    _

// kernel: _lambda_.36
$region0: #{_lambda_.36}
  #allocation0 [shape = 'u32[]', space=smem, size = 0x4, offset = 0x4, fixed_abs, tag = 'smem constant byte address 0x4 - core index']
  #allocation1 [shape = 'u32[144,128]{1,0:T(1,128)}', space=vmem, size = 0x12000, scoped, tag = 'internal scratch']
  %s0 = inlined_call_operand.vmem [shape: f32[2,4,128], index: 0, kind: input, shape index: {}]
  %s1 = inlined_call_operand.vmem [shape: f32[3,128,128], index: 1, kind: input, shape index: {}]
  %s2 = inlined_call_operand.vmem [shape: f32[1,128], index: 2, kind: input, shape index: {}]
  %s3 = inlined_call_operand.vmem [shape: f32[1,128], index: 3, kind: input, shape index: {}]
  %s4 = inlined_call_operand.vmem [shape: f32[1,128], index: 4, kind: input, shape index: {}]
  %s5 = inlined_call_operand.vmem [shape: f32[2,2,128], index: 5, kind: output, shape index: {}]
  %s6 = sld [smem:[#allocation0]]
  $region30: #{_lambda_.36} parent=0
    _
  %s8 = ssub.s32 1, %s6
  %s9 = scalar_select 0, %s8, %s6
  // Predicated region
  $region2: #{_lambda_.36} parent=0 // pred_check
    _
  $region3: #{_lambda_.36} parent=0 // pred_check_branch
    %11 = sbr.rel (0) target = $region5
  $region4: #{_lambda_.36} parent=0 // pred_region
    _
  $region5: #{_lambda_.36} parent=0 // pred_fallthru
    _
  // Predicated region
  $region6: #{_lambda_.36} parent=0 // pred_check
    _
  $region7: #{_lambda_.36} parent=0 // pred_check_branch
    %13 = sbr.rel (0) target = $region9
  $region8: #{_lambda_.36} parent=0 // pred_region
    _
  $region9: #{_lambda_.36} parent=0 // pred_fallthru
    _
  // Predicated region
  $region10: #{_lambda_.36} parent=0 // pred_check
    _
  $region11: #{_lambda_.36} parent=0 // pred_check_branch
    %15 = sbr.rel (0) target = $region13
  $region12: #{_lambda_.36} parent=0 // pred_region
    _
  $region13: #{_lambda_.36} parent=0 // pred_fallthru
    _
  // Predicated region
  $region14: #{_lambda_.36} parent=0 // pred_check
    _
  $region15: #{_lambda_.36} parent=0 // pred_check_branch
    %17 = sbr.rel (0) target = $region17
  $region16: #{_lambda_.36} parent=0 // pred_region
    _
  $region17: #{_lambda_.36} parent=0 // pred_fallthru
    _
  // Predicated region
  $region18: #{_lambda_.36} parent=0 // pred_check
    _
  $region19: #{_lambda_.36} parent=0 // pred_check_branch
    %19 = sbr.rel (0) target = $region21
  $region20: #{_lambda_.36} parent=0 // pred_region
    _
  $region21: #{_lambda_.36} parent=0 // pred_fallthru
    _
  %v20 = vld [vmem:[%s0] sm:$0xf]
  %v21 = vld [vmem:[%s0 + $0x4] sm:$0xf]
  %v22 = vld [vmem:[%s1] sm:$0xff]
  %v23 = vld [vmem:[%s1 + $0x8] sm:$0xff]
  %v24 = vld [vmem:[%s1 + $0x10] sm:$0xff]
  %v25 = vld [vmem:[%s1 + $0x18] sm:$0xff]
  %v26 = vld [vmem:[%s1 + $0x20] sm:$0xff]
  %v27 = vld [vmem:[%s1 + $0x28] sm:$0xff]
  %v28 = vld [vmem:[%s1 + $0x30] sm:$0xff]
  %v29 = vld [vmem:[%s1 + $0x38] sm:$0xff]
  %v30 = vld [vmem:[%s1 + $0x40] sm:$0xff]
  %v31 = vld [vmem:[%s1 + $0x48] sm:$0xff]
  %v32 = vld [vmem:[%s1 + $0x50] sm:$0xff]
  %v33 = vld [vmem:[%s1 + $0x58] sm:$0xff]
  %v34 = vld [vmem:[%s1 + $0x60] sm:$0xff]
  %v35 = vld [vmem:[%s1 + $0x68] sm:$0xff]
  %v36 = vld [vmem:[%s1 + $0x70] sm:$0xff]
  %v37 = vld [vmem:[%s1 + $0x78] sm:$0xff]
  %v41 = vunpack.c.l.s4 1983009808
  %v42 = vunpack.c.0.s8 %v41
  %v43 = vlaneseq
  %v44 = vshrl.u32 %v43, 7
  %v45 = vsub.s32 %v42, %v44
  %v46 = vrot.slane %v20, %v45
  %v47 = vcombine.high %v46, %v46
  %v49 = vunpack.c.l.s4 1983009808
  %v50 = vunpack.c.0.s8 %v49
  %v51 = vlaneseq
  %v52 = vshrl.u32 %v51, 7
  %v53 = vsub.s32 %v50, %v52
  %v54 = vrot.slane %v21, %v53
  %v55 = vcombine.high %v54, %v54
  %vm56 = vcmask 1040384
  %vm57 = vcmask 1042434
  %vm58 = vmor %vm56, %vm57
  %vm59 = vcmask 1044484
  %vm60 = vmor %vm58, %vm59
  %vm61 = vcmask 1046534
  %vm62 = vmor %vm60, %vm61
  %v63 = vrot.slane %v46, 7
  %v64 = vrot.slane %v63, 2
  %v65 = vrot.slane %v47, 7
  %v66 = vsel %vm62, %v64, %v65
  %v67 = vrot.slane %v54, 7
  %v68 = vrot.slane %v67, 2
  %v69 = vrot.slane %v55, 7
  %v70 = vsel %vm62, %v68, %v69
  %s71 = scalar_lea.vmem %s1, 128
  %v72 = vld [vmem:[%s71] sm:$0xff]
  %v73 = vld [vmem:[%s71 + $0x8] sm:$0xff]
  %v74 = vld [vmem:[%s71 + $0x10] sm:$0xff]
  %v75 = vld [vmem:[%s71 + $0x18] sm:$0xff]
  %v76 = vld [vmem:[%s71 + $0x20] sm:$0xff]
  %v77 = vld [vmem:[%s71 + $0x28] sm:$0xff]
  %v78 = vld [vmem:[%s71 + $0x30] sm:$0xff]
  %v79 = vld [vmem:[%s71 + $0x38] sm:$0xff]
  %v80 = vld [vmem:[%s71 + $0x40] sm:$0xff]
  %v81 = vld [vmem:[%s71 + $0x48] sm:$0xff]
  %v82 = vld [vmem:[%s71 + $0x50] sm:$0xff]
  %v83 = vld [vmem:[%s71 + $0x58] sm:$0xff]
  %v84 = vld [vmem:[%s71 + $0x60] sm:$0xff]
  %v85 = vld [vmem:[%s71 + $0x68] sm:$0xff]
  %v86 = vld [vmem:[%s71 + $0x70] sm:$0xff]
  %v87 = vld [vmem:[%s71 + $0x78] sm:$0xff]
  %v88 = vcombine.low %v66, %v70
  %v90 = vunpack.c.l.s4 1983009808
  %v91 = vunpack.c.0.s8 %v90
  %v92 = vlaneseq
  %v93 = vshrl.u32 %v92, 7
  %v94 = vsub.s32 %v91, %v93
  %v95 = vrot.slane %v88, %v94
  %97 = vmatprep.subr.mxu0 0.0
  %98 = vmatpush1.msra.mxu0 %v72
  %99 = vmatprep.subr.mxu0 0.0
  %100 = vmatpush1.msra.mxu0 %v73
  %101 = vmatprep.subr.mxu0 0.0
  %102 = vmatpush1.msra.mxu0 %v74
  %103 = vmatprep.subr.mxu0 0.0
  %104 = vmatpush1.msra.mxu0 %v75
  %105 = vmatprep.subr.mxu0 0.0
  %106 = vmatpush1.msra.mxu0 %v76
  %107 = vmatprep.subr.mxu0 0.0
  %108 = vmatpush1.msra.mxu0 %v77
  %109 = vmatprep.subr.mxu0 0.0
  %110 = vmatpush1.msra.mxu0 %v78
  %111 = vmatprep.subr.mxu0 0.0
  %112 = vmatpush1.msra.mxu0 %v79
  %113 = vmatprep.subr.mxu0 0.0
  %114 = vmatpush1.msra.mxu0 %v80
  %115 = vmatprep.subr.mxu0 0.0
  %116 = vmatpush1.msra.mxu0 %v81
  %117 = vmatprep.subr.mxu0 0.0
  %118 = vmatpush1.msra.mxu0 %v82
  %119 = vmatprep.subr.mxu0 0.0
  %120 = vmatpush1.msra.mxu0 %v83
  %121 = vmatprep.subr.mxu0 0.0
  %122 = vmatpush1.msra.mxu0 %v84
  %123 = vmatprep.subr.mxu0 0.0
  %124 = vmatpush1.msra.mxu0 %v85
  %125 = vmatprep.subr.mxu0 0.0
  %126 = vmatpush1.msra.mxu0 %v86
  %127 = vmatprep.subr.mxu0 0.0
  %128 = vmatpush1.msra.mxu0 %v87
  %129 = vmatprep.subr.mxu0 0.0
  %130 = vmatpush1.msra.mxu0 0.0
  %131 = vmatprep.subr.mxu0 0.0
  %132 = vmatpush1.msra.mxu0 0.0
  %133 = vmatprep.subr.mxu0 0.0
  %134 = vmatpush1.msra.mxu0 0.0
  %135 = vmatprep.subr.mxu0 0.0
  %136 = vmatpush1.msra.mxu0 0.0
  %137 = vmatprep.subr.mxu0 0.0
  %138 = vmatpush1.msra.mxu0 0.0
  %139 = vmatprep.subr.mxu0 0.0
  %140 = vmatpush1.msra.mxu0 0.0
  %141 = vmatprep.subr.mxu0 0.0
  %142 = vmatpush1.msra.mxu0 0.0
  %143 = vmatprep.subr.mxu0 0.0
  %144 = vmatpush1.msra.mxu0 0.0
  %145 = vmatprep.subr.mxu0 0.0
  %146 = vmatpush1.msra.mxu0 0.0
  %147 = vmatprep.subr.mxu0 0.0
  %148 = vmatpush1.msra.mxu0 0.0
  %149 = vmatprep.subr.mxu0 0.0
  %150 = vmatpush1.msra.mxu0 0.0
  %151 = vmatprep.subr.mxu0 0.0
  %152 = vmatpush1.msra.mxu0 0.0
  %153 = vmatprep.subr.mxu0 0.0
  %154 = vmatpush1.msra.mxu0 0.0
  %155 = vmatprep.subr.mxu0 0.0
  %156 = vmatpush1.msra.mxu0 0.0
  %157 = vmatprep.subr.mxu0 0.0
  %158 = vmatpush1.msra.mxu0 0.0
  %159 = vmatprep.subr.mxu0 0.0
  %160 = vmatpush1.msra.mxu0 0.0
  %161 = vmatprep.mubr.f32.mxu0 0.0
  %162 = vmatmul.mubr.f32.gmra.mrb[0].mxu0 %v95
  %v163 = vpop.f32.mrb[0].mxu0
  %v164 = vadd.f32 0.0, %v163
  %v165 = vpop.f32.mrb[0].mxu0
  %166 = vdwg.mxu0
  %v167 = vcombine.low %v20, %v21
  %v169 = vunpack.c.l.s4 1983009808
  %v170 = vunpack.c.0.s8 %v169
  %v171 = vlaneseq
  %v172 = vshrl.u32 %v171, 7
  %v173 = vsub.s32 %v170, %v172
  %v174 = vrot.slane %v167, %v173
  %176 = vmatprep.subr.mxu0 0.0
  %177 = vmatpush1.msra.mxu0 %v22
  %178 = vmatprep.subr.mxu0 0.0
  %179 = vmatpush1.msra.mxu0 %v23
  %180 = vmatprep.subr.mxu0 0.0
  %181 = vmatpush1.msra.mxu0 %v24
  %182 = vmatprep.subr.mxu0 0.0
  %183 = vmatpush1.msra.mxu0 %v25
  %184 = vmatprep.subr.mxu0 0.0
  %185 = vmatpush1.msra.mxu0 %v26
  %186 = vmatprep.subr.mxu0 0.0
  %187 = vmatpush1.msra.mxu0 %v27
  %188 = vmatprep.subr.mxu0 0.0
  %189 = vmatpush1.msra.mxu0 %v28
  %190 = vmatprep.subr.mxu0 0.0
  %191 = vmatpush1.msra.mxu0 %v29
  %192 = vmatprep.subr.mxu0 0.0
  %193 = vmatpush1.msra.mxu0 %v30
  %194 = vmatprep.subr.mxu0 0.0
  %195 = vmatpush1.msra.mxu0 %v31
  %196 = vmatprep.subr.mxu0 0.0
  %197 = vmatpush1.msra.mxu0 %v32
  %198 = vmatprep.subr.mxu0 0.0
  %199 = vmatpush1.msra.mxu0 %v33
  %200 = vmatprep.subr.mxu0 0.0
  %201 = vmatpush1.msra.mxu0 %v34
  %202 = vmatprep.subr.mxu0 0.0
  %203 = vmatpush1.msra.mxu0 %v35
  %204 = vmatprep.subr.mxu0 0.0
  %205 = vmatpush1.msra.mxu0 %v36
  %206 = vmatprep.subr.mxu0 0.0
  %207 = vmatpush1.msra.mxu0 %v37
  %208 = vmatprep.subr.mxu0 0.0
  %209 = vmatpush1.msra.mxu0 0.0
  %210 = vmatprep.subr.mxu0 0.0
  %211 = vmatpush1.msra.mxu0 0.0
  %212 = vmatprep.subr.mxu0 0.0
  %213 = vmatpush1.msra.mxu0 0.0
  %214 = vmatprep.subr.mxu0 0.0
  %215 = vmatpush1.msra.mxu0 0.0
  %216 = vmatprep.subr.mxu0 0.0
  %217 = vmatpush1.msra.mxu0 0.0
  %218 = vmatprep.subr.mxu0 0.0
  %219 = vmatpush1.msra.mxu0 0.0
  %220 = vmatprep.subr.mxu0 0.0
  %221 = vmatpush1.msra.mxu0 0.0
  %222 = vmatprep.subr.mxu0 0.0
  %223 = vmatpush1.msra.mxu0 0.0
  %224 = vmatprep.subr.mxu0 0.0
  %225 = vmatpush1.msra.mxu0 0.0
  %226 = vmatprep.subr.mxu0 0.0
  %227 = vmatpush1.msra.mxu0 0.0
  %228 = vmatprep.subr.mxu0 0.0
  %229 = vmatpush1.msra.mxu0 0.0
  %230 = vmatprep.subr.mxu0 0.0
  %231 = vmatpush1.msra.mxu0 0.0
  %232 = vmatprep.subr.mxu0 0.0
  %233 = vmatpush1.msra.mxu0 0.0
  %234 = vmatprep.subr.mxu0 0.0
  %235 = vmatpush1.msra.mxu0 0.0
  %236 = vmatprep.subr.mxu0 0.0
  %237 = vmatpush1.msra.mxu0 0.0
  %238 = vmatprep.subr.mxu0 0.0
  %239 = vmatpush1.msra.mxu0 0.0
  %240 = vmatprep.mubr.f32.mxu0 0.0
  %241 = vmatmul.mubr.f32.gmra.mrb[0].mxu0 %v174
  %v242 = vpop.f32.mrb[0].mxu0
  %v243 = vadd.f32 %v164, %v242
  %v244 = vpop.f32.mrb[0].mxu0
  %245 = vdwg.mxu0
  %s246 = scalar_lea.vmem %s1, 256
  %v247 = vld [vmem:[%s246] sm:$0xff]
  %v248 = vld [vmem:[%s246 + $0x8] sm:$0xff]
  %v249 = vld [vmem:[%s246 + $0x10] sm:$0xff]
  %v250 = vld [vmem:[%s246 + $0x18] sm:$0xff]
  %v251 = vld [vmem:[%s246 + $0x20] sm:$0xff]
  %v252 = vld [vmem:[%s246 + $0x28] sm:$0xff]
  %v253 = vld [vmem:[%s246 + $0x30] sm:$0xff]
  %v254 = vld [vmem:[%s246 + $0x38] sm:$0xff]
  %v255 = vld [vmem:[%s246 + $0x40] sm:$0xff]
  %v256 = vld [vmem:[%s246 + $0x48] sm:$0xff]
  %v257 = vld [vmem:[%s246 + $0x50] sm:$0xff]
  %v258 = vld [vmem:[%s246 + $0x58] sm:$0xff]
  %v259 = vld [vmem:[%s246 + $0x60] sm:$0xff]
  %v260 = vld [vmem:[%s246 + $0x68] sm:$0xff]
  %v261 = vld [vmem:[%s246 + $0x70] sm:$0xff]
  %v262 = vld [vmem:[%s246 + $0x78] sm:$0xff]
  %v263 = vcombine.low %v47, %v55
  %v265 = vunpack.c.l.s4 1983009808
  %v266 = vunpack.c.0.s8 %v265
  %v267 = vlaneseq
  %v268 = vshrl.u32 %v267, 7
  %v269 = vsub.s32 %v266, %v268
  %v270 = vrot.slane %v263, %v269
  %272 = vmatprep.subr.mxu0 0.0
  %273 = vmatpush1.msra.mxu0 %v247
  %274 = vmatprep.subr.mxu0 0.0
  %275 = vmatpush1.msra.mxu0 %v248
  %276 = vmatprep.subr.mxu0 0.0
  %277 = vmatpush1.msra.mxu0 %v249
  %278 = vmatprep.subr.mxu0 0.0
  %279 = vmatpush1.msra.mxu0 %v250
  %280 = vmatprep.subr.mxu0 0.0
  %281 = vmatpush1.msra.mxu0 %v251
  %282 = vmatprep.subr.mxu0 0.0
  %283 = vmatpush1.msra.mxu0 %v252
  %284 = vmatprep.subr.mxu0 0.0
  %285 = vmatpush1.msra.mxu0 %v253
  %286 = vmatprep.subr.mxu0 0.0
  %287 = vmatpush1.msra.mxu0 %v254
  %288 = vmatprep.subr.mxu0 0.0
  %289 = vmatpush1.msra.mxu0 %v255
  %290 = vmatprep.subr.mxu0 0.0
  %291 = vmatpush1.msra.mxu0 %v256
  %292 = vmatprep.subr.mxu0 0.0
  %293 = vmatpush1.msra.mxu0 %v257
  %294 = vmatprep.subr.mxu0 0.0
  %295 = vmatpush1.msra.mxu0 %v258
  %296 = vmatprep.subr.mxu0 0.0
  %297 = vmatpush1.msra.mxu0 %v259
  %298 = vmatprep.subr.mxu0 0.0
  %299 = vmatpush1.msra.mxu0 %v260
  %300 = vmatprep.subr.mxu0 0.0
  %301 = vmatpush1.msra.mxu0 %v261
  %302 = vmatprep.subr.mxu0 0.0
  %303 = vmatpush1.msra.mxu0 %v262
  %304 = vmatprep.subr.mxu0 0.0
  %305 = vmatpush1.msra.mxu0 0.0
  %306 = vmatprep.subr.mxu0 0.0
  %307 = vmatpush1.msra.mxu0 0.0
  %308 = vmatprep.subr.mxu0 0.0
  %309 = vmatpush1.msra.mxu0 0.0
  %310 = vmatprep.subr.mxu0 0.0
  %311 = vmatpush1.msra.mxu0 0.0
  %312 = vmatprep.subr.mxu0 0.0
  %313 = vmatpush1.msra.mxu0 0.0
  %314 = vmatprep.subr.mxu0 0.0
  %315 = vmatpush1.msra.mxu0 0.0
  %316 = vmatprep.subr.mxu0 0.0
  %317 = vmatpush1.msra.mxu0 0.0
  %318 = vmatprep.subr.mxu0 0.0
  %319 = vmatpush1.msra.mxu0 0.0
  %320 = vmatprep.subr.mxu0 0.0
  %321 = vmatpush1.msra.mxu0 0.0
  %322 = vmatprep.subr.mxu0 0.0
  %323 = vmatpush1.msra.mxu0 0.0
  %324 = vmatprep.subr.mxu0 0.0
  %325 = vmatpush1.msra.mxu0 0.0
  %326 = vmatprep.subr.mxu0 0.0
  %327 = vmatpush1.msra.mxu0 0.0
  %328 = vmatprep.subr.mxu0 0.0
  %329 = vmatpush1.msra.mxu0 0.0
  %330 = vmatprep.subr.mxu0 0.0
  %331 = vmatpush1.msra.mxu0 0.0
  %332 = vmatprep.subr.mxu0 0.0
  %333 = vmatpush1.msra.mxu0 0.0
  %334 = vmatprep.subr.mxu0 0.0
  %335 = vmatpush1.msra.mxu0 0.0
  %336 = vmatprep.mubr.f32.mxu0 0.0
  %337 = vmatmul.mubr.f32.gmra.mrb[0].mxu0 %v270
  %v338 = vpop.f32.mrb[0].mxu0
  %v339 = vadd.f32 0.0, %v338
  %v340 = vpop.f32.mrb[0].mxu0
  %341 = vdwg.mxu0
  %v342 = vadd.f32 %v243, %v339
  %v343 = vld [vmem:[%s2] sm:$0x1]
  %v345 = vlaneseq
  %v346 = vshrl.u32 %v345, 7
  %v347 = vsub.s32 0, %v346
  %v348 = vrot.slane %v343, %v347
  %v350 = vadd.f32 %v342, %v348
  %vm351 = vcmask 1043456
  %v352 = vsel %vm351, %v350, 0.0
  %v353 = vrot.slane %v352, 4
  %v354 = vadd.f32 %v352, %v353
  %v355 = vrot.slane %v354, 2
  %v356 = vadd.f32 %v354, %v355
  %v357 = vrot.slane %v356, 1
  %v358 = vadd.f32 %v356, %v357
  %v359 = vrcp.pop 4.0
  %v360 = vmul.f32 %v358, %v359
  %v361 = vsub.f32 %v350, %v360
  %v362 = vmul.f32 %v361, %v361
  %v363 = vsel %vm351, %v362, 0.0
  %v364 = vrot.slane %v363, 4
  %v365 = vadd.f32 %v363, %v364
  %v366 = vrot.slane %v365, 2
  %v367 = vadd.f32 %v365, %v366
  %v368 = vrot.slane %v367, 1
  %v369 = vadd.f32 %v367, %v368
  %v370 = vmul.f32 %v369, %v359
  %v371 = vadd.f32 %v370, 1e-05
  %v372 = vrsqrt.pop %v371
  %v373 = vmul.f32 %v361, %v372
  %v374 = vld [vmem:[%s3] sm:$0x1]
  %v376 = vlaneseq
  %v377 = vshrl.u32 %v376, 7
  %v378 = vsub.s32 0, %v377
  %v379 = vrot.slane %v374, %v378
  %v381 = vmul.f32 %v373, %v379
  %v382 = vld [vmem:[%s4] sm:$0x1]
  %v384 = vlaneseq
  %v385 = vshrl.u32 %v384, 7
  %v386 = vsub.s32 0, %v385
  %v387 = vrot.slane %v382, %v386
  %v389 = vadd.f32 %v381, %v387
  %v390 = vmax.f32 %v389, 0.0
  %v393 = vunpack.c.l.s4 1983009808
  %v394 = vunpack.c.0.s8 %v393
  %v395 = vlaneseq
  %v396 = vshrl.u32 %v395, 7
  %v397 = vsub.s32 %v394, %v396
  %v398 = vrot.slane %v390, %v397
  %v399 = vcombine.high %v398, %v398
  %402 = vst [vmem:[%s5] sm:$0x3] %v398
  %403 = vst [vmem:[%s5 + $0x2] sm:$0x3] %v399
  // Predicated region
  $region22: #{_lambda_.36} parent=0 // pred_check
    _
  $region23: #{_lambda_.36} parent=0 // pred_check_branch
    %405 = sbr.rel (0) target = $region25
  $region24: #{_lambda_.36} parent=0 // pred_region
    _
  $region25: #{_lambda_.36} parent=0 // pred_fallthru
    _
  // Predicated region
  $region26: #{_lambda_.36} parent=0 // pred_check
    _
  $region27: #{_lambda_.36} parent=0 // pred_check_branch
    %407 = sbr.rel (0) target = $region29
  $region28: #{_lambda_.36} parent=0 // pred_region
    _
  $region29: #{_lambda_.36} parent=0 // pred_fallthru
    _

// kernel: _lambda_.35
$region0: #{_lambda_.35}
  #allocation0 [shape = 'u32[]', space=smem, size = 0x4, offset = 0x4, fixed_abs, tag = 'smem constant byte address 0x4 - core index']
  #allocation1 [shape = 'u32[144,128]{1,0:T(1,128)}', space=vmem, size = 0x12000, scoped, tag = 'internal scratch']
  %s0 = inlined_call_operand.vmem [shape: f32[2,4,128], index: 0, kind: input, shape index: {}]
  %s1 = inlined_call_operand.vmem [shape: f32[3,128,128], index: 1, kind: input, shape index: {}]
  %s2 = inlined_call_operand.vmem [shape: f32[1,128], index: 2, kind: input, shape index: {}]
  %s3 = inlined_call_operand.vmem [shape: f32[1,128], index: 3, kind: input, shape index: {}]
  %s4 = inlined_call_operand.vmem [shape: f32[1,128], index: 4, kind: input, shape index: {}]
  %s5 = inlined_call_operand.vmem [shape: f32[2,2,128], index: 5, kind: input, shape index: {}]
  %s6 = inlined_call_operand.vmem [shape: f32[2,2,128], index: 6, kind: output, shape index: {}]
  %s7 = sld [smem:[#allocation0]]
  $region34: #{_lambda_.35} parent=0
    _
  %s9 = ssub.s32 1, %s7
  %s10 = scalar_select 0, %s9, %s7
  // Predicated region
  $region2: #{_lambda_.35} parent=0 // pred_check
    _
  $region3: #{_lambda_.35} parent=0 // pred_check_branch
    %12 = sbr.rel (0) target = $region5
  $region4: #{_lambda_.35} parent=0 // pred_region
    _
  $region5: #{_lambda_.35} parent=0 // pred_fallthru
    _
  // Predicated region
  $region6: #{_lambda_.35} parent=0 // pred_check
    _
  $region7: #{_lambda_.35} parent=0 // pred_check_branch
    %14 = sbr.rel (0) target = $region9
  $region8: #{_lambda_.35} parent=0 // pred_region
    _
  $region9: #{_lambda_.35} parent=0 // pred_fallthru
    _
  // Predicated region
  $region10: #{_lambda_.35} parent=0 // pred_check
    _
  $region11: #{_lambda_.35} parent=0 // pred_check_branch
    %16 = sbr.rel (0) target = $region13
  $region12: #{_lambda_.35} parent=0 // pred_region
    _
  $region13: #{_lambda_.35} parent=0 // pred_fallthru
    _
  // Predicated region
  $region14: #{_lambda_.35} parent=0 // pred_check
    _
  $region15: #{_lambda_.35} parent=0 // pred_check_branch
    %18 = sbr.rel (0) target = $region17
  $region16: #{_lambda_.35} parent=0 // pred_region
    _
  $region17: #{_lambda_.35} parent=0 // pred_fallthru
    _
  // Predicated region
  $region18: #{_lambda_.35} parent=0 // pred_check
    _
  $region19: #{_lambda_.35} parent=0 // pred_check_branch
    %20 = sbr.rel (0) target = $region21
  $region20: #{_lambda_.35} parent=0 // pred_region
    _
  $region21: #{_lambda_.35} parent=0 // pred_fallthru
    _
  // Predicated region
  $region22: #{_lambda_.35} parent=0 // pred_check
    _
  $region23: #{_lambda_.35} parent=0 // pred_check_branch
    %22 = sbr.rel (0) target = $region25
  $region24: #{_lambda_.35} parent=0 // pred_region
    _
  $region25: #{_lambda_.35} parent=0 // pred_fallthru
    _
  %v23 = vld [vmem:[%s0] sm:$0xf]
  %v24 = vld [vmem:[%s0 + $0x4] sm:$0xf]
  %v25 = vld [vmem:[%s1] sm:$0xff]
  %v26 = vld [vmem:[%s1 + $0x8] sm:$0xff]
  %v27 = vld [vmem:[%s1 + $0x10] sm:$0xff]
  %v28 = vld [vmem:[%s1 + $0x18] sm:$0xff]
  %v29 = vld [vmem:[%s1 + $0x20] sm:$0xff]
  %v30 = vld [vmem:[%s1 + $0x28] sm:$0xff]
  %v31 = vld [vmem:[%s1 + $0x30] sm:$0xff]
  %v32 = vld [vmem:[%s1 + $0x38] sm:$0xff]
  %v33 = vld [vmem:[%s1 + $0x40] sm:$0xff]
  %v34 = vld [vmem:[%s1 + $0x48] sm:$0xff]
  %v35 = vld [vmem:[%s1 + $0x50] sm:$0xff]
  %v36 = vld [vmem:[%s1 + $0x58] sm:$0xff]
  %v37 = vld [vmem:[%s1 + $0x60] sm:$0xff]
  %v38 = vld [vmem:[%s1 + $0x68] sm:$0xff]
  %v39 = vld [vmem:[%s1 + $0x70] sm:$0xff]
  %v40 = vld [vmem:[%s1 + $0x78] sm:$0xff]
  %v44 = vunpack.c.l.s4 1983009808
  %v45 = vunpack.c.0.s8 %v44
  %v46 = vlaneseq
  %v47 = vshrl.u32 %v46, 7
  %v48 = vsub.s32 %v45, %v47
  %v49 = vrot.slane %v23, %v48
  %v50 = vcombine.high %v49, %v49
  %v52 = vunpack.c.l.s4 1983009808
  %v53 = vunpack.c.0.s8 %v52
  %v54 = vlaneseq
  %v55 = vshrl.u32 %v54, 7
  %v56 = vsub.s32 %v53, %v55
  %v57 = vrot.slane %v24, %v56
  %v58 = vcombine.high %v57, %v57
  %vm59 = vcmask 1040384
  %vm60 = vcmask 1042434
  %vm61 = vmor %vm59, %vm60
  %vm62 = vcmask 1044484
  %vm63 = vmor %vm61, %vm62
  %vm64 = vcmask 1046534
  %vm65 = vmor %vm63, %vm64
  %v66 = vrot.slane %v49, 7
  %v67 = vrot.slane %v66, 2
  %v68 = vrot.slane %v50, 7
  %v69 = vsel %vm65, %v67, %v68
  %v70 = vrot.slane %v57, 7
  %v71 = vrot.slane %v70, 2
  %v72 = vrot.slane %v58, 7
  %v73 = vsel %vm65, %v71, %v72
  %s74 = scalar_lea.vmem %s1, 128
  %v75 = vld [vmem:[%s74] sm:$0xff]
  %v76 = vld [vmem:[%s74 + $0x8] sm:$0xff]
  %v77 = vld [vmem:[%s74 + $0x10] sm:$0xff]
  %v78 = vld [vmem:[%s74 + $0x18] sm:$0xff]
  %v79 = vld [vmem:[%s74 + $0x20] sm:$0xff]
  %v80 = vld [vmem:[%s74 + $0x28] sm:$0xff]
  %v81 = vld [vmem:[%s74 + $0x30] sm:$0xff]
  %v82 = vld [vmem:[%s74 + $0x38] sm:$0xff]
  %v83 = vld [vmem:[%s74 + $0x40] sm:$0xff]
  %v84 = vld [vmem:[%s74 + $0x48] sm:$0xff]
  %v85 = vld [vmem:[%s74 + $0x50] sm:$0xff]
  %v86 = vld [vmem:[%s74 + $0x58] sm:$0xff]
  %v87 = vld [vmem:[%s74 + $0x60] sm:$0xff]
  %v88 = vld [vmem:[%s74 + $0x68] sm:$0xff]
  %v89 = vld [vmem:[%s74 + $0x70] sm:$0xff]
  %v90 = vld [vmem:[%s74 + $0x78] sm:$0xff]
  %v91 = vcombine.low %v69, %v73
  %v93 = vunpack.c.l.s4 1983009808
  %v94 = vunpack.c.0.s8 %v93
  %v95 = vlaneseq
  %v96 = vshrl.u32 %v95, 7
  %v97 = vsub.s32 %v94, %v96
  %v98 = vrot.slane %v91, %v97
  %100 = vmatprep.subr.mxu0 0.0
  %101 = vmatpush1.msra.mxu0 %v75
  %102 = vmatprep.subr.mxu0 0.0
  %103 = vmatpush1.msra.mxu0 %v76
  %104 = vmatprep.subr.mxu0 0.0
  %105 = vmatpush1.msra.mxu0 %v77
  %106 = vmatprep.subr.mxu0 0.0
  %107 = vmatpush1.msra.mxu0 %v78
  %108 = vmatprep.subr.mxu0 0.0
  %109 = vmatpush1.msra.mxu0 %v79
  %110 = vmatprep.subr.mxu0 0.0
  %111 = vmatpush1.msra.mxu0 %v80
  %112 = vmatprep.subr.mxu0 0.0
  %113 = vmatpush1.msra.mxu0 %v81
  %114 = vmatprep.subr.mxu0 0.0
  %115 = vmatpush1.msra.mxu0 %v82
  %116 = vmatprep.subr.mxu0 0.0
  %117 = vmatpush1.msra.mxu0 %v83
  %118 = vmatprep.subr.mxu0 0.0
  %119 = vmatpush1.msra.mxu0 %v84
  %120 = vmatprep.subr.mxu0 0.0
  %121 = vmatpush1.msra.mxu0 %v85
  %122 = vmatprep.subr.mxu0 0.0
  %123 = vmatpush1.msra.mxu0 %v86
  %124 = vmatprep.subr.mxu0 0.0
  %125 = vmatpush1.msra.mxu0 %v87
  %126 = vmatprep.subr.mxu0 0.0
  %127 = vmatpush1.msra.mxu0 %v88
  %128 = vmatprep.subr.mxu0 0.0
  %129 = vmatpush1.msra.mxu0 %v89
  %130 = vmatprep.subr.mxu0 0.0
  %131 = vmatpush1.msra.mxu0 %v90
  %132 = vmatprep.subr.mxu0 0.0
  %133 = vmatpush1.msra.mxu0 0.0
  %134 = vmatprep.subr.mxu0 0.0
  %135 = vmatpush1.msra.mxu0 0.0
  %136 = vmatprep.subr.mxu0 0.0
  %137 = vmatpush1.msra.mxu0 0.0
  %138 = vmatprep.subr.mxu0 0.0
  %139 = vmatpush1.msra.mxu0 0.0
  %140 = vmatprep.subr.mxu0 0.0
  %141 = vmatpush1.msra.mxu0 0.0
  %142 = vmatprep.subr.mxu0 0.0
  %143 = vmatpush1.msra.mxu0 0.0
  %144 = vmatprep.subr.mxu0 0.0
  %145 = vmatpush1.msra.mxu0 0.0
  %146 = vmatprep.subr.mxu0 0.0
  %147 = vmatpush1.msra.mxu0 0.0
  %148 = vmatprep.subr.mxu0 0.0
  %149 = vmatpush1.msra.mxu0 0.0
  %150 = vmatprep.subr.mxu0 0.0
  %151 = vmatpush1.msra.mxu0 0.0
  %152 = vmatprep.subr.mxu0 0.0
  %153 = vmatpush1.msra.mxu0 0.0
  %154 = vmatprep.subr.mxu0 0.0
  %155 = vmatpush1.msra.mxu0 0.0
  %156 = vmatprep.subr.mxu0 0.0
  %157 = vmatpush1.msra.mxu0 0.0
  %158 = vmatprep.subr.mxu0 0.0
  %159 = vmatpush1.msra.mxu0 0.0
  %160 = vmatprep.subr.mxu0 0.0
  %161 = vmatpush1.msra.mxu0 0.0
  %162 = vmatprep.subr.mxu0 0.0
  %163 = vmatpush1.msra.mxu0 0.0
  %164 = vmatprep.mubr.f32.mxu0 0.0
  %165 = vmatmul.mubr.f32.gmra.mrb[0].mxu0 %v98
  %v166 = vpop.f32.mrb[0].mxu0
  %v167 = vadd.f32 0.0, %v166
  %v168 = vpop.f32.mrb[0].mxu0
  %169 = vdwg.mxu0
  %v170 = vcombine.low %v23, %v24
  %v172 = vunpack.c.l.s4 1983009808
  %v173 = vunpack.c.0.s8 %v172
  %v174 = vlaneseq
  %v175 = vshrl.u32 %v174, 7
  %v176 = vsub.s32 %v173, %v175
  %v177 = vrot.slane %v170, %v176
  %179 = vmatprep.subr.mxu0 0.0
  %180 = vmatpush1.msra.mxu0 %v25
  %181 = vmatprep.subr.mxu0 0.0
  %182 = vmatpush1.msra.mxu0 %v26
  %183 = vmatprep.subr.mxu0 0.0
  %184 = vmatpush1.msra.mxu0 %v27
  %185 = vmatprep.subr.mxu0 0.0
  %186 = vmatpush1.msra.mxu0 %v28
  %187 = vmatprep.subr.mxu0 0.0
  %188 = vmatpush1.msra.mxu0 %v29
  %189 = vmatprep.subr.mxu0 0.0
  %190 = vmatpush1.msra.mxu0 %v30
  %191 = vmatprep.subr.mxu0 0.0
  %192 = vmatpush1.msra.mxu0 %v31
  %193 = vmatprep.subr.mxu0 0.0
  %194 = vmatpush1.msra.mxu0 %v32
  %195 = vmatprep.subr.mxu0 0.0
  %196 = vmatpush1.msra.mxu0 %v33
  %197 = vmatprep.subr.mxu0 0.0
  %198 = vmatpush1.msra.mxu0 %v34
  %199 = vmatprep.subr.mxu0 0.0
  %200 = vmatpush1.msra.mxu0 %v35
  %201 = vmatprep.subr.mxu0 0.0
  %202 = vmatpush1.msra.mxu0 %v36
  %203 = vmatprep.subr.mxu0 0.0
  %204 = vmatpush1.msra.mxu0 %v37
  %205 = vmatprep.subr.mxu0 0.0
  %206 = vmatpush1.msra.mxu0 %v38
  %207 = vmatprep.subr.mxu0 0.0
  %208 = vmatpush1.msra.mxu0 %v39
  %209 = vmatprep.subr.mxu0 0.0
  %210 = vmatpush1.msra.mxu0 %v40
  %211 = vmatprep.subr.mxu0 0.0
  %212 = vmatpush1.msra.mxu0 0.0
  %213 = vmatprep.subr.mxu0 0.0
  %214 = vmatpush1.msra.mxu0 0.0
  %215 = vmatprep.subr.mxu0 0.0
  %216 = vmatpush1.msra.mxu0 0.0
  %217 = vmatprep.subr.mxu0 0.0
  %218 = vmatpush1.msra.mxu0 0.0
  %219 = vmatprep.subr.mxu0 0.0
  %220 = vmatpush1.msra.mxu0 0.0
  %221 = vmatprep.subr.mxu0 0.0
  %222 = vmatpush1.msra.mxu0 0.0
  %223 = vmatprep.subr.mxu0 0.0
  %224 = vmatpush1.msra.mxu0 0.0
  %225 = vmatprep.subr.mxu0 0.0
  %226 = vmatpush1.msra.mxu0 0.0
  %227 = vmatprep.subr.mxu0 0.0
  %228 = vmatpush1.msra.mxu0 0.0
  %229 = vmatprep.subr.mxu0 0.0
  %230 = vmatpush1.msra.mxu0 0.0
  %231 = vmatprep.subr.mxu0 0.0
  %232 = vmatpush1.msra.mxu0 0.0
  %233 = vmatprep.subr.mxu0 0.0
  %234 = vmatpush1.msra.mxu0 0.0
  %235 = vmatprep.subr.mxu0 0.0
  %236 = vmatpush1.msra.mxu0 0.0
  %237 = vmatprep.subr.mxu0 0.0
  %238 = vmatpush1.msra.mxu0 0.0
  %239 = vmatprep.subr.mxu0 0.0
  %240 = vmatpush1.msra.mxu0 0.0
  %241 = vmatprep.subr.mxu0 0.0
  %242 = vmatpush1.msra.mxu0 0.0
  %243 = vmatprep.mubr.f32.mxu0 0.0
  %244 = vmatmul.mubr.f32.gmra.mrb[0].mxu0 %v177
  %v245 = vpop.f32.mrb[0].mxu0
  %v246 = vadd.f32 %v167, %v245
  %v247 = vpop.f32.mrb[0].mxu0
  %248 = vdwg.mxu0
  %s249 = scalar_lea.vmem %s1, 256
  %v250 = vld [vmem:[%s249] sm:$0xff]
  %v251 = vld [vmem:[%s249 + $0x8] sm:$0xff]
  %v252 = vld [vmem:[%s249 + $0x10] sm:$0xff]
  %v253 = vld [vmem:[%s249 + $0x18] sm:$0xff]
  %v254 = vld [vmem:[%s249 + $0x20] sm:$0xff]
  %v255 = vld [vmem:[%s249 + $0x28] sm:$0xff]
  %v256 = vld [vmem:[%s249 + $0x30] sm:$0xff]
  %v257 = vld [vmem:[%s249 + $0x38] sm:$0xff]
  %v258 = vld [vmem:[%s249 + $0x40] sm:$0xff]
  %v259 = vld [vmem:[%s249 + $0x48] sm:$0xff]
  %v260 = vld [vmem:[%s249 + $0x50] sm:$0xff]
  %v261 = vld [vmem:[%s249 + $0x58] sm:$0xff]
  %v262 = vld [vmem:[%s249 + $0x60] sm:$0xff]
  %v263 = vld [vmem:[%s249 + $0x68] sm:$0xff]
  %v264 = vld [vmem:[%s249 + $0x70] sm:$0xff]
  %v265 = vld [vmem:[%s249 + $0x78] sm:$0xff]
  %v266 = vcombine.low %v50, %v58
  %v268 = vunpack.c.l.s4 1983009808
  %v269 = vunpack.c.0.s8 %v268
  %v270 = vlaneseq
  %v271 = vshrl.u32 %v270, 7
  %v272 = vsub.s32 %v269, %v271
  %v273 = vrot.slane %v266, %v272
  %275 = vmatprep.subr.mxu0 0.0
  %276 = vmatpush1.msra.mxu0 %v250
  %277 = vmatprep.subr.mxu0 0.0
  %278 = vmatpush1.msra.mxu0 %v251
  %279 = vmatprep.subr.mxu0 0.0
  %280 = vmatpush1.msra.mxu0 %v252
  %281 = vmatprep.subr.mxu0 0.0
  %282 = vmatpush1.msra.mxu0 %v253
  %283 = vmatprep.subr.mxu0 0.0
  %284 = vmatpush1.msra.mxu0 %v254
  %285 = vmatprep.subr.mxu0 0.0
  %286 = vmatpush1.msra.mxu0 %v255
  %287 = vmatprep.subr.mxu0 0.0
  %288 = vmatpush1.msra.mxu0 %v256
  %289 = vmatprep.subr.mxu0 0.0
  %290 = vmatpush1.msra.mxu0 %v257
  %291 = vmatprep.subr.mxu0 0.0
  %292 = vmatpush1.msra.mxu0 %v258
  %293 = vmatprep.subr.mxu0 0.0
  %294 = vmatpush1.msra.mxu0 %v259
  %295 = vmatprep.subr.mxu0 0.0
  %296 = vmatpush1.msra.mxu0 %v260
  %297 = vmatprep.subr.mxu0 0.0
  %298 = vmatpush1.msra.mxu0 %v261
  %299 = vmatprep.subr.mxu0 0.0
  %300 = vmatpush1.msra.mxu0 %v262
  %301 = vmatprep.subr.mxu0 0.0
  %302 = vmatpush1.msra.mxu0 %v263
  %303 = vmatprep.subr.mxu0 0.0
  %304 = vmatpush1.msra.mxu0 %v264
  %305 = vmatprep.subr.mxu0 0.0
  %306 = vmatpush1.msra.mxu0 %v265
  %307 = vmatprep.subr.mxu0 0.0
  %308 = vmatpush1.msra.mxu0 0.0
  %309 = vmatprep.subr.mxu0 0.0
  %310 = vmatpush1.msra.mxu0 0.0
  %311 = vmatprep.subr.mxu0 0.0
  %312 = vmatpush1.msra.mxu0 0.0
  %313 = vmatprep.subr.mxu0 0.0
  %314 = vmatpush1.msra.mxu0 0.0
  %315 = vmatprep.subr.mxu0 0.0
  %316 = vmatpush1.msra.mxu0 0.0
  %317 = vmatprep.subr.mxu0 0.0
  %318 = vmatpush1.msra.mxu0 0.0
  %319 = vmatprep.subr.mxu0 0.0
  %320 = vmatpush1.msra.mxu0 0.0
  %321 = vmatprep.subr.mxu0 0.0
  %322 = vmatpush1.msra.mxu0 0.0
  %323 = vmatprep.subr.mxu0 0.0
  %324 = vmatpush1.msra.mxu0 0.0
  %325 = vmatprep.subr.mxu0 0.0
  %326 = vmatpush1.msra.mxu0 0.0
  %327 = vmatprep.subr.mxu0 0.0
  %328 = vmatpush1.msra.mxu0 0.0
  %329 = vmatprep.subr.mxu0 0.0
  %330 = vmatpush1.msra.mxu0 0.0
  %331 = vmatprep.subr.mxu0 0.0
  %332 = vmatpush1.msra.mxu0 0.0
  %333 = vmatprep.subr.mxu0 0.0
  %334 = vmatpush1.msra.mxu0 0.0
  %335 = vmatprep.subr.mxu0 0.0
  %336 = vmatpush1.msra.mxu0 0.0
  %337 = vmatprep.subr.mxu0 0.0
  %338 = vmatpush1.msra.mxu0 0.0
  %339 = vmatprep.mubr.f32.mxu0 0.0
  %340 = vmatmul.mubr.f32.gmra.mrb[0].mxu0 %v273
  %v341 = vpop.f32.mrb[0].mxu0
  %v342 = vadd.f32 0.0, %v341
  %v343 = vpop.f32.mrb[0].mxu0
  %344 = vdwg.mxu0
  %v345 = vadd.f32 %v246, %v342
  %v346 = vld [vmem:[%s2] sm:$0x1]
  %v348 = vlaneseq
  %v349 = vshrl.u32 %v348, 7
  %v350 = vsub.s32 0, %v349
  %v351 = vrot.slane %v346, %v350
  %v353 = vadd.f32 %v345, %v351
  %vm354 = vcmask 1043456
  %v355 = vsel %vm354, %v353, 0.0
  %v356 = vrot.slane %v355, 4
  %v357 = vadd.f32 %v355, %v356
  %v358 = vrot.slane %v357, 2
  %v359 = vadd.f32 %v357, %v358
  %v360 = vrot.slane %v359, 1
  %v361 = vadd.f32 %v359, %v360
  %v362 = vrcp.pop 4.0
  %v363 = vmul.f32 %v361, %v362
  %v364 = vsub.f32 %v353, %v363
  %v365 = vmul.f32 %v364, %v364
  %v366 = vsel %vm354, %v365, 0.0
  %v367 = vrot.slane %v366, 4
  %v368 = vadd.f32 %v366, %v367
  %v369 = vrot.slane %v368, 2
  %v370 = vadd.f32 %v368, %v369
  %v371 = vrot.slane %v370, 1
  %v372 = vadd.f32 %v370, %v371
  %v373 = vmul.f32 %v372, %v362
  %v374 = vadd.f32 %v373, 1e-05
  %v375 = vrsqrt.pop %v374
  %v376 = vmul.f32 %v364, %v375
  %v377 = vld [vmem:[%s3] sm:$0x1]
  %v379 = vlaneseq
  %v380 = vshrl.u32 %v379, 7
  %v381 = vsub.s32 0, %v380
  %v382 = vrot.slane %v377, %v381
  %v384 = vmul.f32 %v376, %v382
  %v385 = vld [vmem:[%s4] sm:$0x1]
  %v387 = vlaneseq
  %v388 = vshrl.u32 %v387, 7
  %v389 = vsub.s32 0, %v388
  %v390 = vrot.slane %v385, %v389
  %v392 = vadd.f32 %v384, %v390
  %v393 = vld [vmem:[%s5] sm:$0x3]
  %v394 = vld [vmem:[%s5 + $0x2] sm:$0x3]
  %v397 = vcombine.low %v393, %v394
  %v399 = vunpack.c.l.s4 1983009808
  %v400 = vunpack.c.0.s8 %v399
  %v401 = vlaneseq
  %v402 = vshrl.u32 %v401, 7
  %v403 = vsub.s32 %v400, %v402
  %v404 = vrot.slane %v397, %v403
  %v406 = vadd.f32 %v392, %v404
  %v407 = vmax.f32 %v406, 0.0
  %v410 = vunpack.c.l.s4 1983009808
  %v411 = vunpack.c.0.s8 %v410
  %v412 = vlaneseq
  %v413 = vshrl.u32 %v412, 7
  %v414 = vsub.s32 %v411, %v413
  %v415 = vrot.slane %v407, %v414
  %v416 = vcombine.high %v415, %v415
  %419 = vst [vmem:[%s6] sm:$0x3] %v415
  %420 = vst [vmem:[%s6 + $0x2] sm:$0x3] %v416
  // Predicated region
  $region26: #{_lambda_.35} parent=0 // pred_check
    _
  $region27: #{_lambda_.35} parent=0 // pred_check_branch
    %422 = sbr.rel (0) target = $region29
  $region28: #{_lambda_.35} parent=0 // pred_region
    _
  $region29: #{_lambda_.35} parent=0 // pred_fallthru
    _
  // Predicated region
  $region30: #{_lambda_.35} parent=0 // pred_check
    _
  $region31: #{_lambda_.35} parent=0 // pred_check_branch
    %424 = sbr.rel (0) target = $region33
  $region32: #{_lambda_.35} parent=0 // pred_region
    _
  $region33: #{_lambda_.35} parent=0 // pred_fallthru
    _

// kernel: _lambda_.38
$region0: #{_lambda_.38}
  #allocation0 [shape = 'u32[]', space=smem, size = 0x4, offset = 0x4, fixed_abs, tag = 'smem constant byte address 0x4 - core index']
  #allocation1 [shape = 'u32[144,128]{1,0:T(1,128)}', space=vmem, size = 0x12000, scoped, tag = 'internal scratch']
  %s0 = inlined_call_operand.vmem [shape: f32[2,1,128], index: 0, kind: input, shape index: {}]
  %s1 = inlined_call_operand.vmem [shape: f32[1,128,128], index: 1, kind: input, shape index: {}]
  %s2 = inlined_call_operand.vmem [shape: f32[1,128], index: 2, kind: input, shape index: {}]
  %s3 = inlined_call_operand.vmem [shape: f32[1,128], index: 3, kind: input, shape index: {}]
  %s4 = inlined_call_operand.vmem [shape: f32[1,128], index: 4, kind: input, shape index: {}]
  %s5 = inlined_call_operand.vmem [shape: f32[2,1,128], index: 5, kind: output, shape index: {}]
  %s6 = sld [smem:[#allocation0]]
  $region30: #{_lambda_.38} parent=0
    _
  %s8 = ssub.s32 1, %s6
  %s9 = scalar_select 0, %s8, %s6
  // Predicated region
  $region2: #{_lambda_.38} parent=0 // pred_check
    _
  $region3: #{_lambda_.38} parent=0 // pred_check_branch
    %11 = sbr.rel (0) target = $region5
  $region4: #{_lambda_.38} parent=0 // pred_region
    _
  $region5: #{_lambda_.38} parent=0 // pred_fallthru
    _
  // Predicated region
  $region6: #{_lambda_.38} parent=0 // pred_check
    _
  $region7: #{_lambda_.38} parent=0 // pred_check_branch
    %13 = sbr.rel (0) target = $region9
  $region8: #{_lambda_.38} parent=0 // pred_region
    _
  $region9: #{_lambda_.38} parent=0 // pred_fallthru
    _
  // Predicated region
  $region10: #{_lambda_.38} parent=0 // pred_check
    _
  $region11: #{_lambda_.38} parent=0 // pred_check_branch
    %15 = sbr.rel (0) target = $region13
  $region12: #{_lambda_.38} parent=0 // pred_region
    _
  $region13: #{_lambda_.38} parent=0 // pred_fallthru
    _
  // Predicated region
  $region14: #{_lambda_.38} parent=0 // pred_check
    _
  $region15: #{_lambda_.38} parent=0 // pred_check_branch
    %17 = sbr.rel (0) target = $region17
  $region16: #{_lambda_.38} parent=0 // pred_region
    _
  $region17: #{_lambda_.38} parent=0 // pred_fallthru
    _
  // Predicated region
  $region18: #{_lambda_.38} parent=0 // pred_check
    _
  $region19: #{_lambda_.38} parent=0 // pred_check_branch
    %19 = sbr.rel (0) target = $region21
  $region20: #{_lambda_.38} parent=0 // pred_region
    _
  $region21: #{_lambda_.38} parent=0 // pred_fallthru
    _
  %v20 = vld [vmem:[%s0] sm:$0x1]
  %v21 = vld [vmem:[%s0 + $0x1] sm:$0x1]
  %v22 = vld [vmem:[%s1] sm:$0xff]
  %v23 = vld [vmem:[%s1 + $0x8] sm:$0xff]
  %v24 = vld [vmem:[%s1 + $0x10] sm:$0xff]
  %v25 = vld [vmem:[%s1 + $0x18] sm:$0xff]
  %v26 = vld [vmem:[%s1 + $0x20] sm:$0xff]
  %v27 = vld [vmem:[%s1 + $0x28] sm:$0xff]
  %v28 = vld [vmem:[%s1 + $0x30] sm:$0xff]
  %v29 = vld [vmem:[%s1 + $0x38] sm:$0xff]
  %v30 = vld [vmem:[%s1 + $0x40] sm:$0xff]
  %v31 = vld [vmem:[%s1 + $0x48] sm:$0xff]
  %v32 = vld [vmem:[%s1 + $0x50] sm:$0xff]
  %v33 = vld [vmem:[%s1 + $0x58] sm:$0xff]
  %v34 = vld [vmem:[%s1 + $0x60] sm:$0xff]
  %v35 = vld [vmem:[%s1 + $0x68] sm:$0xff]
  %v36 = vld [vmem:[%s1 + $0x70] sm:$0xff]
  %v37 = vld [vmem:[%s1 + $0x78] sm:$0xff]
  %v38 = vld [vmem:[%s2] sm:$0x1]
  %v40 = vlaneseq
  %v41 = vshrl.u32 %v40, 7
  %v42 = vsub.s32 0, %v41
  %v43 = vrot.slane %v38, %v42
  %v47 = vcombine.low %v20, %v21
  %v49 = vunpack.c.l.s4 1966171168
  %v50 = vunpack.c.0.s8 %v49
  %v51 = vlaneseq
  %v52 = vshrl.u32 %v51, 7
  %v53 = vsub.s32 %v50, %v52
  %v54 = vrot.slane %v47, %v53
  %v56 = vunpack.c.l.s4 1966171168
  %v57 = vunpack.c.0.s8 %v56
  %v58 = vlaneseq
  %v59 = vshrl.u32 %v58, 7
  %v60 = vsub.s32 %v57, %v59
  %v61 = vrot.slane %v54, %v60
  %63 = vmatprep.subr.mxu0 0.0
  %64 = vmatpush1.msra.mxu0 %v22
  %65 = vmatprep.subr.mxu0 0.0
  %66 = vmatpush1.msra.mxu0 %v23
  %67 = vmatprep.subr.mxu0 0.0
  %68 = vmatpush1.msra.mxu0 %v24
  %69 = vmatprep.subr.mxu0 0.0
  %70 = vmatpush1.msra.mxu0 %v25
  %71 = vmatprep.subr.mxu0 0.0
  %72 = vmatpush1.msra.mxu0 %v26
  %73 = vmatprep.subr.mxu0 0.0
  %74 = vmatpush1.msra.mxu0 %v27
  %75 = vmatprep.subr.mxu0 0.0
  %76 = vmatpush1.msra.mxu0 %v28
  %77 = vmatprep.subr.mxu0 0.0
  %78 = vmatpush1.msra.mxu0 %v29
  %79 = vmatprep.subr.mxu0 0.0
  %80 = vmatpush1.msra.mxu0 %v30
  %81 = vmatprep.subr.mxu0 0.0
  %82 = vmatpush1.msra.mxu0 %v31
  %83 = vmatprep.subr.mxu0 0.0
  %84 = vmatpush1.msra.mxu0 %v32
  %85 = vmatprep.subr.mxu0 0.0
  %86 = vmatpush1.msra.mxu0 %v33
  %87 = vmatprep.subr.mxu0 0.0
  %88 = vmatpush1.msra.mxu0 %v34
  %89 = vmatprep.subr.mxu0 0.0
  %90 = vmatpush1.msra.mxu0 %v35
  %91 = vmatprep.subr.mxu0 0.0
  %92 = vmatpush1.msra.mxu0 %v36
  %93 = vmatprep.subr.mxu0 0.0
  %94 = vmatpush1.msra.mxu0 %v37
  %95 = vmatprep.subr.mxu0 0.0
  %96 = vmatpush1.msra.mxu0 0.0
  %97 = vmatprep.subr.mxu0 0.0
  %98 = vmatpush1.msra.mxu0 0.0
  %99 = vmatprep.subr.mxu0 0.0
  %100 = vmatpush1.msra.mxu0 0.0
  %101 = vmatprep.subr.mxu0 0.0
  %102 = vmatpush1.msra.mxu0 0.0
  %103 = vmatprep.subr.mxu0 0.0
  %104 = vmatpush1.msra.mxu0 0.0
  %105 = vmatprep.subr.mxu0 0.0
  %106 = vmatpush1.msra.mxu0 0.0
  %107 = vmatprep.subr.mxu0 0.0
  %108 = vmatpush1.msra.mxu0 0.0
  %109 = vmatprep.subr.mxu0 0.0
  %110 = vmatpush1.msra.mxu0 0.0
  %111 = vmatprep.subr.mxu0 0.0
  %112 = vmatpush1.msra.mxu0 0.0
  %113 = vmatprep.subr.mxu0 0.0
  %114 = vmatpush1.msra.mxu0 0.0
  %115 = vmatprep.subr.mxu0 0.0
  %116 = vmatpush1.msra.mxu0 0.0
  %117 = vmatprep.subr.mxu0 0.0
  %118 = vmatpush1.msra.mxu0 0.0
  %119 = vmatprep.subr.mxu0 0.0
  %120 = vmatpush1.msra.mxu0 0.0
  %121 = vmatprep.subr.mxu0 0.0
  %122 = vmatpush1.msra.mxu0 0.0
  %123 = vmatprep.subr.mxu0 0.0
  %124 = vmatpush1.msra.mxu0 0.0
  %125 = vmatprep.subr.mxu0 0.0
  %126 = vmatpush1.msra.mxu0 0.0
  %127 = vmatprep.mubr.f32.mxu0 0.0
  %128 = vmatmul.mubr.f32.gmra.mrb[0].mxu0 %v61
  %v129 = vpop.f32.mrb[0].mxu0
  %v130 = vadd.f32 %v43, %v129
  %v131 = vpop.f32.mrb[0].mxu0
  %132 = vdwg.mxu0
  %vm133 = vcmask 1041408
  %v134 = vsel %vm133, %v130, 0.0
  %v135 = vrot.slane %v134, 4
  %v136 = vadd.f32 %v134, %v135
  %v137 = vrot.slane %v136, 2
  %v138 = vadd.f32 %v136, %v137
  %v139 = vrot.slane %v138, 1
  %v140 = vadd.f32 %v138, %v139
  %v141 = vrcp.pop 2.0
  %v142 = vmul.f32 %v140, %v141
  %v143 = vsub.f32 %v130, %v142
  %v144 = vmul.f32 %v143, %v143
  %v145 = vsel %vm133, %v144, 0.0
  %v146 = vrot.slane %v145, 4
  %v147 = vadd.f32 %v145, %v146
  %v148 = vrot.slane %v147, 2
  %v149 = vadd.f32 %v147, %v148
  %v150 = vrot.slane %v149, 1
  %v151 = vadd.f32 %v149, %v150
  %v152 = vmul.f32 %v151, %v141
  %v153 = vadd.f32 %v152, 1e-05
  %v154 = vrsqrt.pop %v153
  %v155 = vmul.f32 %v143, %v154
  %v156 = vld [vmem:[%s3] sm:$0x1]
  %v158 = vlaneseq
  %v159 = vshrl.u32 %v158, 7
  %v160 = vsub.s32 0, %v159
  %v161 = vrot.slane %v156, %v160
  %v163 = vmul.f32 %v155, %v161
  %v164 = vld [vmem:[%s4] sm:$0x1]
  %v166 = vlaneseq
  %v167 = vshrl.u32 %v166, 7
  %v168 = vsub.s32 0, %v167
  %v169 = vrot.slane %v164, %v168
  %v171 = vadd.f32 %v163, %v169
  %v174 = vunpack.c.l.s4 1966171168
  %v175 = vunpack.c.0.s8 %v174
  %v176 = vlaneseq
  %v177 = vshrl.u32 %v176, 7
  %v178 = vsub.s32 %v175, %v177
  %v179 = vrot.slane %v171, %v178
  %v180 = vcombine.high %v179, %v179
  %v182 = vunpack.c.l.s4 1966171168
  %v183 = vunpack.c.0.s8 %v182
  %v184 = vlaneseq
  %v185 = vshrl.u32 %v184, 7
  %v186 = vsub.s32 %v183, %v185
  %v187 = vrot.slane %v179, %v186
  %v189 = vunpack.c.l.s4 1966171168
  %v190 = vunpack.c.0.s8 %v189
  %v191 = vlaneseq
  %v192 = vshrl.u32 %v191, 7
  %v193 = vsub.s32 %v190, %v192
  %v194 = vrot.slane %v180, %v193
  %197 = vst [vmem:[%s5] sm:$0x1] %v187
  %198 = vst [vmem:[%s5 + $0x1] sm:$0x1] %v194
  // Predicated region
  $region22: #{_lambda_.38} parent=0 // pred_check
    _
  $region23: #{_lambda_.38} parent=0 // pred_check_branch
    %200 = sbr.rel (0) target = $region25
  $region24: #{_lambda_.38} parent=0 // pred_region
    _
  $region25: #{_lambda_.38} parent=0 // pred_fallthru
    _
  // Predicated region
  $region26: #{_lambda_.38} parent=0 // pred_check
    _
  $region27: #{_lambda_.38} parent=0 // pred_check_branch
    %202 = sbr.rel (0) target = $region29
  $region28: #{_lambda_.38} parent=0 // pred_region
    _
  $region29: #{_lambda_.38} parent=0 // pred_fallthru
    _

// kernel: _lambda_.39
$region0: #{_lambda_.39}
  #allocation0 [shape = 'u32[]', space=smem, size = 0x4, offset = 0x4, fixed_abs, tag = 'smem constant byte address 0x4 - core index']
  #allocation1 [shape = 'u32[144,128]{1,0:T(1,128)}', space=vmem, size = 0x12000, scoped, tag = 'internal scratch']
  %s0 = inlined_call_operand.vmem [shape: f32[2,2,128], index: 0, kind: input, shape index: {}]
  %s1 = inlined_call_operand.vmem [shape: f32[2,2,128], index: 1, kind: input, shape index: {}]
  %s2 = inlined_call_operand.vmem [shape: f32[3,128,128], index: 2, kind: input, shape index: {}]
  %s3 = inlined_call_operand.vmem [shape: f32[1,128], index: 3, kind: input, shape index: {}]
  %s4 = inlined_call_operand.vmem [shape: f32[1,128], index: 4, kind: input, shape index: {}]
  %s5 = inlined_call_operand.vmem [shape: f32[1,128], index: 5, kind: input, shape index: {}]
  %s6 = inlined_call_operand.vmem [shape: f32[2,1,128], index: 6, kind: output, shape index: {}]
  %s7 = sld [smem:[#allocation0]]
  $region34: #{_lambda_.39} parent=0
    _
  %s9 = ssub.s32 1, %s7
  %s10 = scalar_select 0, %s9, %s7
  // Predicated region
  $region2: #{_lambda_.39} parent=0 // pred_check
    _
  $region3: #{_lambda_.39} parent=0 // pred_check_branch
    %12 = sbr.rel (0) target = $region5
  $region4: #{_lambda_.39} parent=0 // pred_region
    _
  $region5: #{_lambda_.39} parent=0 // pred_fallthru
    _
  // Predicated region
  $region6: #{_lambda_.39} parent=0 // pred_check
    _
  $region7: #{_lambda_.39} parent=0 // pred_check_branch
    %14 = sbr.rel (0) target = $region9
  $region8: #{_lambda_.39} parent=0 // pred_region
    _
  $region9: #{_lambda_.39} parent=0 // pred_fallthru
    _
  // Predicated region
  $region10: #{_lambda_.39} parent=0 // pred_check
    _
  $region11: #{_lambda_.39} parent=0 // pred_check_branch
    %16 = sbr.rel (0) target = $region13
  $region12: #{_lambda_.39} parent=0 // pred_region
    _
  $region13: #{_lambda_.39} parent=0 // pred_fallthru
    _
  // Predicated region
  $region14: #{_lambda_.39} parent=0 // pred_check
    _
  $region15: #{_lambda_.39} parent=0 // pred_check_branch
    %18 = sbr.rel (0) target = $region17
  $region16: #{_lambda_.39} parent=0 // pred_region
    _
  $region17: #{_lambda_.39} parent=0 // pred_fallthru
    _
  // Predicated region
  $region18: #{_lambda_.39} parent=0 // pred_check
    _
  $region19: #{_lambda_.39} parent=0 // pred_check_branch
    %20 = sbr.rel (0) target = $region21
  $region20: #{_lambda_.39} parent=0 // pred_region
    _
  $region21: #{_lambda_.39} parent=0 // pred_fallthru
    _
  // Predicated region
  $region22: #{_lambda_.39} parent=0 // pred_check
    _
  $region23: #{_lambda_.39} parent=0 // pred_check_branch
    %22 = sbr.rel (0) target = $region25
  $region24: #{_lambda_.39} parent=0 // pred_region
    _
  $region25: #{_lambda_.39} parent=0 // pred_fallthru
    _
  %v23 = vld [vmem:[%s0] sm:$0x3]
  %v24 = vld [vmem:[%s0 + $0x2] sm:$0x3]
  %v25 = vld [vmem:[%s1] sm:$0x3]
  %v26 = vld [vmem:[%s1 + $0x2] sm:$0x3]
  %v27 = vld [vmem:[%s2] sm:$0xff]
  %v28 = vld [vmem:[%s2 + $0x8] sm:$0xff]
  %v29 = vld [vmem:[%s2 + $0x10] sm:$0xff]
  %v30 = vld [vmem:[%s2 + $0x18] sm:$0xff]
  %v31 = vld [vmem:[%s2 + $0x20] sm:$0xff]
  %v32 = vld [vmem:[%s2 + $0x28] sm:$0xff]
  %v33 = vld [vmem:[%s2 + $0x30] sm:$0xff]
  %v34 = vld [vmem:[%s2 + $0x38] sm:$0xff]
  %v35 = vld [vmem:[%s2 + $0x40] sm:$0xff]
  %v36 = vld [vmem:[%s2 + $0x48] sm:$0xff]
  %v37 = vld [vmem:[%s2 + $0x50] sm:$0xff]
  %v38 = vld [vmem:[%s2 + $0x58] sm:$0xff]
  %v39 = vld [vmem:[%s2 + $0x60] sm:$0xff]
  %v40 = vld [vmem:[%s2 + $0x68] sm:$0xff]
  %v41 = vld [vmem:[%s2 + $0x70] sm:$0xff]
  %v42 = vld [vmem:[%s2 + $0x78] sm:$0xff]
  %s43 = scalar_lea.vmem %s2, 128
  %v44 = vld [vmem:[%s43] sm:$0xff]
  %v45 = vld [vmem:[%s43 + $0x8] sm:$0xff]
  %v46 = vld [vmem:[%s43 + $0x10] sm:$0xff]
  %v47 = vld [vmem:[%s43 + $0x18] sm:$0xff]
  %v48 = vld [vmem:[%s43 + $0x20] sm:$0xff]
  %v49 = vld [vmem:[%s43 + $0x28] sm:$0xff]
  %v50 = vld [vmem:[%s43 + $0x30] sm:$0xff]
  %v51 = vld [vmem:[%s43 + $0x38] sm:$0xff]
  %v52 = vld [vmem:[%s43 + $0x40] sm:$0xff]
  %v53 = vld [vmem:[%s43 + $0x48] sm:$0xff]
  %v54 = vld [vmem:[%s43 + $0x50] sm:$0xff]
  %v55 = vld [vmem:[%s43 + $0x58] sm:$0xff]
  %v56 = vld [vmem:[%s43 + $0x60] sm:$0xff]
  %v57 = vld [vmem:[%s43 + $0x68] sm:$0xff]
  %v58 = vld [vmem:[%s43 + $0x70] sm:$0xff]
  %v59 = vld [vmem:[%s43 + $0x78] sm:$0xff]
  %v62 = vrot.slane %v26, 7
  %vm63 = vcmask 1041409
  %v64 = vsel %vm63, %v62, %v25
  %66 = vmatprep.subr.mxu0 0.0
  %67 = vmatpush1.msra.mxu0 %v44
  %68 = vmatprep.subr.mxu0 0.0
  %69 = vmatpush1.msra.mxu0 %v45
  %70 = vmatprep.subr.mxu0 0.0
  %71 = vmatpush1.msra.mxu0 %v46
  %72 = vmatprep.subr.mxu0 0.0
  %73 = vmatpush1.msra.mxu0 %v47
  %74 = vmatprep.subr.mxu0 0.0
  %75 = vmatpush1.msra.mxu0 %v48
  %76 = vmatprep.subr.mxu0 0.0
  %77 = vmatpush1.msra.mxu0 %v49
  %78 = vmatprep.subr.mxu0 0.0
  %79 = vmatpush1.msra.mxu0 %v50
  %80 = vmatprep.subr.mxu0 0.0
  %81 = vmatpush1.msra.mxu0 %v51
  %82 = vmatprep.subr.mxu0 0.0
  %83 = vmatpush1.msra.mxu0 %v52
  %84 = vmatprep.subr.mxu0 0.0
  %85 = vmatpush1.msra.mxu0 %v53
  %86 = vmatprep.subr.mxu0 0.0
  %87 = vmatpush1.msra.mxu0 %v54
  %88 = vmatprep.subr.mxu0 0.0
  %89 = vmatpush1.msra.mxu0 %v55
  %90 = vmatprep.subr.mxu0 0.0
  %91 = vmatpush1.msra.mxu0 %v56
  %92 = vmatprep.subr.mxu0 0.0
  %93 = vmatpush1.msra.mxu0 %v57
  %94 = vmatprep.subr.mxu0 0.0
  %95 = vmatpush1.msra.mxu0 %v58
  %96 = vmatprep.subr.mxu0 0.0
  %97 = vmatpush1.msra.mxu0 %v59
  %98 = vmatprep.subr.mxu0 0.0
  %99 = vmatpush1.msra.mxu0 0.0
  %100 = vmatprep.subr.mxu0 0.0
  %101 = vmatpush1.msra.mxu0 0.0
  %102 = vmatprep.subr.mxu0 0.0
  %103 = vmatpush1.msra.mxu0 0.0
  %104 = vmatprep.subr.mxu0 0.0
  %105 = vmatpush1.msra.mxu0 0.0
  %106 = vmatprep.subr.mxu0 0.0
  %107 = vmatpush1.msra.mxu0 0.0
  %108 = vmatprep.subr.mxu0 0.0
  %109 = vmatpush1.msra.mxu0 0.0
  %110 = vmatprep.subr.mxu0 0.0
  %111 = vmatpush1.msra.mxu0 0.0
  %112 = vmatprep.subr.mxu0 0.0
  %113 = vmatpush1.msra.mxu0 0.0
  %114 = vmatprep.subr.mxu0 0.0
  %115 = vmatpush1.msra.mxu0 0.0
  %116 = vmatprep.subr.mxu0 0.0
  %117 = vmatpush1.msra.mxu0 0.0
  %118 = vmatprep.subr.mxu0 0.0
  %119 = vmatpush1.msra.mxu0 0.0
  %120 = vmatprep.subr.mxu0 0.0
  %121 = vmatpush1.msra.mxu0 0.0
  %122 = vmatprep.subr.mxu0 0.0
  %123 = vmatpush1.msra.mxu0 0.0
  %124 = vmatprep.subr.mxu0 0.0
  %125 = vmatpush1.msra.mxu0 0.0
  %126 = vmatprep.subr.mxu0 0.0
  %127 = vmatpush1.msra.mxu0 0.0
  %128 = vmatprep.subr.mxu0 0.0
  %129 = vmatpush1.msra.mxu0 0.0
  %130 = vmatprep.mubr.f32.mxu0 0.0
  %131 = vmatmul.mubr.f32.gmra.mrb[0].mxu0 %v64
  %v132 = vpop.f32.mrb[0].mxu0
  %v133 = vadd.f32 0.0, %v132
  %v134 = vpop.f32.mrb[0].mxu0
  %135 = vdwg.mxu0
  %v138 = vrot.slane %v24, 7
  %v139 = vsel %vm63, %v138, %v23
  %141 = vmatprep.subr.mxu0 0.0
  %142 = vmatpush1.msra.mxu0 %v27
  %143 = vmatprep.subr.mxu0 0.0
  %144 = vmatpush1.msra.mxu0 %v28
  %145 = vmatprep.subr.mxu0 0.0
  %146 = vmatpush1.msra.mxu0 %v29
  %147 = vmatprep.subr.mxu0 0.0
  %148 = vmatpush1.msra.mxu0 %v30
  %149 = vmatprep.subr.mxu0 0.0
  %150 = vmatpush1.msra.mxu0 %v31
  %151 = vmatprep.subr.mxu0 0.0
  %152 = vmatpush1.msra.mxu0 %v32
  %153 = vmatprep.subr.mxu0 0.0
  %154 = vmatpush1.msra.mxu0 %v33
  %155 = vmatprep.subr.mxu0 0.0
  %156 = vmatpush1.msra.mxu0 %v34
  %157 = vmatprep.subr.mxu0 0.0
  %158 = vmatpush1.msra.mxu0 %v35
  %159 = vmatprep.subr.mxu0 0.0
  %160 = vmatpush1.msra.mxu0 %v36
  %161 = vmatprep.subr.mxu0 0.0
  %162 = vmatpush1.msra.mxu0 %v37
  %163 = vmatprep.subr.mxu0 0.0
  %164 = vmatpush1.msra.mxu0 %v38
  %165 = vmatprep.subr.mxu0 0.0
  %166 = vmatpush1.msra.mxu0 %v39
  %167 = vmatprep.subr.mxu0 0.0
  %168 = vmatpush1.msra.mxu0 %v40
  %169 = vmatprep.subr.mxu0 0.0
  %170 = vmatpush1.msra.mxu0 %v41
  %171 = vmatprep.subr.mxu0 0.0
  %172 = vmatpush1.msra.mxu0 %v42
  %173 = vmatprep.subr.mxu0 0.0
  %174 = vmatpush1.msra.mxu0 0.0
  %175 = vmatprep.subr.mxu0 0.0
  %176 = vmatpush1.msra.mxu0 0.0
  %177 = vmatprep.subr.mxu0 0.0
  %178 = vmatpush1.msra.mxu0 0.0
  %179 = vmatprep.subr.mxu0 0.0
  %180 = vmatpush1.msra.mxu0 0.0
  %181 = vmatprep.subr.mxu0 0.0
  %182 = vmatpush1.msra.mxu0 0.0
  %183 = vmatprep.subr.mxu0 0.0
  %184 = vmatpush1.msra.mxu0 0.0
  %185 = vmatprep.subr.mxu0 0.0
  %186 = vmatpush1.msra.mxu0 0.0
  %187 = vmatprep.subr.mxu0 0.0
  %188 = vmatpush1.msra.mxu0 0.0
  %189 = vmatprep.subr.mxu0 0.0
  %190 = vmatpush1.msra.mxu0 0.0
  %191 = vmatprep.subr.mxu0 0.0
  %192 = vmatpush1.msra.mxu0 0.0
  %193 = vmatprep.subr.mxu0 0.0
  %194 = vmatpush1.msra.mxu0 0.0
  %195 = vmatprep.subr.mxu0 0.0
  %196 = vmatpush1.msra.mxu0 0.0
  %197 = vmatprep.subr.mxu0 0.0
  %198 = vmatpush1.msra.mxu0 0.0
  %199 = vmatprep.subr.mxu0 0.0
  %200 = vmatpush1.msra.mxu0 0.0
  %201 = vmatprep.subr.mxu0 0.0
  %202 = vmatpush1.msra.mxu0 0.0
  %203 = vmatprep.subr.mxu0 0.0
  %204 = vmatpush1.msra.mxu0 0.0
  %205 = vmatprep.mubr.f32.mxu0 0.0
  %206 = vmatmul.mubr.f32.gmra.mrb[0].mxu0 %v139
  %v207 = vpop.f32.mrb[0].mxu0
  %v208 = vadd.f32 %v133, %v207
  %v209 = vpop.f32.mrb[0].mxu0
  %210 = vdwg.mxu0
  %s211 = scalar_lea.vmem %s2, 256
  %v212 = vld [vmem:[%s211] sm:$0xff]
  %v213 = vld [vmem:[%s211 + $0x8] sm:$0xff]
  %v214 = vld [vmem:[%s211 + $0x10] sm:$0xff]
  %v215 = vld [vmem:[%s211 + $0x18] sm:$0xff]
  %v216 = vld [vmem:[%s211 + $0x20] sm:$0xff]
  %v217 = vld [vmem:[%s211 + $0x28] sm:$0xff]
  %v218 = vld [vmem:[%s211 + $0x30] sm:$0xff]
  %v219 = vld [vmem:[%s211 + $0x38] sm:$0xff]
  %v220 = vld [vmem:[%s211 + $0x40] sm:$0xff]
  %v221 = vld [vmem:[%s211 + $0x48] sm:$0xff]
  %v222 = vld [vmem:[%s211 + $0x50] sm:$0xff]
  %v223 = vld [vmem:[%s211 + $0x58] sm:$0xff]
  %v224 = vld [vmem:[%s211 + $0x60] sm:$0xff]
  %v225 = vld [vmem:[%s211 + $0x68] sm:$0xff]
  %v226 = vld [vmem:[%s211 + $0x70] sm:$0xff]
  %v227 = vld [vmem:[%s211 + $0x78] sm:$0xff]
  %v228 = vrot.slane %v23, 1
  %v229 = vsel %vm63, %v24, %v228
  %231 = vmatprep.subr.mxu0 0.0
  %232 = vmatpush1.msra.mxu0 %v212
  %233 = vmatprep.subr.mxu0 0.0
  %234 = vmatpush1.msra.mxu0 %v213
  %235 = vmatprep.subr.mxu0 0.0
  %236 = vmatpush1.msra.mxu0 %v214
  %237 = vmatprep.subr.mxu0 0.0
  %238 = vmatpush1.msra.mxu0 %v215
  %239 = vmatprep.subr.mxu0 0.0
  %240 = vmatpush1.msra.mxu0 %v216
  %241 = vmatprep.subr.mxu0 0.0
  %242 = vmatpush1.msra.mxu0 %v217
  %243 = vmatprep.subr.mxu0 0.0
  %244 = vmatpush1.msra.mxu0 %v218
  %245 = vmatprep.subr.mxu0 0.0
  %246 = vmatpush1.msra.mxu0 %v219
  %247 = vmatprep.subr.mxu0 0.0
  %248 = vmatpush1.msra.mxu0 %v220
  %249 = vmatprep.subr.mxu0 0.0
  %250 = vmatpush1.msra.mxu0 %v221
  %251 = vmatprep.subr.mxu0 0.0
  %252 = vmatpush1.msra.mxu0 %v222
  %253 = vmatprep.subr.mxu0 0.0
  %254 = vmatpush1.msra.mxu0 %v223
  %255 = vmatprep.subr.mxu0 0.0
  %256 = vmatpush1.msra.mxu0 %v224
  %257 = vmatprep.subr.mxu0 0.0
  %258 = vmatpush1.msra.mxu0 %v225
  %259 = vmatprep.subr.mxu0 0.0
  %260 = vmatpush1.msra.mxu0 %v226
  %261 = vmatprep.subr.mxu0 0.0
  %262 = vmatpush1.msra.mxu0 %v227
  %263 = vmatprep.subr.mxu0 0.0
  %264 = vmatpush1.msra.mxu0 0.0
  %265 = vmatprep.subr.mxu0 0.0
  %266 = vmatpush1.msra.mxu0 0.0
  %267 = vmatprep.subr.mxu0 0.0
  %268 = vmatpush1.msra.mxu0 0.0
  %269 = vmatprep.subr.mxu0 0.0
  %270 = vmatpush1.msra.mxu0 0.0
  %271 = vmatprep.subr.mxu0 0.0
  %272 = vmatpush1.msra.mxu0 0.0
  %273 = vmatprep.subr.mxu0 0.0
  %274 = vmatpush1.msra.mxu0 0.0
  %275 = vmatprep.subr.mxu0 0.0
  %276 = vmatpush1.msra.mxu0 0.0
  %277 = vmatprep.subr.mxu0 0.0
  %278 = vmatpush1.msra.mxu0 0.0
  %279 = vmatprep.subr.mxu0 0.0
  %280 = vmatpush1.msra.mxu0 0.0
  %281 = vmatprep.subr.mxu0 0.0
  %282 = vmatpush1.msra.mxu0 0.0
  %283 = vmatprep.subr.mxu0 0.0
  %284 = vmatpush1.msra.mxu0 0.0
  %285 = vmatprep.subr.mxu0 0.0
  %286 = vmatpush1.msra.mxu0 0.0
  %287 = vmatprep.subr.mxu0 0.0
  %288 = vmatpush1.msra.mxu0 0.0
  %289 = vmatprep.subr.mxu0 0.0
  %290 = vmatpush1.msra.mxu0 0.0
  %291 = vmatprep.subr.mxu0 0.0
  %292 = vmatpush1.msra.mxu0 0.0
  %293 = vmatprep.subr.mxu0 0.0
  %294 = vmatpush1.msra.mxu0 0.0
  %295 = vmatprep.mubr.f32.mxu0 0.0
  %296 = vmatmul.mubr.f32.gmra.mrb[0].mxu0 %v229
  %v297 = vpop.f32.mrb[0].mxu0
  %v298 = vadd.f32 0.0, %v297
  %v299 = vpop.f32.mrb[0].mxu0
  %300 = vdwg.mxu0
  %v301 = vadd.f32 %v208, %v298
  %v302 = vld [vmem:[%s3] sm:$0x1]
  %v304 = vlaneseq
  %v305 = vshrl.u32 %v304, 7
  %v306 = vsub.s32 0, %v305
  %v307 = vrot.slane %v302, %v306
  %v309 = vadd.f32 %v301, %v307
  %vm310 = vcmask 1041408
  %v311 = vsel %vm310, %v309, 0.0
  %v312 = vrot.slane %v311, 4
  %v313 = vadd.f32 %v311, %v312
  %v314 = vrot.slane %v313, 2
  %v315 = vadd.f32 %v313, %v314
  %v316 = vrot.slane %v315, 1
  %v317 = vadd.f32 %v315, %v316
  %v318 = vrcp.pop 2.0
  %v319 = vmul.f32 %v317, %v318
  %v320 = vsub.f32 %v309, %v319
  %v321 = vmul.f32 %v320, %v320
  %v322 = vsel %vm310, %v321, 0.0
  %v323 = vrot.slane %v322, 4
  %v324 = vadd.f32 %v322, %v323
  %v325 = vrot.slane %v324, 2
  %v326 = vadd.f32 %v324, %v325
  %v327 = vrot.slane %v326, 1
  %v328 = vadd.f32 %v326, %v327
  %v329 = vmul.f32 %v328, %v318
  %v330 = vadd.f32 %v329, 1e-05
  %v331 = vrsqrt.pop %v330
  %v332 = vmul.f32 %v320, %v331
  %v333 = vld [vmem:[%s4] sm:$0x1]
  %v335 = vlaneseq
  %v336 = vshrl.u32 %v335, 7
  %v337 = vsub.s32 0, %v336
  %v338 = vrot.slane %v333, %v337
  %v340 = vmul.f32 %v332, %v338
  %v341 = vld [vmem:[%s5] sm:$0x1]
  %v343 = vlaneseq
  %v344 = vshrl.u32 %v343, 7
  %v345 = vsub.s32 0, %v344
  %v346 = vrot.slane %v341, %v345
  %v348 = vadd.f32 %v340, %v346
  %v349 = vmax.f32 %v348, 0.0
  %v352 = vunpack.c.l.s4 1966171168
  %v353 = vunpack.c.0.s8 %v352
  %v354 = vlaneseq
  %v355 = vshrl.u32 %v354, 7
  %v356 = vsub.s32 %v353, %v355
  %v357 = vrot.slane %v349, %v356
  %v358 = vcombine.high %v357, %v357
  %v360 = vunpack.c.l.s4 1966171168
  %v361 = vunpack.c.0.s8 %v360
  %v362 = vlaneseq
  %v363 = vshrl.u32 %v362, 7
  %v364 = vsub.s32 %v361, %v363
  %v365 = vrot.slane %v357, %v364
  %v367 = vunpack.c.l.s4 1966171168
  %v368 = vunpack.c.0.s8 %v367
  %v369 = vlaneseq
  %v370 = vshrl.u32 %v369, 7
  %v371 = vsub.s32 %v368, %v370
  %v372 = vrot.slane %v358, %v371
  %375 = vst [vmem:[%s6] sm:$0x1] %v365
  %376 = vst [vmem:[%s6 + $0x1] sm:$0x1] %v372
  // Predicated region
  $region26: #{_lambda_.39} parent=0 // pred_check
    _
  $region27: #{_lambda_.39} parent=0 // pred_check_branch
    %378 = sbr.rel (0) target = $region29
  $region28: #{_lambda_.39} parent=0 // pred_region
    _
  $region29: #{_lambda_.39} parent=0 // pred_fallthru
    _
  // Predicated region
  $region30: #{_lambda_.39} parent=0 // pred_check
    _
  $region31: #{_lambda_.39} parent=0 // pred_check_branch
    %380 = sbr.rel (0) target = $region33
  $region32: #{_lambda_.39} parent=0 // pred_region
    _
  $region33: #{_lambda_.39} parent=0 // pred_fallthru
    _

// kernel: _lambda_.43
$region0: #{_lambda_.43}
  #allocation0 [shape = 'u32[]', space=smem, size = 0x4, offset = 0x4, fixed_abs, tag = 'smem constant byte address 0x4 - core index']
  #allocation1 [shape = 'u32[144,128]{1,0:T(1,128)}', space=vmem, size = 0x12000, scoped, tag = 'internal scratch']
  %s0 = inlined_call_operand.vmem [shape: f32[2,1,128], index: 0, kind: input, shape index: {}]
  %s1 = inlined_call_operand.vmem [shape: f32[128,128], index: 1, kind: input, shape index: {}]
  %s2 = inlined_call_operand.vmem [shape: f32[1,128], index: 2, kind: input, shape index: {}]
  %s3 = inlined_call_operand.hbm [shape: f32[2,128], index: 3, kind: output, shape index: {}]
  %s4 = sld [smem:[#allocation0]]
  $region22: #{_lambda_.43} parent=0
    _
  %s6 = ssub.s32 1, %s4
  %s7 = scalar_select 0, %s6, %s4
  $region1: #{_lambda_.43} parent=0
    #allocation2 [shape = 'u8[1024]{0}', space=vmem, size = 0x400, scoped, tag = 'output window, operand 0, single buffered']
    #allocation3 [shape = 's32[1]{0}', space=sflag, size = 0x4, scoped, tag = 'scoped memory for _lambda_.43']
    %8 = vsyncpa [#allocation3], 0
    // Predicated region
    $region2: #{_lambda_.43} parent=1 // pred_check
      _
    $region3: #{_lambda_.43} parent=1 // pred_check_branch
      %10 = sbr.rel (0) target = $region5
    $region4: #{_lambda_.43} parent=1 // pred_region
      _
    $region5: #{_lambda_.43} parent=1 // pred_fallthru
      _
    // Predicated region
    $region6: #{_lambda_.43} parent=1 // pred_check
      _
    $region7: #{_lambda_.43} parent=1 // pred_check_branch
      %12 = sbr.rel (0) target = $region9
    $region8: #{_lambda_.43} parent=1 // pred_region
      _
    $region9: #{_lambda_.43} parent=1 // pred_fallthru
      _
    // Predicated region
    $region10: #{_lambda_.43} parent=1 // pred_check
      _
    $region11: #{_lambda_.43} parent=1 // pred_check_branch
      %14 = sbr.rel (0) target = $region13
    $region12: #{_lambda_.43} parent=1 // pred_region
      _
    $region13: #{_lambda_.43} parent=1 // pred_fallthru
      _
    %v15 = vld [vmem:[%s0] sm:$0x1]
    %v16 = vld [vmem:[%s0 + $0x1] sm:$0x1]
    %v17 = vadd.f32 %v15, 0.0
    %v18 = vadd.f32 %v16, 0.0
    %v19 = vld [vmem:[%s1] sm:$0xff]
    %v20 = vld [vmem:[%s1 + $0x8] sm:$0xff]
    %v21 = vld [vmem:[%s1 + $0x10] sm:$0xff]
    %v22 = vld [vmem:[%s1 + $0x18] sm:$0xff]
    %v23 = vld [vmem:[%s1 + $0x20] sm:$0xff]
    %v24 = vld [vmem:[%s1 + $0x28] sm:$0xff]
    %v25 = vld [vmem:[%s1 + $0x30] sm:$0xff]
    %v26 = vld [vmem:[%s1 + $0x38] sm:$0xff]
    %v27 = vld [vmem:[%s1 + $0x40] sm:$0xff]
    %v28 = vld [vmem:[%s1 + $0x48] sm:$0xff]
    %v29 = vld [vmem:[%s1 + $0x50] sm:$0xff]
    %v30 = vld [vmem:[%s1 + $0x58] sm:$0xff]
    %v31 = vld [vmem:[%s1 + $0x60] sm:$0xff]
    %v32 = vld [vmem:[%s1 + $0x68] sm:$0xff]
    %v33 = vld [vmem:[%s1 + $0x70] sm:$0xff]
    %v34 = vld [vmem:[%s1 + $0x78] sm:$0xff]
    %v35 = vld [vmem:[%s2] sm:$0x1]
    %v37 = vlaneseq
    %v38 = vshrl.u32 %v37, 7
    %v39 = vsub.s32 0, %v38
    %v40 = vrot.slane %v35, %v39
    %v44 = vcombine.low %v17, %v18
    %v46 = vunpack.c.l.s4 1966171168
    %v47 = vunpack.c.0.s8 %v46
    %v48 = vlaneseq
    %v49 = vshrl.u32 %v48, 7
    %v50 = vsub.s32 %v47, %v49
    %v51 = vrot.slane %v44, %v50
    %v53 = vunpack.c.l.s4 1966171168
    %v54 = vunpack.c.0.s8 %v53
    %v55 = vlaneseq
    %v56 = vshrl.u32 %v55, 7
    %v57 = vsub.s32 %v54, %v56
    %v58 = vrot.slane %v51, %v57
    %60 = vmatprep.subr.mxu0 0.0
    %61 = vmatpush1.msra.mxu0 %v19
    %62 = vmatprep.subr.mxu0 0.0
    %63 = vmatpush1.msra.mxu0 %v20
    %64 = vmatprep.subr.mxu0 0.0
    %65 = vmatpush1.msra.mxu0 %v21
    %66 = vmatprep.subr.mxu0 0.0
    %67 = vmatpush1.msra.mxu0 %v22
    %68 = vmatprep.subr.mxu0 0.0
    %69 = vmatpush1.msra.mxu0 %v23
    %70 = vmatprep.subr.mxu0 0.0
    %71 = vmatpush1.msra.mxu0 %v24
    %72 = vmatprep.subr.mxu0 0.0
    %73 = vmatpush1.msra.mxu0 %v25
    %74 = vmatprep.subr.mxu0 0.0
    %75 = vmatpush1.msra.mxu0 %v26
    %76 = vmatprep.subr.mxu0 0.0
    %77 = vmatpush1.msra.mxu0 %v27
    %78 = vmatprep.subr.mxu0 0.0
    %79 = vmatpush1.msra.mxu0 %v28
    %80 = vmatprep.subr.mxu0 0.0
    %81 = vmatpush1.msra.mxu0 %v29
    %82 = vmatprep.subr.mxu0 0.0
    %83 = vmatpush1.msra.mxu0 %v30
    %84 = vmatprep.subr.mxu0 0.0
    %85 = vmatpush1.msra.mxu0 %v31
    %86 = vmatprep.subr.mxu0 0.0
    %87 = vmatpush1.msra.mxu0 %v32
    %88 = vmatprep.subr.mxu0 0.0
    %89 = vmatpush1.msra.mxu0 %v33
    %90 = vmatprep.subr.mxu0 0.0
    %91 = vmatpush1.msra.mxu0 %v34
    %92 = vmatprep.subr.mxu0 0.0
    %93 = vmatpush1.msra.mxu0 0.0
    %94 = vmatprep.subr.mxu0 0.0
    %95 = vmatpush1.msra.mxu0 0.0
    %96 = vmatprep.subr.mxu0 0.0
    %97 = vmatpush1.msra.mxu0 0.0
    %98 = vmatprep.subr.mxu0 0.0
    %99 = vmatpush1.msra.mxu0 0.0
    %100 = vmatprep.subr.mxu0 0.0
    %101 = vmatpush1.msra.mxu0 0.0
    %102 = vmatprep.subr.mxu0 0.0
    %103 = vmatpush1.msra.mxu0 0.0
    %104 = vmatprep.subr.mxu0 0.0
    %105 = vmatpush1.msra.mxu0 0.0
    %106 = vmatprep.subr.mxu0 0.0
    %107 = vmatpush1.msra.mxu0 0.0
    %108 = vmatprep.subr.mxu0 0.0
    %109 = vmatpush1.msra.mxu0 0.0
    %110 = vmatprep.subr.mxu0 0.0
    %111 = vmatpush1.msra.mxu0 0.0
    %112 = vmatprep.subr.mxu0 0.0
    %113 = vmatpush1.msra.mxu0 0.0
    %114 = vmatprep.subr.mxu0 0.0
    %115 = vmatpush1.msra.mxu0 0.0
    %116 = vmatprep.subr.mxu0 0.0
    %117 = vmatpush1.msra.mxu0 0.0
    %118 = vmatprep.subr.mxu0 0.0
    %119 = vmatpush1.msra.mxu0 0.0
    %120 = vmatprep.subr.mxu0 0.0
    %121 = vmatpush1.msra.mxu0 0.0
    %122 = vmatprep.subr.mxu0 0.0
    %123 = vmatpush1.msra.mxu0 0.0
    %124 = vmatprep.mubr.f32.mxu0 0.0
    %125 = vmatmul.mubr.f32.gmra.mrb[0].mxu0 %v58
    %v126 = vpop.f32.mrb[0].mxu0
    %v127 = vadd.f32 %v40, %v126
    %v128 = vpop.f32.mrb[0].mxu0
    %129 = vdwg.mxu0
    %130 = vst [vmem:[#allocation2] sm:$0x3] %v127
    // Predicated region
    $region14: #{_lambda_.43} parent=1 // pred_check
      _
    $region15: #{_lambda_.43} parent=1 // pred_check_branch
      %132 = sbr.rel (0) target = $region17
    $region16: #{_lambda_.43} parent=1 // pred_region
      %s134 = ssub.s32 32, 32
      %135 = vsyncadd [#allocation3], %s134
      %s137 = sshll.u32 [#allocation2], 4
      %s138 = int_to_ptr.vmem [resolvable:$true] %s137
      %140 = dma.vmem_to_hbm [thread:$0]  %s138, 32, %s3, [#allocation3]
    $region17: #{_lambda_.43} parent=1 // pred_fallthru
      _
    // Predicated region
    $region18: #{_lambda_.43} parent=1 // pred_check
      _
    $region19: #{_lambda_.43} parent=1 // pred_check_branch
      %142 = sbr.rel (0) target = $region21
    $region20: #{_lambda_.43} parent=1 // pred_region
      %143 = dma.done [#allocation3], 32
    $region21: #{_lambda_.43} parent=1 // pred_fallthru
      _
    %144 = vsyncpa [#allocation3], 1

// kernel: _lambda_.40
$region0: #{_lambda_.40}
  #allocation0 [shape = 'u32[]', space=smem, size = 0x4, offset = 0x4, fixed_abs, tag = 'smem constant byte address 0x4 - core index']
  #allocation1 [shape = 'u32[144,128]{1,0:T(1,128)}', space=vmem, size = 0x12000, scoped, tag = 'internal scratch']
  %s0 = inlined_call_operand.vmem [shape: f32[2,3,128], index: 0, kind: input, shape index: {}]
  %s1 = inlined_call_operand.vmem [shape: f32[3,128,128], index: 1, kind: input, shape index: {}]
  %s2 = inlined_call_operand.vmem [shape: f32[1,128], index: 2, kind: input, shape index: {}]
  %s3 = inlined_call_operand.vmem [shape: f32[1,128], index: 3, kind: input, shape index: {}]
  %s4 = inlined_call_operand.vmem [shape: f32[1,128], index: 4, kind: input, shape index: {}]
  %s5 = inlined_call_operand.vmem [shape: f32[2,1,128], index: 5, kind: input, shape index: {}]
  %s6 = inlined_call_operand.vmem [shape: f32[2,1,128], index: 6, kind: output, shape index: {}]
  %s7 = sld [smem:[#allocation0]]
  $region34: #{_lambda_.40} parent=0
    _
  %s9 = ssub.s32 1, %s7
  %s10 = scalar_select 0, %s9, %s7
  // Predicated region
  $region2: #{_lambda_.40} parent=0 // pred_check
    _
  $region3: #{_lambda_.40} parent=0 // pred_check_branch
    %12 = sbr.rel (0) target = $region5
  $region4: #{_lambda_.40} parent=0 // pred_region
    _
  $region5: #{_lambda_.40} parent=0 // pred_fallthru
    _
  // Predicated region
  $region6: #{_lambda_.40} parent=0 // pred_check
    _
  $region7: #{_lambda_.40} parent=0 // pred_check_branch
    %14 = sbr.rel (0) target = $region9
  $region8: #{_lambda_.40} parent=0 // pred_region
    _
  $region9: #{_lambda_.40} parent=0 // pred_fallthru
    _
  // Predicated region
  $region10: #{_lambda_.40} parent=0 // pred_check
    _
  $region11: #{_lambda_.40} parent=0 // pred_check_branch
    %16 = sbr.rel (0) target = $region13
  $region12: #{_lambda_.40} parent=0 // pred_region
    _
  $region13: #{_lambda_.40} parent=0 // pred_fallthru
    _
  // Predicated region
  $region14: #{_lambda_.40} parent=0 // pred_check
    _
  $region15: #{_lambda_.40} parent=0 // pred_check_branch
    %18 = sbr.rel (0) target = $region17
  $region16: #{_lambda_.40} parent=0 // pred_region
    _
  $region17: #{_lambda_.40} parent=0 // pred_fallthru
    _
  // Predicated region
  $region18: #{_lambda_.40} parent=0 // pred_check
    _
  $region19: #{_lambda_.40} parent=0 // pred_check_branch
    %20 = sbr.rel (0) target = $region21
  $region20: #{_lambda_.40} parent=0 // pred_region
    _
  $region21: #{_lambda_.40} parent=0 // pred_fallthru
    _
  // Predicated region
  $region22: #{_lambda_.40} parent=0 // pred_check
    _
  $region23: #{_lambda_.40} parent=0 // pred_check_branch
    %22 = sbr.rel (0) target = $region25
  $region24: #{_lambda_.40} parent=0 // pred_region
    _
  $region25: #{_lambda_.40} parent=0 // pred_fallthru
    _
  %v23 = vld [vmem:[%s0] sm:$0x7]
  %v24 = vld [vmem:[%s0 + $0x4] sm:$0x7]
  %v25 = vld [vmem:[%s1] sm:$0xff]
  %v26 = vld [vmem:[%s1 + $0x8] sm:$0xff]
  %v27 = vld [vmem:[%s1 + $0x10] sm:$0xff]
  %v28 = vld [vmem:[%s1 + $0x18] sm:$0xff]
  %v29 = vld [vmem:[%s1 + $0x20] sm:$0xff]
  %v30 = vld [vmem:[%s1 + $0x28] sm:$0xff]
  %v31 = vld [vmem:[%s1 + $0x30] sm:$0xff]
  %v32 = vld [vmem:[%s1 + $0x38] sm:$0xff]
  %v33 = vld [vmem:[%s1 + $0x40] sm:$0xff]
  %v34 = vld [vmem:[%s1 + $0x48] sm:$0xff]
  %v35 = vld [vmem:[%s1 + $0x50] sm:$0xff]
  %v36 = vld [vmem:[%s1 + $0x58] sm:$0xff]
  %v37 = vld [vmem:[%s1 + $0x60] sm:$0xff]
  %v38 = vld [vmem:[%s1 + $0x68] sm:$0xff]
  %v39 = vld [vmem:[%s1 + $0x70] sm:$0xff]
  %v40 = vld [vmem:[%s1 + $0x78] sm:$0xff]
  %s41 = scalar_lea.vmem %s1, 128
  %v42 = vld [vmem:[%s41] sm:$0xff]
  %v43 = vld [vmem:[%s41 + $0x8] sm:$0xff]
  %v44 = vld [vmem:[%s41 + $0x10] sm:$0xff]
  %v45 = vld [vmem:[%s41 + $0x18] sm:$0xff]
  %v46 = vld [vmem:[%s41 + $0x20] sm:$0xff]
  %v47 = vld [vmem:[%s41 + $0x28] sm:$0xff]
  %v48 = vld [vmem:[%s41 + $0x30] sm:$0xff]
  %v49 = vld [vmem:[%s41 + $0x38] sm:$0xff]
  %v50 = vld [vmem:[%s41 + $0x40] sm:$0xff]
  %v51 = vld [vmem:[%s41 + $0x48] sm:$0xff]
  %v52 = vld [vmem:[%s41 + $0x50] sm:$0xff]
  %v53 = vld [vmem:[%s41 + $0x58] sm:$0xff]
  %v54 = vld [vmem:[%s41 + $0x60] sm:$0xff]
  %v55 = vld [vmem:[%s41 + $0x68] sm:$0xff]
  %v56 = vld [vmem:[%s41 + $0x70] sm:$0xff]
  %v57 = vld [vmem:[%s41 + $0x78] sm:$0xff]
  %v60 = vrot.slane %v23, 1
  %vm61 = vcmask 1041409
  %v62 = vsel %vm61, %v24, %v60
  %64 = vmatprep.subr.mxu0 0.0
  %65 = vmatpush1.msra.mxu0 %v42
  %66 = vmatprep.subr.mxu0 0.0
  %67 = vmatpush1.msra.mxu0 %v43
  %68 = vmatprep.subr.mxu0 0.0
  %69 = vmatpush1.msra.mxu0 %v44
  %70 = vmatprep.subr.mxu0 0.0
  %71 = vmatpush1.msra.mxu0 %v45
  %72 = vmatprep.subr.mxu0 0.0
  %73 = vmatpush1.msra.mxu0 %v46
  %74 = vmatprep.subr.mxu0 0.0
  %75 = vmatpush1.msra.mxu0 %v47
  %76 = vmatprep.subr.mxu0 0.0
  %77 = vmatpush1.msra.mxu0 %v48
  %78 = vmatprep.subr.mxu0 0.0
  %79 = vmatpush1.msra.mxu0 %v49
  %80 = vmatprep.subr.mxu0 0.0
  %81 = vmatpush1.msra.mxu0 %v50
  %82 = vmatprep.subr.mxu0 0.0
  %83 = vmatpush1.msra.mxu0 %v51
  %84 = vmatprep.subr.mxu0 0.0
  %85 = vmatpush1.msra.mxu0 %v52
  %86 = vmatprep.subr.mxu0 0.0
  %87 = vmatpush1.msra.mxu0 %v53
  %88 = vmatprep.subr.mxu0 0.0
  %89 = vmatpush1.msra.mxu0 %v54
  %90 = vmatprep.subr.mxu0 0.0
  %91 = vmatpush1.msra.mxu0 %v55
  %92 = vmatprep.subr.mxu0 0.0
  %93 = vmatpush1.msra.mxu0 %v56
  %94 = vmatprep.subr.mxu0 0.0
  %95 = vmatpush1.msra.mxu0 %v57
  %96 = vmatprep.subr.mxu0 0.0
  %97 = vmatpush1.msra.mxu0 0.0
  %98 = vmatprep.subr.mxu0 0.0
  %99 = vmatpush1.msra.mxu0 0.0
  %100 = vmatprep.subr.mxu0 0.0
  %101 = vmatpush1.msra.mxu0 0.0
  %102 = vmatprep.subr.mxu0 0.0
  %103 = vmatpush1.msra.mxu0 0.0
  %104 = vmatprep.subr.mxu0 0.0
  %105 = vmatpush1.msra.mxu0 0.0
  %106 = vmatprep.subr.mxu0 0.0
  %107 = vmatpush1.msra.mxu0 0.0
  %108 = vmatprep.subr.mxu0 0.0
  %109 = vmatpush1.msra.mxu0 0.0
  %110 = vmatprep.subr.mxu0 0.0
  %111 = vmatpush1.msra.mxu0 0.0
  %112 = vmatprep.subr.mxu0 0.0
  %113 = vmatpush1.msra.mxu0 0.0
  %114 = vmatprep.subr.mxu0 0.0
  %115 = vmatpush1.msra.mxu0 0.0
  %116 = vmatprep.subr.mxu0 0.0
  %117 = vmatpush1.msra.mxu0 0.0
  %118 = vmatprep.subr.mxu0 0.0
  %119 = vmatpush1.msra.mxu0 0.0
  %120 = vmatprep.subr.mxu0 0.0
  %121 = vmatpush1.msra.mxu0 0.0
  %122 = vmatprep.subr.mxu0 0.0
  %123 = vmatpush1.msra.mxu0 0.0
  %124 = vmatprep.subr.mxu0 0.0
  %125 = vmatpush1.msra.mxu0 0.0
  %126 = vmatprep.subr.mxu0 0.0
  %127 = vmatpush1.msra.mxu0 0.0
  %128 = vmatprep.mubr.f32.mxu0 0.0
  %129 = vmatmul.mubr.f32.gmra.mrb[0].mxu0 %v62
  %v130 = vpop.f32.mrb[0].mxu0
  %v131 = vadd.f32 0.0, %v130
  %v132 = vpop.f32.mrb[0].mxu0
  %133 = vdwg.mxu0
  %v134 = vrot.slane %v24, 7
  %v135 = vsel %vm61, %v134, %v23
  %137 = vmatprep.subr.mxu0 0.0
  %138 = vmatpush1.msra.mxu0 %v25
  %139 = vmatprep.subr.mxu0 0.0
  %140 = vmatpush1.msra.mxu0 %v26
  %141 = vmatprep.subr.mxu0 0.0
  %142 = vmatpush1.msra.mxu0 %v27
  %143 = vmatprep.subr.mxu0 0.0
  %144 = vmatpush1.msra.mxu0 %v28
  %145 = vmatprep.subr.mxu0 0.0
  %146 = vmatpush1.msra.mxu0 %v29
  %147 = vmatprep.subr.mxu0 0.0
  %148 = vmatpush1.msra.mxu0 %v30
  %149 = vmatprep.subr.mxu0 0.0
  %150 = vmatpush1.msra.mxu0 %v31
  %151 = vmatprep.subr.mxu0 0.0
  %152 = vmatpush1.msra.mxu0 %v32
  %153 = vmatprep.subr.mxu0 0.0
  %154 = vmatpush1.msra.mxu0 %v33
  %155 = vmatprep.subr.mxu0 0.0
  %156 = vmatpush1.msra.mxu0 %v34
  %157 = vmatprep.subr.mxu0 0.0
  %158 = vmatpush1.msra.mxu0 %v35
  %159 = vmatprep.subr.mxu0 0.0
  %160 = vmatpush1.msra.mxu0 %v36
  %161 = vmatprep.subr.mxu0 0.0
  %162 = vmatpush1.msra.mxu0 %v37
  %163 = vmatprep.subr.mxu0 0.0
  %164 = vmatpush1.msra.mxu0 %v38
  %165 = vmatprep.subr.mxu0 0.0
  %166 = vmatpush1.msra.mxu0 %v39
  %167 = vmatprep.subr.mxu0 0.0
  %168 = vmatpush1.msra.mxu0 %v40
  %169 = vmatprep.subr.mxu0 0.0
  %170 = vmatpush1.msra.mxu0 0.0
  %171 = vmatprep.subr.mxu0 0.0
  %172 = vmatpush1.msra.mxu0 0.0
  %173 = vmatprep.subr.mxu0 0.0
  %174 = vmatpush1.msra.mxu0 0.0
  %175 = vmatprep.subr.mxu0 0.0
  %176 = vmatpush1.msra.mxu0 0.0
  %177 = vmatprep.subr.mxu0 0.0
  %178 = vmatpush1.msra.mxu0 0.0
  %179 = vmatprep.subr.mxu0 0.0
  %180 = vmatpush1.msra.mxu0 0.0
  %181 = vmatprep.subr.mxu0 0.0
  %182 = vmatpush1.msra.mxu0 0.0
  %183 = vmatprep.subr.mxu0 0.0
  %184 = vmatpush1.msra.mxu0 0.0
  %185 = vmatprep.subr.mxu0 0.0
  %186 = vmatpush1.msra.mxu0 0.0
  %187 = vmatprep.subr.mxu0 0.0
  %188 = vmatpush1.msra.mxu0 0.0
  %189 = vmatprep.subr.mxu0 0.0
  %190 = vmatpush1.msra.mxu0 0.0
  %191 = vmatprep.subr.mxu0 0.0
  %192 = vmatpush1.msra.mxu0 0.0
  %193 = vmatprep.subr.mxu0 0.0
  %194 = vmatpush1.msra.mxu0 0.0
  %195 = vmatprep.subr.mxu0 0.0
  %196 = vmatpush1.msra.mxu0 0.0
  %197 = vmatprep.subr.mxu0 0.0
  %198 = vmatpush1.msra.mxu0 0.0
  %199 = vmatprep.subr.mxu0 0.0
  %200 = vmatpush1.msra.mxu0 0.0
  %201 = vmatprep.mubr.f32.mxu0 0.0
  %202 = vmatmul.mubr.f32.gmra.mrb[0].mxu0 %v135
  %v203 = vpop.f32.mrb[0].mxu0
  %v204 = vadd.f32 %v131, %v203
  %v205 = vpop.f32.mrb[0].mxu0
  %206 = vdwg.mxu0
  %s207 = scalar_lea.vmem %s1, 256
  %v208 = vld [vmem:[%s207] sm:$0xff]
  %v209 = vld [vmem:[%s207 + $0x8] sm:$0xff]
  %v210 = vld [vmem:[%s207 + $0x10] sm:$0xff]
  %v211 = vld [vmem:[%s207 + $0x18] sm:$0xff]
  %v212 = vld [vmem:[%s207 + $0x20] sm:$0xff]
  %v213 = vld [vmem:[%s207 + $0x28] sm:$0xff]
  %v214 = vld [vmem:[%s207 + $0x30] sm:$0xff]
  %v215 = vld [vmem:[%s207 + $0x38] sm:$0xff]
  %v216 = vld [vmem:[%s207 + $0x40] sm:$0xff]
  %v217 = vld [vmem:[%s207 + $0x48] sm:$0xff]
  %v218 = vld [vmem:[%s207 + $0x50] sm:$0xff]
  %v219 = vld [vmem:[%s207 + $0x58] sm:$0xff]
  %v220 = vld [vmem:[%s207 + $0x60] sm:$0xff]
  %v221 = vld [vmem:[%s207 + $0x68] sm:$0xff]
  %v222 = vld [vmem:[%s207 + $0x70] sm:$0xff]
  %v223 = vld [vmem:[%s207 + $0x78] sm:$0xff]
  %v224 = vrot.slane %v23, 2
  %v225 = vrot.slane %v24, 1
  %v226 = vsel %vm61, %v225, %v224
  %228 = vmatprep.subr.mxu0 0.0
  %229 = vmatpush1.msra.mxu0 %v208
  %230 = vmatprep.subr.mxu0 0.0
  %231 = vmatpush1.msra.mxu0 %v209
  %232 = vmatprep.subr.mxu0 0.0
  %233 = vmatpush1.msra.mxu0 %v210
  %234 = vmatprep.subr.mxu0 0.0
  %235 = vmatpush1.msra.mxu0 %v211
  %236 = vmatprep.subr.mxu0 0.0
  %237 = vmatpush1.msra.mxu0 %v212
  %238 = vmatprep.subr.mxu0 0.0
  %239 = vmatpush1.msra.mxu0 %v213
  %240 = vmatprep.subr.mxu0 0.0
  %241 = vmatpush1.msra.mxu0 %v214
  %242 = vmatprep.subr.mxu0 0.0
  %243 = vmatpush1.msra.mxu0 %v215
  %244 = vmatprep.subr.mxu0 0.0
  %245 = vmatpush1.msra.mxu0 %v216
  %246 = vmatprep.subr.mxu0 0.0
  %247 = vmatpush1.msra.mxu0 %v217
  %248 = vmatprep.subr.mxu0 0.0
  %249 = vmatpush1.msra.mxu0 %v218
  %250 = vmatprep.subr.mxu0 0.0
  %251 = vmatpush1.msra.mxu0 %v219
  %252 = vmatprep.subr.mxu0 0.0
  %253 = vmatpush1.msra.mxu0 %v220
  %254 = vmatprep.subr.mxu0 0.0
  %255 = vmatpush1.msra.mxu0 %v221
  %256 = vmatprep.subr.mxu0 0.0
  %257 = vmatpush1.msra.mxu0 %v222
  %258 = vmatprep.subr.mxu0 0.0
  %259 = vmatpush1.msra.mxu0 %v223
  %260 = vmatprep.subr.mxu0 0.0
  %261 = vmatpush1.msra.mxu0 0.0
  %262 = vmatprep.subr.mxu0 0.0
  %263 = vmatpush1.msra.mxu0 0.0
  %264 = vmatprep.subr.mxu0 0.0
  %265 = vmatpush1.msra.mxu0 0.0
  %266 = vmatprep.subr.mxu0 0.0
  %267 = vmatpush1.msra.mxu0 0.0
  %268 = vmatprep.subr.mxu0 0.0
  %269 = vmatpush1.msra.mxu0 0.0
  %270 = vmatprep.subr.mxu0 0.0
  %271 = vmatpush1.msra.mxu0 0.0
  %272 = vmatprep.subr.mxu0 0.0
  %273 = vmatpush1.msra.mxu0 0.0
  %274 = vmatprep.subr.mxu0 0.0
  %275 = vmatpush1.msra.mxu0 0.0
  %276 = vmatprep.subr.mxu0 0.0
  %277 = vmatpush1.msra.mxu0 0.0
  %278 = vmatprep.subr.mxu0 0.0
  %279 = vmatpush1.msra.mxu0 0.0
  %280 = vmatprep.subr.mxu0 0.0
  %281 = vmatpush1.msra.mxu0 0.0
  %282 = vmatprep.subr.mxu0 0.0
  %283 = vmatpush1.msra.mxu0 0.0
  %284 = vmatprep.subr.mxu0 0.0
  %285 = vmatpush1.msra.mxu0 0.0
  %286 = vmatprep.subr.mxu0 0.0
  %287 = vmatpush1.msra.mxu0 0.0
  %288 = vmatprep.subr.mxu0 0.0
  %289 = vmatpush1.msra.mxu0 0.0
  %290 = vmatprep.subr.mxu0 0.0
  %291 = vmatpush1.msra.mxu0 0.0
  %292 = vmatprep.mubr.f32.mxu0 0.0
  %293 = vmatmul.mubr.f32.gmra.mrb[0].mxu0 %v226
  %v294 = vpop.f32.mrb[0].mxu0
  %v295 = vadd.f32 0.0, %v294
  %v296 = vpop.f32.mrb[0].mxu0
  %297 = vdwg.mxu0
  %v298 = vadd.f32 %v204, %v295
  %v299 = vld [vmem:[%s2] sm:$0x1]
  %v301 = vlaneseq
  %v302 = vshrl.u32 %v301, 7
  %v303 = vsub.s32 0, %v302
  %v304 = vrot.slane %v299, %v303
  %v306 = vadd.f32 %v298, %v304
  %vm307 = vcmask 1041408
  %v308 = vsel %vm307, %v306, 0.0
  %v309 = vrot.slane %v308, 4
  %v310 = vadd.f32 %v308, %v309
  %v311 = vrot.slane %v310, 2
  %v312 = vadd.f32 %v310, %v311
  %v313 = vrot.slane %v312, 1
  %v314 = vadd.f32 %v312, %v313
  %v315 = vrcp.pop 2.0
  %v316 = vmul.f32 %v314, %v315
  %v317 = vsub.f32 %v306, %v316
  %v318 = vmul.f32 %v317, %v317
  %v319 = vsel %vm307, %v318, 0.0
  %v320 = vrot.slane %v319, 4
  %v321 = vadd.f32 %v319, %v320
  %v322 = vrot.slane %v321, 2
  %v323 = vadd.f32 %v321, %v322
  %v324 = vrot.slane %v323, 1
  %v325 = vadd.f32 %v323, %v324
  %v326 = vmul.f32 %v325, %v315
  %v327 = vadd.f32 %v326, 1e-05
  %v328 = vrsqrt.pop %v327
  %v329 = vmul.f32 %v317, %v328
  %v330 = vld [vmem:[%s3] sm:$0x1]
  %v332 = vlaneseq
  %v333 = vshrl.u32 %v332, 7
  %v334 = vsub.s32 0, %v333
  %v335 = vrot.slane %v330, %v334
  %v337 = vmul.f32 %v329, %v335
  %v338 = vld [vmem:[%s4] sm:$0x1]
  %v340 = vlaneseq
  %v341 = vshrl.u32 %v340, 7
  %v342 = vsub.s32 0, %v341
  %v343 = vrot.slane %v338, %v342
  %v345 = vadd.f32 %v337, %v343
  %v346 = vld [vmem:[%s5] sm:$0x1]
  %v347 = vld [vmem:[%s5 + $0x1] sm:$0x1]
  %v350 = vcombine.low %v346, %v347
  %v352 = vunpack.c.l.s4 1966171168
  %v353 = vunpack.c.0.s8 %v352
  %v354 = vlaneseq
  %v355 = vshrl.u32 %v354, 7
  %v356 = vsub.s32 %v353, %v355
  %v357 = vrot.slane %v350, %v356
  %v359 = vunpack.c.l.s4 1966171168
  %v360 = vunpack.c.0.s8 %v359
  %v361 = vlaneseq
  %v362 = vshrl.u32 %v361, 7
  %v363 = vsub.s32 %v360, %v362
  %v364 = vrot.slane %v357, %v363
  %v366 = vadd.f32 %v345, %v364
  %v367 = vmax.f32 %v366, 0.0
  %v370 = vunpack.c.l.s4 1966171168
  %v371 = vunpack.c.0.s8 %v370
  %v372 = vlaneseq
  %v373 = vshrl.u32 %v372, 7
  %v374 = vsub.s32 %v371, %v373
  %v375 = vrot.slane %v367, %v374
  %v376 = vcombine.high %v375, %v375
  %v378 = vunpack.c.l.s4 1966171168
  %v379 = vunpack.c.0.s8 %v378
  %v380 = vlaneseq
  %v381 = vshrl.u32 %v380, 7
  %v382 = vsub.s32 %v379, %v381
  %v383 = vrot.slane %v375, %v382
  %v385 = vunpack.c.l.s4 1966171168
  %v386 = vunpack.c.0.s8 %v385
  %v387 = vlaneseq
  %v388 = vshrl.u32 %v387, 7
  %v389 = vsub.s32 %v386, %v388
  %v390 = vrot.slane %v376, %v389
  %393 = vst [vmem:[%s6] sm:$0x1] %v383
  %394 = vst [vmem:[%s6 + $0x1] sm:$0x1] %v390
  // Predicated region
  $region26: #{_lambda_.40} parent=0 // pred_check
    _
  $region27: #{_lambda_.40} parent=0 // pred_check_branch
    %396 = sbr.rel (0) target = $region29
  $region28: #{_lambda_.40} parent=0 // pred_region
    _
  $region29: #{_lambda_.40} parent=0 // pred_fallthru
    _
  // Predicated region
  $region30: #{_lambda_.40} parent=0 // pred_check
    _
  $region31: #{_lambda_.40} parent=0 // pred_check_branch
    %398 = sbr.rel (0) target = $region33
  $region32: #{_lambda_.40} parent=0 // pred_region
    _
  $region33: #{_lambda_.40} parent=0 // pred_fallthru
    _

// kernel: _lambda_.41
$region0: #{_lambda_.41}
  #allocation0 [shape = 'u32[]', space=smem, size = 0x4, offset = 0x4, fixed_abs, tag = 'smem constant byte address 0x4 - core index']
  #allocation1 [shape = 'u32[144,128]{1,0:T(1,128)}', space=vmem, size = 0x12000, scoped, tag = 'internal scratch']
  %s0 = inlined_call_operand.vmem [shape: f32[2,3,128], index: 0, kind: input, shape index: {}]
  %s1 = inlined_call_operand.vmem [shape: f32[3,128,128], index: 1, kind: input, shape index: {}]
  %s2 = inlined_call_operand.vmem [shape: f32[1,128], index: 2, kind: input, shape index: {}]
  %s3 = inlined_call_operand.vmem [shape: f32[1,128], index: 3, kind: input, shape index: {}]
  %s4 = inlined_call_operand.vmem [shape: f32[1,128], index: 4, kind: input, shape index: {}]
  %s5 = inlined_call_operand.vmem [shape: f32[2,1,128], index: 5, kind: output, shape index: {}]
  %s6 = sld [smem:[#allocation0]]
  $region30: #{_lambda_.41} parent=0
    _
  %s8 = ssub.s32 1, %s6
  %s9 = scalar_select 0, %s8, %s6
  // Predicated region
  $region2: #{_lambda_.41} parent=0 // pred_check
    _
  $region3: #{_lambda_.41} parent=0 // pred_check_branch
    %11 = sbr.rel (0) target = $region5
  $region4: #{_lambda_.41} parent=0 // pred_region
    _
  $region5: #{_lambda_.41} parent=0 // pred_fallthru
    _
  // Predicated region
  $region6: #{_lambda_.41} parent=0 // pred_check
    _
  $region7: #{_lambda_.41} parent=0 // pred_check_branch
    %13 = sbr.rel (0) target = $region9
  $region8: #{_lambda_.41} parent=0 // pred_region
    _
  $region9: #{_lambda_.41} parent=0 // pred_fallthru
    _
  // Predicated region
  $region10: #{_lambda_.41} parent=0 // pred_check
    _
  $region11: #{_lambda_.41} parent=0 // pred_check_branch
    %15 = sbr.rel (0) target = $region13
  $region12: #{_lambda_.41} parent=0 // pred_region
    _
  $region13: #{_lambda_.41} parent=0 // pred_fallthru
    _
  // Predicated region
  $region14: #{_lambda_.41} parent=0 // pred_check
    _
  $region15: #{_lambda_.41} parent=0 // pred_check_branch
    %17 = sbr.rel (0) target = $region17
  $region16: #{_lambda_.41} parent=0 // pred_region
    _
  $region17: #{_lambda_.41} parent=0 // pred_fallthru
    _
  // Predicated region
  $region18: #{_lambda_.41} parent=0 // pred_check
    _
  $region19: #{_lambda_.41} parent=0 // pred_check_branch
    %19 = sbr.rel (0) target = $region21
  $region20: #{_lambda_.41} parent=0 // pred_region
    _
  $region21: #{_lambda_.41} parent=0 // pred_fallthru
    _
  %v20 = vld [vmem:[%s0] sm:$0x7]
  %v21 = vld [vmem:[%s0 + $0x4] sm:$0x7]
  %v22 = vld [vmem:[%s1] sm:$0xff]
  %v23 = vld [vmem:[%s1 + $0x8] sm:$0xff]
  %v24 = vld [vmem:[%s1 + $0x10] sm:$0xff]
  %v25 = vld [vmem:[%s1 + $0x18] sm:$0xff]
  %v26 = vld [vmem:[%s1 + $0x20] sm:$0xff]
  %v27 = vld [vmem:[%s1 + $0x28] sm:$0xff]
  %v28 = vld [vmem:[%s1 + $0x30] sm:$0xff]
  %v29 = vld [vmem:[%s1 + $0x38] sm:$0xff]
  %v30 = vld [vmem:[%s1 + $0x40] sm:$0xff]
  %v31 = vld [vmem:[%s1 + $0x48] sm:$0xff]
  %v32 = vld [vmem:[%s1 + $0x50] sm:$0xff]
  %v33 = vld [vmem:[%s1 + $0x58] sm:$0xff]
  %v34 = vld [vmem:[%s1 + $0x60] sm:$0xff]
  %v35 = vld [vmem:[%s1 + $0x68] sm:$0xff]
  %v36 = vld [vmem:[%s1 + $0x70] sm:$0xff]
  %v37 = vld [vmem:[%s1 + $0x78] sm:$0xff]
  %s38 = scalar_lea.vmem %s1, 128
  %v39 = vld [vmem:[%s38] sm:$0xff]
  %v40 = vld [vmem:[%s38 + $0x8] sm:$0xff]
  %v41 = vld [vmem:[%s38 + $0x10] sm:$0xff]
  %v42 = vld [vmem:[%s38 + $0x18] sm:$0xff]
  %v43 = vld [vmem:[%s38 + $0x20] sm:$0xff]
  %v44 = vld [vmem:[%s38 + $0x28] sm:$0xff]
  %v45 = vld [vmem:[%s38 + $0x30] sm:$0xff]
  %v46 = vld [vmem:[%s38 + $0x38] sm:$0xff]
  %v47 = vld [vmem:[%s38 + $0x40] sm:$0xff]
  %v48 = vld [vmem:[%s38 + $0x48] sm:$0xff]
  %v49 = vld [vmem:[%s38 + $0x50] sm:$0xff]
  %v50 = vld [vmem:[%s38 + $0x58] sm:$0xff]
  %v51 = vld [vmem:[%s38 + $0x60] sm:$0xff]
  %v52 = vld [vmem:[%s38 + $0x68] sm:$0xff]
  %v53 = vld [vmem:[%s38 + $0x70] sm:$0xff]
  %v54 = vld [vmem:[%s38 + $0x78] sm:$0xff]
  %v57 = vrot.slane %v20, 1
  %vm58 = vcmask 1041409
  %v59 = vsel %vm58, %v21, %v57
  %61 = vmatprep.subr.mxu0 0.0
  %62 = vmatpush1.msra.mxu0 %v39
  %63 = vmatprep.subr.mxu0 0.0
  %64 = vmatpush1.msra.mxu0 %v40
  %65 = vmatprep.subr.mxu0 0.0
  %66 = vmatpush1.msra.mxu0 %v41
  %67 = vmatprep.subr.mxu0 0.0
  %68 = vmatpush1.msra.mxu0 %v42
  %69 = vmatprep.subr.mxu0 0.0
  %70 = vmatpush1.msra.mxu0 %v43
  %71 = vmatprep.subr.mxu0 0.0
  %72 = vmatpush1.msra.mxu0 %v44
  %73 = vmatprep.subr.mxu0 0.0
  %74 = vmatpush1.msra.mxu0 %v45
  %75 = vmatprep.subr.mxu0 0.0
  %76 = vmatpush1.msra.mxu0 %v46
  %77 = vmatprep.subr.mxu0 0.0
  %78 = vmatpush1.msra.mxu0 %v47
  %79 = vmatprep.subr.mxu0 0.0
  %80 = vmatpush1.msra.mxu0 %v48
  %81 = vmatprep.subr.mxu0 0.0
  %82 = vmatpush1.msra.mxu0 %v49
  %83 = vmatprep.subr.mxu0 0.0
  %84 = vmatpush1.msra.mxu0 %v50
  %85 = vmatprep.subr.mxu0 0.0
  %86 = vmatpush1.msra.mxu0 %v51
  %87 = vmatprep.subr.mxu0 0.0
  %88 = vmatpush1.msra.mxu0 %v52
  %89 = vmatprep.subr.mxu0 0.0
  %90 = vmatpush1.msra.mxu0 %v53
  %91 = vmatprep.subr.mxu0 0.0
  %92 = vmatpush1.msra.mxu0 %v54
  %93 = vmatprep.subr.mxu0 0.0
  %94 = vmatpush1.msra.mxu0 0.0
  %95 = vmatprep.subr.mxu0 0.0
  %96 = vmatpush1.msra.mxu0 0.0
  %97 = vmatprep.subr.mxu0 0.0
  %98 = vmatpush1.msra.mxu0 0.0
  %99 = vmatprep.subr.mxu0 0.0
  %100 = vmatpush1.msra.mxu0 0.0
  %101 = vmatprep.subr.mxu0 0.0
  %102 = vmatpush1.msra.mxu0 0.0
  %103 = vmatprep.subr.mxu0 0.0
  %104 = vmatpush1.msra.mxu0 0.0
  %105 = vmatprep.subr.mxu0 0.0
  %106 = vmatpush1.msra.mxu0 0.0
  %107 = vmatprep.subr.mxu0 0.0
  %108 = vmatpush1.msra.mxu0 0.0
  %109 = vmatprep.subr.mxu0 0.0
  %110 = vmatpush1.msra.mxu0 0.0
  %111 = vmatprep.subr.mxu0 0.0
  %112 = vmatpush1.msra.mxu0 0.0
  %113 = vmatprep.subr.mxu0 0.0
  %114 = vmatpush1.msra.mxu0 0.0
  %115 = vmatprep.subr.mxu0 0.0
  %116 = vmatpush1.msra.mxu0 0.0
  %117 = vmatprep.subr.mxu0 0.0
  %118 = vmatpush1.msra.mxu0 0.0
  %119 = vmatprep.subr.mxu0 0.0
  %120 = vmatpush1.msra.mxu0 0.0
  %121 = vmatprep.subr.mxu0 0.0
  %122 = vmatpush1.msra.mxu0 0.0
  %123 = vmatprep.subr.mxu0 0.0
  %124 = vmatpush1.msra.mxu0 0.0
  %125 = vmatprep.mubr.f32.mxu0 0.0
  %126 = vmatmul.mubr.f32.gmra.mrb[0].mxu0 %v59
  %v127 = vpop.f32.mrb[0].mxu0
  %v128 = vadd.f32 0.0, %v127
  %v129 = vpop.f32.mrb[0].mxu0
  %130 = vdwg.mxu0
  %v131 = vrot.slane %v21, 7
  %v132 = vsel %vm58, %v131, %v20
  %134 = vmatprep.subr.mxu0 0.0
  %135 = vmatpush1.msra.mxu0 %v22
  %136 = vmatprep.subr.mxu0 0.0
  %137 = vmatpush1.msra.mxu0 %v23
  %138 = vmatprep.subr.mxu0 0.0
  %139 = vmatpush1.msra.mxu0 %v24
  %140 = vmatprep.subr.mxu0 0.0
  %141 = vmatpush1.msra.mxu0 %v25
  %142 = vmatprep.subr.mxu0 0.0
  %143 = vmatpush1.msra.mxu0 %v26
  %144 = vmatprep.subr.mxu0 0.0
  %145 = vmatpush1.msra.mxu0 %v27
  %146 = vmatprep.subr.mxu0 0.0
  %147 = vmatpush1.msra.mxu0 %v28
  %148 = vmatprep.subr.mxu0 0.0
  %149 = vmatpush1.msra.mxu0 %v29
  %150 = vmatprep.subr.mxu0 0.0
  %151 = vmatpush1.msra.mxu0 %v30
  %152 = vmatprep.subr.mxu0 0.0
  %153 = vmatpush1.msra.mxu0 %v31
  %154 = vmatprep.subr.mxu0 0.0
  %155 = vmatpush1.msra.mxu0 %v32
  %156 = vmatprep.subr.mxu0 0.0
  %157 = vmatpush1.msra.mxu0 %v33
  %158 = vmatprep.subr.mxu0 0.0
  %159 = vmatpush1.msra.mxu0 %v34
  %160 = vmatprep.subr.mxu0 0.0
  %161 = vmatpush1.msra.mxu0 %v35
  %162 = vmatprep.subr.mxu0 0.0
  %163 = vmatpush1.msra.mxu0 %v36
  %164 = vmatprep.subr.mxu0 0.0
  %165 = vmatpush1.msra.mxu0 %v37
  %166 = vmatprep.subr.mxu0 0.0
  %167 = vmatpush1.msra.mxu0 0.0
  %168 = vmatprep.subr.mxu0 0.0
  %169 = vmatpush1.msra.mxu0 0.0
  %170 = vmatprep.subr.mxu0 0.0
  %171 = vmatpush1.msra.mxu0 0.0
  %172 = vmatprep.subr.mxu0 0.0
  %173 = vmatpush1.msra.mxu0 0.0
  %174 = vmatprep.subr.mxu0 0.0
  %175 = vmatpush1.msra.mxu0 0.0
  %176 = vmatprep.subr.mxu0 0.0
  %177 = vmatpush1.msra.mxu0 0.0
  %178 = vmatprep.subr.mxu0 0.0
  %179 = vmatpush1.msra.mxu0 0.0
  %180 = vmatprep.subr.mxu0 0.0
  %181 = vmatpush1.msra.mxu0 0.0
  %182 = vmatprep.subr.mxu0 0.0
  %183 = vmatpush1.msra.mxu0 0.0
  %184 = vmatprep.subr.mxu0 0.0
  %185 = vmatpush1.msra.mxu0 0.0
  %186 = vmatprep.subr.mxu0 0.0
  %187 = vmatpush1.msra.mxu0 0.0
  %188 = vmatprep.subr.mxu0 0.0
  %189 = vmatpush1.msra.mxu0 0.0
  %190 = vmatprep.subr.mxu0 0.0
  %191 = vmatpush1.msra.mxu0 0.0
  %192 = vmatprep.subr.mxu0 0.0
  %193 = vmatpush1.msra.mxu0 0.0
  %194 = vmatprep.subr.mxu0 0.0
  %195 = vmatpush1.msra.mxu0 0.0
  %196 = vmatprep.subr.mxu0 0.0
  %197 = vmatpush1.msra.mxu0 0.0
  %198 = vmatprep.mubr.f32.mxu0 0.0
  %199 = vmatmul.mubr.f32.gmra.mrb[0].mxu0 %v132
  %v200 = vpop.f32.mrb[0].mxu0
  %v201 = vadd.f32 %v128, %v200
  %v202 = vpop.f32.mrb[0].mxu0
  %203 = vdwg.mxu0
  %s204 = scalar_lea.vmem %s1, 256
  %v205 = vld [vmem:[%s204] sm:$0xff]
  %v206 = vld [vmem:[%s204 + $0x8] sm:$0xff]
  %v207 = vld [vmem:[%s204 + $0x10] sm:$0xff]
  %v208 = vld [vmem:[%s204 + $0x18] sm:$0xff]
  %v209 = vld [vmem:[%s204 + $0x20] sm:$0xff]
  %v210 = vld [vmem:[%s204 + $0x28] sm:$0xff]
  %v211 = vld [vmem:[%s204 + $0x30] sm:$0xff]
  %v212 = vld [vmem:[%s204 + $0x38] sm:$0xff]
  %v213 = vld [vmem:[%s204 + $0x40] sm:$0xff]
  %v214 = vld [vmem:[%s204 + $0x48] sm:$0xff]
  %v215 = vld [vmem:[%s204 + $0x50] sm:$0xff]
  %v216 = vld [vmem:[%s204 + $0x58] sm:$0xff]
  %v217 = vld [vmem:[%s204 + $0x60] sm:$0xff]
  %v218 = vld [vmem:[%s204 + $0x68] sm:$0xff]
  %v219 = vld [vmem:[%s204 + $0x70] sm:$0xff]
  %v220 = vld [vmem:[%s204 + $0x78] sm:$0xff]
  %v221 = vrot.slane %v20, 2
  %v222 = vrot.slane %v21, 1
  %v223 = vsel %vm58, %v222, %v221
  %225 = vmatprep.subr.mxu0 0.0
  %226 = vmatpush1.msra.mxu0 %v205
  %227 = vmatprep.subr.mxu0 0.0
  %228 = vmatpush1.msra.mxu0 %v206
  %229 = vmatprep.subr.mxu0 0.0
  %230 = vmatpush1.msra.mxu0 %v207
  %231 = vmatprep.subr.mxu0 0.0
  %232 = vmatpush1.msra.mxu0 %v208
  %233 = vmatprep.subr.mxu0 0.0
  %234 = vmatpush1.msra.mxu0 %v209
  %235 = vmatprep.subr.mxu0 0.0
  %236 = vmatpush1.msra.mxu0 %v210
  %237 = vmatprep.subr.mxu0 0.0
  %238 = vmatpush1.msra.mxu0 %v211
  %239 = vmatprep.subr.mxu0 0.0
  %240 = vmatpush1.msra.mxu0 %v212
  %241 = vmatprep.subr.mxu0 0.0
  %242 = vmatpush1.msra.mxu0 %v213
  %243 = vmatprep.subr.mxu0 0.0
  %244 = vmatpush1.msra.mxu0 %v214
  %245 = vmatprep.subr.mxu0 0.0
  %246 = vmatpush1.msra.mxu0 %v215
  %247 = vmatprep.subr.mxu0 0.0
  %248 = vmatpush1.msra.mxu0 %v216
  %249 = vmatprep.subr.mxu0 0.0
  %250 = vmatpush1.msra.mxu0 %v217
  %251 = vmatprep.subr.mxu0 0.0
  %252 = vmatpush1.msra.mxu0 %v218
  %253 = vmatprep.subr.mxu0 0.0
  %254 = vmatpush1.msra.mxu0 %v219
  %255 = vmatprep.subr.mxu0 0.0
  %256 = vmatpush1.msra.mxu0 %v220
  %257 = vmatprep.subr.mxu0 0.0
  %258 = vmatpush1.msra.mxu0 0.0
  %259 = vmatprep.subr.mxu0 0.0
  %260 = vmatpush1.msra.mxu0 0.0
  %261 = vmatprep.subr.mxu0 0.0
  %262 = vmatpush1.msra.mxu0 0.0
  %263 = vmatprep.subr.mxu0 0.0
  %264 = vmatpush1.msra.mxu0 0.0
  %265 = vmatprep.subr.mxu0 0.0
  %266 = vmatpush1.msra.mxu0 0.0
  %267 = vmatprep.subr.mxu0 0.0
  %268 = vmatpush1.msra.mxu0 0.0
  %269 = vmatprep.subr.mxu0 0.0
  %270 = vmatpush1.msra.mxu0 0.0
  %271 = vmatprep.subr.mxu0 0.0
  %272 = vmatpush1.msra.mxu0 0.0
  %273 = vmatprep.subr.mxu0 0.0
  %274 = vmatpush1.msra.mxu0 0.0
  %275 = vmatprep.subr.mxu0 0.0
  %276 = vmatpush1.msra.mxu0 0.0
  %277 = vmatprep.subr.mxu0 0.0
  %278 = vmatpush1.msra.mxu0 0.0
  %279 = vmatprep.subr.mxu0 0.0
  %280 = vmatpush1.msra.mxu0 0.0
  %281 = vmatprep.subr.mxu0 0.0
  %282 = vmatpush1.msra.mxu0 0.0
  %283 = vmatprep.subr.mxu0 0.0
  %284 = vmatpush1.msra.mxu0 0.0
  %285 = vmatprep.subr.mxu0 0.0
  %286 = vmatpush1.msra.mxu0 0.0
  %287 = vmatprep.subr.mxu0 0.0
  %288 = vmatpush1.msra.mxu0 0.0
  %289 = vmatprep.mubr.f32.mxu0 0.0
  %290 = vmatmul.mubr.f32.gmra.mrb[0].mxu0 %v223
  %v291 = vpop.f32.mrb[0].mxu0
  %v292 = vadd.f32 0.0, %v291
  %v293 = vpop.f32.mrb[0].mxu0
  %294 = vdwg.mxu0
  %v295 = vadd.f32 %v201, %v292
  %v296 = vld [vmem:[%s2] sm:$0x1]
  %v298 = vlaneseq
  %v299 = vshrl.u32 %v298, 7
  %v300 = vsub.s32 0, %v299
  %v301 = vrot.slane %v296, %v300
  %v303 = vadd.f32 %v295, %v301
  %vm304 = vcmask 1041408
  %v305 = vsel %vm304, %v303, 0.0
  %v306 = vrot.slane %v305, 4
  %v307 = vadd.f32 %v305, %v306
  %v308 = vrot.slane %v307, 2
  %v309 = vadd.f32 %v307, %v308
  %v310 = vrot.slane %v309, 1
  %v311 = vadd.f32 %v309, %v310
  %v312 = vrcp.pop 2.0
  %v313 = vmul.f32 %v311, %v312
  %v314 = vsub.f32 %v303, %v313
  %v315 = vmul.f32 %v314, %v314
  %v316 = vsel %vm304, %v315, 0.0
  %v317 = vrot.slane %v316, 4
  %v318 = vadd.f32 %v316, %v317
  %v319 = vrot.slane %v318, 2
  %v320 = vadd.f32 %v318, %v319
  %v321 = vrot.slane %v320, 1
  %v322 = vadd.f32 %v320, %v321
  %v323 = vmul.f32 %v322, %v312
  %v324 = vadd.f32 %v323, 1e-05
  %v325 = vrsqrt.pop %v324
  %v326 = vmul.f32 %v314, %v325
  %v327 = vld [vmem:[%s3] sm:$0x1]
  %v329 = vlaneseq
  %v330 = vshrl.u32 %v329, 7
  %v331 = vsub.s32 0, %v330
  %v332 = vrot.slane %v327, %v331
  %v334 = vmul.f32 %v326, %v332
  %v335 = vld [vmem:[%s4] sm:$0x1]
  %v337 = vlaneseq
  %v338 = vshrl.u32 %v337, 7
  %v339 = vsub.s32 0, %v338
  %v340 = vrot.slane %v335, %v339
  %v342 = vadd.f32 %v334, %v340
  %v343 = vmax.f32 %v342, 0.0
  %v346 = vunpack.c.l.s4 1966171168
  %v347 = vunpack.c.0.s8 %v346
  %v348 = vlaneseq
  %v349 = vshrl.u32 %v348, 7
  %v350 = vsub.s32 %v347, %v349
  %v351 = vrot.slane %v343, %v350
  %v352 = vcombine.high %v351, %v351
  %v354 = vunpack.c.l.s4 1966171168
  %v355 = vunpack.c.0.s8 %v354
  %v356 = vlaneseq
  %v357 = vshrl.u32 %v356, 7
  %v358 = vsub.s32 %v355, %v357
  %v359 = vrot.slane %v351, %v358
  %v361 = vunpack.c.l.s4 1966171168
  %v362 = vunpack.c.0.s8 %v361
  %v363 = vlaneseq
  %v364 = vshrl.u32 %v363, 7
  %v365 = vsub.s32 %v362, %v364
  %v366 = vrot.slane %v352, %v365
  %369 = vst [vmem:[%s5] sm:$0x1] %v359
  %370 = vst [vmem:[%s5 + $0x1] sm:$0x1] %v366
  // Predicated region
  $region22: #{_lambda_.41} parent=0 // pred_check
    _
  $region23: #{_lambda_.41} parent=0 // pred_check_branch
    %372 = sbr.rel (0) target = $region25
  $region24: #{_lambda_.41} parent=0 // pred_region
    _
  $region25: #{_lambda_.41} parent=0 // pred_fallthru
    _
  // Predicated region
  $region26: #{_lambda_.41} parent=0 // pred_check
    _
  $region27: #{_lambda_.41} parent=0 // pred_check_branch
    %374 = sbr.rel (0) target = $region29
  $region28: #{_lambda_.41} parent=0 // pred_region
    _
  $region29: #{_lambda_.41} parent=0 // pred_fallthru
    _

</llo_original>
